<compile_context>
chip_gen: v7x
topology: tpu7x:2x2x1
jax: 0.10.0
libtpu: 0.0.40
codegen_flags: <defaults>
</compile_context>

<pallas_src>
import jax
import jax.numpy as jnp
from jax.experimental import pallas as pl
from jax.experimental.pallas import tpu as pltpu

LATENT_DIM = 50
NEG_SLOPE = 0.01   # F.leaky_relu default negative_slope
TILE_B = 256       # default batch rows per grid step (fills 256-wide MXU)


def _round_up(x, m):
    return (x + m - 1) // m * m


def _leaky_relu(x):
    return jnp.where(x >= 0, x, NEG_SLOPE * x)


def _softplus(x):
    # numerically stable softplus == torch F.softplus (beta=1)
    return jnp.maximum(x, 0.0) + jnp.log1p(jnp.exp(-jnp.abs(x)))


def simple_ae_kernel(x_ref,
                     we1_ref, be1_ref, we2_ref, be2_ref, we3_ref, be3_ref,
                     wd1_ref, bd1_ref, wd2_ref, bd2_ref, wd3_ref, bd3_ref,
                     o_ref):
    def dense(h, w, b_ref):
        # MXU matmul with f32 accumulation, f32 bias add
        return jnp.dot(h, w, preferred_element_type=jnp.float32) + b_ref[...]

    x = x_ref[...]                                                # (tile_b, n_in_pad) bf16

    # ---- Encoder: n_in_pad -> 1024 -> 128 -> 128(latent) ----
    h = _leaky_relu(dense(x, we1_ref[...], be1_ref)).astype(jnp.bfloat16)   # big: bf16 matmul
    h = _leaky_relu(dense(h, we2_ref[...], be2_ref))                        # 128-wide, keep f32
    z = dense(h, we3_ref[...].astype(jnp.float32), be3_ref)                 # latent in f32 (tiny)

    # ---- Decoder: 128(latent) -> 128 -> 1024 -> n_in_pad ----
    h = _leaky_relu(dense(z, wd1_ref[...].astype(jnp.float32), bd1_ref))    # 128-wide f32 (tiny)
    h = _leaky_relu(dense(h.astype(jnp.bfloat16), wd2_ref[...], bd2_ref)).astype(jnp.bfloat16)
    y = dense(h, wd3_ref[...], bd3_ref)                                     # f32

    o_ref[...] = _softplus(y).astype(o_ref.dtype)


def simple_ae_forward(x, params, *, tile_b=TILE_B):
    """x: (B, n_inputs) float32.  params: 12 padded arrays (bf16 W, f32 b)."""
    B, n_in = x.shape
    n_in_pad = params[0].shape[0]              # padded input width (enc1 rows)
    assert params[-2].shape[1] == n_in_pad     # dec3 cols == padded n_inputs

    # Clamp tile to the (sublane-aligned) batch for small-batch calls.
    tile_b = min(tile_b, _round_up(max(B, 1), 8))
    b_pad = _round_up(max(B, 1), tile_b)

    # Skip the padding copy when the input is already aligned.
    if b_pad == B and n_in_pad == n_in:
        xp = x.astype(jnp.bfloat16)
    else:
        xp = (jnp.zeros((b_pad, n_in_pad), jnp.bfloat16)
              .at[:B, :n_in].set(x.astype(jnp.bfloat16)))

    grid = (b_pad // tile_b,)
    x_spec = pl.BlockSpec((tile_b, n_in_pad), lambda i: (i, 0))
    out_spec = pl.BlockSpec((tile_b, n_in_pad), lambda i: (i, 0))

    # Advisory cost estimate for XLA's scheduler.
    flops = 2 * b_pad * sum(int(params[2 * j].shape[0]) * int(params[2 * j].shape[1])
                            for j in range(6))
    param_bytes = sum(int(p.size) * p.dtype.itemsize for p in params)
    bytes_accessed = param_bytes + int(xp.size) * 2 + b_pad * n_in_pad * 4
    cost = pl.CostEstimate(flops=flops,
                           transcendentals=2 * b_pad * n_in_pad,   # softplus: exp + log1p
                           bytes_accessed=bytes_accessed)

    # VMEM budget: single-buffered params + double-buffered x (bf16) and out
    # (f32) tiles + headroom for in-kernel intermediates.
    est_vmem = (param_bytes
                + 2 * tile_b * n_in_pad * 2
                + 2 * tile_b * n_in_pad * 4
                + (8 << 20))
    vmem_limit = int(min(max(est_vmem, 32 << 20), 96 << 20))

    def call(pipeline_mode):
        def const_spec(arr):
            # Full-array block, constant index map -> resident across grid steps.
            if pipeline_mode is None:
                return pl.BlockSpec(arr.shape, lambda i: (0, 0))
            return pl.BlockSpec(arr.shape, lambda i: (0, 0),
                                pipeline_mode=pipeline_mode)

        return pl.pallas_call(
            simple_ae_kernel,
            out_shape=jax.ShapeDtypeStruct((b_pad, n_in_pad), jnp.float32),
            grid=grid,
            in_specs=[x_spec] + [const_spec(p) for p in params],
            out_specs=out_spec,
            compiler_params=pltpu.CompilerParams(
                dimension_semantics=("parallel",),
                vmem_limit_bytes=vmem_limit,
            ),
            cost_estimate=cost,
        )(xp, *params)

    try:
        # Single-buffer the constant-index weights/biases (halves param VMEM).
        out = call(pl.Buffered(1))
    except Exception:
        # Fallback: default double-buffering if single-buffering is rejected.
        out = call(None)

    return out[:B, :n_in]


def init_linear(key, fan_in, fan_out, fan_in_pad, fan_out_pad):
    """nn.Linear-style init (uniform +-1/sqrt(fan_in)), zero-padded to
    (fan_in_pad, fan_out_pad).  W returned pre-transposed in bf16; b in f32."""
    kw, kb = jax.random.split(key)
    bound = 1.0 / (float(fan_in) ** 0.5)
    w = jax.random.uniform(kw, (fan_in, fan_out), jnp.float32, -bound, bound)
    b = jax.random.uniform(kb, (1, fan_out), jnp.float32, -bound, bound)
    w_pad = jnp.zeros((fan_in_pad, fan_out_pad), jnp.float32).at[:fan_in, :fan_out].set(w)
    b_pad = jnp.zeros((1, fan_out_pad), jnp.float32).at[:, :fan_out].set(b)
    return w_pad.astype(jnp.bfloat16), b_pad


def init_simple_ae_params(key, n_inputs):
    n_in_pad = _round_up(n_inputs, 128)
    lat_pad = _round_up(LATENT_DIM, 128)   # 50   -> 128
    h100_pad = _round_up(100, 128)         # 100  -> 128
    h1k_pad = _round_up(1000, 128)         # 1000 -> 1024
    dims = [
        (n_inputs, 1000, n_in_pad, h1k_pad),     # enc1
        (1000, 100, h1k_pad, h100_pad),          # enc2
        (100, LATENT_DIM, h100_pad, lat_pad),    # enc3
        (LATENT_DIM, 100, lat_pad, h100_pad),    # dec1
        (100, 1000, h100_pad, h1k_pad),          # dec2
        (1000, n_inputs, h1k_pad, n_in_pad),     # dec3
    ]
    keys = jax.random.split(key, len(dims))
    params = []
    for k, (fi, fo, fip, fop) in zip(keys, dims):
        w, b = init_linear(k, fi, fo, fip, fop)
        params.extend([w, b])
    return params


def reference_forward(x, params):
    """Pure-JAX reference mirroring the kernel's mixed bf16/f32 math."""
    (we1, be1, we2, be2, we3, be3, wd1, bd1, wd2, bd2, wd3, bd3) = params
    B, n_in = x.shape
    n_in_pad = we1.shape[0]
    xp = jnp.zeros((B, n_in_pad), jnp.bfloat16).at[:, :n_in].set(x.astype(jnp.bfloat16))

    def dense(h, w, b):
        return jnp.dot(h, w, preferred_element_type=jnp.float32) + b

    h = _leaky_relu(dense(xp, we1, be1)).astype(jnp.bfloat16)
    h = _leaky_relu(dense(h, we2, be2))
    z = dense(h, we3.astype(jnp.float32), be3)
    h = _leaky_relu(dense(z, wd1.astype(jnp.float32), bd1))
    h = _leaky_relu(dense(h.astype(jnp.bfloat16), wd2, bd2)).astype(jnp.bfloat16)
    y = dense(h, wd3, bd3)
    return _softplus(y)[:, :n_in]


if __name__ == "__main__":
    key = jax.random.PRNGKey(0)
    k_x, k_p = jax.random.split(key)

    B = 2
    N_INPUTS = 256  # small, deterministic synthetic input size

    x = jax.random.normal(k_x, (B, N_INPUTS), dtype=jnp.float32)
    params = init_simple_ae_params(k_p, N_INPUTS)

    out = simple_ae_forward(x, params)
    out = jax.block_until_ready(out)

    ref = reference_forward(x, params)
    assert out.shape == (B, N_INPUTS)
    assert jnp.allclose(out, ref, atol=2e-2, rtol=2e-2), (
        float(jnp.max(jnp.abs(out - ref))))

    print("KERNEL_OK")
</pallas_src>

<mosaic_0001>
module attributes {stable_mosaic.version = 11 : i64} {
  func.func @simple_ae_kernel(%arg0: i32, %arg1: memref<8x256xbf16, #tpu.memory_space<vmem>>, %arg2: memref<256x1024xbf16, #tpu.memory_space<vmem>>, %arg3: memref<1x1024xf32, #tpu.memory_space<vmem>>, %arg4: memref<1024x128xbf16, #tpu.memory_space<vmem>>, %arg5: memref<1x128xf32, #tpu.memory_space<vmem>>, %arg6: memref<128x128xbf16, #tpu.memory_space<vmem>>, %arg7: memref<1x128xf32, #tpu.memory_space<vmem>>, %arg8: memref<128x128xbf16, #tpu.memory_space<vmem>>, %arg9: memref<1x128xf32, #tpu.memory_space<vmem>>, %arg10: memref<128x1024xbf16, #tpu.memory_space<vmem>>, %arg11: memref<1x1024xf32, #tpu.memory_space<vmem>>, %arg12: memref<1024x256xbf16, #tpu.memory_space<vmem>>, %arg13: memref<1x256xf32, #tpu.memory_space<vmem>>, %arg14: memref<8x256xf32, #tpu.memory_space<vmem>>) attributes {dimension_semantics = [#tpu.dimension_semantics<parallel>], iteration_bounds = array<i64: 1>, scalar_prefetch = 0 : i64, scratch_operands = 0 : i64, tpu.core_type = #tpu.core_type<tc>, window_params = [{transform_indices = @transform_0, window_bounds = array<i64: 8, 256>}, {pipeline_mode = #tpu.pipeline_mode<synchronous>, transform_indices = @transform_1, window_bounds = array<i64: 256, 1024>}, {pipeline_mode = #tpu.pipeline_mode<synchronous>, transform_indices = @transform_2, window_bounds = array<i64: 1, 1024>}, {pipeline_mode = #tpu.pipeline_mode<synchronous>, transform_indices = @transform_3, window_bounds = array<i64: 1024, 128>}, {pipeline_mode = #tpu.pipeline_mode<synchronous>, transform_indices = @transform_4, window_bounds = array<i64: 1, 128>}, {pipeline_mode = #tpu.pipeline_mode<synchronous>, transform_indices = @transform_5, window_bounds = array<i64: 128, 128>}, {pipeline_mode = #tpu.pipeline_mode<synchronous>, transform_indices = @transform_6, window_bounds = array<i64: 1, 128>}, {pipeline_mode = #tpu.pipeline_mode<synchronous>, transform_indices = @transform_7, window_bounds = array<i64: 128, 128>}, {pipeline_mode = #tpu.pipeline_mode<synchronous>, transform_indices = @transform_8, window_bounds = array<i64: 1, 128>}, {pipeline_mode = #tpu.pipeline_mode<synchronous>, transform_indices = @transform_9, window_bounds = array<i64: 128, 1024>}, {pipeline_mode = #tpu.pipeline_mode<synchronous>, transform_indices = @transform_10, window_bounds = array<i64: 1, 1024>}, {pipeline_mode = #tpu.pipeline_mode<synchronous>, transform_indices = @transform_11, window_bounds = array<i64: 1024, 256>}, {pipeline_mode = #tpu.pipeline_mode<synchronous>, transform_indices = @transform_12, window_bounds = array<i64: 1, 256>}, {transform_indices = @transform_13, window_bounds = array<i64: 8, 256>}]} {
    %c0 = arith.constant 0 : index
    %c0_0 = arith.constant 0 : index
    %0 = vector.load %arg1[%c0, %c0_0] : memref<8x256xbf16, #tpu.memory_space<vmem>>, vector<8x256xbf16>
    %c0_1 = arith.constant 0 : index
    %c0_2 = arith.constant 0 : index
    %1 = vector.load %arg2[%c0_1, %c0_2] : memref<256x1024xbf16, #tpu.memory_space<vmem>>, vector<256x1024xbf16>
    %cst = arith.constant dense<0.000000e+00> : vector<8x1024xf32>
    %2 = tpu.matmul %0, %1, %cst {dimension_numbers = #tpu.dot_dimension_numbers<[1], [0], [0], [1], [0, 0, 1, 1], [], []>} : vector<8x256xbf16>, vector<256x1024xbf16>, vector<8x1024xf32> -> vector<8x1024xf32>
    %c0_3 = arith.constant 0 : index
    %c0_4 = arith.constant 0 : index
    %3 = vector.load %arg3[%c0_3, %c0_4] : memref<1x1024xf32, #tpu.memory_space<vmem>>, vector<1x1024xf32>
    %4 = vector.broadcast %3 : vector<1x1024xf32> to vector<8x1024xf32>
    %5 = arith.addf %2, %4 : vector<8x1024xf32>
    %cst_5 = arith.constant 0.000000e+00 : f32
    %6 = vector.broadcast %cst_5 : f32 to vector<8x1024xf32>
    %7 = arith.cmpf oge, %5, %6 : vector<8x1024xf32>
    %cst_6 = arith.constant 0.00999999977 : f32
    %8 = vector.broadcast %cst_6 : f32 to vector<8x1024xf32>
    %9 = arith.mulf %8, %5 : vector<8x1024xf32>
    %10 = arith.select %7, %5, %9 : vector<8x1024xi1>, vector<8x1024xf32>
    %11 = arith.truncf %10 : vector<8x1024xf32> to vector<8x1024xbf16>
    %c0_7 = arith.constant 0 : index
    %c0_8 = arith.constant 0 : index
    %12 = vector.load %arg4[%c0_7, %c0_8] : memref<1024x128xbf16, #tpu.memory_space<vmem>>, vector<1024x128xbf16>
    %cst_9 = arith.constant dense<0.000000e+00> : vector<8x128xf32>
    %13 = tpu.matmul %11, %12, %cst_9 {dimension_numbers = #tpu.dot_dimension_numbers<[1], [0], [0], [1], [0, 0, 1, 1], [], []>} : vector<8x1024xbf16>, vector<1024x128xbf16>, vector<8x128xf32> -> vector<8x128xf32>
    %c0_10 = arith.constant 0 : index
    %c0_11 = arith.constant 0 : index
    %14 = vector.load %arg5[%c0_10, %c0_11] : memref<1x128xf32, #tpu.memory_space<vmem>>, vector<1x128xf32>
    %15 = vector.broadcast %14 : vector<1x128xf32> to vector<8x128xf32>
    %16 = arith.addf %13, %15 : vector<8x128xf32>
    %cst_12 = arith.constant 0.000000e+00 : f32
    %17 = vector.broadcast %cst_12 : f32 to vector<8x128xf32>
    %18 = arith.cmpf oge, %16, %17 : vector<8x128xf32>
    %cst_13 = arith.constant 0.00999999977 : f32
    %19 = vector.broadcast %cst_13 : f32 to vector<8x128xf32>
    %20 = arith.mulf %19, %16 : vector<8x128xf32>
    %21 = arith.select %18, %16, %20 : vector<8x128xi1>, vector<8x128xf32>
    %c0_14 = arith.constant 0 : index
    %c0_15 = arith.constant 0 : index
    %22 = vector.load %arg6[%c0_14, %c0_15] : memref<128x128xbf16, #tpu.memory_space<vmem>>, vector<128x128xbf16>
    %23 = arith.extf %22 : vector<128x128xbf16> to vector<128x128xf32>
    %cst_16 = arith.constant dense<0.000000e+00> : vector<8x128xf32>
    %24 = tpu.matmul %21, %23, %cst_16 {dimension_numbers = #tpu.dot_dimension_numbers<[1], [0], [0], [1], [0, 0, 1, 1], [], []>} : vector<8x128xf32>, vector<128x128xf32>, vector<8x128xf32> -> vector<8x128xf32>
    %c0_17 = arith.constant 0 : index
    %c0_18 = arith.constant 0 : index
    %25 = vector.load %arg7[%c0_17, %c0_18] : memref<1x128xf32, #tpu.memory_space<vmem>>, vector<1x128xf32>
    %26 = vector.broadcast %25 : vector<1x128xf32> to vector<8x128xf32>
    %27 = arith.addf %24, %26 : vector<8x128xf32>
    %c0_19 = arith.constant 0 : index
    %c0_20 = arith.constant 0 : index
    %28 = vector.load %arg8[%c0_19, %c0_20] : memref<128x128xbf16, #tpu.memory_space<vmem>>, vector<128x128xbf16>
    %29 = arith.extf %28 : vector<128x128xbf16> to vector<128x128xf32>
    %cst_21 = arith.constant dense<0.000000e+00> : vector<8x128xf32>
    %30 = tpu.matmul %27, %29, %cst_21 {dimension_numbers = #tpu.dot_dimension_numbers<[1], [0], [0], [1], [0, 0, 1, 1], [], []>} : vector<8x128xf32>, vector<128x128xf32>, vector<8x128xf32> -> vector<8x128xf32>
    %c0_22 = arith.constant 0 : index
    %c0_23 = arith.constant 0 : index
    %31 = vector.load %arg9[%c0_22, %c0_23] : memref<1x128xf32, #tpu.memory_space<vmem>>, vector<1x128xf32>
    %32 = vector.broadcast %31 : vector<1x128xf32> to vector<8x128xf32>
    %33 = arith.addf %30, %32 : vector<8x128xf32>
    %cst_24 = arith.constant 0.000000e+00 : f32
    %34 = vector.broadcast %cst_24 : f32 to vector<8x128xf32>
    %35 = arith.cmpf oge, %33, %34 : vector<8x128xf32>
    %cst_25 = arith.constant 0.00999999977 : f32
    %36 = vector.broadcast %cst_25 : f32 to vector<8x128xf32>
    %37 = arith.mulf %36, %33 : vector<8x128xf32>
    %38 = arith.select %35, %33, %37 : vector<8x128xi1>, vector<8x128xf32>
    %39 = arith.truncf %38 : vector<8x128xf32> to vector<8x128xbf16>
    %c0_26 = arith.constant 0 : index
    %c0_27 = arith.constant 0 : index
    %40 = vector.load %arg10[%c0_26, %c0_27] : memref<128x1024xbf16, #tpu.memory_space<vmem>>, vector<128x1024xbf16>
    %cst_28 = arith.constant dense<0.000000e+00> : vector<8x1024xf32>
    %41 = tpu.matmul %39, %40, %cst_28 {dimension_numbers = #tpu.dot_dimension_numbers<[1], [0], [0], [1], [0, 0, 1, 1], [], []>} : vector<8x128xbf16>, vector<128x1024xbf16>, vector<8x1024xf32> -> vector<8x1024xf32>
    %c0_29 = arith.constant 0 : index
    %c0_30 = arith.constant 0 : index
    %42 = vector.load %arg11[%c0_29, %c0_30] : memref<1x1024xf32, #tpu.memory_space<vmem>>, vector<1x1024xf32>
    %43 = vector.broadcast %42 : vector<1x1024xf32> to vector<8x1024xf32>
    %44 = arith.addf %41, %43 : vector<8x1024xf32>
    %cst_31 = arith.constant 0.000000e+00 : f32
    %45 = vector.broadcast %cst_31 : f32 to vector<8x1024xf32>
    %46 = arith.cmpf oge, %44, %45 : vector<8x1024xf32>
    %cst_32 = arith.constant 0.00999999977 : f32
    %47 = vector.broadcast %cst_32 : f32 to vector<8x1024xf32>
    %48 = arith.mulf %47, %44 : vector<8x1024xf32>
    %49 = arith.select %46, %44, %48 : vector<8x1024xi1>, vector<8x1024xf32>
    %50 = arith.truncf %49 : vector<8x1024xf32> to vector<8x1024xbf16>
    %c0_33 = arith.constant 0 : index
    %c0_34 = arith.constant 0 : index
    %51 = vector.load %arg12[%c0_33, %c0_34] : memref<1024x256xbf16, #tpu.memory_space<vmem>>, vector<1024x256xbf16>
    %cst_35 = arith.constant dense<0.000000e+00> : vector<8x256xf32>
    %52 = tpu.matmul %50, %51, %cst_35 {dimension_numbers = #tpu.dot_dimension_numbers<[1], [0], [0], [1], [0, 0, 1, 1], [], []>} : vector<8x1024xbf16>, vector<1024x256xbf16>, vector<8x256xf32> -> vector<8x256xf32>
    %c0_36 = arith.constant 0 : index
    %c0_37 = arith.constant 0 : index
    %53 = vector.load %arg13[%c0_36, %c0_37] : memref<1x256xf32, #tpu.memory_space<vmem>>, vector<1x256xf32>
    %54 = vector.broadcast %53 : vector<1x256xf32> to vector<8x256xf32>
    %55 = arith.addf %52, %54 : vector<8x256xf32>
    %cst_38 = arith.constant 0.000000e+00 : f32
    %56 = vector.broadcast %cst_38 : f32 to vector<8x256xf32>
    %57 = arith.maximumf %55, %56 : vector<8x256xf32>
    %58 = math.absf %55 : vector<8x256xf32>
    %cst_39 = arith.constant 0.000000e+00 : f32
    %59 = vector.broadcast %cst_39 : f32 to vector<8x256xf32>
    %60 = arith.subf %59, %58 : vector<8x256xf32>
    %61 = math.exp %60 : vector<8x256xf32>
    %62 = math.log1p %61 : vector<8x256xf32>
    %63 = arith.addf %57, %62 : vector<8x256xf32>
    %c0_40 = arith.constant 0 : index
    %c0_41 = arith.constant 0 : index
    %64 = vector.load %arg14[%c0_40, %c0_41] : memref<8x256xf32, #tpu.memory_space<vmem>>, vector<8x256xf32>
    tpu.vector_store %arg14[%c0_40, %c0_41], %63 {strides = array<i32>} : memref<8x256xf32, #tpu.memory_space<vmem>>, vector<8x256xf32>,
    return
  }
  func.func @transform_0(%arg0: i32) -> (i32, i32) {
    %c0_i32 = arith.constant 0 : i32
    %c0_i32_0 = arith.constant 0 : i32
    return %arg0, %c0_i32 : i32, i32
  }
  func.func @transform_1(%arg0: i32) -> (i32, i32) {
    %c0_i32 = arith.constant 0 : i32
    %c0_i32_0 = arith.constant 0 : i32
    %c0_i32_1 = arith.constant 0 : i32
    return %c0_i32, %c0_i32_0 : i32, i32
  }
  func.func @transform_2(%arg0: i32) -> (i32, i32) {
    %c0_i32 = arith.constant 0 : i32
    %c0_i32_0 = arith.constant 0 : i32
    %c0_i32_1 = arith.constant 0 : i32
    return %c0_i32, %c0_i32_0 : i32, i32
  }
  func.func @transform_3(%arg0: i32) -> (i32, i32) {
    %c0_i32 = arith.constant 0 : i32
    %c0_i32_0 = arith.constant 0 : i32
    %c0_i32_1 = arith.constant 0 : i32
    return %c0_i32, %c0_i32_0 : i32, i32
  }
  func.func @transform_4(%arg0: i32) -> (i32, i32) {
    %c0_i32 = arith.constant 0 : i32
    %c0_i32_0 = arith.constant 0 : i32
    %c0_i32_1 = arith.constant 0 : i32
    return %c0_i32, %c0_i32_0 : i32, i32
  }
  func.func @transform_5(%arg0: i32) -> (i32, i32) {
    %c0_i32 = arith.constant 0 : i32
    %c0_i32_0 = arith.constant 0 : i32
    %c0_i32_1 = arith.constant 0 : i32
    return %c0_i32, %c0_i32_0 : i32, i32
  }
  func.func @transform_6(%arg0: i32) -> (i32, i32) {
    %c0_i32 = arith.constant 0 : i32
    %c0_i32_0 = arith.constant 0 : i32
    %c0_i32_1 = arith.constant 0 : i32
    return %c0_i32, %c0_i32_0 : i32, i32
  }
  func.func @transform_7(%arg0: i32) -> (i32, i32) {
    %c0_i32 = arith.constant 0 : i32
    %c0_i32_0 = arith.constant 0 : i32
    %c0_i32_1 = arith.constant 0 : i32
    return %c0_i32, %c0_i32_0 : i32, i32
  }
  func.func @transform_8(%arg0: i32) -> (i32, i32) {
    %c0_i32 = arith.constant 0 : i32
    %c0_i32_0 = arith.constant 0 : i32
    %c0_i32_1 = arith.constant 0 : i32
    return %c0_i32, %c0_i32_0 : i32, i32
  }
  func.func @transform_9(%arg0: i32) -> (i32, i32) {
    %c0_i32 = arith.constant 0 : i32
    %c0_i32_0 = arith.constant 0 : i32
    %c0_i32_1 = arith.constant 0 : i32
    return %c0_i32, %c0_i32_0 : i32, i32
  }
  func.func @transform_10(%arg0: i32) -> (i32, i32) {
    %c0_i32 = arith.constant 0 : i32
    %c0_i32_0 = arith.constant 0 : i32
    %c0_i32_1 = arith.constant 0 : i32
    return %c0_i32, %c0_i32_0 : i32, i32
  }
  func.func @transform_11(%arg0: i32) -> (i32, i32) {
    %c0_i32 = arith.constant 0 : i32
    %c0_i32_0 = arith.constant 0 : i32
    %c0_i32_1 = arith.constant 0 : i32
    return %c0_i32, %c0_i32_0 : i32, i32
  }
  func.func @transform_12(%arg0: i32) -> (i32, i32) {
    %c0_i32 = arith.constant 0 : i32
    %c0_i32_0 = arith.constant 0 : i32
    %c0_i32_1 = arith.constant 0 : i32
    return %c0_i32, %c0_i32_0 : i32, i32
  }
  func.func @transform_13(%arg0: i32) -> (i32, i32) {
    %c0_i32 = arith.constant 0 : i32
    %c0_i32_0 = arith.constant 0 : i32
    return %arg0, %c0_i32 : i32, i32
  }
}

module attributes {stable_mosaic.version = 11 : i64} {
  func.func @simple_ae_kernel(%arg0: i32, %arg1: memref<8x256xbf16, #tpu.memory_space<vmem>>, %arg2: memref<256x1024xbf16, #tpu.memory_space<vmem>>, %arg3: memref<1x1024xf32, #tpu.memory_space<vmem>>, %arg4: memref<1024x128xbf16, #tpu.memory_space<vmem>>, %arg5: memref<1x128xf32, #tpu.memory_space<vmem>>, %arg6: memref<128x128xbf16, #tpu.memory_space<vmem>>, %arg7: memref<1x128xf32, #tpu.memory_space<vmem>>, %arg8: memref<128x128xbf16, #tpu.memory_space<vmem>>, %arg9: memref<1x128xf32, #tpu.memory_space<vmem>>, %arg10: memref<128x1024xbf16, #tpu.memory_space<vmem>>, %arg11: memref<1x1024xf32, #tpu.memory_space<vmem>>, %arg12: memref<1024x256xbf16, #tpu.memory_space<vmem>>, %arg13: memref<1x256xf32, #tpu.memory_space<vmem>>, %arg14: memref<8x256xf32, #tpu.memory_space<vmem>>) attributes {dimension_semantics = [#tpu.dimension_semantics<parallel>], iteration_bounds = array<i64: 1>, scalar_prefetch = 0 : i64, scratch_operands = 0 : i64, tpu.core_type = #tpu.core_type<tc>, window_params = [{transform_indices = @transform_0, window_bounds = array<i64: 8, 256>}, {pipeline_mode = #tpu.pipeline_mode<synchronous>, transform_indices = @transform_1, window_bounds = array<i64: 256, 1024>}, {pipeline_mode = #tpu.pipeline_mode<synchronous>, transform_indices = @transform_2, window_bounds = array<i64: 1, 1024>}, {pipeline_mode = #tpu.pipeline_mode<synchronous>, transform_indices = @transform_3, window_bounds = array<i64: 1024, 128>}, {pipeline_mode = #tpu.pipeline_mode<synchronous>, transform_indices = @transform_4, window_bounds = array<i64: 1, 128>}, {pipeline_mode = #tpu.pipeline_mode<synchronous>, transform_indices = @transform_5, window_bounds = array<i64: 128, 128>}, {pipeline_mode = #tpu.pipeline_mode<synchronous>, transform_indices = @transform_6, window_bounds = array<i64: 1, 128>}, {pipeline_mode = #tpu.pipeline_mode<synchronous>, transform_indices = @transform_7, window_bounds = array<i64: 128, 128>}, {pipeline_mode = #tpu.pipeline_mode<synchronous>, transform_indices = @transform_8, window_bounds = array<i64: 1, 128>}, {pipeline_mode = #tpu.pipeline_mode<synchronous>, transform_indices = @transform_9, window_bounds = array<i64: 128, 1024>}, {pipeline_mode = #tpu.pipeline_mode<synchronous>, transform_indices = @transform_10, window_bounds = array<i64: 1, 1024>}, {pipeline_mode = #tpu.pipeline_mode<synchronous>, transform_indices = @transform_11, window_bounds = array<i64: 1024, 256>}, {pipeline_mode = #tpu.pipeline_mode<synchronous>, transform_indices = @transform_12, window_bounds = array<i64: 1, 256>}, {transform_indices = @transform_13, window_bounds = array<i64: 8, 256>}]} {
    %c0 = arith.constant 0 : index
    %c0_0 = arith.constant 0 : index
    %0 = vector.load %arg1[%c0, %c0_0] : memref<8x256xbf16, #tpu.memory_space<vmem>>, vector<8x256xbf16>
    %c0_1 = arith.constant 0 : index
    %c0_2 = arith.constant 0 : index
    %1 = vector.load %arg2[%c0_1, %c0_2] : memref<256x1024xbf16, #tpu.memory_space<vmem>>, vector<256x1024xbf16>
    %cst = arith.constant dense<0.000000e+00> : vector<8x1024xf32>
    %2 = tpu.matmul %0, %1, %cst {dimension_numbers = #tpu.dot_dimension_numbers<[1], [0], [0], [1], [0, 0, 1, 1], [], []>} : vector<8x256xbf16>, vector<256x1024xbf16>, vector<8x1024xf32> -> vector<8x1024xf32>
    %c0_3 = arith.constant 0 : index
    %c0_4 = arith.constant 0 : index
    %3 = vector.load %arg3[%c0_3, %c0_4] : memref<1x1024xf32, #tpu.memory_space<vmem>>, vector<1x1024xf32>
    %4 = vector.broadcast %3 : vector<1x1024xf32> to vector<8x1024xf32>
    %5 = arith.addf %2, %4 : vector<8x1024xf32>
    %cst_5 = arith.constant 0.000000e+00 : f32
    %6 = vector.broadcast %cst_5 : f32 to vector<8x1024xf32>
    %7 = arith.cmpf oge, %5, %6 : vector<8x1024xf32>
    %cst_6 = arith.constant 0.00999999977 : f32
    %8 = vector.broadcast %cst_6 : f32 to vector<8x1024xf32>
    %9 = arith.mulf %8, %5 : vector<8x1024xf32>
    %10 = arith.select %7, %5, %9 : vector<8x1024xi1>, vector<8x1024xf32>
    %11 = arith.truncf %10 : vector<8x1024xf32> to vector<8x1024xbf16>
    %c0_7 = arith.constant 0 : index
    %c0_8 = arith.constant 0 : index
    %12 = vector.load %arg4[%c0_7, %c0_8] : memref<1024x128xbf16, #tpu.memory_space<vmem>>, vector<1024x128xbf16>
    %cst_9 = arith.constant dense<0.000000e+00> : vector<8x128xf32>
    %13 = tpu.matmul %11, %12, %cst_9 {dimension_numbers = #tpu.dot_dimension_numbers<[1], [0], [0], [1], [0, 0, 1, 1], [], []>} : vector<8x1024xbf16>, vector<1024x128xbf16>, vector<8x128xf32> -> vector<8x128xf32>
    %c0_10 = arith.constant 0 : index
    %c0_11 = arith.constant 0 : index
    %14 = vector.load %arg5[%c0_10, %c0_11] : memref<1x128xf32, #tpu.memory_space<vmem>>, vector<1x128xf32>
    %15 = vector.broadcast %14 : vector<1x128xf32> to vector<8x128xf32>
    %16 = arith.addf %13, %15 : vector<8x128xf32>
    %cst_12 = arith.constant 0.000000e+00 : f32
    %17 = vector.broadcast %cst_12 : f32 to vector<8x128xf32>
    %18 = arith.cmpf oge, %16, %17 : vector<8x128xf32>
    %cst_13 = arith.constant 0.00999999977 : f32
    %19 = vector.broadcast %cst_13 : f32 to vector<8x128xf32>
    %20 = arith.mulf %19, %16 : vector<8x128xf32>
    %21 = arith.select %18, %16, %20 : vector<8x128xi1>, vector<8x128xf32>
    %c0_14 = arith.constant 0 : index
    %c0_15 = arith.constant 0 : index
    %22 = vector.load %arg6[%c0_14, %c0_15] : memref<128x128xbf16, #tpu.memory_space<vmem>>, vector<128x128xbf16>
    %23 = arith.extf %22 : vector<128x128xbf16> to vector<128x128xf32>
    %cst_16 = arith.constant dense<0.000000e+00> : vector<8x128xf32>
    %24 = tpu.matmul %21, %23, %cst_16 {dimension_numbers = #tpu.dot_dimension_numbers<[1], [0], [0], [1], [0, 0, 1, 1], [], []>} : vector<8x128xf32>, vector<128x128xf32>, vector<8x128xf32> -> vector<8x128xf32>
    %c0_17 = arith.constant 0 : index
    %c0_18 = arith.constant 0 : index
    %25 = vector.load %arg7[%c0_17, %c0_18] : memref<1x128xf32, #tpu.memory_space<vmem>>, vector<1x128xf32>
    %26 = vector.broadcast %25 : vector<1x128xf32> to vector<8x128xf32>
    %27 = arith.addf %24, %26 : vector<8x128xf32>
    %c0_19 = arith.constant 0 : index
    %c0_20 = arith.constant 0 : index
    %28 = vector.load %arg8[%c0_19, %c0_20] : memref<128x128xbf16, #tpu.memory_space<vmem>>, vector<128x128xbf16>
    %29 = arith.extf %28 : vector<128x128xbf16> to vector<128x128xf32>
    %cst_21 = arith.constant dense<0.000000e+00> : vector<8x128xf32>
    %30 = tpu.matmul %27, %29, %cst_21 {dimension_numbers = #tpu.dot_dimension_numbers<[1], [0], [0], [1], [0, 0, 1, 1], [], []>} : vector<8x128xf32>, vector<128x128xf32>, vector<8x128xf32> -> vector<8x128xf32>
    %c0_22 = arith.constant 0 : index
    %c0_23 = arith.constant 0 : index
    %31 = vector.load %arg9[%c0_22, %c0_23] : memref<1x128xf32, #tpu.memory_space<vmem>>, vector<1x128xf32>
    %32 = vector.broadcast %31 : vector<1x128xf32> to vector<8x128xf32>
    %33 = arith.addf %30, %32 : vector<8x128xf32>
    %cst_24 = arith.constant 0.000000e+00 : f32
    %34 = vector.broadcast %cst_24 : f32 to vector<8x128xf32>
    %35 = arith.cmpf oge, %33, %34 : vector<8x128xf32>
    %cst_25 = arith.constant 0.00999999977 : f32
    %36 = vector.broadcast %cst_25 : f32 to vector<8x128xf32>
    %37 = arith.mulf %36, %33 : vector<8x128xf32>
    %38 = arith.select %35, %33, %37 : vector<8x128xi1>, vector<8x128xf32>
    %39 = arith.truncf %38 : vector<8x128xf32> to vector<8x128xbf16>
    %c0_26 = arith.constant 0 : index
    %c0_27 = arith.constant 0 : index
    %40 = vector.load %arg10[%c0_26, %c0_27] : memref<128x1024xbf16, #tpu.memory_space<vmem>>, vector<128x1024xbf16>
    %cst_28 = arith.constant dense<0.000000e+00> : vector<8x1024xf32>
    %41 = tpu.matmul %39, %40, %cst_28 {dimension_numbers = #tpu.dot_dimension_numbers<[1], [0], [0], [1], [0, 0, 1, 1], [], []>} : vector<8x128xbf16>, vector<128x1024xbf16>, vector<8x1024xf32> -> vector<8x1024xf32>
    %c0_29 = arith.constant 0 : index
    %c0_30 = arith.constant 0 : index
    %42 = vector.load %arg11[%c0_29, %c0_30] : memref<1x1024xf32, #tpu.memory_space<vmem>>, vector<1x1024xf32>
    %43 = vector.broadcast %42 : vector<1x1024xf32> to vector<8x1024xf32>
    %44 = arith.addf %41, %43 : vector<8x1024xf32>
    %cst_31 = arith.constant 0.000000e+00 : f32
    %45 = vector.broadcast %cst_31 : f32 to vector<8x1024xf32>
    %46 = arith.cmpf oge, %44, %45 : vector<8x1024xf32>
    %cst_32 = arith.constant 0.00999999977 : f32
    %47 = vector.broadcast %cst_32 : f32 to vector<8x1024xf32>
    %48 = arith.mulf %47, %44 : vector<8x1024xf32>
    %49 = arith.select %46, %44, %48 : vector<8x1024xi1>, vector<8x1024xf32>
    %50 = arith.truncf %49 : vector<8x1024xf32> to vector<8x1024xbf16>
    %c0_33 = arith.constant 0 : index
    %c0_34 = arith.constant 0 : index
    %51 = vector.load %arg12[%c0_33, %c0_34] : memref<1024x256xbf16, #tpu.memory_space<vmem>>, vector<1024x256xbf16>
    %cst_35 = arith.constant dense<0.000000e+00> : vector<8x256xf32>
    %52 = tpu.matmul %50, %51, %cst_35 {dimension_numbers = #tpu.dot_dimension_numbers<[1], [0], [0], [1], [0, 0, 1, 1], [], []>} : vector<8x1024xbf16>, vector<1024x256xbf16>, vector<8x256xf32> -> vector<8x256xf32>
    %c0_36 = arith.constant 0 : index
    %c0_37 = arith.constant 0 : index
    %53 = vector.load %arg13[%c0_36, %c0_37] : memref<1x256xf32, #tpu.memory_space<vmem>>, vector<1x256xf32>
    %54 = vector.broadcast %53 : vector<1x256xf32> to vector<8x256xf32>
    %55 = arith.addf %52, %54 : vector<8x256xf32>
    %cst_38 = arith.constant 0.000000e+00 : f32
    %56 = vector.broadcast %cst_38 : f32 to vector<8x256xf32>
    %57 = arith.maximumf %55, %56 : vector<8x256xf32>
    %58 = math.absf %55 : vector<8x256xf32>
    %cst_39 = arith.constant 0.000000e+00 : f32
    %59 = vector.broadcast %cst_39 : f32 to vector<8x256xf32>
    %60 = arith.subf %59, %58 : vector<8x256xf32>
    %61 = math.exp %60 : vector<8x256xf32>
    %62 = math.log1p %61 : vector<8x256xf32>
    %63 = arith.addf %57, %62 : vector<8x256xf32>
    %c0_40 = arith.constant 0 : index
    %c0_41 = arith.constant 0 : index
    %64 = vector.load %arg14[%c0_40, %c0_41] : memref<8x256xf32, #tpu.memory_space<vmem>>, vector<8x256xf32>
    tpu.vector_store %arg14[%c0_40, %c0_41], %63 {strides = array<i32>} : memref<8x256xf32, #tpu.memory_space<vmem>>, vector<8x256xf32>,
    return
  }
  func.func @transform_0(%arg0: i32) -> (i32, i32) {
    %c0_i32 = arith.constant 0 : i32
    %c0_i32_0 = arith.constant 0 : i32
    return %arg0, %c0_i32 : i32, i32
  }
  func.func @transform_1(%arg0: i32) -> (i32, i32) {
    %c0_i32 = arith.constant 0 : i32
    %c0_i32_0 = arith.constant 0 : i32
    %c0_i32_1 = arith.constant 0 : i32
    return %c0_i32, %c0_i32_0 : i32, i32
  }
  func.func @transform_2(%arg0: i32) -> (i32, i32) {
    %c0_i32 = arith.constant 0 : i32
    %c0_i32_0 = arith.constant 0 : i32
    %c0_i32_1 = arith.constant 0 : i32
    return %c0_i32, %c0_i32_0 : i32, i32
  }
  func.func @transform_3(%arg0: i32) -> (i32, i32) {
    %c0_i32 = arith.constant 0 : i32
    %c0_i32_0 = arith.constant 0 : i32
    %c0_i32_1 = arith.constant 0 : i32
    return %c0_i32, %c0_i32_0 : i32, i32
  }
  func.func @transform_4(%arg0: i32) -> (i32, i32) {
    %c0_i32 = arith.constant 0 : i32
    %c0_i32_0 = arith.constant 0 : i32
    %c0_i32_1 = arith.constant 0 : i32
    return %c0_i32, %c0_i32_0 : i32, i32
  }
  func.func @transform_5(%arg0: i32) -> (i32, i32) {
    %c0_i32 = arith.constant 0 : i32
    %c0_i32_0 = arith.constant 0 : i32
    %c0_i32_1 = arith.constant 0 : i32
    return %c0_i32, %c0_i32_0 : i32, i32
  }
  func.func @transform_6(%arg0: i32) -> (i32, i32) {
    %c0_i32 = arith.constant 0 : i32
    %c0_i32_0 = arith.constant 0 : i32
    %c0_i32_1 = arith.constant 0 : i32
    return %c0_i32, %c0_i32_0 : i32, i32
  }
  func.func @transform_7(%arg0: i32) -> (i32, i32) {
    %c0_i32 = arith.constant 0 : i32
    %c0_i32_0 = arith.constant 0 : i32
    %c0_i32_1 = arith.constant 0 : i32
    return %c0_i32, %c0_i32_0 : i32, i32
  }
  func.func @transform_8(%arg0: i32) -> (i32, i32) {
    %c0_i32 = arith.constant 0 : i32
    %c0_i32_0 = arith.constant 0 : i32
    %c0_i32_1 = arith.constant 0 : i32
    return %c0_i32, %c0_i32_0 : i32, i32
  }
  func.func @transform_9(%arg0: i32) -> (i32, i32) {
    %c0_i32 = arith.constant 0 : i32
    %c0_i32_0 = arith.constant 0 : i32
    %c0_i32_1 = arith.constant 0 : i32
    return %c0_i32, %c0_i32_0 : i32, i32
  }
  func.func @transform_10(%arg0: i32) -> (i32, i32) {
    %c0_i32 = arith.constant 0 : i32
    %c0_i32_0 = arith.constant 0 : i32
    %c0_i32_1 = arith.constant 0 : i32
    return %c0_i32, %c0_i32_0 : i32, i32
  }
  func.func @transform_11(%arg0: i32) -> (i32, i32) {
    %c0_i32 = arith.constant 0 : i32
    %c0_i32_0 = arith.constant 0 : i32
    %c0_i32_1 = arith.constant 0 : i32
    return %c0_i32, %c0_i32_0 : i32, i32
  }
  func.func @transform_12(%arg0: i32) -> (i32, i32) {
    %c0_i32 = arith.constant 0 : i32
    %c0_i32_0 = arith.constant 0 : i32
    %c0_i32_1 = arith.constant 0 : i32
    return %c0_i32, %c0_i32_0 : i32, i32
  }
  func.func @transform_13(%arg0: i32) -> (i32, i32) {
    %c0_i32 = arith.constant 0 : i32
    %c0_i32_0 = arith.constant 0 : i32
    return %arg0, %c0_i32 : i32, i32
  }
}

</mosaic_0001>

<llo_original>
// kernel: tpu_custom_call.1
$region0: #{tpu_custom_call.1}
  #allocation0 [shape = 'u32[]', space=smem, size = 0x4, offset = 0x4, fixed_abs, tag = 'smem constant byte address 0x4 - core index']
  #allocation1 [shape = 'u32[144,128]{1,0:T(1,128)}', space=vmem, size = 0x12000, scoped, tag = 'internal scratch']
  %s0 = inlined_call_operand.hbm [shape: bf16[8,256], index: 0, kind: input, shape index: {}]
  %s1 = inlined_call_operand.hbm [shape: bf16[256,1024], index: 1, kind: input, shape index: {}]
  %s2 = inlined_call_operand.hbm [shape: f32[1,1024], index: 2, kind: input, shape index: {}]
  %s3 = inlined_call_operand.hbm [shape: bf16[1024,128], index: 3, kind: input, shape index: {}]
  %s4 = inlined_call_operand.vmem [shape: f32[1,128], index: 4, kind: input, shape index: {}]
  %s5 = inlined_call_operand.hbm [shape: bf16[128,128], index: 5, kind: input, shape index: {}]
  %s6 = inlined_call_operand.vmem [shape: f32[1,128], index: 6, kind: input, shape index: {}]
  %s7 = inlined_call_operand.hbm [shape: bf16[128,128], index: 7, kind: input, shape index: {}]
  %s8 = inlined_call_operand.vmem [shape: f32[1,128], index: 8, kind: input, shape index: {}]
  %s9 = inlined_call_operand.hbm [shape: bf16[128,1024], index: 9, kind: input, shape index: {}]
  %s10 = inlined_call_operand.vmem [shape: f32[1,1024], index: 10, kind: input, shape index: {}]
  %s11 = inlined_call_operand.hbm [shape: bf16[1024,256], index: 11, kind: input, shape index: {}]
  %s12 = inlined_call_operand.vmem [shape: f32[1,256], index: 12, kind: input, shape index: {}]
  %s13 = inlined_call_operand.hbm [shape: f32[8,256], index: 13, kind: output, shape index: {}]
  %s14 = sld [smem:[#allocation0]]
  $region94: #{tpu_custom_call.1} parent=0
    _
  %s16 = ssub.s32 1, %s14
  %s17 = scalar_select 0, %s16, %s14
  $region1: #{tpu_custom_call.1} parent=0
    #allocation2 [shape = 'u8[4096]{0}', space=vmem, size = 0x1000, scoped, tag = 'input window, operand 0, single buffered']
    #allocation3 [shape = 's32[1]{0}', space=sflag, size = 0x4, scoped, tag = 'scoped memory for tpu_custom_call.1']
    #allocation4 [shape = 's32[1]{0}', space=sflag, size = 0x4, scoped, tag = 'scoped memory for tpu_custom_call.1']
    #allocation5 [shape = 'u8[524288]{0}', space=vmem, size = 0x80000, scoped, tag = 'input window, operand 1, single buffered']
    #allocation6 [shape = 's32[1]{0}', space=sflag, size = 0x4, scoped, tag = 'scoped memory for tpu_custom_call.1']
    #allocation7 [shape = 'u8[4096]{0}', space=vmem, size = 0x1000, scoped, tag = 'input window, operand 2, single buffered']
    #allocation8 [shape = 'u8[262144]{0}', space=vmem, size = 0x40000, scoped, tag = 'input window, operand 3, single buffered']
    #allocation9 [shape = 's32[1]{0}', space=sflag, size = 0x4, scoped, tag = 'scoped memory for tpu_custom_call.1']
    #allocation10 [shape = 'u8[32768]{0}', space=vmem, size = 0x8000, scoped, tag = 'input window, operand 5, single buffered']
    #allocation11 [shape = 'u8[32768]{0}', space=vmem, size = 0x8000, scoped, tag = 'input window, operand 7, single buffered']
    #allocation12 [shape = 's32[1]{0}', space=sflag, size = 0x4, scoped, tag = 'scoped memory for tpu_custom_call.1']
    #allocation13 [shape = 'u8[262144]{0}', space=vmem, size = 0x40000, scoped, tag = 'input window, operand 9, single buffered']
    #allocation14 [shape = 'u8[524288]{0}', space=vmem, size = 0x80000, scoped, tag = 'input window, operand 11, single buffered']
    #allocation15 [shape = 's32[1]{0}', space=sflag, size = 0x4, scoped, tag = 'scoped memory for tpu_custom_call.1']
    #allocation16 [shape = 'u8[8192]{0}', space=vmem, size = 0x2000, scoped, tag = 'output window, operand 0, single buffered']
    %18 = vsyncpa [#allocation3], 0
    %19 = vsyncpa [#allocation6], 0
    %20 = vsyncpa [#allocation9], 0
    %21 = vsyncpa [#allocation12], 0
    %22 = vsyncpa [#allocation15], 0
    %23 = vsyncpa [#allocation4], 0
    // Predicated region
    $region2: #{tpu_custom_call.1} parent=1 // pred_check
      _
    $region3: #{tpu_custom_call.1} parent=1 // pred_check_branch
      %25 = sbr.rel (0) target = $region5
    $region4: #{tpu_custom_call.1} parent=1 // pred_region
      %s27 = ssub.s32 128, 128
      %28 = vsyncadd [#allocation3], %s27
      %s30 = sshll.u32 [#allocation2], 4
      %s31 = int_to_ptr.vmem [resolvable:$true] %s30
      %33 = dma.hbm_to_vmem [thread:$0]  %s0, 128, %s31, [#allocation3]
    $region5: #{tpu_custom_call.1} parent=1 // pred_fallthru
      _
    // Predicated region
    $region6: #{tpu_custom_call.1} parent=1 // pred_check
      _
    $region7: #{tpu_custom_call.1} parent=1 // pred_check_branch
      %35 = sbr.rel (0) target = $region9
    $region8: #{tpu_custom_call.1} parent=1 // pred_region
      %s37 = ssub.s32 16384, 16384
      %38 = vsyncadd [#allocation6], %s37
      %s39 = sshll.u32 [#allocation5], 4
      %s40 = int_to_ptr.vmem [resolvable:$true] %s39
      %45 = dma.hbm_to_vmem [thread:$0]  %s1, 16384, %s40, [#allocation6], 512, 512, 32
    $region9: #{tpu_custom_call.1} parent=1 // pred_fallthru
      _
    // Predicated region
    $region10: #{tpu_custom_call.1} parent=1 // pred_check
      _
    $region11: #{tpu_custom_call.1} parent=1 // pred_check_branch
      %47 = sbr.rel (0) target = $region13
    $region12: #{tpu_custom_call.1} parent=1 // pred_region
      %s49 = ssub.s32 128, 128
      %50 = vsyncadd [#allocation6], %s49
      %s52 = sshll.u32 [#allocation7], 4
      %s53 = int_to_ptr.vmem [resolvable:$true] %s52
      %55 = dma.hbm_to_vmem [thread:$0]  %s2, 128, %s53, [#allocation6]
    $region13: #{tpu_custom_call.1} parent=1 // pred_fallthru
      _
    // Predicated region
    $region14: #{tpu_custom_call.1} parent=1 // pred_check
      _
    $region15: #{tpu_custom_call.1} parent=1 // pred_check_branch
      %57 = sbr.rel (0) target = $region17
    $region16: #{tpu_custom_call.1} parent=1 // pred_region
      %s59 = ssub.s32 8192, 8192
      %60 = vsyncadd [#allocation9], %s59
      %s61 = sshll.u32 [#allocation8], 4
      %s62 = int_to_ptr.vmem [resolvable:$true] %s61
      %67 = dma.hbm_to_vmem [thread:$0]  %s3, 8192, %s62, [#allocation9], 64, 64, 4
    $region17: #{tpu_custom_call.1} parent=1 // pred_fallthru
      _
    // Predicated region
    $region18: #{tpu_custom_call.1} parent=1 // pred_check
      _
    $region19: #{tpu_custom_call.1} parent=1 // pred_check_branch
      %69 = sbr.rel (0) target = $region21
    $region20: #{tpu_custom_call.1} parent=1 // pred_region
      _
    $region21: #{tpu_custom_call.1} parent=1 // pred_fallthru
      _
    // Predicated region
    $region22: #{tpu_custom_call.1} parent=1 // pred_check
      _
    $region23: #{tpu_custom_call.1} parent=1 // pred_check_branch
      %71 = sbr.rel (0) target = $region25
    $region24: #{tpu_custom_call.1} parent=1 // pred_region
      %s73 = ssub.s32 1024, 1024
      %74 = vsyncadd [#allocation9], %s73
      %s75 = sshll.u32 [#allocation10], 4
      %s76 = int_to_ptr.vmem [resolvable:$true] %s75
      %81 = dma.hbm_to_vmem [thread:$0]  %s5, 1024, %s76, [#allocation9], 64, 64, 4
    $region25: #{tpu_custom_call.1} parent=1 // pred_fallthru
      _
    // Predicated region
    $region26: #{tpu_custom_call.1} parent=1 // pred_check
      _
    $region27: #{tpu_custom_call.1} parent=1 // pred_check_branch
      %83 = sbr.rel (0) target = $region29
    $region28: #{tpu_custom_call.1} parent=1 // pred_region
      _
    $region29: #{tpu_custom_call.1} parent=1 // pred_fallthru
      _
    // Predicated region
    $region30: #{tpu_custom_call.1} parent=1 // pred_check
      _
    $region31: #{tpu_custom_call.1} parent=1 // pred_check_branch
      %85 = sbr.rel (0) target = $region33
    $region32: #{tpu_custom_call.1} parent=1 // pred_region
      %s87 = ssub.s32 1024, 1024
      %88 = vsyncadd [#allocation12], %s87
      %s89 = sshll.u32 [#allocation11], 4
      %s90 = int_to_ptr.vmem [resolvable:$true] %s89
      %95 = dma.hbm_to_vmem [thread:$0]  %s7, 1024, %s90, [#allocation12], 64, 64, 4
    $region33: #{tpu_custom_call.1} parent=1 // pred_fallthru
      _
    // Predicated region
    $region34: #{tpu_custom_call.1} parent=1 // pred_check
      _
    $region35: #{tpu_custom_call.1} parent=1 // pred_check_branch
      %97 = sbr.rel (0) target = $region37
    $region36: #{tpu_custom_call.1} parent=1 // pred_region
      _
    $region37: #{tpu_custom_call.1} parent=1 // pred_fallthru
      _
    // Predicated region
    $region38: #{tpu_custom_call.1} parent=1 // pred_check
      _
    $region39: #{tpu_custom_call.1} parent=1 // pred_check_branch
      %99 = sbr.rel (0) target = $region41
    $region40: #{tpu_custom_call.1} parent=1 // pred_region
      %s101 = ssub.s32 8192, 8192
      %102 = vsyncadd [#allocation12], %s101
      %s103 = sshll.u32 [#allocation13], 4
      %s104 = int_to_ptr.vmem [resolvable:$true] %s103
      %109 = dma.hbm_to_vmem [thread:$0]  %s9, 8192, %s104, [#allocation12], 512, 512, 32
    $region41: #{tpu_custom_call.1} parent=1 // pred_fallthru
      _
    // Predicated region
    $region42: #{tpu_custom_call.1} parent=1 // pred_check
      _
    $region43: #{tpu_custom_call.1} parent=1 // pred_check_branch
      %111 = sbr.rel (0) target = $region45
    $region44: #{tpu_custom_call.1} parent=1 // pred_region
      _
    $region45: #{tpu_custom_call.1} parent=1 // pred_fallthru
      _
    // Predicated region
    $region46: #{tpu_custom_call.1} parent=1 // pred_check
      _
    $region47: #{tpu_custom_call.1} parent=1 // pred_check_branch
      %113 = sbr.rel (0) target = $region49
    $region48: #{tpu_custom_call.1} parent=1 // pred_region
      %s115 = ssub.s32 16384, 16384
      %116 = vsyncadd [#allocation15], %s115
      %s117 = sshll.u32 [#allocation14], 4
      %s118 = int_to_ptr.vmem [resolvable:$true] %s117
      %123 = dma.hbm_to_vmem [thread:$0]  %s11, 16384, %s118, [#allocation15], 128, 128, 8
    $region49: #{tpu_custom_call.1} parent=1 // pred_fallthru
      _
    // Predicated region
    $region50: #{tpu_custom_call.1} parent=1 // pred_check
      _
    $region51: #{tpu_custom_call.1} parent=1 // pred_check_branch
      %125 = sbr.rel (0) target = $region53
    $region52: #{tpu_custom_call.1} parent=1 // pred_region
      _
    $region53: #{tpu_custom_call.1} parent=1 // pred_fallthru
      _
    // Predicated region
    $region54: #{tpu_custom_call.1} parent=1 // pred_check
      _
    $region55: #{tpu_custom_call.1} parent=1 // pred_check_branch
      %127 = sbr.rel (0) target = $region57
    $region56: #{tpu_custom_call.1} parent=1 // pred_region
      %128 = dma.done [#allocation3], 128
    $region57: #{tpu_custom_call.1} parent=1 // pred_fallthru
      _
    // Predicated region
    $region58: #{tpu_custom_call.1} parent=1 // pred_check
      _
    $region59: #{tpu_custom_call.1} parent=1 // pred_check_branch
      %130 = sbr.rel (0) target = $region61
    $region60: #{tpu_custom_call.1} parent=1 // pred_region
      %131 = dma.done [#allocation6], 16384
    $region61: #{tpu_custom_call.1} parent=1 // pred_fallthru
      _
    // Predicated region
    $region62: #{tpu_custom_call.1} parent=1 // pred_check
      _
    $region63: #{tpu_custom_call.1} parent=1 // pred_check_branch
      %133 = sbr.rel (0) target = $region65
    $region64: #{tpu_custom_call.1} parent=1 // pred_region
      %134 = dma.done [#allocation6], 128
    $region65: #{tpu_custom_call.1} parent=1 // pred_fallthru
      _
    // Predicated region
    $region66: #{tpu_custom_call.1} parent=1 // pred_check
      _
    $region67: #{tpu_custom_call.1} parent=1 // pred_check_branch
      %136 = sbr.rel (0) target = $region69
    $region68: #{tpu_custom_call.1} parent=1 // pred_region
      %137 = dma.done [#allocation9], 8192
    $region69: #{tpu_custom_call.1} parent=1 // pred_fallthru
      _
    // Predicated region
    $region70: #{tpu_custom_call.1} parent=1 // pred_check
      _
    $region71: #{tpu_custom_call.1} parent=1 // pred_check_branch
      %139 = sbr.rel (0) target = $region73
    $region72: #{tpu_custom_call.1} parent=1 // pred_region
      %140 = dma.done [#allocation9], 1024
    $region73: #{tpu_custom_call.1} parent=1 // pred_fallthru
      _
    // Predicated region
    $region74: #{tpu_custom_call.1} parent=1 // pred_check
      _
    $region75: #{tpu_custom_call.1} parent=1 // pred_check_branch
      %142 = sbr.rel (0) target = $region77
    $region76: #{tpu_custom_call.1} parent=1 // pred_region
      %143 = dma.done [#allocation12], 1024
    $region77: #{tpu_custom_call.1} parent=1 // pred_fallthru
      _
    // Predicated region
    $region78: #{tpu_custom_call.1} parent=1 // pred_check
      _
    $region79: #{tpu_custom_call.1} parent=1 // pred_check_branch
      %145 = sbr.rel (0) target = $region81
    $region80: #{tpu_custom_call.1} parent=1 // pred_region
      %146 = dma.done [#allocation12], 8192
    $region81: #{tpu_custom_call.1} parent=1 // pred_fallthru
      _
    // Predicated region
    $region82: #{tpu_custom_call.1} parent=1 // pred_check
      _
    $region83: #{tpu_custom_call.1} parent=1 // pred_check_branch
      %148 = sbr.rel (0) target = $region85
    $region84: #{tpu_custom_call.1} parent=1 // pred_region
      %149 = dma.done [#allocation15], 16384
    $region85: #{tpu_custom_call.1} parent=1 // pred_fallthru
      _
    %v151 = vld [vmem:[#allocation2] sm:$0xff]
    %v152 = vld [vmem:[#allocation5] sm:$0xff]
    %v153 = vld [vmem:[#allocation5 + $0x8] sm:$0xff]
    %v154 = vld [vmem:[#allocation5 + $0x10] sm:$0xff]
    %v155 = vld [vmem:[#allocation5 + $0x18] sm:$0xff]
    %v156 = vld [vmem:[#allocation5 + $0x20] sm:$0xff]
    %v157 = vld [vmem:[#allocation5 + $0x28] sm:$0xff]
    %v158 = vld [vmem:[#allocation5 + $0x30] sm:$0xff]
    %v159 = vld [vmem:[#allocation5 + $0x38] sm:$0xff]
    %v160 = vld [vmem:[#allocation5 + $0x40] sm:$0xff]
    %v161 = vld [vmem:[#allocation5 + $0x48] sm:$0xff]
    %v162 = vld [vmem:[#allocation5 + $0x50] sm:$0xff]
    %v163 = vld [vmem:[#allocation5 + $0x58] sm:$0xff]
    %v164 = vld [vmem:[#allocation5 + $0x60] sm:$0xff]
    %v165 = vld [vmem:[#allocation5 + $0x68] sm:$0xff]
    %v166 = vld [vmem:[#allocation5 + $0x70] sm:$0xff]
    %v167 = vld [vmem:[#allocation5 + $0x78] sm:$0xff]
    %v168 = vld [vmem:[#allocation5 + $0x80] sm:$0xff]
    %v169 = vld [vmem:[#allocation5 + $0x88] sm:$0xff]
    %v170 = vld [vmem:[#allocation5 + $0x90] sm:$0xff]
    %v171 = vld [vmem:[#allocation5 + $0x98] sm:$0xff]
    %v172 = vld [vmem:[#allocation5 + $0xa0] sm:$0xff]
    %v173 = vld [vmem:[#allocation5 + $0xa8] sm:$0xff]
    %v174 = vld [vmem:[#allocation5 + $0xb0] sm:$0xff]
    %v175 = vld [vmem:[#allocation5 + $0xb8] sm:$0xff]
    %v176 = vld [vmem:[#allocation5 + $0xc0] sm:$0xff]
    %v177 = vld [vmem:[#allocation5 + $0xc8] sm:$0xff]
    %v178 = vld [vmem:[#allocation5 + $0xd0] sm:$0xff]
    %v179 = vld [vmem:[#allocation5 + $0xd8] sm:$0xff]
    %v180 = vld [vmem:[#allocation5 + $0xe0] sm:$0xff]
    %v181 = vld [vmem:[#allocation5 + $0xe8] sm:$0xff]
    %v182 = vld [vmem:[#allocation5 + $0xf0] sm:$0xff]
    %v183 = vld [vmem:[#allocation5 + $0xf8] sm:$0xff]
    %v184 = vld [vmem:[#allocation5 + $0x100] sm:$0xff]
    %v185 = vld [vmem:[#allocation5 + $0x108] sm:$0xff]
    %v186 = vld [vmem:[#allocation5 + $0x110] sm:$0xff]
    %v187 = vld [vmem:[#allocation5 + $0x118] sm:$0xff]
    %v188 = vld [vmem:[#allocation5 + $0x120] sm:$0xff]
    %v189 = vld [vmem:[#allocation5 + $0x128] sm:$0xff]
    %v190 = vld [vmem:[#allocation5 + $0x130] sm:$0xff]
    %v191 = vld [vmem:[#allocation5 + $0x138] sm:$0xff]
    %v192 = vld [vmem:[#allocation5 + $0x140] sm:$0xff]
    %v193 = vld [vmem:[#allocation5 + $0x148] sm:$0xff]
    %v194 = vld [vmem:[#allocation5 + $0x150] sm:$0xff]
    %v195 = vld [vmem:[#allocation5 + $0x158] sm:$0xff]
    %v196 = vld [vmem:[#allocation5 + $0x160] sm:$0xff]
    %v197 = vld [vmem:[#allocation5 + $0x168] sm:$0xff]
    %v198 = vld [vmem:[#allocation5 + $0x170] sm:$0xff]
    %v199 = vld [vmem:[#allocation5 + $0x178] sm:$0xff]
    %v200 = vld [vmem:[#allocation5 + $0x180] sm:$0xff]
    %v201 = vld [vmem:[#allocation5 + $0x188] sm:$0xff]
    %v202 = vld [vmem:[#allocation5 + $0x190] sm:$0xff]
    %v203 = vld [vmem:[#allocation5 + $0x198] sm:$0xff]
    %v204 = vld [vmem:[#allocation5 + $0x1a0] sm:$0xff]
    %v205 = vld [vmem:[#allocation5 + $0x1a8] sm:$0xff]
    %v206 = vld [vmem:[#allocation5 + $0x1b0] sm:$0xff]
    %v207 = vld [vmem:[#allocation5 + $0x1b8] sm:$0xff]
    %v208 = vld [vmem:[#allocation5 + $0x1c0] sm:$0xff]
    %v209 = vld [vmem:[#allocation5 + $0x1c8] sm:$0xff]
    %v210 = vld [vmem:[#allocation5 + $0x1d0] sm:$0xff]
    %v211 = vld [vmem:[#allocation5 + $0x1d8] sm:$0xff]
    %v212 = vld [vmem:[#allocation5 + $0x1e0] sm:$0xff]
    %v213 = vld [vmem:[#allocation5 + $0x1e8] sm:$0xff]
    %v214 = vld [vmem:[#allocation5 + $0x1f0] sm:$0xff]
    %v215 = vld [vmem:[#allocation5 + $0x1f8] sm:$0xff]
    %v216 = vld [vmem:[#allocation5 + $0x200] sm:$0xff]
    %v217 = vld [vmem:[#allocation5 + $0x208] sm:$0xff]
    %v218 = vld [vmem:[#allocation5 + $0x210] sm:$0xff]
    %v219 = vld [vmem:[#allocation5 + $0x218] sm:$0xff]
    %v220 = vld [vmem:[#allocation5 + $0x220] sm:$0xff]
    %v221 = vld [vmem:[#allocation5 + $0x228] sm:$0xff]
    %v222 = vld [vmem:[#allocation5 + $0x230] sm:$0xff]
    %v223 = vld [vmem:[#allocation5 + $0x238] sm:$0xff]
    %v224 = vld [vmem:[#allocation5 + $0x240] sm:$0xff]
    %v225 = vld [vmem:[#allocation5 + $0x248] sm:$0xff]
    %v226 = vld [vmem:[#allocation5 + $0x250] sm:$0xff]
    %v227 = vld [vmem:[#allocation5 + $0x258] sm:$0xff]
    %v228 = vld [vmem:[#allocation5 + $0x260] sm:$0xff]
    %v229 = vld [vmem:[#allocation5 + $0x268] sm:$0xff]
    %v230 = vld [vmem:[#allocation5 + $0x270] sm:$0xff]
    %v231 = vld [vmem:[#allocation5 + $0x278] sm:$0xff]
    %v232 = vld [vmem:[#allocation5 + $0x280] sm:$0xff]
    %v233 = vld [vmem:[#allocation5 + $0x288] sm:$0xff]
    %v234 = vld [vmem:[#allocation5 + $0x290] sm:$0xff]
    %v235 = vld [vmem:[#allocation5 + $0x298] sm:$0xff]
    %v236 = vld [vmem:[#allocation5 + $0x2a0] sm:$0xff]
    %v237 = vld [vmem:[#allocation5 + $0x2a8] sm:$0xff]
    %v238 = vld [vmem:[#allocation5 + $0x2b0] sm:$0xff]
    %v239 = vld [vmem:[#allocation5 + $0x2b8] sm:$0xff]
    %v240 = vld [vmem:[#allocation5 + $0x2c0] sm:$0xff]
    %v241 = vld [vmem:[#allocation5 + $0x2c8] sm:$0xff]
    %v242 = vld [vmem:[#allocation5 + $0x2d0] sm:$0xff]
    %v243 = vld [vmem:[#allocation5 + $0x2d8] sm:$0xff]
    %v244 = vld [vmem:[#allocation5 + $0x2e0] sm:$0xff]
    %v245 = vld [vmem:[#allocation5 + $0x2e8] sm:$0xff]
    %v246 = vld [vmem:[#allocation5 + $0x2f0] sm:$0xff]
    %v247 = vld [vmem:[#allocation5 + $0x2f8] sm:$0xff]
    %v248 = vld [vmem:[#allocation5 + $0x300] sm:$0xff]
    %v249 = vld [vmem:[#allocation5 + $0x308] sm:$0xff]
    %v250 = vld [vmem:[#allocation5 + $0x310] sm:$0xff]
    %v251 = vld [vmem:[#allocation5 + $0x318] sm:$0xff]
    %v252 = vld [vmem:[#allocation5 + $0x320] sm:$0xff]
    %v253 = vld [vmem:[#allocation5 + $0x328] sm:$0xff]
    %v254 = vld [vmem:[#allocation5 + $0x330] sm:$0xff]
    %v255 = vld [vmem:[#allocation5 + $0x338] sm:$0xff]
    %v256 = vld [vmem:[#allocation5 + $0x340] sm:$0xff]
    %v257 = vld [vmem:[#allocation5 + $0x348] sm:$0xff]
    %v258 = vld [vmem:[#allocation5 + $0x350] sm:$0xff]
    %v259 = vld [vmem:[#allocation5 + $0x358] sm:$0xff]
    %v260 = vld [vmem:[#allocation5 + $0x360] sm:$0xff]
    %v261 = vld [vmem:[#allocation5 + $0x368] sm:$0xff]
    %v262 = vld [vmem:[#allocation5 + $0x370] sm:$0xff]
    %v263 = vld [vmem:[#allocation5 + $0x378] sm:$0xff]
    %v264 = vld [vmem:[#allocation5 + $0x380] sm:$0xff]
    %v265 = vld [vmem:[#allocation5 + $0x388] sm:$0xff]
    %v266 = vld [vmem:[#allocation5 + $0x390] sm:$0xff]
    %v267 = vld [vmem:[#allocation5 + $0x398] sm:$0xff]
    %v268 = vld [vmem:[#allocation5 + $0x3a0] sm:$0xff]
    %v269 = vld [vmem:[#allocation5 + $0x3a8] sm:$0xff]
    %v270 = vld [vmem:[#allocation5 + $0x3b0] sm:$0xff]
    %v271 = vld [vmem:[#allocation5 + $0x3b8] sm:$0xff]
    %v272 = vld [vmem:[#allocation5 + $0x3c0] sm:$0xff]
    %v273 = vld [vmem:[#allocation5 + $0x3c8] sm:$0xff]
    %v274 = vld [vmem:[#allocation5 + $0x3d0] sm:$0xff]
    %v275 = vld [vmem:[#allocation5 + $0x3d8] sm:$0xff]
    %v276 = vld [vmem:[#allocation5 + $0x3e0] sm:$0xff]
    %v277 = vld [vmem:[#allocation5 + $0x3e8] sm:$0xff]
    %v278 = vld [vmem:[#allocation5 + $0x3f0] sm:$0xff]
    %v279 = vld [vmem:[#allocation5 + $0x3f8] sm:$0xff]
    %v280 = vld [vmem:[#allocation7] sm:$0xff]
    %v282 = vlaneseq
    %v283 = vshrl.u32 %v282, 7
    %v284 = vsub.s32 0, %v283
    %v285 = vrot.slane %v280, %v284
    %v286 = vlaneseq
    %v287 = vshrl.u32 %v286, 7
    %v288 = vsub.s32 1, %v287
    %v289 = vrot.slane %v280, %v288
    %v290 = vlaneseq
    %v291 = vshrl.u32 %v290, 7
    %v292 = vsub.s32 2, %v291
    %v293 = vrot.slane %v280, %v292
    %v294 = vlaneseq
    %v295 = vshrl.u32 %v294, 7
    %v296 = vsub.s32 3, %v295
    %v297 = vrot.slane %v280, %v296
    %v298 = vlaneseq
    %v299 = vshrl.u32 %v298, 7
    %v300 = vsub.s32 4, %v299
    %v301 = vrot.slane %v280, %v300
    %v302 = vlaneseq
    %v303 = vshrl.u32 %v302, 7
    %v304 = vsub.s32 5, %v303
    %v305 = vrot.slane %v280, %v304
    %v306 = vlaneseq
    %v307 = vshrl.u32 %v306, 7
    %v308 = vsub.s32 6, %v307
    %v309 = vrot.slane %v280, %v308
    %v310 = vlaneseq
    %v311 = vshrl.u32 %v310, 7
    %v312 = vsub.s32 7, %v311
    %v313 = vrot.slane %v280, %v312
    %v323 = vunpack.c.l.b16 %v151
    %v324 = vunpack.c.h.b16 %v151
    %v325 = vpack.c.b16 %v323, %v323
    %v326 = vpack.c.b16 %v324, %v324
    %v457 = vunpack.c.l.b16 %v152
    %v458 = vunpack.c.h.b16 %v152
    %v459 = vunpack.c.l.b16 %v153
    %v460 = vunpack.c.h.b16 %v153
    %v461 = vunpack.c.l.b16 %v154
    %v462 = vunpack.c.h.b16 %v154
    %v463 = vunpack.c.l.b16 %v155
    %v464 = vunpack.c.h.b16 %v155
    %v465 = vunpack.c.l.b16 %v156
    %v466 = vunpack.c.h.b16 %v156
    %v467 = vunpack.c.l.b16 %v157
    %v468 = vunpack.c.h.b16 %v157
    %v469 = vunpack.c.l.b16 %v158
    %v470 = vunpack.c.h.b16 %v158
    %v471 = vunpack.c.l.b16 %v159
    %v472 = vunpack.c.h.b16 %v159
    %v473 = vunpack.c.l.b16 %v160
    %v474 = vunpack.c.h.b16 %v160
    %v475 = vunpack.c.l.b16 %v161
    %v476 = vunpack.c.h.b16 %v161
    %v477 = vunpack.c.l.b16 %v162
    %v478 = vunpack.c.h.b16 %v162
    %v479 = vunpack.c.l.b16 %v163
    %v480 = vunpack.c.h.b16 %v163
    %v481 = vunpack.c.l.b16 %v164
    %v482 = vunpack.c.h.b16 %v164
    %v483 = vunpack.c.l.b16 %v165
    %v484 = vunpack.c.h.b16 %v165
    %v485 = vunpack.c.l.b16 %v166
    %v486 = vunpack.c.h.b16 %v166
    %v487 = vunpack.c.l.b16 %v167
    %v488 = vunpack.c.h.b16 %v167
    %v489 = vunpack.c.l.b16 %v168
    %v490 = vunpack.c.h.b16 %v168
    %v491 = vunpack.c.l.b16 %v169
    %v492 = vunpack.c.h.b16 %v169
    %v493 = vunpack.c.l.b16 %v170
    %v494 = vunpack.c.h.b16 %v170
    %v495 = vunpack.c.l.b16 %v171
    %v496 = vunpack.c.h.b16 %v171
    %v497 = vunpack.c.l.b16 %v172
    %v498 = vunpack.c.h.b16 %v172
    %v499 = vunpack.c.l.b16 %v173
    %v500 = vunpack.c.h.b16 %v173
    %v501 = vunpack.c.l.b16 %v174
    %v502 = vunpack.c.h.b16 %v174
    %v503 = vunpack.c.l.b16 %v175
    %v504 = vunpack.c.h.b16 %v175
    %v505 = vunpack.c.l.b16 %v176
    %v506 = vunpack.c.h.b16 %v176
    %v507 = vunpack.c.l.b16 %v177
    %v508 = vunpack.c.h.b16 %v177
    %v509 = vunpack.c.l.b16 %v178
    %v510 = vunpack.c.h.b16 %v178
    %v511 = vunpack.c.l.b16 %v179
    %v512 = vunpack.c.h.b16 %v179
    %v513 = vunpack.c.l.b16 %v180
    %v514 = vunpack.c.h.b16 %v180
    %v515 = vunpack.c.l.b16 %v181
    %v516 = vunpack.c.h.b16 %v181
    %v517 = vunpack.c.l.b16 %v182
    %v518 = vunpack.c.h.b16 %v182
    %v519 = vunpack.c.l.b16 %v183
    %v520 = vunpack.c.h.b16 %v183
    %v521 = vunpack.c.l.b16 %v184
    %v522 = vunpack.c.h.b16 %v184
    %v523 = vunpack.c.l.b16 %v185
    %v524 = vunpack.c.h.b16 %v185
    %v525 = vunpack.c.l.b16 %v186
    %v526 = vunpack.c.h.b16 %v186
    %v527 = vunpack.c.l.b16 %v187
    %v528 = vunpack.c.h.b16 %v187
    %v529 = vunpack.c.l.b16 %v188
    %v530 = vunpack.c.h.b16 %v188
    %v531 = vunpack.c.l.b16 %v189
    %v532 = vunpack.c.h.b16 %v189
    %v533 = vunpack.c.l.b16 %v190
    %v534 = vunpack.c.h.b16 %v190
    %v535 = vunpack.c.l.b16 %v191
    %v536 = vunpack.c.h.b16 %v191
    %v537 = vunpack.c.l.b16 %v192
    %v538 = vunpack.c.h.b16 %v192
    %v539 = vunpack.c.l.b16 %v193
    %v540 = vunpack.c.h.b16 %v193
    %v541 = vunpack.c.l.b16 %v194
    %v542 = vunpack.c.h.b16 %v194
    %v543 = vunpack.c.l.b16 %v195
    %v544 = vunpack.c.h.b16 %v195
    %v545 = vunpack.c.l.b16 %v196
    %v546 = vunpack.c.h.b16 %v196
    %v547 = vunpack.c.l.b16 %v197
    %v548 = vunpack.c.h.b16 %v197
    %v549 = vunpack.c.l.b16 %v198
    %v550 = vunpack.c.h.b16 %v198
    %v551 = vunpack.c.l.b16 %v199
    %v552 = vunpack.c.h.b16 %v199
    %v553 = vunpack.c.l.b16 %v200
    %v554 = vunpack.c.h.b16 %v200
    %v555 = vunpack.c.l.b16 %v201
    %v556 = vunpack.c.h.b16 %v201
    %v557 = vunpack.c.l.b16 %v202
    %v558 = vunpack.c.h.b16 %v202
    %v559 = vunpack.c.l.b16 %v203
    %v560 = vunpack.c.h.b16 %v203
    %v561 = vunpack.c.l.b16 %v204
    %v562 = vunpack.c.h.b16 %v204
    %v563 = vunpack.c.l.b16 %v205
    %v564 = vunpack.c.h.b16 %v205
    %v565 = vunpack.c.l.b16 %v206
    %v566 = vunpack.c.h.b16 %v206
    %v567 = vunpack.c.l.b16 %v207
    %v568 = vunpack.c.h.b16 %v207
    %v569 = vunpack.c.l.b16 %v208
    %v570 = vunpack.c.h.b16 %v208
    %v571 = vunpack.c.l.b16 %v209
    %v572 = vunpack.c.h.b16 %v209
    %v573 = vunpack.c.l.b16 %v210
    %v574 = vunpack.c.h.b16 %v210
    %v575 = vunpack.c.l.b16 %v211
    %v576 = vunpack.c.h.b16 %v211
    %v577 = vunpack.c.l.b16 %v212
    %v578 = vunpack.c.h.b16 %v212
    %v579 = vunpack.c.l.b16 %v213
    %v580 = vunpack.c.h.b16 %v213
    %v581 = vunpack.c.l.b16 %v214
    %v582 = vunpack.c.h.b16 %v214
    %v583 = vunpack.c.l.b16 %v215
    %v584 = vunpack.c.h.b16 %v215
    %v585 = vunpack.c.l.b16 %v216
    %v586 = vunpack.c.h.b16 %v216
    %v587 = vunpack.c.l.b16 %v217
    %v588 = vunpack.c.h.b16 %v217
    %v589 = vunpack.c.l.b16 %v218
    %v590 = vunpack.c.h.b16 %v218
    %v591 = vunpack.c.l.b16 %v219
    %v592 = vunpack.c.h.b16 %v219
    %v593 = vunpack.c.l.b16 %v220
    %v594 = vunpack.c.h.b16 %v220
    %v595 = vunpack.c.l.b16 %v221
    %v596 = vunpack.c.h.b16 %v221
    %v597 = vunpack.c.l.b16 %v222
    %v598 = vunpack.c.h.b16 %v222
    %v599 = vunpack.c.l.b16 %v223
    %v600 = vunpack.c.h.b16 %v223
    %v601 = vunpack.c.l.b16 %v224
    %v602 = vunpack.c.h.b16 %v224
    %v603 = vunpack.c.l.b16 %v225
    %v604 = vunpack.c.h.b16 %v225
    %v605 = vunpack.c.l.b16 %v226
    %v606 = vunpack.c.h.b16 %v226
    %v607 = vunpack.c.l.b16 %v227
    %v608 = vunpack.c.h.b16 %v227
    %v609 = vunpack.c.l.b16 %v228
    %v610 = vunpack.c.h.b16 %v228
    %v611 = vunpack.c.l.b16 %v229
    %v612 = vunpack.c.h.b16 %v229
    %v613 = vunpack.c.l.b16 %v230
    %v614 = vunpack.c.h.b16 %v230
    %v615 = vunpack.c.l.b16 %v231
    %v616 = vunpack.c.h.b16 %v231
    %v617 = vunpack.c.l.b16 %v232
    %v618 = vunpack.c.h.b16 %v232
    %v619 = vunpack.c.l.b16 %v233
    %v620 = vunpack.c.h.b16 %v233
    %v621 = vunpack.c.l.b16 %v234
    %v622 = vunpack.c.h.b16 %v234
    %v623 = vunpack.c.l.b16 %v235
    %v624 = vunpack.c.h.b16 %v235
    %v625 = vunpack.c.l.b16 %v236
    %v626 = vunpack.c.h.b16 %v236
    %v627 = vunpack.c.l.b16 %v237
    %v628 = vunpack.c.h.b16 %v237
    %v629 = vunpack.c.l.b16 %v238
    %v630 = vunpack.c.h.b16 %v238
    %v631 = vunpack.c.l.b16 %v239
    %v632 = vunpack.c.h.b16 %v239
    %v633 = vunpack.c.l.b16 %v240
    %v634 = vunpack.c.h.b16 %v240
    %v635 = vunpack.c.l.b16 %v241
    %v636 = vunpack.c.h.b16 %v241
    %v637 = vunpack.c.l.b16 %v242
    %v638 = vunpack.c.h.b16 %v242
    %v639 = vunpack.c.l.b16 %v243
    %v640 = vunpack.c.h.b16 %v243
    %v641 = vunpack.c.l.b16 %v244
    %v642 = vunpack.c.h.b16 %v244
    %v643 = vunpack.c.l.b16 %v245
    %v644 = vunpack.c.h.b16 %v245
    %v645 = vunpack.c.l.b16 %v246
    %v646 = vunpack.c.h.b16 %v246
    %v647 = vunpack.c.l.b16 %v247
    %v648 = vunpack.c.h.b16 %v247
    %v649 = vunpack.c.l.b16 %v248
    %v650 = vunpack.c.h.b16 %v248
    %v651 = vunpack.c.l.b16 %v249
    %v652 = vunpack.c.h.b16 %v249
    %v653 = vunpack.c.l.b16 %v250
    %v654 = vunpack.c.h.b16 %v250
    %v655 = vunpack.c.l.b16 %v251
    %v656 = vunpack.c.h.b16 %v251
    %v657 = vunpack.c.l.b16 %v252
    %v658 = vunpack.c.h.b16 %v252
    %v659 = vunpack.c.l.b16 %v253
    %v660 = vunpack.c.h.b16 %v253
    %v661 = vunpack.c.l.b16 %v254
    %v662 = vunpack.c.h.b16 %v254
    %v663 = vunpack.c.l.b16 %v255
    %v664 = vunpack.c.h.b16 %v255
    %v665 = vunpack.c.l.b16 %v256
    %v666 = vunpack.c.h.b16 %v256
    %v667 = vunpack.c.l.b16 %v257
    %v668 = vunpack.c.h.b16 %v257
    %v669 = vunpack.c.l.b16 %v258
    %v670 = vunpack.c.h.b16 %v258
    %v671 = vunpack.c.l.b16 %v259
    %v672 = vunpack.c.h.b16 %v259
    %v673 = vunpack.c.l.b16 %v260
    %v674 = vunpack.c.h.b16 %v260
    %v675 = vunpack.c.l.b16 %v261
    %v676 = vunpack.c.h.b16 %v261
    %v677 = vunpack.c.l.b16 %v262
    %v678 = vunpack.c.h.b16 %v262
    %v679 = vunpack.c.l.b16 %v263
    %v680 = vunpack.c.h.b16 %v263
    %v681 = vunpack.c.l.b16 %v264
    %v682 = vunpack.c.h.b16 %v264
    %v683 = vunpack.c.l.b16 %v265
    %v684 = vunpack.c.h.b16 %v265
    %v685 = vunpack.c.l.b16 %v266
    %v686 = vunpack.c.h.b16 %v266
    %v687 = vunpack.c.l.b16 %v267
    %v688 = vunpack.c.h.b16 %v267
    %v689 = vunpack.c.l.b16 %v268
    %v690 = vunpack.c.h.b16 %v268
    %v691 = vunpack.c.l.b16 %v269
    %v692 = vunpack.c.h.b16 %v269
    %v693 = vunpack.c.l.b16 %v270
    %v694 = vunpack.c.h.b16 %v270
    %v695 = vunpack.c.l.b16 %v271
    %v696 = vunpack.c.h.b16 %v271
    %v697 = vunpack.c.l.b16 %v272
    %v698 = vunpack.c.h.b16 %v272
    %v699 = vunpack.c.l.b16 %v273
    %v700 = vunpack.c.h.b16 %v273
    %v701 = vunpack.c.l.b16 %v274
    %v702 = vunpack.c.h.b16 %v274
    %v703 = vunpack.c.l.b16 %v275
    %v704 = vunpack.c.h.b16 %v275
    %v705 = vunpack.c.l.b16 %v276
    %v706 = vunpack.c.h.b16 %v276
    %v707 = vunpack.c.l.b16 %v277
    %v708 = vunpack.c.h.b16 %v277
    %v709 = vunpack.c.l.b16 %v278
    %v710 = vunpack.c.h.b16 %v278
    %v711 = vunpack.c.l.b16 %v279
    %v712 = vunpack.c.h.b16 %v279
    %v713 = vpack.c.b16 %v465, %v457
    %v714 = vpack.c.b16 %v466, %v458
    %v715 = vpack.c.b16 %v467, %v459
    %v716 = vpack.c.b16 %v468, %v460
    %v717 = vpack.c.b16 %v469, %v461
    %v718 = vpack.c.b16 %v470, %v462
    %v719 = vpack.c.b16 %v471, %v463
    %v720 = vpack.c.b16 %v472, %v464
    %v721 = vpack.c.b16 %v481, %v473
    %v722 = vpack.c.b16 %v482, %v474
    %v723 = vpack.c.b16 %v483, %v475
    %v724 = vpack.c.b16 %v484, %v476
    %v725 = vpack.c.b16 %v485, %v477
    %v726 = vpack.c.b16 %v486, %v478
    %v727 = vpack.c.b16 %v487, %v479
    %v728 = vpack.c.b16 %v488, %v480
    %v729 = vpack.c.b16 %v497, %v489
    %v730 = vpack.c.b16 %v498, %v490
    %v731 = vpack.c.b16 %v499, %v491
    %v732 = vpack.c.b16 %v500, %v492
    %v733 = vpack.c.b16 %v501, %v493
    %v734 = vpack.c.b16 %v502, %v494
    %v735 = vpack.c.b16 %v503, %v495
    %v736 = vpack.c.b16 %v504, %v496
    %v737 = vpack.c.b16 %v513, %v505
    %v738 = vpack.c.b16 %v514, %v506
    %v739 = vpack.c.b16 %v515, %v507
    %v740 = vpack.c.b16 %v516, %v508
    %v741 = vpack.c.b16 %v517, %v509
    %v742 = vpack.c.b16 %v518, %v510
    %v743 = vpack.c.b16 %v519, %v511
    %v744 = vpack.c.b16 %v520, %v512
    %v745 = vpack.c.b16 %v529, %v521
    %v746 = vpack.c.b16 %v530, %v522
    %v747 = vpack.c.b16 %v531, %v523
    %v748 = vpack.c.b16 %v532, %v524
    %v749 = vpack.c.b16 %v533, %v525
    %v750 = vpack.c.b16 %v534, %v526
    %v751 = vpack.c.b16 %v535, %v527
    %v752 = vpack.c.b16 %v536, %v528
    %v753 = vpack.c.b16 %v545, %v537
    %v754 = vpack.c.b16 %v546, %v538
    %v755 = vpack.c.b16 %v547, %v539
    %v756 = vpack.c.b16 %v548, %v540
    %v757 = vpack.c.b16 %v549, %v541
    %v758 = vpack.c.b16 %v550, %v542
    %v759 = vpack.c.b16 %v551, %v543
    %v760 = vpack.c.b16 %v552, %v544
    %v761 = vpack.c.b16 %v561, %v553
    %v762 = vpack.c.b16 %v562, %v554
    %v763 = vpack.c.b16 %v563, %v555
    %v764 = vpack.c.b16 %v564, %v556
    %v765 = vpack.c.b16 %v565, %v557
    %v766 = vpack.c.b16 %v566, %v558
    %v767 = vpack.c.b16 %v567, %v559
    %v768 = vpack.c.b16 %v568, %v560
    %v769 = vpack.c.b16 %v577, %v569
    %v770 = vpack.c.b16 %v578, %v570
    %v771 = vpack.c.b16 %v579, %v571
    %v772 = vpack.c.b16 %v580, %v572
    %v773 = vpack.c.b16 %v581, %v573
    %v774 = vpack.c.b16 %v582, %v574
    %v775 = vpack.c.b16 %v583, %v575
    %v776 = vpack.c.b16 %v584, %v576
    %v777 = vpack.c.b16 %v593, %v585
    %v778 = vpack.c.b16 %v594, %v586
    %v779 = vpack.c.b16 %v595, %v587
    %v780 = vpack.c.b16 %v596, %v588
    %v781 = vpack.c.b16 %v597, %v589
    %v782 = vpack.c.b16 %v598, %v590
    %v783 = vpack.c.b16 %v599, %v591
    %v784 = vpack.c.b16 %v600, %v592
    %v785 = vpack.c.b16 %v609, %v601
    %v786 = vpack.c.b16 %v610, %v602
    %v787 = vpack.c.b16 %v611, %v603
    %v788 = vpack.c.b16 %v612, %v604
    %v789 = vpack.c.b16 %v613, %v605
    %v790 = vpack.c.b16 %v614, %v606
    %v791 = vpack.c.b16 %v615, %v607
    %v792 = vpack.c.b16 %v616, %v608
    %v793 = vpack.c.b16 %v625, %v617
    %v794 = vpack.c.b16 %v626, %v618
    %v795 = vpack.c.b16 %v627, %v619
    %v796 = vpack.c.b16 %v628, %v620
    %v797 = vpack.c.b16 %v629, %v621
    %v798 = vpack.c.b16 %v630, %v622
    %v799 = vpack.c.b16 %v631, %v623
    %v800 = vpack.c.b16 %v632, %v624
    %v801 = vpack.c.b16 %v641, %v633
    %v802 = vpack.c.b16 %v642, %v634
    %v803 = vpack.c.b16 %v643, %v635
    %v804 = vpack.c.b16 %v644, %v636
    %v805 = vpack.c.b16 %v645, %v637
    %v806 = vpack.c.b16 %v646, %v638
    %v807 = vpack.c.b16 %v647, %v639
    %v808 = vpack.c.b16 %v648, %v640
    %v809 = vpack.c.b16 %v657, %v649
    %v810 = vpack.c.b16 %v658, %v650
    %v811 = vpack.c.b16 %v659, %v651
    %v812 = vpack.c.b16 %v660, %v652
    %v813 = vpack.c.b16 %v661, %v653
    %v814 = vpack.c.b16 %v662, %v654
    %v815 = vpack.c.b16 %v663, %v655
    %v816 = vpack.c.b16 %v664, %v656
    %v817 = vpack.c.b16 %v673, %v665
    %v818 = vpack.c.b16 %v674, %v666
    %v819 = vpack.c.b16 %v675, %v667
    %v820 = vpack.c.b16 %v676, %v668
    %v821 = vpack.c.b16 %v677, %v669
    %v822 = vpack.c.b16 %v678, %v670
    %v823 = vpack.c.b16 %v679, %v671
    %v824 = vpack.c.b16 %v680, %v672
    %v825 = vpack.c.b16 %v689, %v681
    %v826 = vpack.c.b16 %v690, %v682
    %v827 = vpack.c.b16 %v691, %v683
    %v828 = vpack.c.b16 %v692, %v684
    %v829 = vpack.c.b16 %v693, %v685
    %v830 = vpack.c.b16 %v694, %v686
    %v831 = vpack.c.b16 %v695, %v687
    %v832 = vpack.c.b16 %v696, %v688
    %v833 = vpack.c.b16 %v705, %v697
    %v834 = vpack.c.b16 %v706, %v698
    %v835 = vpack.c.b16 %v707, %v699
    %v836 = vpack.c.b16 %v708, %v700
    %v837 = vpack.c.b16 %v709, %v701
    %v838 = vpack.c.b16 %v710, %v702
    %v839 = vpack.c.b16 %v711, %v703
    %v840 = vpack.c.b16 %v712, %v704
    %969 = vmatprep.subr.bf16.mxu0 %v714
    %970 = vmatpush1.bf16.msra.mxu0 %v713
    %971 = vmatprep.subr.bf16.mxu0 %v722
    %972 = vmatpush1.bf16.msra.mxu0 %v721
    %973 = vmatprep.subr.bf16.mxu0 %v730
    %974 = vmatpush1.bf16.msra.mxu0 %v729
    %975 = vmatprep.subr.bf16.mxu0 %v738
    %976 = vmatpush1.bf16.msra.mxu0 %v737
    %977 = vmatprep.subr.bf16.mxu0 %v746
    %978 = vmatpush1.bf16.msra.mxu0 %v745
    %979 = vmatprep.subr.bf16.mxu0 %v754
    %980 = vmatpush1.bf16.msra.mxu0 %v753
    %981 = vmatprep.subr.bf16.mxu0 %v762
    %982 = vmatpush1.bf16.msra.mxu0 %v761
    %983 = vmatprep.subr.bf16.mxu0 %v770
    %984 = vmatpush1.bf16.msra.mxu0 %v769
    %985 = vmatprep.subr.bf16.mxu0 %v778
    %986 = vmatpush1.bf16.msra.mxu0 %v777
    %987 = vmatprep.subr.bf16.mxu0 %v786
    %988 = vmatpush1.bf16.msra.mxu0 %v785
    %989 = vmatprep.subr.bf16.mxu0 %v794
    %990 = vmatpush1.bf16.msra.mxu0 %v793
    %991 = vmatprep.subr.bf16.mxu0 %v802
    %992 = vmatpush1.bf16.msra.mxu0 %v801
    %993 = vmatprep.subr.bf16.mxu0 %v810
    %994 = vmatpush1.bf16.msra.mxu0 %v809
    %995 = vmatprep.subr.bf16.mxu0 %v818
    %996 = vmatpush1.bf16.msra.mxu0 %v817
    %997 = vmatprep.subr.bf16.mxu0 %v826
    %998 = vmatpush1.bf16.msra.mxu0 %v825
    %999 = vmatprep.subr.bf16.mxu0 %v834
    %1000 = vmatpush1.bf16.msra.mxu0 %v833
    %1001 = vmatprep.mubr.bf16.mxu0 %v326
    %1002 = vmatmul.mubr.bf16.gmra.mrb[0].mxu0 %v325
    %v1003 = vpop.f32.mrb[0].mxu0
    %v1004 = vadd.f32 %v285, %v1003
    %v1005 = vpop.f32.mrb[0].mxu0
    %v1006 = vadd.f32 %v289, %v1005
    %v1007 = vpop.f32.mrb[0].mxu0
    %v1008 = vpop.f32.mrb[0].mxu0
    %1009 = vdwg.mxu0
    %1010 = vmatprep.subr.bf16.mxu0 %v716
    %1011 = vmatpush1.bf16.msra.mxu0 %v715
    %1012 = vmatprep.subr.bf16.mxu0 %v724
    %1013 = vmatpush1.bf16.msra.mxu0 %v723
    %1014 = vmatprep.subr.bf16.mxu0 %v732
    %1015 = vmatpush1.bf16.msra.mxu0 %v731
    %1016 = vmatprep.subr.bf16.mxu0 %v740
    %1017 = vmatpush1.bf16.msra.mxu0 %v739
    %1018 = vmatprep.subr.bf16.mxu0 %v748
    %1019 = vmatpush1.bf16.msra.mxu0 %v747
    %1020 = vmatprep.subr.bf16.mxu0 %v756
    %1021 = vmatpush1.bf16.msra.mxu0 %v755
    %1022 = vmatprep.subr.bf16.mxu0 %v764
    %1023 = vmatpush1.bf16.msra.mxu0 %v763
    %1024 = vmatprep.subr.bf16.mxu0 %v772
    %1025 = vmatpush1.bf16.msra.mxu0 %v771
    %1026 = vmatprep.subr.bf16.mxu0 %v780
    %1027 = vmatpush1.bf16.msra.mxu0 %v779
    %1028 = vmatprep.subr.bf16.mxu0 %v788
    %1029 = vmatpush1.bf16.msra.mxu0 %v787
    %1030 = vmatprep.subr.bf16.mxu0 %v796
    %1031 = vmatpush1.bf16.msra.mxu0 %v795
    %1032 = vmatprep.subr.bf16.mxu0 %v804
    %1033 = vmatpush1.bf16.msra.mxu0 %v803
    %1034 = vmatprep.subr.bf16.mxu0 %v812
    %1035 = vmatpush1.bf16.msra.mxu0 %v811
    %1036 = vmatprep.subr.bf16.mxu0 %v820
    %1037 = vmatpush1.bf16.msra.mxu0 %v819
    %1038 = vmatprep.subr.bf16.mxu0 %v828
    %1039 = vmatpush1.bf16.msra.mxu0 %v827
    %1040 = vmatprep.subr.bf16.mxu0 %v836
    %1041 = vmatpush1.bf16.msra.mxu0 %v835
    %1042 = vmatprep.mubr.bf16.mxu0 %v326
    %1043 = vmatmul.mubr.bf16.gmra.mrb[0].mxu0 %v325
    %v1044 = vpop.f32.mrb[0].mxu0
    %v1045 = vadd.f32 %v293, %v1044
    %v1046 = vpop.f32.mrb[0].mxu0
    %v1047 = vadd.f32 %v297, %v1046
    %v1048 = vpop.f32.mrb[0].mxu0
    %v1049 = vpop.f32.mrb[0].mxu0
    %1050 = vdwg.mxu0
    %1051 = vmatprep.subr.bf16.mxu0 %v718
    %1052 = vmatpush1.bf16.msra.mxu0 %v717
    %1053 = vmatprep.subr.bf16.mxu0 %v726
    %1054 = vmatpush1.bf16.msra.mxu0 %v725
    %1055 = vmatprep.subr.bf16.mxu0 %v734
    %1056 = vmatpush1.bf16.msra.mxu0 %v733
    %1057 = vmatprep.subr.bf16.mxu0 %v742
    %1058 = vmatpush1.bf16.msra.mxu0 %v741
    %1059 = vmatprep.subr.bf16.mxu0 %v750
    %1060 = vmatpush1.bf16.msra.mxu0 %v749
    %1061 = vmatprep.subr.bf16.mxu0 %v758
    %1062 = vmatpush1.bf16.msra.mxu0 %v757
    %1063 = vmatprep.subr.bf16.mxu0 %v766
    %1064 = vmatpush1.bf16.msra.mxu0 %v765
    %1065 = vmatprep.subr.bf16.mxu0 %v774
    %1066 = vmatpush1.bf16.msra.mxu0 %v773
    %1067 = vmatprep.subr.bf16.mxu0 %v782
    %1068 = vmatpush1.bf16.msra.mxu0 %v781
    %1069 = vmatprep.subr.bf16.mxu0 %v790
    %1070 = vmatpush1.bf16.msra.mxu0 %v789
    %1071 = vmatprep.subr.bf16.mxu0 %v798
    %1072 = vmatpush1.bf16.msra.mxu0 %v797
    %1073 = vmatprep.subr.bf16.mxu0 %v806
    %1074 = vmatpush1.bf16.msra.mxu0 %v805
    %1075 = vmatprep.subr.bf16.mxu0 %v814
    %1076 = vmatpush1.bf16.msra.mxu0 %v813
    %1077 = vmatprep.subr.bf16.mxu0 %v822
    %1078 = vmatpush1.bf16.msra.mxu0 %v821
    %1079 = vmatprep.subr.bf16.mxu0 %v830
    %1080 = vmatpush1.bf16.msra.mxu0 %v829
    %1081 = vmatprep.subr.bf16.mxu0 %v838
    %1082 = vmatpush1.bf16.msra.mxu0 %v837
    %1083 = vmatprep.mubr.bf16.mxu0 %v326
    %1084 = vmatmul.mubr.bf16.gmra.mrb[0].mxu0 %v325
    %v1085 = vpop.f32.mrb[0].mxu0
    %v1086 = vadd.f32 %v301, %v1085
    %v1087 = vpop.f32.mrb[0].mxu0
    %v1088 = vadd.f32 %v305, %v1087
    %v1089 = vpop.f32.mrb[0].mxu0
    %v1090 = vpop.f32.mrb[0].mxu0
    %1091 = vdwg.mxu0
    %1092 = vmatprep.subr.bf16.mxu0 %v720
    %1093 = vmatpush1.bf16.msra.mxu0 %v719
    %1094 = vmatprep.subr.bf16.mxu0 %v728
    %1095 = vmatpush1.bf16.msra.mxu0 %v727
    %1096 = vmatprep.subr.bf16.mxu0 %v736
    %1097 = vmatpush1.bf16.msra.mxu0 %v735
    %1098 = vmatprep.subr.bf16.mxu0 %v744
    %1099 = vmatpush1.bf16.msra.mxu0 %v743
    %1100 = vmatprep.subr.bf16.mxu0 %v752
    %1101 = vmatpush1.bf16.msra.mxu0 %v751
    %1102 = vmatprep.subr.bf16.mxu0 %v760
    %1103 = vmatpush1.bf16.msra.mxu0 %v759
    %1104 = vmatprep.subr.bf16.mxu0 %v768
    %1105 = vmatpush1.bf16.msra.mxu0 %v767
    %1106 = vmatprep.subr.bf16.mxu0 %v776
    %1107 = vmatpush1.bf16.msra.mxu0 %v775
    %1108 = vmatprep.subr.bf16.mxu0 %v784
    %1109 = vmatpush1.bf16.msra.mxu0 %v783
    %1110 = vmatprep.subr.bf16.mxu0 %v792
    %1111 = vmatpush1.bf16.msra.mxu0 %v791
    %1112 = vmatprep.subr.bf16.mxu0 %v800
    %1113 = vmatpush1.bf16.msra.mxu0 %v799
    %1114 = vmatprep.subr.bf16.mxu0 %v808
    %1115 = vmatpush1.bf16.msra.mxu0 %v807
    %1116 = vmatprep.subr.bf16.mxu0 %v816
    %1117 = vmatpush1.bf16.msra.mxu0 %v815
    %1118 = vmatprep.subr.bf16.mxu0 %v824
    %1119 = vmatpush1.bf16.msra.mxu0 %v823
    %1120 = vmatprep.subr.bf16.mxu0 %v832
    %1121 = vmatpush1.bf16.msra.mxu0 %v831
    %1122 = vmatprep.subr.bf16.mxu0 %v840
    %1123 = vmatpush1.bf16.msra.mxu0 %v839
    %1124 = vmatprep.mubr.bf16.mxu0 %v326
    %1125 = vmatmul.mubr.bf16.gmra.mrb[0].mxu0 %v325
    %v1126 = vpop.f32.mrb[0].mxu0
    %v1127 = vadd.f32 %v309, %v1126
    %v1128 = vpop.f32.mrb[0].mxu0
    %v1129 = vadd.f32 %v313, %v1128
    %v1130 = vpop.f32.mrb[0].mxu0
    %v1131 = vpop.f32.mrb[0].mxu0
    %1132 = vdwg.mxu0
    %vm1133 = vcmp.ge.f32.partialorder %v1004, 0.0
    %vm1134 = vcmp.ge.f32.partialorder %v1006, 0.0
    %vm1135 = vcmp.ge.f32.partialorder %v1045, 0.0
    %vm1136 = vcmp.ge.f32.partialorder %v1047, 0.0
    %vm1137 = vcmp.ge.f32.partialorder %v1086, 0.0
    %vm1138 = vcmp.ge.f32.partialorder %v1088, 0.0
    %vm1139 = vcmp.ge.f32.partialorder %v1127, 0.0
    %vm1140 = vcmp.ge.f32.partialorder %v1129, 0.0
    %v1141 = vmul.f32 %v1004, 0.01
    %v1142 = vmul.f32 %v1006, 0.01
    %v1143 = vmul.f32 %v1045, 0.01
    %v1144 = vmul.f32 %v1047, 0.01
    %v1145 = vmul.f32 %v1086, 0.01
    %v1146 = vmul.f32 %v1088, 0.01
    %v1147 = vmul.f32 %v1127, 0.01
    %v1148 = vmul.f32 %v1129, 0.01
    %v1149 = vsel %vm1133, %v1004, %v1141
    %v1150 = vsel %vm1134, %v1006, %v1142
    %v1151 = vsel %vm1135, %v1045, %v1143
    %v1152 = vsel %vm1136, %v1047, %v1144
    %v1153 = vsel %vm1137, %v1086, %v1145
    %v1154 = vsel %vm1138, %v1088, %v1146
    %v1155 = vsel %vm1139, %v1127, %v1147
    %v1156 = vsel %vm1140, %v1129, %v1148
    %v1157 = vpack.c.bf16 %v1149, %v1149
    %v1158 = vpack.c.bf16 %v1150, %v1150
    %v1159 = vpack.c.bf16 %v1151, %v1151
    %v1160 = vpack.c.bf16 %v1152, %v1152
    %v1161 = vpack.c.bf16 %v1153, %v1153
    %v1162 = vpack.c.bf16 %v1154, %v1154
    %v1163 = vpack.c.bf16 %v1155, %v1155
    %v1164 = vpack.c.bf16 %v1156, %v1156
    %v1165 = vld [vmem:[#allocation8] sm:$0xf]
    %v1166 = vld [vmem:[#allocation8 + $0x4] sm:$0xf]
    %v1167 = vld [vmem:[#allocation8 + $0x8] sm:$0xf]
    %v1168 = vld [vmem:[#allocation8 + $0xc] sm:$0xf]
    %v1169 = vld [vmem:[#allocation8 + $0x10] sm:$0xf]
    %v1170 = vld [vmem:[#allocation8 + $0x14] sm:$0xf]
    %v1171 = vld [vmem:[#allocation8 + $0x18] sm:$0xf]
    %v1172 = vld [vmem:[#allocation8 + $0x1c] sm:$0xf]
    %v1173 = vld [vmem:[#allocation8 + $0x20] sm:$0xf]
    %v1174 = vld [vmem:[#allocation8 + $0x24] sm:$0xf]
    %v1175 = vld [vmem:[#allocation8 + $0x28] sm:$0xf]
    %v1176 = vld [vmem:[#allocation8 + $0x2c] sm:$0xf]
    %v1177 = vld [vmem:[#allocation8 + $0x30] sm:$0xf]
    %v1178 = vld [vmem:[#allocation8 + $0x34] sm:$0xf]
    %v1179 = vld [vmem:[#allocation8 + $0x38] sm:$0xf]
    %v1180 = vld [vmem:[#allocation8 + $0x3c] sm:$0xf]
    %v1181 = vld [vmem:[#allocation8 + $0x40] sm:$0xf]
    %v1182 = vld [vmem:[#allocation8 + $0x44] sm:$0xf]
    %v1183 = vld [vmem:[#allocation8 + $0x48] sm:$0xf]
    %v1184 = vld [vmem:[#allocation8 + $0x4c] sm:$0xf]
    %v1185 = vld [vmem:[#allocation8 + $0x50] sm:$0xf]
    %v1186 = vld [vmem:[#allocation8 + $0x54] sm:$0xf]
    %v1187 = vld [vmem:[#allocation8 + $0x58] sm:$0xf]
    %v1188 = vld [vmem:[#allocation8 + $0x5c] sm:$0xf]
    %v1189 = vld [vmem:[#allocation8 + $0x60] sm:$0xf]
    %v1190 = vld [vmem:[#allocation8 + $0x64] sm:$0xf]
    %v1191 = vld [vmem:[#allocation8 + $0x68] sm:$0xf]
    %v1192 = vld [vmem:[#allocation8 + $0x6c] sm:$0xf]
    %v1193 = vld [vmem:[#allocation8 + $0x70] sm:$0xf]
    %v1194 = vld [vmem:[#allocation8 + $0x74] sm:$0xf]
    %v1195 = vld [vmem:[#allocation8 + $0x78] sm:$0xf]
    %v1196 = vld [vmem:[#allocation8 + $0x7c] sm:$0xf]
    %v1197 = vld [vmem:[#allocation8 + $0x80] sm:$0xf]
    %v1198 = vld [vmem:[#allocation8 + $0x84] sm:$0xf]
    %v1199 = vld [vmem:[#allocation8 + $0x88] sm:$0xf]
    %v1200 = vld [vmem:[#allocation8 + $0x8c] sm:$0xf]
    %v1201 = vld [vmem:[#allocation8 + $0x90] sm:$0xf]
    %v1202 = vld [vmem:[#allocation8 + $0x94] sm:$0xf]
    %v1203 = vld [vmem:[#allocation8 + $0x98] sm:$0xf]
    %v1204 = vld [vmem:[#allocation8 + $0x9c] sm:$0xf]
    %v1205 = vld [vmem:[#allocation8 + $0xa0] sm:$0xf]
    %v1206 = vld [vmem:[#allocation8 + $0xa4] sm:$0xf]
    %v1207 = vld [vmem:[#allocation8 + $0xa8] sm:$0xf]
    %v1208 = vld [vmem:[#allocation8 + $0xac] sm:$0xf]
    %v1209 = vld [vmem:[#allocation8 + $0xb0] sm:$0xf]
    %v1210 = vld [vmem:[#allocation8 + $0xb4] sm:$0xf]
    %v1211 = vld [vmem:[#allocation8 + $0xb8] sm:$0xf]
    %v1212 = vld [vmem:[#allocation8 + $0xbc] sm:$0xf]
    %v1213 = vld [vmem:[#allocation8 + $0xc0] sm:$0xf]
    %v1214 = vld [vmem:[#allocation8 + $0xc4] sm:$0xf]
    %v1215 = vld [vmem:[#allocation8 + $0xc8] sm:$0xf]
    %v1216 = vld [vmem:[#allocation8 + $0xcc] sm:$0xf]
    %v1217 = vld [vmem:[#allocation8 + $0xd0] sm:$0xf]
    %v1218 = vld [vmem:[#allocation8 + $0xd4] sm:$0xf]
    %v1219 = vld [vmem:[#allocation8 + $0xd8] sm:$0xf]
    %v1220 = vld [vmem:[#allocation8 + $0xdc] sm:$0xf]
    %v1221 = vld [vmem:[#allocation8 + $0xe0] sm:$0xf]
    %v1222 = vld [vmem:[#allocation8 + $0xe4] sm:$0xf]
    %v1223 = vld [vmem:[#allocation8 + $0xe8] sm:$0xf]
    %v1224 = vld [vmem:[#allocation8 + $0xec] sm:$0xf]
    %v1225 = vld [vmem:[#allocation8 + $0xf0] sm:$0xf]
    %v1226 = vld [vmem:[#allocation8 + $0xf4] sm:$0xf]
    %v1227 = vld [vmem:[#allocation8 + $0xf8] sm:$0xf]
    %v1228 = vld [vmem:[#allocation8 + $0xfc] sm:$0xf]
    %v1229 = vld [vmem:[#allocation8 + $0x100] sm:$0xf]
    %v1230 = vld [vmem:[#allocation8 + $0x104] sm:$0xf]
    %v1231 = vld [vmem:[#allocation8 + $0x108] sm:$0xf]
    %v1232 = vld [vmem:[#allocation8 + $0x10c] sm:$0xf]
    %v1233 = vld [vmem:[#allocation8 + $0x110] sm:$0xf]
    %v1234 = vld [vmem:[#allocation8 + $0x114] sm:$0xf]
    %v1235 = vld [vmem:[#allocation8 + $0x118] sm:$0xf]
    %v1236 = vld [vmem:[#allocation8 + $0x11c] sm:$0xf]
    %v1237 = vld [vmem:[#allocation8 + $0x120] sm:$0xf]
    %v1238 = vld [vmem:[#allocation8 + $0x124] sm:$0xf]
    %v1239 = vld [vmem:[#allocation8 + $0x128] sm:$0xf]
    %v1240 = vld [vmem:[#allocation8 + $0x12c] sm:$0xf]
    %v1241 = vld [vmem:[#allocation8 + $0x130] sm:$0xf]
    %v1242 = vld [vmem:[#allocation8 + $0x134] sm:$0xf]
    %v1243 = vld [vmem:[#allocation8 + $0x138] sm:$0xf]
    %v1244 = vld [vmem:[#allocation8 + $0x13c] sm:$0xf]
    %v1245 = vld [vmem:[#allocation8 + $0x140] sm:$0xf]
    %v1246 = vld [vmem:[#allocation8 + $0x144] sm:$0xf]
    %v1247 = vld [vmem:[#allocation8 + $0x148] sm:$0xf]
    %v1248 = vld [vmem:[#allocation8 + $0x14c] sm:$0xf]
    %v1249 = vld [vmem:[#allocation8 + $0x150] sm:$0xf]
    %v1250 = vld [vmem:[#allocation8 + $0x154] sm:$0xf]
    %v1251 = vld [vmem:[#allocation8 + $0x158] sm:$0xf]
    %v1252 = vld [vmem:[#allocation8 + $0x15c] sm:$0xf]
    %v1253 = vld [vmem:[#allocation8 + $0x160] sm:$0xf]
    %v1254 = vld [vmem:[#allocation8 + $0x164] sm:$0xf]
    %v1255 = vld [vmem:[#allocation8 + $0x168] sm:$0xf]
    %v1256 = vld [vmem:[#allocation8 + $0x16c] sm:$0xf]
    %v1257 = vld [vmem:[#allocation8 + $0x170] sm:$0xf]
    %v1258 = vld [vmem:[#allocation8 + $0x174] sm:$0xf]
    %v1259 = vld [vmem:[#allocation8 + $0x178] sm:$0xf]
    %v1260 = vld [vmem:[#allocation8 + $0x17c] sm:$0xf]
    %v1261 = vld [vmem:[#allocation8 + $0x180] sm:$0xf]
    %v1262 = vld [vmem:[#allocation8 + $0x184] sm:$0xf]
    %v1263 = vld [vmem:[#allocation8 + $0x188] sm:$0xf]
    %v1264 = vld [vmem:[#allocation8 + $0x18c] sm:$0xf]
    %v1265 = vld [vmem:[#allocation8 + $0x190] sm:$0xf]
    %v1266 = vld [vmem:[#allocation8 + $0x194] sm:$0xf]
    %v1267 = vld [vmem:[#allocation8 + $0x198] sm:$0xf]
    %v1268 = vld [vmem:[#allocation8 + $0x19c] sm:$0xf]
    %v1269 = vld [vmem:[#allocation8 + $0x1a0] sm:$0xf]
    %v1270 = vld [vmem:[#allocation8 + $0x1a4] sm:$0xf]
    %v1271 = vld [vmem:[#allocation8 + $0x1a8] sm:$0xf]
    %v1272 = vld [vmem:[#allocation8 + $0x1ac] sm:$0xf]
    %v1273 = vld [vmem:[#allocation8 + $0x1b0] sm:$0xf]
    %v1274 = vld [vmem:[#allocation8 + $0x1b4] sm:$0xf]
    %v1275 = vld [vmem:[#allocation8 + $0x1b8] sm:$0xf]
    %v1276 = vld [vmem:[#allocation8 + $0x1bc] sm:$0xf]
    %v1277 = vld [vmem:[#allocation8 + $0x1c0] sm:$0xf]
    %v1278 = vld [vmem:[#allocation8 + $0x1c4] sm:$0xf]
    %v1279 = vld [vmem:[#allocation8 + $0x1c8] sm:$0xf]
    %v1280 = vld [vmem:[#allocation8 + $0x1cc] sm:$0xf]
    %v1281 = vld [vmem:[#allocation8 + $0x1d0] sm:$0xf]
    %v1282 = vld [vmem:[#allocation8 + $0x1d4] sm:$0xf]
    %v1283 = vld [vmem:[#allocation8 + $0x1d8] sm:$0xf]
    %v1284 = vld [vmem:[#allocation8 + $0x1dc] sm:$0xf]
    %v1285 = vld [vmem:[#allocation8 + $0x1e0] sm:$0xf]
    %v1286 = vld [vmem:[#allocation8 + $0x1e4] sm:$0xf]
    %v1287 = vld [vmem:[#allocation8 + $0x1e8] sm:$0xf]
    %v1288 = vld [vmem:[#allocation8 + $0x1ec] sm:$0xf]
    %v1289 = vld [vmem:[#allocation8 + $0x1f0] sm:$0xf]
    %v1290 = vld [vmem:[#allocation8 + $0x1f4] sm:$0xf]
    %v1291 = vld [vmem:[#allocation8 + $0x1f8] sm:$0xf]
    %v1292 = vld [vmem:[#allocation8 + $0x1fc] sm:$0xf]
    %v1293 = vld [vmem:[%s4] sm:$0x1]
    %v1295 = vlaneseq
    %v1296 = vshrl.u32 %v1295, 7
    %v1297 = vsub.s32 0, %v1296
    %v1298 = vrot.slane %v1293, %v1297
    %v1428 = vunpack.c.l.b16 %v1165
    %v1429 = vunpack.c.l.b16 %v1166
    %v1430 = vunpack.c.l.b16 %v1167
    %v1431 = vunpack.c.l.b16 %v1168
    %v1432 = vunpack.c.l.b16 %v1169
    %v1433 = vunpack.c.l.b16 %v1170
    %v1434 = vunpack.c.l.b16 %v1171
    %v1435 = vunpack.c.l.b16 %v1172
    %v1436 = vunpack.c.l.b16 %v1173
    %v1437 = vunpack.c.l.b16 %v1174
    %v1438 = vunpack.c.l.b16 %v1175
    %v1439 = vunpack.c.l.b16 %v1176
    %v1440 = vunpack.c.l.b16 %v1177
    %v1441 = vunpack.c.l.b16 %v1178
    %v1442 = vunpack.c.l.b16 %v1179
    %v1443 = vunpack.c.l.b16 %v1180
    %v1444 = vunpack.c.l.b16 %v1181
    %v1445 = vunpack.c.l.b16 %v1182
    %v1446 = vunpack.c.l.b16 %v1183
    %v1447 = vunpack.c.l.b16 %v1184
    %v1448 = vunpack.c.l.b16 %v1185
    %v1449 = vunpack.c.l.b16 %v1186
    %v1450 = vunpack.c.l.b16 %v1187
    %v1451 = vunpack.c.l.b16 %v1188
    %v1452 = vunpack.c.l.b16 %v1189
    %v1453 = vunpack.c.l.b16 %v1190
    %v1454 = vunpack.c.l.b16 %v1191
    %v1455 = vunpack.c.l.b16 %v1192
    %v1456 = vunpack.c.l.b16 %v1193
    %v1457 = vunpack.c.l.b16 %v1194
    %v1458 = vunpack.c.l.b16 %v1195
    %v1459 = vunpack.c.l.b16 %v1196
    %v1460 = vunpack.c.l.b16 %v1197
    %v1461 = vunpack.c.l.b16 %v1198
    %v1462 = vunpack.c.l.b16 %v1199
    %v1463 = vunpack.c.l.b16 %v1200
    %v1464 = vunpack.c.l.b16 %v1201
    %v1465 = vunpack.c.l.b16 %v1202
    %v1466 = vunpack.c.l.b16 %v1203
    %v1467 = vunpack.c.l.b16 %v1204
    %v1468 = vunpack.c.l.b16 %v1205
    %v1469 = vunpack.c.l.b16 %v1206
    %v1470 = vunpack.c.l.b16 %v1207
    %v1471 = vunpack.c.l.b16 %v1208
    %v1472 = vunpack.c.l.b16 %v1209
    %v1473 = vunpack.c.l.b16 %v1210
    %v1474 = vunpack.c.l.b16 %v1211
    %v1475 = vunpack.c.l.b16 %v1212
    %v1476 = vunpack.c.l.b16 %v1213
    %v1477 = vunpack.c.l.b16 %v1214
    %v1478 = vunpack.c.l.b16 %v1215
    %v1479 = vunpack.c.l.b16 %v1216
    %v1480 = vunpack.c.l.b16 %v1217
    %v1481 = vunpack.c.l.b16 %v1218
    %v1482 = vunpack.c.l.b16 %v1219
    %v1483 = vunpack.c.l.b16 %v1220
    %v1484 = vunpack.c.l.b16 %v1221
    %v1485 = vunpack.c.l.b16 %v1222
    %v1486 = vunpack.c.l.b16 %v1223
    %v1487 = vunpack.c.l.b16 %v1224
    %v1488 = vunpack.c.l.b16 %v1225
    %v1489 = vunpack.c.l.b16 %v1226
    %v1490 = vunpack.c.l.b16 %v1227
    %v1491 = vunpack.c.l.b16 %v1228
    %v1492 = vunpack.c.l.b16 %v1229
    %v1493 = vunpack.c.l.b16 %v1230
    %v1494 = vunpack.c.l.b16 %v1231
    %v1495 = vunpack.c.l.b16 %v1232
    %v1496 = vunpack.c.l.b16 %v1233
    %v1497 = vunpack.c.l.b16 %v1234
    %v1498 = vunpack.c.l.b16 %v1235
    %v1499 = vunpack.c.l.b16 %v1236
    %v1500 = vunpack.c.l.b16 %v1237
    %v1501 = vunpack.c.l.b16 %v1238
    %v1502 = vunpack.c.l.b16 %v1239
    %v1503 = vunpack.c.l.b16 %v1240
    %v1504 = vunpack.c.l.b16 %v1241
    %v1505 = vunpack.c.l.b16 %v1242
    %v1506 = vunpack.c.l.b16 %v1243
    %v1507 = vunpack.c.l.b16 %v1244
    %v1508 = vunpack.c.l.b16 %v1245
    %v1509 = vunpack.c.l.b16 %v1246
    %v1510 = vunpack.c.l.b16 %v1247
    %v1511 = vunpack.c.l.b16 %v1248
    %v1512 = vunpack.c.l.b16 %v1249
    %v1513 = vunpack.c.l.b16 %v1250
    %v1514 = vunpack.c.l.b16 %v1251
    %v1515 = vunpack.c.l.b16 %v1252
    %v1516 = vunpack.c.l.b16 %v1253
    %v1517 = vunpack.c.l.b16 %v1254
    %v1518 = vunpack.c.l.b16 %v1255
    %v1519 = vunpack.c.l.b16 %v1256
    %v1520 = vunpack.c.l.b16 %v1257
    %v1521 = vunpack.c.l.b16 %v1258
    %v1522 = vunpack.c.l.b16 %v1259
    %v1523 = vunpack.c.l.b16 %v1260
    %v1524 = vunpack.c.l.b16 %v1261
    %v1525 = vunpack.c.l.b16 %v1262
    %v1526 = vunpack.c.l.b16 %v1263
    %v1527 = vunpack.c.l.b16 %v1264
    %v1528 = vunpack.c.l.b16 %v1265
    %v1529 = vunpack.c.l.b16 %v1266
    %v1530 = vunpack.c.l.b16 %v1267
    %v1531 = vunpack.c.l.b16 %v1268
    %v1532 = vunpack.c.l.b16 %v1269
    %v1533 = vunpack.c.l.b16 %v1270
    %v1534 = vunpack.c.l.b16 %v1271
    %v1535 = vunpack.c.l.b16 %v1272
    %v1536 = vunpack.c.l.b16 %v1273
    %v1537 = vunpack.c.l.b16 %v1274
    %v1538 = vunpack.c.l.b16 %v1275
    %v1539 = vunpack.c.l.b16 %v1276
    %v1540 = vunpack.c.l.b16 %v1277
    %v1541 = vunpack.c.l.b16 %v1278
    %v1542 = vunpack.c.l.b16 %v1279
    %v1543 = vunpack.c.l.b16 %v1280
    %v1544 = vunpack.c.l.b16 %v1281
    %v1545 = vunpack.c.l.b16 %v1282
    %v1546 = vunpack.c.l.b16 %v1283
    %v1547 = vunpack.c.l.b16 %v1284
    %v1548 = vunpack.c.l.b16 %v1285
    %v1549 = vunpack.c.l.b16 %v1286
    %v1550 = vunpack.c.l.b16 %v1287
    %v1551 = vunpack.c.l.b16 %v1288
    %v1552 = vunpack.c.l.b16 %v1289
    %v1553 = vunpack.c.l.b16 %v1290
    %v1554 = vunpack.c.l.b16 %v1291
    %v1555 = vunpack.c.l.b16 %v1292
    %v1556 = vpack.c.b16 %v1429, %v1428
    %v1557 = vpack.c.b16 %v1431, %v1430
    %v1558 = vpack.c.b16 %v1433, %v1432
    %v1559 = vpack.c.b16 %v1435, %v1434
    %v1560 = vpack.c.b16 %v1437, %v1436
    %v1561 = vpack.c.b16 %v1439, %v1438
    %v1562 = vpack.c.b16 %v1441, %v1440
    %v1563 = vpack.c.b16 %v1443, %v1442
    %v1564 = vpack.c.b16 %v1445, %v1444
    %v1565 = vpack.c.b16 %v1447, %v1446
    %v1566 = vpack.c.b16 %v1449, %v1448
    %v1567 = vpack.c.b16 %v1451, %v1450
    %v1568 = vpack.c.b16 %v1453, %v1452
    %v1569 = vpack.c.b16 %v1455, %v1454
    %v1570 = vpack.c.b16 %v1457, %v1456
    %v1571 = vpack.c.b16 %v1459, %v1458
    %v1572 = vpack.c.b16 %v1461, %v1460
    %v1573 = vpack.c.b16 %v1463, %v1462
    %v1574 = vpack.c.b16 %v1465, %v1464
    %v1575 = vpack.c.b16 %v1467, %v1466
    %v1576 = vpack.c.b16 %v1469, %v1468
    %v1577 = vpack.c.b16 %v1471, %v1470
    %v1578 = vpack.c.b16 %v1473, %v1472
    %v1579 = vpack.c.b16 %v1475, %v1474
    %v1580 = vpack.c.b16 %v1477, %v1476
    %v1581 = vpack.c.b16 %v1479, %v1478
    %v1582 = vpack.c.b16 %v1481, %v1480
    %v1583 = vpack.c.b16 %v1483, %v1482
    %v1584 = vpack.c.b16 %v1485, %v1484
    %v1585 = vpack.c.b16 %v1487, %v1486
    %v1586 = vpack.c.b16 %v1489, %v1488
    %v1587 = vpack.c.b16 %v1491, %v1490
    %v1588 = vpack.c.b16 %v1493, %v1492
    %v1589 = vpack.c.b16 %v1495, %v1494
    %v1590 = vpack.c.b16 %v1497, %v1496
    %v1591 = vpack.c.b16 %v1499, %v1498
    %v1592 = vpack.c.b16 %v1501, %v1500
    %v1593 = vpack.c.b16 %v1503, %v1502
    %v1594 = vpack.c.b16 %v1505, %v1504
    %v1595 = vpack.c.b16 %v1507, %v1506
    %v1596 = vpack.c.b16 %v1509, %v1508
    %v1597 = vpack.c.b16 %v1511, %v1510
    %v1598 = vpack.c.b16 %v1513, %v1512
    %v1599 = vpack.c.b16 %v1515, %v1514
    %v1600 = vpack.c.b16 %v1517, %v1516
    %v1601 = vpack.c.b16 %v1519, %v1518
    %v1602 = vpack.c.b16 %v1521, %v1520
    %v1603 = vpack.c.b16 %v1523, %v1522
    %v1604 = vpack.c.b16 %v1525, %v1524
    %v1605 = vpack.c.b16 %v1527, %v1526
    %v1606 = vpack.c.b16 %v1529, %v1528
    %v1607 = vpack.c.b16 %v1531, %v1530
    %v1608 = vpack.c.b16 %v1533, %v1532
    %v1609 = vpack.c.b16 %v1535, %v1534
    %v1610 = vpack.c.b16 %v1537, %v1536
    %v1611 = vpack.c.b16 %v1539, %v1538
    %v1612 = vpack.c.b16 %v1541, %v1540
    %v1613 = vpack.c.b16 %v1543, %v1542
    %v1614 = vpack.c.b16 %v1545, %v1544
    %v1615 = vpack.c.b16 %v1547, %v1546
    %v1616 = vpack.c.b16 %v1549, %v1548
    %v1617 = vpack.c.b16 %v1551, %v1550
    %v1618 = vpack.c.b16 %v1553, %v1552
    %v1619 = vpack.c.b16 %v1555, %v1554
    %1684 = vmatprep.subr.bf16.mxu0 0
    %1685 = vmatpush1.bf16.msra.mxu0 %v1556
    %1686 = vmatprep.subr.bf16.mxu0 0
    %1687 = vmatpush1.bf16.msra.mxu0 %v1557
    %1688 = vmatprep.subr.bf16.mxu0 0
    %1689 = vmatpush1.bf16.msra.mxu0 %v1558
    %1690 = vmatprep.subr.bf16.mxu0 0
    %1691 = vmatpush1.bf16.msra.mxu0 %v1559
    %1692 = vmatprep.subr.bf16.mxu0 0
    %1693 = vmatpush1.bf16.msra.mxu0 %v1560
    %1694 = vmatprep.subr.bf16.mxu0 0
    %1695 = vmatpush1.bf16.msra.mxu0 %v1561
    %1696 = vmatprep.subr.bf16.mxu0 0
    %1697 = vmatpush1.bf16.msra.mxu0 %v1562
    %1698 = vmatprep.subr.bf16.mxu0 0
    %1699 = vmatpush1.bf16.msra.mxu0 %v1563
    %1700 = vmatprep.subr.bf16.mxu0 0
    %1701 = vmatpush1.bf16.msra.mxu0 %v1564
    %1702 = vmatprep.subr.bf16.mxu0 0
    %1703 = vmatpush1.bf16.msra.mxu0 %v1565
    %1704 = vmatprep.subr.bf16.mxu0 0
    %1705 = vmatpush1.bf16.msra.mxu0 %v1566
    %1706 = vmatprep.subr.bf16.mxu0 0
    %1707 = vmatpush1.bf16.msra.mxu0 %v1567
    %1708 = vmatprep.subr.bf16.mxu0 0
    %1709 = vmatpush1.bf16.msra.mxu0 %v1568
    %1710 = vmatprep.subr.bf16.mxu0 0
    %1711 = vmatpush1.bf16.msra.mxu0 %v1569
    %1712 = vmatprep.subr.bf16.mxu0 0
    %1713 = vmatpush1.bf16.msra.mxu0 %v1570
    %1714 = vmatprep.subr.bf16.mxu0 0
    %1715 = vmatpush1.bf16.msra.mxu0 %v1571
    %1716 = vmatprep.mubr.bf16.mxu0 %v1158
    %1717 = vmatmul.mubr.bf16.gmra.mrb[0].mxu0 %v1157
    %v1718 = vpop.f32.mrb[0].mxu0
    %v1719 = vadd.f32 %v1298, %v1718
    %v1720 = vpop.f32.mrb[0].mxu0
    %v1721 = vpop.f32.mrb[0].mxu0
    %v1722 = vpop.f32.mrb[0].mxu0
    %1723 = vdwg.mxu0
    %1724 = vmatprep.subr.bf16.mxu0 0
    %1725 = vmatpush1.bf16.msra.mxu0 %v1572
    %1726 = vmatprep.subr.bf16.mxu0 0
    %1727 = vmatpush1.bf16.msra.mxu0 %v1573
    %1728 = vmatprep.subr.bf16.mxu0 0
    %1729 = vmatpush1.bf16.msra.mxu0 %v1574
    %1730 = vmatprep.subr.bf16.mxu0 0
    %1731 = vmatpush1.bf16.msra.mxu0 %v1575
    %1732 = vmatprep.subr.bf16.mxu0 0
    %1733 = vmatpush1.bf16.msra.mxu0 %v1576
    %1734 = vmatprep.subr.bf16.mxu0 0
    %1735 = vmatpush1.bf16.msra.mxu0 %v1577
    %1736 = vmatprep.subr.bf16.mxu0 0
    %1737 = vmatpush1.bf16.msra.mxu0 %v1578
    %1738 = vmatprep.subr.bf16.mxu0 0
    %1739 = vmatpush1.bf16.msra.mxu0 %v1579
    %1740 = vmatprep.subr.bf16.mxu0 0
    %1741 = vmatpush1.bf16.msra.mxu0 %v1580
    %1742 = vmatprep.subr.bf16.mxu0 0
    %1743 = vmatpush1.bf16.msra.mxu0 %v1581
    %1744 = vmatprep.subr.bf16.mxu0 0
    %1745 = vmatpush1.bf16.msra.mxu0 %v1582
    %1746 = vmatprep.subr.bf16.mxu0 0
    %1747 = vmatpush1.bf16.msra.mxu0 %v1583
    %1748 = vmatprep.subr.bf16.mxu0 0
    %1749 = vmatpush1.bf16.msra.mxu0 %v1584
    %1750 = vmatprep.subr.bf16.mxu0 0
    %1751 = vmatpush1.bf16.msra.mxu0 %v1585
    %1752 = vmatprep.subr.bf16.mxu0 0
    %1753 = vmatpush1.bf16.msra.mxu0 %v1586
    %1754 = vmatprep.subr.bf16.mxu0 0
    %1755 = vmatpush1.bf16.msra.mxu0 %v1587
    %1756 = vmatprep.mubr.bf16.mxu0 %v1160
    %1757 = vmatmul.mubr.bf16.gmra.mrb[0].mxu0 %v1159
    %v1758 = vpop.f32.mrb[0].mxu0
    %v1759 = vadd.f32 %v1719, %v1758
    %v1760 = vpop.f32.mrb[0].mxu0
    %v1761 = vpop.f32.mrb[0].mxu0
    %v1762 = vpop.f32.mrb[0].mxu0
    %1763 = vdwg.mxu0
    %1764 = vmatprep.subr.bf16.mxu0 0
    %1765 = vmatpush1.bf16.msra.mxu0 %v1588
    %1766 = vmatprep.subr.bf16.mxu0 0
    %1767 = vmatpush1.bf16.msra.mxu0 %v1589
    %1768 = vmatprep.subr.bf16.mxu0 0
    %1769 = vmatpush1.bf16.msra.mxu0 %v1590
    %1770 = vmatprep.subr.bf16.mxu0 0
    %1771 = vmatpush1.bf16.msra.mxu0 %v1591
    %1772 = vmatprep.subr.bf16.mxu0 0
    %1773 = vmatpush1.bf16.msra.mxu0 %v1592
    %1774 = vmatprep.subr.bf16.mxu0 0
    %1775 = vmatpush1.bf16.msra.mxu0 %v1593
    %1776 = vmatprep.subr.bf16.mxu0 0
    %1777 = vmatpush1.bf16.msra.mxu0 %v1594
    %1778 = vmatprep.subr.bf16.mxu0 0
    %1779 = vmatpush1.bf16.msra.mxu0 %v1595
    %1780 = vmatprep.subr.bf16.mxu0 0
    %1781 = vmatpush1.bf16.msra.mxu0 %v1596
    %1782 = vmatprep.subr.bf16.mxu0 0
    %1783 = vmatpush1.bf16.msra.mxu0 %v1597
    %1784 = vmatprep.subr.bf16.mxu0 0
    %1785 = vmatpush1.bf16.msra.mxu0 %v1598
    %1786 = vmatprep.subr.bf16.mxu0 0
    %1787 = vmatpush1.bf16.msra.mxu0 %v1599
    %1788 = vmatprep.subr.bf16.mxu0 0
    %1789 = vmatpush1.bf16.msra.mxu0 %v1600
    %1790 = vmatprep.subr.bf16.mxu0 0
    %1791 = vmatpush1.bf16.msra.mxu0 %v1601
    %1792 = vmatprep.subr.bf16.mxu0 0
    %1793 = vmatpush1.bf16.msra.mxu0 %v1602
    %1794 = vmatprep.subr.bf16.mxu0 0
    %1795 = vmatpush1.bf16.msra.mxu0 %v1603
    %1796 = vmatprep.mubr.bf16.mxu0 %v1162
    %1797 = vmatmul.mubr.bf16.gmra.mrb[0].mxu0 %v1161
    %v1798 = vpop.f32.mrb[0].mxu0
    %v1799 = vadd.f32 %v1759, %v1798
    %v1800 = vpop.f32.mrb[0].mxu0
    %v1801 = vpop.f32.mrb[0].mxu0
    %v1802 = vpop.f32.mrb[0].mxu0
    %1803 = vdwg.mxu0
    %1804 = vmatprep.subr.bf16.mxu0 0
    %1805 = vmatpush1.bf16.msra.mxu0 %v1604
    %1806 = vmatprep.subr.bf16.mxu0 0
    %1807 = vmatpush1.bf16.msra.mxu0 %v1605
    %1808 = vmatprep.subr.bf16.mxu0 0
    %1809 = vmatpush1.bf16.msra.mxu0 %v1606
    %1810 = vmatprep.subr.bf16.mxu0 0
    %1811 = vmatpush1.bf16.msra.mxu0 %v1607
    %1812 = vmatprep.subr.bf16.mxu0 0
    %1813 = vmatpush1.bf16.msra.mxu0 %v1608
    %1814 = vmatprep.subr.bf16.mxu0 0
    %1815 = vmatpush1.bf16.msra.mxu0 %v1609
    %1816 = vmatprep.subr.bf16.mxu0 0
    %1817 = vmatpush1.bf16.msra.mxu0 %v1610
    %1818 = vmatprep.subr.bf16.mxu0 0
    %1819 = vmatpush1.bf16.msra.mxu0 %v1611
    %1820 = vmatprep.subr.bf16.mxu0 0
    %1821 = vmatpush1.bf16.msra.mxu0 %v1612
    %1822 = vmatprep.subr.bf16.mxu0 0
    %1823 = vmatpush1.bf16.msra.mxu0 %v1613
    %1824 = vmatprep.subr.bf16.mxu0 0
    %1825 = vmatpush1.bf16.msra.mxu0 %v1614
    %1826 = vmatprep.subr.bf16.mxu0 0
    %1827 = vmatpush1.bf16.msra.mxu0 %v1615
    %1828 = vmatprep.subr.bf16.mxu0 0
    %1829 = vmatpush1.bf16.msra.mxu0 %v1616
    %1830 = vmatprep.subr.bf16.mxu0 0
    %1831 = vmatpush1.bf16.msra.mxu0 %v1617
    %1832 = vmatprep.subr.bf16.mxu0 0
    %1833 = vmatpush1.bf16.msra.mxu0 %v1618
    %1834 = vmatprep.subr.bf16.mxu0 0
    %1835 = vmatpush1.bf16.msra.mxu0 %v1619
    %1836 = vmatprep.mubr.bf16.mxu0 %v1164
    %1837 = vmatmul.mubr.bf16.gmra.mrb[0].mxu0 %v1163
    %v1838 = vpop.f32.mrb[0].mxu0
    %v1839 = vadd.f32 %v1799, %v1838
    %v1840 = vpop.f32.mrb[0].mxu0
    %v1841 = vpop.f32.mrb[0].mxu0
    %v1842 = vpop.f32.mrb[0].mxu0
    %1843 = vdwg.mxu0
    %vm1844 = vcmp.ge.f32.partialorder %v1839, 0.0
    %v1845 = vmul.f32 %v1839, 0.01
    %v1846 = vsel %vm1844, %v1839, %v1845
    %v1847 = vld [vmem:[#allocation10] sm:$0xf]
    %v1848 = vld [vmem:[#allocation10 + $0x4] sm:$0xf]
    %v1849 = vld [vmem:[#allocation10 + $0x8] sm:$0xf]
    %v1850 = vld [vmem:[#allocation10 + $0xc] sm:$0xf]
    %v1851 = vld [vmem:[#allocation10 + $0x10] sm:$0xf]
    %v1852 = vld [vmem:[#allocation10 + $0x14] sm:$0xf]
    %v1853 = vld [vmem:[#allocation10 + $0x18] sm:$0xf]
    %v1854 = vld [vmem:[#allocation10 + $0x1c] sm:$0xf]
    %v1855 = vld [vmem:[#allocation10 + $0x20] sm:$0xf]
    %v1856 = vld [vmem:[#allocation10 + $0x24] sm:$0xf]
    %v1857 = vld [vmem:[#allocation10 + $0x28] sm:$0xf]
    %v1858 = vld [vmem:[#allocation10 + $0x2c] sm:$0xf]
    %v1859 = vld [vmem:[#allocation10 + $0x30] sm:$0xf]
    %v1860 = vld [vmem:[#allocation10 + $0x34] sm:$0xf]
    %v1861 = vld [vmem:[#allocation10 + $0x38] sm:$0xf]
    %v1862 = vld [vmem:[#allocation10 + $0x3c] sm:$0xf]
    %v1863 = vunpack.c.l.bf16 %v1847
    %v1864 = vunpack.c.l.bf16 %v1848
    %v1865 = vunpack.c.l.bf16 %v1849
    %v1866 = vunpack.c.l.bf16 %v1850
    %v1867 = vunpack.c.l.bf16 %v1851
    %v1868 = vunpack.c.l.bf16 %v1852
    %v1869 = vunpack.c.l.bf16 %v1853
    %v1870 = vunpack.c.l.bf16 %v1854
    %v1871 = vunpack.c.l.bf16 %v1855
    %v1872 = vunpack.c.l.bf16 %v1856
    %v1873 = vunpack.c.l.bf16 %v1857
    %v1874 = vunpack.c.l.bf16 %v1858
    %v1875 = vunpack.c.l.bf16 %v1859
    %v1876 = vunpack.c.l.bf16 %v1860
    %v1877 = vunpack.c.l.bf16 %v1861
    %v1878 = vunpack.c.l.bf16 %v1862
    %v1879 = vld [vmem:[%s6] sm:$0x1]
    %v1881 = vlaneseq
    %v1882 = vshrl.u32 %v1881, 7
    %v1883 = vsub.s32 0, %v1882
    %v1884 = vrot.slane %v1879, %v1883
    %1886 = vmatprep.subr.mxu0 0.0
    %1887 = vmatpush1.msra.mxu0 %v1863
    %1888 = vmatprep.subr.mxu0 0.0
    %1889 = vmatpush1.msra.mxu0 %v1864
    %1890 = vmatprep.subr.mxu0 0.0
    %1891 = vmatpush1.msra.mxu0 %v1865
    %1892 = vmatprep.subr.mxu0 0.0
    %1893 = vmatpush1.msra.mxu0 %v1866
    %1894 = vmatprep.subr.mxu0 0.0
    %1895 = vmatpush1.msra.mxu0 %v1867
    %1896 = vmatprep.subr.mxu0 0.0
    %1897 = vmatpush1.msra.mxu0 %v1868
    %1898 = vmatprep.subr.mxu0 0.0
    %1899 = vmatpush1.msra.mxu0 %v1869
    %1900 = vmatprep.subr.mxu0 0.0
    %1901 = vmatpush1.msra.mxu0 %v1870
    %1902 = vmatprep.subr.mxu0 0.0
    %1903 = vmatpush1.msra.mxu0 %v1871
    %1904 = vmatprep.subr.mxu0 0.0
    %1905 = vmatpush1.msra.mxu0 %v1872
    %1906 = vmatprep.subr.mxu0 0.0
    %1907 = vmatpush1.msra.mxu0 %v1873
    %1908 = vmatprep.subr.mxu0 0.0
    %1909 = vmatpush1.msra.mxu0 %v1874
    %1910 = vmatprep.subr.mxu0 0.0
    %1911 = vmatpush1.msra.mxu0 %v1875
    %1912 = vmatprep.subr.mxu0 0.0
    %1913 = vmatpush1.msra.mxu0 %v1876
    %1914 = vmatprep.subr.mxu0 0.0
    %1915 = vmatpush1.msra.mxu0 %v1877
    %1916 = vmatprep.subr.mxu0 0.0
    %1917 = vmatpush1.msra.mxu0 %v1878
    %1918 = vmatprep.subr.mxu0 0.0
    %1919 = vmatpush1.msra.mxu0 0.0
    %1920 = vmatprep.subr.mxu0 0.0
    %1921 = vmatpush1.msra.mxu0 0.0
    %1922 = vmatprep.subr.mxu0 0.0
    %1923 = vmatpush1.msra.mxu0 0.0
    %1924 = vmatprep.subr.mxu0 0.0
    %1925 = vmatpush1.msra.mxu0 0.0
    %1926 = vmatprep.subr.mxu0 0.0
    %1927 = vmatpush1.msra.mxu0 0.0
    %1928 = vmatprep.subr.mxu0 0.0
    %1929 = vmatpush1.msra.mxu0 0.0
    %1930 = vmatprep.subr.mxu0 0.0
    %1931 = vmatpush1.msra.mxu0 0.0
    %1932 = vmatprep.subr.mxu0 0.0
    %1933 = vmatpush1.msra.mxu0 0.0
    %1934 = vmatprep.subr.mxu0 0.0
    %1935 = vmatpush1.msra.mxu0 0.0
    %1936 = vmatprep.subr.mxu0 0.0
    %1937 = vmatpush1.msra.mxu0 0.0
    %1938 = vmatprep.subr.mxu0 0.0
    %1939 = vmatpush1.msra.mxu0 0.0
    %1940 = vmatprep.subr.mxu0 0.0
    %1941 = vmatpush1.msra.mxu0 0.0
    %1942 = vmatprep.subr.mxu0 0.0
    %1943 = vmatpush1.msra.mxu0 0.0
    %1944 = vmatprep.subr.mxu0 0.0
    %1945 = vmatpush1.msra.mxu0 0.0
    %1946 = vmatprep.subr.mxu0 0.0
    %1947 = vmatpush1.msra.mxu0 0.0
    %1948 = vmatprep.subr.mxu0 0.0
    %1949 = vmatpush1.msra.mxu0 0.0
    %1950 = vmatprep.mubr.f32.mxu0 0.0
    %1951 = vmatmul.mubr.f32.gmra.mrb[0].mxu0 %v1846
    %v1952 = vpop.f32.mrb[0].mxu0
    %v1953 = vadd.f32 %v1884, %v1952
    %v1954 = vpop.f32.mrb[0].mxu0
    %1955 = vdwg.mxu0
    %v1956 = vld [vmem:[#allocation11] sm:$0xf]
    %v1957 = vld [vmem:[#allocation11 + $0x4] sm:$0xf]
    %v1958 = vld [vmem:[#allocation11 + $0x8] sm:$0xf]
    %v1959 = vld [vmem:[#allocation11 + $0xc] sm:$0xf]
    %v1960 = vld [vmem:[#allocation11 + $0x10] sm:$0xf]
    %v1961 = vld [vmem:[#allocation11 + $0x14] sm:$0xf]
    %v1962 = vld [vmem:[#allocation11 + $0x18] sm:$0xf]
    %v1963 = vld [vmem:[#allocation11 + $0x1c] sm:$0xf]
    %v1964 = vld [vmem:[#allocation11 + $0x20] sm:$0xf]
    %v1965 = vld [vmem:[#allocation11 + $0x24] sm:$0xf]
    %v1966 = vld [vmem:[#allocation11 + $0x28] sm:$0xf]
    %v1967 = vld [vmem:[#allocation11 + $0x2c] sm:$0xf]
    %v1968 = vld [vmem:[#allocation11 + $0x30] sm:$0xf]
    %v1969 = vld [vmem:[#allocation11 + $0x34] sm:$0xf]
    %v1970 = vld [vmem:[#allocation11 + $0x38] sm:$0xf]
    %v1971 = vld [vmem:[#allocation11 + $0x3c] sm:$0xf]
    %v1972 = vunpack.c.l.bf16 %v1956
    %v1973 = vunpack.c.l.bf16 %v1957
    %v1974 = vunpack.c.l.bf16 %v1958
    %v1975 = vunpack.c.l.bf16 %v1959
    %v1976 = vunpack.c.l.bf16 %v1960
    %v1977 = vunpack.c.l.bf16 %v1961
    %v1978 = vunpack.c.l.bf16 %v1962
    %v1979 = vunpack.c.l.bf16 %v1963
    %v1980 = vunpack.c.l.bf16 %v1964
    %v1981 = vunpack.c.l.bf16 %v1965
    %v1982 = vunpack.c.l.bf16 %v1966
    %v1983 = vunpack.c.l.bf16 %v1967
    %v1984 = vunpack.c.l.bf16 %v1968
    %v1985 = vunpack.c.l.bf16 %v1969
    %v1986 = vunpack.c.l.bf16 %v1970
    %v1987 = vunpack.c.l.bf16 %v1971
    %v1988 = vld [vmem:[%s8] sm:$0x1]
    %v1990 = vlaneseq
    %v1991 = vshrl.u32 %v1990, 7
    %v1992 = vsub.s32 0, %v1991
    %v1993 = vrot.slane %v1988, %v1992
    %1995 = vmatprep.subr.mxu0 0.0
    %1996 = vmatpush1.msra.mxu0 %v1972
    %1997 = vmatprep.subr.mxu0 0.0
    %1998 = vmatpush1.msra.mxu0 %v1973
    %1999 = vmatprep.subr.mxu0 0.0
    %2000 = vmatpush1.msra.mxu0 %v1974
    %2001 = vmatprep.subr.mxu0 0.0
    %2002 = vmatpush1.msra.mxu0 %v1975
    %2003 = vmatprep.subr.mxu0 0.0
    %2004 = vmatpush1.msra.mxu0 %v1976
    %2005 = vmatprep.subr.mxu0 0.0
    %2006 = vmatpush1.msra.mxu0 %v1977
    %2007 = vmatprep.subr.mxu0 0.0
    %2008 = vmatpush1.msra.mxu0 %v1978
    %2009 = vmatprep.subr.mxu0 0.0
    %2010 = vmatpush1.msra.mxu0 %v1979
    %2011 = vmatprep.subr.mxu0 0.0
    %2012 = vmatpush1.msra.mxu0 %v1980
    %2013 = vmatprep.subr.mxu0 0.0
    %2014 = vmatpush1.msra.mxu0 %v1981
    %2015 = vmatprep.subr.mxu0 0.0
    %2016 = vmatpush1.msra.mxu0 %v1982
    %2017 = vmatprep.subr.mxu0 0.0
    %2018 = vmatpush1.msra.mxu0 %v1983
    %2019 = vmatprep.subr.mxu0 0.0
    %2020 = vmatpush1.msra.mxu0 %v1984
    %2021 = vmatprep.subr.mxu0 0.0
    %2022 = vmatpush1.msra.mxu0 %v1985
    %2023 = vmatprep.subr.mxu0 0.0
    %2024 = vmatpush1.msra.mxu0 %v1986
    %2025 = vmatprep.subr.mxu0 0.0
    %2026 = vmatpush1.msra.mxu0 %v1987
    %2027 = vmatprep.subr.mxu0 0.0
    %2028 = vmatpush1.msra.mxu0 0.0
    %2029 = vmatprep.subr.mxu0 0.0
    %2030 = vmatpush1.msra.mxu0 0.0
    %2031 = vmatprep.subr.mxu0 0.0
    %2032 = vmatpush1.msra.mxu0 0.0
    %2033 = vmatprep.subr.mxu0 0.0
    %2034 = vmatpush1.msra.mxu0 0.0
    %2035 = vmatprep.subr.mxu0 0.0
    %2036 = vmatpush1.msra.mxu0 0.0
    %2037 = vmatprep.subr.mxu0 0.0
    %2038 = vmatpush1.msra.mxu0 0.0
    %2039 = vmatprep.subr.mxu0 0.0
    %2040 = vmatpush1.msra.mxu0 0.0
    %2041 = vmatprep.subr.mxu0 0.0
    %2042 = vmatpush1.msra.mxu0 0.0
    %2043 = vmatprep.subr.mxu0 0.0
    %2044 = vmatpush1.msra.mxu0 0.0
    %2045 = vmatprep.subr.mxu0 0.0
    %2046 = vmatpush1.msra.mxu0 0.0
    %2047 = vmatprep.subr.mxu0 0.0
    %2048 = vmatpush1.msra.mxu0 0.0
    %2049 = vmatprep.subr.mxu0 0.0
    %2050 = vmatpush1.msra.mxu0 0.0
    %2051 = vmatprep.subr.mxu0 0.0
    %2052 = vmatpush1.msra.mxu0 0.0
    %2053 = vmatprep.subr.mxu0 0.0
    %2054 = vmatpush1.msra.mxu0 0.0
    %2055 = vmatprep.subr.mxu0 0.0
    %2056 = vmatpush1.msra.mxu0 0.0
    %2057 = vmatprep.subr.mxu0 0.0
    %2058 = vmatpush1.msra.mxu0 0.0
    %2059 = vmatprep.mubr.f32.mxu0 0.0
    %2060 = vmatmul.mubr.f32.gmra.mrb[0].mxu0 %v1953
    %v2061 = vpop.f32.mrb[0].mxu0
    %v2062 = vadd.f32 %v1993, %v2061
    %v2063 = vpop.f32.mrb[0].mxu0
    %2064 = vdwg.mxu0
    %vm2065 = vcmp.ge.f32.partialorder %v2062, 0.0
    %v2066 = vmul.f32 %v2062, 0.01
    %v2067 = vsel %vm2065, %v2062, %v2066
    %v2068 = vpack.c.bf16 %v2067, %v2067
    %v2069 = vld [vmem:[#allocation13] sm:$0xff]
    %v2070 = vld [vmem:[#allocation13 + $0x8] sm:$0xff]
    %v2071 = vld [vmem:[#allocation13 + $0x10] sm:$0xff]
    %v2072 = vld [vmem:[#allocation13 + $0x18] sm:$0xff]
    %v2073 = vld [vmem:[#allocation13 + $0x20] sm:$0xff]
    %v2074 = vld [vmem:[#allocation13 + $0x28] sm:$0xff]
    %v2075 = vld [vmem:[#allocation13 + $0x30] sm:$0xff]
    %v2076 = vld [vmem:[#allocation13 + $0x38] sm:$0xff]
    %v2077 = vld [vmem:[#allocation13 + $0x40] sm:$0xff]
    %v2078 = vld [vmem:[#allocation13 + $0x48] sm:$0xff]
    %v2079 = vld [vmem:[#allocation13 + $0x50] sm:$0xff]
    %v2080 = vld [vmem:[#allocation13 + $0x58] sm:$0xff]
    %v2081 = vld [vmem:[#allocation13 + $0x60] sm:$0xff]
    %v2082 = vld [vmem:[#allocation13 + $0x68] sm:$0xff]
    %v2083 = vld [vmem:[#allocation13 + $0x70] sm:$0xff]
    %v2084 = vld [vmem:[#allocation13 + $0x78] sm:$0xff]
    %v2085 = vld [vmem:[#allocation13 + $0x80] sm:$0xff]
    %v2086 = vld [vmem:[#allocation13 + $0x88] sm:$0xff]
    %v2087 = vld [vmem:[#allocation13 + $0x90] sm:$0xff]
    %v2088 = vld [vmem:[#allocation13 + $0x98] sm:$0xff]
    %v2089 = vld [vmem:[#allocation13 + $0xa0] sm:$0xff]
    %v2090 = vld [vmem:[#allocation13 + $0xa8] sm:$0xff]
    %v2091 = vld [vmem:[#allocation13 + $0xb0] sm:$0xff]
    %v2092 = vld [vmem:[#allocation13 + $0xb8] sm:$0xff]
    %v2093 = vld [vmem:[#allocation13 + $0xc0] sm:$0xff]
    %v2094 = vld [vmem:[#allocation13 + $0xc8] sm:$0xff]
    %v2095 = vld [vmem:[#allocation13 + $0xd0] sm:$0xff]
    %v2096 = vld [vmem:[#allocation13 + $0xd8] sm:$0xff]
    %v2097 = vld [vmem:[#allocation13 + $0xe0] sm:$0xff]
    %v2098 = vld [vmem:[#allocation13 + $0xe8] sm:$0xff]
    %v2099 = vld [vmem:[#allocation13 + $0xf0] sm:$0xff]
    %v2100 = vld [vmem:[#allocation13 + $0xf8] sm:$0xff]
    %v2101 = vld [vmem:[#allocation13 + $0x100] sm:$0xff]
    %v2102 = vld [vmem:[#allocation13 + $0x108] sm:$0xff]
    %v2103 = vld [vmem:[#allocation13 + $0x110] sm:$0xff]
    %v2104 = vld [vmem:[#allocation13 + $0x118] sm:$0xff]
    %v2105 = vld [vmem:[#allocation13 + $0x120] sm:$0xff]
    %v2106 = vld [vmem:[#allocation13 + $0x128] sm:$0xff]
    %v2107 = vld [vmem:[#allocation13 + $0x130] sm:$0xff]
    %v2108 = vld [vmem:[#allocation13 + $0x138] sm:$0xff]
    %v2109 = vld [vmem:[#allocation13 + $0x140] sm:$0xff]
    %v2110 = vld [vmem:[#allocation13 + $0x148] sm:$0xff]
    %v2111 = vld [vmem:[#allocation13 + $0x150] sm:$0xff]
    %v2112 = vld [vmem:[#allocation13 + $0x158] sm:$0xff]
    %v2113 = vld [vmem:[#allocation13 + $0x160] sm:$0xff]
    %v2114 = vld [vmem:[#allocation13 + $0x168] sm:$0xff]
    %v2115 = vld [vmem:[#allocation13 + $0x170] sm:$0xff]
    %v2116 = vld [vmem:[#allocation13 + $0x178] sm:$0xff]
    %v2117 = vld [vmem:[#allocation13 + $0x180] sm:$0xff]
    %v2118 = vld [vmem:[#allocation13 + $0x188] sm:$0xff]
    %v2119 = vld [vmem:[#allocation13 + $0x190] sm:$0xff]
    %v2120 = vld [vmem:[#allocation13 + $0x198] sm:$0xff]
    %v2121 = vld [vmem:[#allocation13 + $0x1a0] sm:$0xff]
    %v2122 = vld [vmem:[#allocation13 + $0x1a8] sm:$0xff]
    %v2123 = vld [vmem:[#allocation13 + $0x1b0] sm:$0xff]
    %v2124 = vld [vmem:[#allocation13 + $0x1b8] sm:$0xff]
    %v2125 = vld [vmem:[#allocation13 + $0x1c0] sm:$0xff]
    %v2126 = vld [vmem:[#allocation13 + $0x1c8] sm:$0xff]
    %v2127 = vld [vmem:[#allocation13 + $0x1d0] sm:$0xff]
    %v2128 = vld [vmem:[#allocation13 + $0x1d8] sm:$0xff]
    %v2129 = vld [vmem:[#allocation13 + $0x1e0] sm:$0xff]
    %v2130 = vld [vmem:[#allocation13 + $0x1e8] sm:$0xff]
    %v2131 = vld [vmem:[#allocation13 + $0x1f0] sm:$0xff]
    %v2132 = vld [vmem:[#allocation13 + $0x1f8] sm:$0xff]
    %v2133 = vld [vmem:[%s10] sm:$0xff]
    %v2135 = vlaneseq
    %v2136 = vshrl.u32 %v2135, 7
    %v2137 = vsub.s32 0, %v2136
    %v2138 = vrot.slane %v2133, %v2137
    %v2139 = vlaneseq
    %v2140 = vshrl.u32 %v2139, 7
    %v2141 = vsub.s32 1, %v2140
    %v2142 = vrot.slane %v2133, %v2141
    %v2143 = vlaneseq
    %v2144 = vshrl.u32 %v2143, 7
    %v2145 = vsub.s32 2, %v2144
    %v2146 = vrot.slane %v2133, %v2145
    %v2147 = vlaneseq
    %v2148 = vshrl.u32 %v2147, 7
    %v2149 = vsub.s32 3, %v2148
    %v2150 = vrot.slane %v2133, %v2149
    %v2151 = vlaneseq
    %v2152 = vshrl.u32 %v2151, 7
    %v2153 = vsub.s32 4, %v2152
    %v2154 = vrot.slane %v2133, %v2153
    %v2155 = vlaneseq
    %v2156 = vshrl.u32 %v2155, 7
    %v2157 = vsub.s32 5, %v2156
    %v2158 = vrot.slane %v2133, %v2157
    %v2159 = vlaneseq
    %v2160 = vshrl.u32 %v2159, 7
    %v2161 = vsub.s32 6, %v2160
    %v2162 = vrot.slane %v2133, %v2161
    %v2163 = vlaneseq
    %v2164 = vshrl.u32 %v2163, 7
    %v2165 = vsub.s32 7, %v2164
    %v2166 = vrot.slane %v2133, %v2165
    %v2239 = vunpack.c.l.b16 %v2069
    %v2240 = vunpack.c.h.b16 %v2069
    %v2241 = vunpack.c.l.b16 %v2070
    %v2242 = vunpack.c.h.b16 %v2070
    %v2243 = vunpack.c.l.b16 %v2071
    %v2244 = vunpack.c.h.b16 %v2071
    %v2245 = vunpack.c.l.b16 %v2072
    %v2246 = vunpack.c.h.b16 %v2072
    %v2247 = vunpack.c.l.b16 %v2073
    %v2248 = vunpack.c.h.b16 %v2073
    %v2249 = vunpack.c.l.b16 %v2074
    %v2250 = vunpack.c.h.b16 %v2074
    %v2251 = vunpack.c.l.b16 %v2075
    %v2252 = vunpack.c.h.b16 %v2075
    %v2253 = vunpack.c.l.b16 %v2076
    %v2254 = vunpack.c.h.b16 %v2076
    %v2255 = vunpack.c.l.b16 %v2077
    %v2256 = vunpack.c.h.b16 %v2077
    %v2257 = vunpack.c.l.b16 %v2078
    %v2258 = vunpack.c.h.b16 %v2078
    %v2259 = vunpack.c.l.b16 %v2079
    %v2260 = vunpack.c.h.b16 %v2079
    %v2261 = vunpack.c.l.b16 %v2080
    %v2262 = vunpack.c.h.b16 %v2080
    %v2263 = vunpack.c.l.b16 %v2081
    %v2264 = vunpack.c.h.b16 %v2081
    %v2265 = vunpack.c.l.b16 %v2082
    %v2266 = vunpack.c.h.b16 %v2082
    %v2267 = vunpack.c.l.b16 %v2083
    %v2268 = vunpack.c.h.b16 %v2083
    %v2269 = vunpack.c.l.b16 %v2084
    %v2270 = vunpack.c.h.b16 %v2084
    %v2271 = vunpack.c.l.b16 %v2085
    %v2272 = vunpack.c.h.b16 %v2085
    %v2273 = vunpack.c.l.b16 %v2086
    %v2274 = vunpack.c.h.b16 %v2086
    %v2275 = vunpack.c.l.b16 %v2087
    %v2276 = vunpack.c.h.b16 %v2087
    %v2277 = vunpack.c.l.b16 %v2088
    %v2278 = vunpack.c.h.b16 %v2088
    %v2279 = vunpack.c.l.b16 %v2089
    %v2280 = vunpack.c.h.b16 %v2089
    %v2281 = vunpack.c.l.b16 %v2090
    %v2282 = vunpack.c.h.b16 %v2090
    %v2283 = vunpack.c.l.b16 %v2091
    %v2284 = vunpack.c.h.b16 %v2091
    %v2285 = vunpack.c.l.b16 %v2092
    %v2286 = vunpack.c.h.b16 %v2092
    %v2287 = vunpack.c.l.b16 %v2093
    %v2288 = vunpack.c.h.b16 %v2093
    %v2289 = vunpack.c.l.b16 %v2094
    %v2290 = vunpack.c.h.b16 %v2094
    %v2291 = vunpack.c.l.b16 %v2095
    %v2292 = vunpack.c.h.b16 %v2095
    %v2293 = vunpack.c.l.b16 %v2096
    %v2294 = vunpack.c.h.b16 %v2096
    %v2295 = vunpack.c.l.b16 %v2097
    %v2296 = vunpack.c.h.b16 %v2097
    %v2297 = vunpack.c.l.b16 %v2098
    %v2298 = vunpack.c.h.b16 %v2098
    %v2299 = vunpack.c.l.b16 %v2099
    %v2300 = vunpack.c.h.b16 %v2099
    %v2301 = vunpack.c.l.b16 %v2100
    %v2302 = vunpack.c.h.b16 %v2100
    %v2303 = vunpack.c.l.b16 %v2101
    %v2304 = vunpack.c.h.b16 %v2101
    %v2305 = vunpack.c.l.b16 %v2102
    %v2306 = vunpack.c.h.b16 %v2102
    %v2307 = vunpack.c.l.b16 %v2103
    %v2308 = vunpack.c.h.b16 %v2103
    %v2309 = vunpack.c.l.b16 %v2104
    %v2310 = vunpack.c.h.b16 %v2104
    %v2311 = vunpack.c.l.b16 %v2105
    %v2312 = vunpack.c.h.b16 %v2105
    %v2313 = vunpack.c.l.b16 %v2106
    %v2314 = vunpack.c.h.b16 %v2106
    %v2315 = vunpack.c.l.b16 %v2107
    %v2316 = vunpack.c.h.b16 %v2107
    %v2317 = vunpack.c.l.b16 %v2108
    %v2318 = vunpack.c.h.b16 %v2108
    %v2319 = vunpack.c.l.b16 %v2109
    %v2320 = vunpack.c.h.b16 %v2109
    %v2321 = vunpack.c.l.b16 %v2110
    %v2322 = vunpack.c.h.b16 %v2110
    %v2323 = vunpack.c.l.b16 %v2111
    %v2324 = vunpack.c.h.b16 %v2111
    %v2325 = vunpack.c.l.b16 %v2112
    %v2326 = vunpack.c.h.b16 %v2112
    %v2327 = vunpack.c.l.b16 %v2113
    %v2328 = vunpack.c.h.b16 %v2113
    %v2329 = vunpack.c.l.b16 %v2114
    %v2330 = vunpack.c.h.b16 %v2114
    %v2331 = vunpack.c.l.b16 %v2115
    %v2332 = vunpack.c.h.b16 %v2115
    %v2333 = vunpack.c.l.b16 %v2116
    %v2334 = vunpack.c.h.b16 %v2116
    %v2335 = vunpack.c.l.b16 %v2117
    %v2336 = vunpack.c.h.b16 %v2117
    %v2337 = vunpack.c.l.b16 %v2118
    %v2338 = vunpack.c.h.b16 %v2118
    %v2339 = vunpack.c.l.b16 %v2119
    %v2340 = vunpack.c.h.b16 %v2119
    %v2341 = vunpack.c.l.b16 %v2120
    %v2342 = vunpack.c.h.b16 %v2120
    %v2343 = vunpack.c.l.b16 %v2121
    %v2344 = vunpack.c.h.b16 %v2121
    %v2345 = vunpack.c.l.b16 %v2122
    %v2346 = vunpack.c.h.b16 %v2122
    %v2347 = vunpack.c.l.b16 %v2123
    %v2348 = vunpack.c.h.b16 %v2123
    %v2349 = vunpack.c.l.b16 %v2124
    %v2350 = vunpack.c.h.b16 %v2124
    %v2351 = vunpack.c.l.b16 %v2125
    %v2352 = vunpack.c.h.b16 %v2125
    %v2353 = vunpack.c.l.b16 %v2126
    %v2354 = vunpack.c.h.b16 %v2126
    %v2355 = vunpack.c.l.b16 %v2127
    %v2356 = vunpack.c.h.b16 %v2127
    %v2357 = vunpack.c.l.b16 %v2128
    %v2358 = vunpack.c.h.b16 %v2128
    %v2359 = vunpack.c.l.b16 %v2129
    %v2360 = vunpack.c.h.b16 %v2129
    %v2361 = vunpack.c.l.b16 %v2130
    %v2362 = vunpack.c.h.b16 %v2130
    %v2363 = vunpack.c.l.b16 %v2131
    %v2364 = vunpack.c.h.b16 %v2131
    %v2365 = vunpack.c.l.b16 %v2132
    %v2366 = vunpack.c.h.b16 %v2132
    %v2367 = vpack.c.b16 %v2247, %v2239
    %v2368 = vpack.c.b16 %v2248, %v2240
    %v2369 = vpack.c.b16 %v2249, %v2241
    %v2370 = vpack.c.b16 %v2250, %v2242
    %v2371 = vpack.c.b16 %v2251, %v2243
    %v2372 = vpack.c.b16 %v2252, %v2244
    %v2373 = vpack.c.b16 %v2253, %v2245
    %v2374 = vpack.c.b16 %v2254, %v2246
    %v2375 = vpack.c.b16 %v2263, %v2255
    %v2376 = vpack.c.b16 %v2264, %v2256
    %v2377 = vpack.c.b16 %v2265, %v2257
    %v2378 = vpack.c.b16 %v2266, %v2258
    %v2379 = vpack.c.b16 %v2267, %v2259
    %v2380 = vpack.c.b16 %v2268, %v2260
    %v2381 = vpack.c.b16 %v2269, %v2261
    %v2382 = vpack.c.b16 %v2270, %v2262
    %v2383 = vpack.c.b16 %v2279, %v2271
    %v2384 = vpack.c.b16 %v2280, %v2272
    %v2385 = vpack.c.b16 %v2281, %v2273
    %v2386 = vpack.c.b16 %v2282, %v2274
    %v2387 = vpack.c.b16 %v2283, %v2275
    %v2388 = vpack.c.b16 %v2284, %v2276
    %v2389 = vpack.c.b16 %v2285, %v2277
    %v2390 = vpack.c.b16 %v2286, %v2278
    %v2391 = vpack.c.b16 %v2295, %v2287
    %v2392 = vpack.c.b16 %v2296, %v2288
    %v2393 = vpack.c.b16 %v2297, %v2289
    %v2394 = vpack.c.b16 %v2298, %v2290
    %v2395 = vpack.c.b16 %v2299, %v2291
    %v2396 = vpack.c.b16 %v2300, %v2292
    %v2397 = vpack.c.b16 %v2301, %v2293
    %v2398 = vpack.c.b16 %v2302, %v2294
    %v2399 = vpack.c.b16 %v2311, %v2303
    %v2400 = vpack.c.b16 %v2312, %v2304
    %v2401 = vpack.c.b16 %v2313, %v2305
    %v2402 = vpack.c.b16 %v2314, %v2306
    %v2403 = vpack.c.b16 %v2315, %v2307
    %v2404 = vpack.c.b16 %v2316, %v2308
    %v2405 = vpack.c.b16 %v2317, %v2309
    %v2406 = vpack.c.b16 %v2318, %v2310
    %v2407 = vpack.c.b16 %v2327, %v2319
    %v2408 = vpack.c.b16 %v2328, %v2320
    %v2409 = vpack.c.b16 %v2329, %v2321
    %v2410 = vpack.c.b16 %v2330, %v2322
    %v2411 = vpack.c.b16 %v2331, %v2323
    %v2412 = vpack.c.b16 %v2332, %v2324
    %v2413 = vpack.c.b16 %v2333, %v2325
    %v2414 = vpack.c.b16 %v2334, %v2326
    %v2415 = vpack.c.b16 %v2343, %v2335
    %v2416 = vpack.c.b16 %v2344, %v2336
    %v2417 = vpack.c.b16 %v2345, %v2337
    %v2418 = vpack.c.b16 %v2346, %v2338
    %v2419 = vpack.c.b16 %v2347, %v2339
    %v2420 = vpack.c.b16 %v2348, %v2340
    %v2421 = vpack.c.b16 %v2349, %v2341
    %v2422 = vpack.c.b16 %v2350, %v2342
    %v2423 = vpack.c.b16 %v2359, %v2351
    %v2424 = vpack.c.b16 %v2360, %v2352
    %v2425 = vpack.c.b16 %v2361, %v2353
    %v2426 = vpack.c.b16 %v2362, %v2354
    %v2427 = vpack.c.b16 %v2363, %v2355
    %v2428 = vpack.c.b16 %v2364, %v2356
    %v2429 = vpack.c.b16 %v2365, %v2357
    %v2430 = vpack.c.b16 %v2366, %v2358
    %2495 = vmatprep.subr.bf16.mxu0 %v2368
    %2496 = vmatpush1.bf16.msra.mxu0 %v2367
    %2497 = vmatprep.subr.bf16.mxu0 %v2376
    %2498 = vmatpush1.bf16.msra.mxu0 %v2375
    %2499 = vmatprep.subr.bf16.mxu0 %v2384
    %2500 = vmatpush1.bf16.msra.mxu0 %v2383
    %2501 = vmatprep.subr.bf16.mxu0 %v2392
    %2502 = vmatpush1.bf16.msra.mxu0 %v2391
    %2503 = vmatprep.subr.bf16.mxu0 %v2400
    %2504 = vmatpush1.bf16.msra.mxu0 %v2399
    %2505 = vmatprep.subr.bf16.mxu0 %v2408
    %2506 = vmatpush1.bf16.msra.mxu0 %v2407
    %2507 = vmatprep.subr.bf16.mxu0 %v2416
    %2508 = vmatpush1.bf16.msra.mxu0 %v2415
    %2509 = vmatprep.subr.bf16.mxu0 %v2424
    %2510 = vmatpush1.bf16.msra.mxu0 %v2423
    %2511 = vmatprep.subr.bf16.mxu0 0
    %2512 = vmatpush1.bf16.msra.mxu0 0
    %2513 = vmatprep.subr.bf16.mxu0 0
    %2514 = vmatpush1.bf16.msra.mxu0 0
    %2515 = vmatprep.subr.bf16.mxu0 0
    %2516 = vmatpush1.bf16.msra.mxu0 0
    %2517 = vmatprep.subr.bf16.mxu0 0
    %2518 = vmatpush1.bf16.msra.mxu0 0
    %2519 = vmatprep.subr.bf16.mxu0 0
    %2520 = vmatpush1.bf16.msra.mxu0 0
    %2521 = vmatprep.subr.bf16.mxu0 0
    %2522 = vmatpush1.bf16.msra.mxu0 0
    %2523 = vmatprep.subr.bf16.mxu0 0
    %2524 = vmatpush1.bf16.msra.mxu0 0
    %2525 = vmatprep.subr.bf16.mxu0 0
    %2526 = vmatpush1.bf16.msra.mxu0 0
    %2527 = vmatprep.mubr.bf16.mxu0 0
    %2528 = vmatmul.mubr.bf16.gmra.mrb[0].mxu0 %v2068
    %v2529 = vpop.f32.mrb[0].mxu0
    %v2530 = vadd.f32 %v2138, %v2529
    %v2531 = vpop.f32.mrb[0].mxu0
    %v2532 = vadd.f32 %v2142, %v2531
    %v2533 = vpop.f32.mrb[0].mxu0
    %v2534 = vpop.f32.mrb[0].mxu0
    %2535 = vdwg.mxu0
    %2536 = vmatprep.subr.bf16.mxu0 %v2370
    %2537 = vmatpush1.bf16.msra.mxu0 %v2369
    %2538 = vmatprep.subr.bf16.mxu0 %v2378
    %2539 = vmatpush1.bf16.msra.mxu0 %v2377
    %2540 = vmatprep.subr.bf16.mxu0 %v2386
    %2541 = vmatpush1.bf16.msra.mxu0 %v2385
    %2542 = vmatprep.subr.bf16.mxu0 %v2394
    %2543 = vmatpush1.bf16.msra.mxu0 %v2393
    %2544 = vmatprep.subr.bf16.mxu0 %v2402
    %2545 = vmatpush1.bf16.msra.mxu0 %v2401
    %2546 = vmatprep.subr.bf16.mxu0 %v2410
    %2547 = vmatpush1.bf16.msra.mxu0 %v2409
    %2548 = vmatprep.subr.bf16.mxu0 %v2418
    %2549 = vmatpush1.bf16.msra.mxu0 %v2417
    %2550 = vmatprep.subr.bf16.mxu0 %v2426
    %2551 = vmatpush1.bf16.msra.mxu0 %v2425
    %2552 = vmatprep.subr.bf16.mxu0 0
    %2553 = vmatpush1.bf16.msra.mxu0 0
    %2554 = vmatprep.subr.bf16.mxu0 0
    %2555 = vmatpush1.bf16.msra.mxu0 0
    %2556 = vmatprep.subr.bf16.mxu0 0
    %2557 = vmatpush1.bf16.msra.mxu0 0
    %2558 = vmatprep.subr.bf16.mxu0 0
    %2559 = vmatpush1.bf16.msra.mxu0 0
    %2560 = vmatprep.subr.bf16.mxu0 0
    %2561 = vmatpush1.bf16.msra.mxu0 0
    %2562 = vmatprep.subr.bf16.mxu0 0
    %2563 = vmatpush1.bf16.msra.mxu0 0
    %2564 = vmatprep.subr.bf16.mxu0 0
    %2565 = vmatpush1.bf16.msra.mxu0 0
    %2566 = vmatprep.subr.bf16.mxu0 0
    %2567 = vmatpush1.bf16.msra.mxu0 0
    %2568 = vmatprep.mubr.bf16.mxu0 0
    %2569 = vmatmul.mubr.bf16.gmra.mrb[0].mxu0 %v2068
    %v2570 = vpop.f32.mrb[0].mxu0
    %v2571 = vadd.f32 %v2146, %v2570
    %v2572 = vpop.f32.mrb[0].mxu0
    %v2573 = vadd.f32 %v2150, %v2572
    %v2574 = vpop.f32.mrb[0].mxu0
    %v2575 = vpop.f32.mrb[0].mxu0
    %2576 = vdwg.mxu0
    %2577 = vmatprep.subr.bf16.mxu0 %v2372
    %2578 = vmatpush1.bf16.msra.mxu0 %v2371
    %2579 = vmatprep.subr.bf16.mxu0 %v2380
    %2580 = vmatpush1.bf16.msra.mxu0 %v2379
    %2581 = vmatprep.subr.bf16.mxu0 %v2388
    %2582 = vmatpush1.bf16.msra.mxu0 %v2387
    %2583 = vmatprep.subr.bf16.mxu0 %v2396
    %2584 = vmatpush1.bf16.msra.mxu0 %v2395
    %2585 = vmatprep.subr.bf16.mxu0 %v2404
    %2586 = vmatpush1.bf16.msra.mxu0 %v2403
    %2587 = vmatprep.subr.bf16.mxu0 %v2412
    %2588 = vmatpush1.bf16.msra.mxu0 %v2411
    %2589 = vmatprep.subr.bf16.mxu0 %v2420
    %2590 = vmatpush1.bf16.msra.mxu0 %v2419
    %2591 = vmatprep.subr.bf16.mxu0 %v2428
    %2592 = vmatpush1.bf16.msra.mxu0 %v2427
    %2593 = vmatprep.subr.bf16.mxu0 0
    %2594 = vmatpush1.bf16.msra.mxu0 0
    %2595 = vmatprep.subr.bf16.mxu0 0
    %2596 = vmatpush1.bf16.msra.mxu0 0
    %2597 = vmatprep.subr.bf16.mxu0 0
    %2598 = vmatpush1.bf16.msra.mxu0 0
    %2599 = vmatprep.subr.bf16.mxu0 0
    %2600 = vmatpush1.bf16.msra.mxu0 0
    %2601 = vmatprep.subr.bf16.mxu0 0
    %2602 = vmatpush1.bf16.msra.mxu0 0
    %2603 = vmatprep.subr.bf16.mxu0 0
    %2604 = vmatpush1.bf16.msra.mxu0 0
    %2605 = vmatprep.subr.bf16.mxu0 0
    %2606 = vmatpush1.bf16.msra.mxu0 0
    %2607 = vmatprep.subr.bf16.mxu0 0
    %2608 = vmatpush1.bf16.msra.mxu0 0
    %2609 = vmatprep.mubr.bf16.mxu0 0
    %2610 = vmatmul.mubr.bf16.gmra.mrb[0].mxu0 %v2068
    %v2611 = vpop.f32.mrb[0].mxu0
    %v2612 = vadd.f32 %v2154, %v2611
    %v2613 = vpop.f32.mrb[0].mxu0
    %v2614 = vadd.f32 %v2158, %v2613
    %v2615 = vpop.f32.mrb[0].mxu0
    %v2616 = vpop.f32.mrb[0].mxu0
    %2617 = vdwg.mxu0
    %2618 = vmatprep.subr.bf16.mxu0 %v2374
    %2619 = vmatpush1.bf16.msra.mxu0 %v2373
    %2620 = vmatprep.subr.bf16.mxu0 %v2382
    %2621 = vmatpush1.bf16.msra.mxu0 %v2381
    %2622 = vmatprep.subr.bf16.mxu0 %v2390
    %2623 = vmatpush1.bf16.msra.mxu0 %v2389
    %2624 = vmatprep.subr.bf16.mxu0 %v2398
    %2625 = vmatpush1.bf16.msra.mxu0 %v2397
    %2626 = vmatprep.subr.bf16.mxu0 %v2406
    %2627 = vmatpush1.bf16.msra.mxu0 %v2405
    %2628 = vmatprep.subr.bf16.mxu0 %v2414
    %2629 = vmatpush1.bf16.msra.mxu0 %v2413
    %2630 = vmatprep.subr.bf16.mxu0 %v2422
    %2631 = vmatpush1.bf16.msra.mxu0 %v2421
    %2632 = vmatprep.subr.bf16.mxu0 %v2430
    %2633 = vmatpush1.bf16.msra.mxu0 %v2429
    %2634 = vmatprep.subr.bf16.mxu0 0
    %2635 = vmatpush1.bf16.msra.mxu0 0
    %2636 = vmatprep.subr.bf16.mxu0 0
    %2637 = vmatpush1.bf16.msra.mxu0 0
    %2638 = vmatprep.subr.bf16.mxu0 0
    %2639 = vmatpush1.bf16.msra.mxu0 0
    %2640 = vmatprep.subr.bf16.mxu0 0
    %2641 = vmatpush1.bf16.msra.mxu0 0
    %2642 = vmatprep.subr.bf16.mxu0 0
    %2643 = vmatpush1.bf16.msra.mxu0 0
    %2644 = vmatprep.subr.bf16.mxu0 0
    %2645 = vmatpush1.bf16.msra.mxu0 0
    %2646 = vmatprep.subr.bf16.mxu0 0
    %2647 = vmatpush1.bf16.msra.mxu0 0
    %2648 = vmatprep.subr.bf16.mxu0 0
    %2649 = vmatpush1.bf16.msra.mxu0 0
    %2650 = vmatprep.mubr.bf16.mxu0 0
    %2651 = vmatmul.mubr.bf16.gmra.mrb[0].mxu0 %v2068
    %v2652 = vpop.f32.mrb[0].mxu0
    %v2653 = vadd.f32 %v2162, %v2652
    %v2654 = vpop.f32.mrb[0].mxu0
    %v2655 = vadd.f32 %v2166, %v2654
    %v2656 = vpop.f32.mrb[0].mxu0
    %v2657 = vpop.f32.mrb[0].mxu0
    %2658 = vdwg.mxu0
    %vm2659 = vcmp.ge.f32.partialorder %v2530, 0.0
    %vm2660 = vcmp.ge.f32.partialorder %v2532, 0.0
    %vm2661 = vcmp.ge.f32.partialorder %v2571, 0.0
    %vm2662 = vcmp.ge.f32.partialorder %v2573, 0.0
    %vm2663 = vcmp.ge.f32.partialorder %v2612, 0.0
    %vm2664 = vcmp.ge.f32.partialorder %v2614, 0.0
    %vm2665 = vcmp.ge.f32.partialorder %v2653, 0.0
    %vm2666 = vcmp.ge.f32.partialorder %v2655, 0.0
    %v2667 = vmul.f32 %v2530, 0.01
    %v2668 = vmul.f32 %v2532, 0.01
    %v2669 = vmul.f32 %v2571, 0.01
    %v2670 = vmul.f32 %v2573, 0.01
    %v2671 = vmul.f32 %v2612, 0.01
    %v2672 = vmul.f32 %v2614, 0.01
    %v2673 = vmul.f32 %v2653, 0.01
    %v2674 = vmul.f32 %v2655, 0.01
    %v2675 = vsel %vm2659, %v2530, %v2667
    %v2676 = vsel %vm2660, %v2532, %v2668
    %v2677 = vsel %vm2661, %v2571, %v2669
    %v2678 = vsel %vm2662, %v2573, %v2670
    %v2679 = vsel %vm2663, %v2612, %v2671
    %v2680 = vsel %vm2664, %v2614, %v2672
    %v2681 = vsel %vm2665, %v2653, %v2673
    %v2682 = vsel %vm2666, %v2655, %v2674
    %v2683 = vpack.c.bf16 %v2675, %v2675
    %v2684 = vpack.c.bf16 %v2676, %v2676
    %v2685 = vpack.c.bf16 %v2677, %v2677
    %v2686 = vpack.c.bf16 %v2678, %v2678
    %v2687 = vpack.c.bf16 %v2679, %v2679
    %v2688 = vpack.c.bf16 %v2680, %v2680
    %v2689 = vpack.c.bf16 %v2681, %v2681
    %v2690 = vpack.c.bf16 %v2682, %v2682
    %v2691 = vld [vmem:[#allocation14] sm:$0xff]
    %v2692 = vld [vmem:[#allocation14 + $0x8] sm:$0xff]
    %v2693 = vld [vmem:[#allocation14 + $0x10] sm:$0xff]
    %v2694 = vld [vmem:[#allocation14 + $0x18] sm:$0xff]
    %v2695 = vld [vmem:[#allocation14 + $0x20] sm:$0xff]
    %v2696 = vld [vmem:[#allocation14 + $0x28] sm:$0xff]
    %v2697 = vld [vmem:[#allocation14 + $0x30] sm:$0xff]
    %v2698 = vld [vmem:[#allocation14 + $0x38] sm:$0xff]
    %v2699 = vld [vmem:[#allocation14 + $0x40] sm:$0xff]
    %v2700 = vld [vmem:[#allocation14 + $0x48] sm:$0xff]
    %v2701 = vld [vmem:[#allocation14 + $0x50] sm:$0xff]
    %v2702 = vld [vmem:[#allocation14 + $0x58] sm:$0xff]
    %v2703 = vld [vmem:[#allocation14 + $0x60] sm:$0xff]
    %v2704 = vld [vmem:[#allocation14 + $0x68] sm:$0xff]
    %v2705 = vld [vmem:[#allocation14 + $0x70] sm:$0xff]
    %v2706 = vld [vmem:[#allocation14 + $0x78] sm:$0xff]
    %v2707 = vld [vmem:[#allocation14 + $0x80] sm:$0xff]
    %v2708 = vld [vmem:[#allocation14 + $0x88] sm:$0xff]
    %v2709 = vld [vmem:[#allocation14 + $0x90] sm:$0xff]
    %v2710 = vld [vmem:[#allocation14 + $0x98] sm:$0xff]
    %v2711 = vld [vmem:[#allocation14 + $0xa0] sm:$0xff]
    %v2712 = vld [vmem:[#allocation14 + $0xa8] sm:$0xff]
    %v2713 = vld [vmem:[#allocation14 + $0xb0] sm:$0xff]
    %v2714 = vld [vmem:[#allocation14 + $0xb8] sm:$0xff]
    %v2715 = vld [vmem:[#allocation14 + $0xc0] sm:$0xff]
    %v2716 = vld [vmem:[#allocation14 + $0xc8] sm:$0xff]
    %v2717 = vld [vmem:[#allocation14 + $0xd0] sm:$0xff]
    %v2718 = vld [vmem:[#allocation14 + $0xd8] sm:$0xff]
    %v2719 = vld [vmem:[#allocation14 + $0xe0] sm:$0xff]
    %v2720 = vld [vmem:[#allocation14 + $0xe8] sm:$0xff]
    %v2721 = vld [vmem:[#allocation14 + $0xf0] sm:$0xff]
    %v2722 = vld [vmem:[#allocation14 + $0xf8] sm:$0xff]
    %v2723 = vld [vmem:[#allocation14 + $0x100] sm:$0xff]
    %v2724 = vld [vmem:[#allocation14 + $0x108] sm:$0xff]
    %v2725 = vld [vmem:[#allocation14 + $0x110] sm:$0xff]
    %v2726 = vld [vmem:[#allocation14 + $0x118] sm:$0xff]
    %v2727 = vld [vmem:[#allocation14 + $0x120] sm:$0xff]
    %v2728 = vld [vmem:[#allocation14 + $0x128] sm:$0xff]
    %v2729 = vld [vmem:[#allocation14 + $0x130] sm:$0xff]
    %v2730 = vld [vmem:[#allocation14 + $0x138] sm:$0xff]
    %v2731 = vld [vmem:[#allocation14 + $0x140] sm:$0xff]
    %v2732 = vld [vmem:[#allocation14 + $0x148] sm:$0xff]
    %v2733 = vld [vmem:[#allocation14 + $0x150] sm:$0xff]
    %v2734 = vld [vmem:[#allocation14 + $0x158] sm:$0xff]
    %v2735 = vld [vmem:[#allocation14 + $0x160] sm:$0xff]
    %v2736 = vld [vmem:[#allocation14 + $0x168] sm:$0xff]
    %v2737 = vld [vmem:[#allocation14 + $0x170] sm:$0xff]
    %v2738 = vld [vmem:[#allocation14 + $0x178] sm:$0xff]
    %v2739 = vld [vmem:[#allocation14 + $0x180] sm:$0xff]
    %v2740 = vld [vmem:[#allocation14 + $0x188] sm:$0xff]
    %v2741 = vld [vmem:[#allocation14 + $0x190] sm:$0xff]
    %v2742 = vld [vmem:[#allocation14 + $0x198] sm:$0xff]
    %v2743 = vld [vmem:[#allocation14 + $0x1a0] sm:$0xff]
    %v2744 = vld [vmem:[#allocation14 + $0x1a8] sm:$0xff]
    %v2745 = vld [vmem:[#allocation14 + $0x1b0] sm:$0xff]
    %v2746 = vld [vmem:[#allocation14 + $0x1b8] sm:$0xff]
    %v2747 = vld [vmem:[#allocation14 + $0x1c0] sm:$0xff]
    %v2748 = vld [vmem:[#allocation14 + $0x1c8] sm:$0xff]
    %v2749 = vld [vmem:[#allocation14 + $0x1d0] sm:$0xff]
    %v2750 = vld [vmem:[#allocation14 + $0x1d8] sm:$0xff]
    %v2751 = vld [vmem:[#allocation14 + $0x1e0] sm:$0xff]
    %v2752 = vld [vmem:[#allocation14 + $0x1e8] sm:$0xff]
    %v2753 = vld [vmem:[#allocation14 + $0x1f0] sm:$0xff]
    %v2754 = vld [vmem:[#allocation14 + $0x1f8] sm:$0xff]
    %v2755 = vld [vmem:[#allocation14 + $0x200] sm:$0xff]
    %v2756 = vld [vmem:[#allocation14 + $0x208] sm:$0xff]
    %v2757 = vld [vmem:[#allocation14 + $0x210] sm:$0xff]
    %v2758 = vld [vmem:[#allocation14 + $0x218] sm:$0xff]
    %v2759 = vld [vmem:[#allocation14 + $0x220] sm:$0xff]
    %v2760 = vld [vmem:[#allocation14 + $0x228] sm:$0xff]
    %v2761 = vld [vmem:[#allocation14 + $0x230] sm:$0xff]
    %v2762 = vld [vmem:[#allocation14 + $0x238] sm:$0xff]
    %v2763 = vld [vmem:[#allocation14 + $0x240] sm:$0xff]
    %v2764 = vld [vmem:[#allocation14 + $0x248] sm:$0xff]
    %v2765 = vld [vmem:[#allocation14 + $0x250] sm:$0xff]
    %v2766 = vld [vmem:[#allocation14 + $0x258] sm:$0xff]
    %v2767 = vld [vmem:[#allocation14 + $0x260] sm:$0xff]
    %v2768 = vld [vmem:[#allocation14 + $0x268] sm:$0xff]
    %v2769 = vld [vmem:[#allocation14 + $0x270] sm:$0xff]
    %v2770 = vld [vmem:[#allocation14 + $0x278] sm:$0xff]
    %v2771 = vld [vmem:[#allocation14 + $0x280] sm:$0xff]
    %v2772 = vld [vmem:[#allocation14 + $0x288] sm:$0xff]
    %v2773 = vld [vmem:[#allocation14 + $0x290] sm:$0xff]
    %v2774 = vld [vmem:[#allocation14 + $0x298] sm:$0xff]
    %v2775 = vld [vmem:[#allocation14 + $0x2a0] sm:$0xff]
    %v2776 = vld [vmem:[#allocation14 + $0x2a8] sm:$0xff]
    %v2777 = vld [vmem:[#allocation14 + $0x2b0] sm:$0xff]
    %v2778 = vld [vmem:[#allocation14 + $0x2b8] sm:$0xff]
    %v2779 = vld [vmem:[#allocation14 + $0x2c0] sm:$0xff]
    %v2780 = vld [vmem:[#allocation14 + $0x2c8] sm:$0xff]
    %v2781 = vld [vmem:[#allocation14 + $0x2d0] sm:$0xff]
    %v2782 = vld [vmem:[#allocation14 + $0x2d8] sm:$0xff]
    %v2783 = vld [vmem:[#allocation14 + $0x2e0] sm:$0xff]
    %v2784 = vld [vmem:[#allocation14 + $0x2e8] sm:$0xff]
    %v2785 = vld [vmem:[#allocation14 + $0x2f0] sm:$0xff]
    %v2786 = vld [vmem:[#allocation14 + $0x2f8] sm:$0xff]
    %v2787 = vld [vmem:[#allocation14 + $0x300] sm:$0xff]
    %v2788 = vld [vmem:[#allocation14 + $0x308] sm:$0xff]
    %v2789 = vld [vmem:[#allocation14 + $0x310] sm:$0xff]
    %v2790 = vld [vmem:[#allocation14 + $0x318] sm:$0xff]
    %v2791 = vld [vmem:[#allocation14 + $0x320] sm:$0xff]
    %v2792 = vld [vmem:[#allocation14 + $0x328] sm:$0xff]
    %v2793 = vld [vmem:[#allocation14 + $0x330] sm:$0xff]
    %v2794 = vld [vmem:[#allocation14 + $0x338] sm:$0xff]
    %v2795 = vld [vmem:[#allocation14 + $0x340] sm:$0xff]
    %v2796 = vld [vmem:[#allocation14 + $0x348] sm:$0xff]
    %v2797 = vld [vmem:[#allocation14 + $0x350] sm:$0xff]
    %v2798 = vld [vmem:[#allocation14 + $0x358] sm:$0xff]
    %v2799 = vld [vmem:[#allocation14 + $0x360] sm:$0xff]
    %v2800 = vld [vmem:[#allocation14 + $0x368] sm:$0xff]
    %v2801 = vld [vmem:[#allocation14 + $0x370] sm:$0xff]
    %v2802 = vld [vmem:[#allocation14 + $0x378] sm:$0xff]
    %v2803 = vld [vmem:[#allocation14 + $0x380] sm:$0xff]
    %v2804 = vld [vmem:[#allocation14 + $0x388] sm:$0xff]
    %v2805 = vld [vmem:[#allocation14 + $0x390] sm:$0xff]
    %v2806 = vld [vmem:[#allocation14 + $0x398] sm:$0xff]
    %v2807 = vld [vmem:[#allocation14 + $0x3a0] sm:$0xff]
    %v2808 = vld [vmem:[#allocation14 + $0x3a8] sm:$0xff]
    %v2809 = vld [vmem:[#allocation14 + $0x3b0] sm:$0xff]
    %v2810 = vld [vmem:[#allocation14 + $0x3b8] sm:$0xff]
    %v2811 = vld [vmem:[#allocation14 + $0x3c0] sm:$0xff]
    %v2812 = vld [vmem:[#allocation14 + $0x3c8] sm:$0xff]
    %v2813 = vld [vmem:[#allocation14 + $0x3d0] sm:$0xff]
    %v2814 = vld [vmem:[#allocation14 + $0x3d8] sm:$0xff]
    %v2815 = vld [vmem:[#allocation14 + $0x3e0] sm:$0xff]
    %v2816 = vld [vmem:[#allocation14 + $0x3e8] sm:$0xff]
    %v2817 = vld [vmem:[#allocation14 + $0x3f0] sm:$0xff]
    %v2818 = vld [vmem:[#allocation14 + $0x3f8] sm:$0xff]
    %v2819 = vld [vmem:[%s12] sm:$0x3]
    %v2821 = vlaneseq
    %v2822 = vshrl.u32 %v2821, 7
    %v2823 = vsub.s32 0, %v2822
    %v2824 = vrot.slane %v2819, %v2823
    %v2825 = vlaneseq
    %v2826 = vshrl.u32 %v2825, 7
    %v2827 = vsub.s32 1, %v2826
    %v2828 = vrot.slane %v2819, %v2827
    %v2959 = vunpack.c.l.b16 %v2691
    %v2960 = vunpack.c.h.b16 %v2691
    %v2961 = vunpack.c.l.b16 %v2692
    %v2962 = vunpack.c.h.b16 %v2692
    %v2963 = vunpack.c.l.b16 %v2693
    %v2964 = vunpack.c.h.b16 %v2693
    %v2965 = vunpack.c.l.b16 %v2694
    %v2966 = vunpack.c.h.b16 %v2694
    %v2967 = vunpack.c.l.b16 %v2695
    %v2968 = vunpack.c.h.b16 %v2695
    %v2969 = vunpack.c.l.b16 %v2696
    %v2970 = vunpack.c.h.b16 %v2696
    %v2971 = vunpack.c.l.b16 %v2697
    %v2972 = vunpack.c.h.b16 %v2697
    %v2973 = vunpack.c.l.b16 %v2698
    %v2974 = vunpack.c.h.b16 %v2698
    %v2975 = vunpack.c.l.b16 %v2699
    %v2976 = vunpack.c.h.b16 %v2699
    %v2977 = vunpack.c.l.b16 %v2700
    %v2978 = vunpack.c.h.b16 %v2700
    %v2979 = vunpack.c.l.b16 %v2701
    %v2980 = vunpack.c.h.b16 %v2701
    %v2981 = vunpack.c.l.b16 %v2702
    %v2982 = vunpack.c.h.b16 %v2702
    %v2983 = vunpack.c.l.b16 %v2703
    %v2984 = vunpack.c.h.b16 %v2703
    %v2985 = vunpack.c.l.b16 %v2704
    %v2986 = vunpack.c.h.b16 %v2704
    %v2987 = vunpack.c.l.b16 %v2705
    %v2988 = vunpack.c.h.b16 %v2705
    %v2989 = vunpack.c.l.b16 %v2706
    %v2990 = vunpack.c.h.b16 %v2706
    %v2991 = vunpack.c.l.b16 %v2707
    %v2992 = vunpack.c.h.b16 %v2707
    %v2993 = vunpack.c.l.b16 %v2708
    %v2994 = vunpack.c.h.b16 %v2708
    %v2995 = vunpack.c.l.b16 %v2709
    %v2996 = vunpack.c.h.b16 %v2709
    %v2997 = vunpack.c.l.b16 %v2710
    %v2998 = vunpack.c.h.b16 %v2710
    %v2999 = vunpack.c.l.b16 %v2711
    %v3000 = vunpack.c.h.b16 %v2711
    %v3001 = vunpack.c.l.b16 %v2712
    %v3002 = vunpack.c.h.b16 %v2712
    %v3003 = vunpack.c.l.b16 %v2713
    %v3004 = vunpack.c.h.b16 %v2713
    %v3005 = vunpack.c.l.b16 %v2714
    %v3006 = vunpack.c.h.b16 %v2714
    %v3007 = vunpack.c.l.b16 %v2715
    %v3008 = vunpack.c.h.b16 %v2715
    %v3009 = vunpack.c.l.b16 %v2716
    %v3010 = vunpack.c.h.b16 %v2716
    %v3011 = vunpack.c.l.b16 %v2717
    %v3012 = vunpack.c.h.b16 %v2717
    %v3013 = vunpack.c.l.b16 %v2718
    %v3014 = vunpack.c.h.b16 %v2718
    %v3015 = vunpack.c.l.b16 %v2719
    %v3016 = vunpack.c.h.b16 %v2719
    %v3017 = vunpack.c.l.b16 %v2720
    %v3018 = vunpack.c.h.b16 %v2720
    %v3019 = vunpack.c.l.b16 %v2721
    %v3020 = vunpack.c.h.b16 %v2721
    %v3021 = vunpack.c.l.b16 %v2722
    %v3022 = vunpack.c.h.b16 %v2722
    %v3023 = vunpack.c.l.b16 %v2723
    %v3024 = vunpack.c.h.b16 %v2723
    %v3025 = vunpack.c.l.b16 %v2724
    %v3026 = vunpack.c.h.b16 %v2724
    %v3027 = vunpack.c.l.b16 %v2725
    %v3028 = vunpack.c.h.b16 %v2725
    %v3029 = vunpack.c.l.b16 %v2726
    %v3030 = vunpack.c.h.b16 %v2726
    %v3031 = vunpack.c.l.b16 %v2727
    %v3032 = vunpack.c.h.b16 %v2727
    %v3033 = vunpack.c.l.b16 %v2728
    %v3034 = vunpack.c.h.b16 %v2728
    %v3035 = vunpack.c.l.b16 %v2729
    %v3036 = vunpack.c.h.b16 %v2729
    %v3037 = vunpack.c.l.b16 %v2730
    %v3038 = vunpack.c.h.b16 %v2730
    %v3039 = vunpack.c.l.b16 %v2731
    %v3040 = vunpack.c.h.b16 %v2731
    %v3041 = vunpack.c.l.b16 %v2732
    %v3042 = vunpack.c.h.b16 %v2732
    %v3043 = vunpack.c.l.b16 %v2733
    %v3044 = vunpack.c.h.b16 %v2733
    %v3045 = vunpack.c.l.b16 %v2734
    %v3046 = vunpack.c.h.b16 %v2734
    %v3047 = vunpack.c.l.b16 %v2735
    %v3048 = vunpack.c.h.b16 %v2735
    %v3049 = vunpack.c.l.b16 %v2736
    %v3050 = vunpack.c.h.b16 %v2736
    %v3051 = vunpack.c.l.b16 %v2737
    %v3052 = vunpack.c.h.b16 %v2737
    %v3053 = vunpack.c.l.b16 %v2738
    %v3054 = vunpack.c.h.b16 %v2738
    %v3055 = vunpack.c.l.b16 %v2739
    %v3056 = vunpack.c.h.b16 %v2739
    %v3057 = vunpack.c.l.b16 %v2740
    %v3058 = vunpack.c.h.b16 %v2740
    %v3059 = vunpack.c.l.b16 %v2741
    %v3060 = vunpack.c.h.b16 %v2741
    %v3061 = vunpack.c.l.b16 %v2742
    %v3062 = vunpack.c.h.b16 %v2742
    %v3063 = vunpack.c.l.b16 %v2743
    %v3064 = vunpack.c.h.b16 %v2743
    %v3065 = vunpack.c.l.b16 %v2744
    %v3066 = vunpack.c.h.b16 %v2744
    %v3067 = vunpack.c.l.b16 %v2745
    %v3068 = vunpack.c.h.b16 %v2745
    %v3069 = vunpack.c.l.b16 %v2746
    %v3070 = vunpack.c.h.b16 %v2746
    %v3071 = vunpack.c.l.b16 %v2747
    %v3072 = vunpack.c.h.b16 %v2747
    %v3073 = vunpack.c.l.b16 %v2748
    %v3074 = vunpack.c.h.b16 %v2748
    %v3075 = vunpack.c.l.b16 %v2749
    %v3076 = vunpack.c.h.b16 %v2749
    %v3077 = vunpack.c.l.b16 %v2750
    %v3078 = vunpack.c.h.b16 %v2750
    %v3079 = vunpack.c.l.b16 %v2751
    %v3080 = vunpack.c.h.b16 %v2751
    %v3081 = vunpack.c.l.b16 %v2752
    %v3082 = vunpack.c.h.b16 %v2752
    %v3083 = vunpack.c.l.b16 %v2753
    %v3084 = vunpack.c.h.b16 %v2753
    %v3085 = vunpack.c.l.b16 %v2754
    %v3086 = vunpack.c.h.b16 %v2754
    %v3087 = vunpack.c.l.b16 %v2755
    %v3088 = vunpack.c.h.b16 %v2755
    %v3089 = vunpack.c.l.b16 %v2756
    %v3090 = vunpack.c.h.b16 %v2756
    %v3091 = vunpack.c.l.b16 %v2757
    %v3092 = vunpack.c.h.b16 %v2757
    %v3093 = vunpack.c.l.b16 %v2758
    %v3094 = vunpack.c.h.b16 %v2758
    %v3095 = vunpack.c.l.b16 %v2759
    %v3096 = vunpack.c.h.b16 %v2759
    %v3097 = vunpack.c.l.b16 %v2760
    %v3098 = vunpack.c.h.b16 %v2760
    %v3099 = vunpack.c.l.b16 %v2761
    %v3100 = vunpack.c.h.b16 %v2761
    %v3101 = vunpack.c.l.b16 %v2762
    %v3102 = vunpack.c.h.b16 %v2762
    %v3103 = vunpack.c.l.b16 %v2763
    %v3104 = vunpack.c.h.b16 %v2763
    %v3105 = vunpack.c.l.b16 %v2764
    %v3106 = vunpack.c.h.b16 %v2764
    %v3107 = vunpack.c.l.b16 %v2765
    %v3108 = vunpack.c.h.b16 %v2765
    %v3109 = vunpack.c.l.b16 %v2766
    %v3110 = vunpack.c.h.b16 %v2766
    %v3111 = vunpack.c.l.b16 %v2767
    %v3112 = vunpack.c.h.b16 %v2767
    %v3113 = vunpack.c.l.b16 %v2768
    %v3114 = vunpack.c.h.b16 %v2768
    %v3115 = vunpack.c.l.b16 %v2769
    %v3116 = vunpack.c.h.b16 %v2769
    %v3117 = vunpack.c.l.b16 %v2770
    %v3118 = vunpack.c.h.b16 %v2770
    %v3119 = vunpack.c.l.b16 %v2771
    %v3120 = vunpack.c.h.b16 %v2771
    %v3121 = vunpack.c.l.b16 %v2772
    %v3122 = vunpack.c.h.b16 %v2772
    %v3123 = vunpack.c.l.b16 %v2773
    %v3124 = vunpack.c.h.b16 %v2773
    %v3125 = vunpack.c.l.b16 %v2774
    %v3126 = vunpack.c.h.b16 %v2774
    %v3127 = vunpack.c.l.b16 %v2775
    %v3128 = vunpack.c.h.b16 %v2775
    %v3129 = vunpack.c.l.b16 %v2776
    %v3130 = vunpack.c.h.b16 %v2776
    %v3131 = vunpack.c.l.b16 %v2777
    %v3132 = vunpack.c.h.b16 %v2777
    %v3133 = vunpack.c.l.b16 %v2778
    %v3134 = vunpack.c.h.b16 %v2778
    %v3135 = vunpack.c.l.b16 %v2779
    %v3136 = vunpack.c.h.b16 %v2779
    %v3137 = vunpack.c.l.b16 %v2780
    %v3138 = vunpack.c.h.b16 %v2780
    %v3139 = vunpack.c.l.b16 %v2781
    %v3140 = vunpack.c.h.b16 %v2781
    %v3141 = vunpack.c.l.b16 %v2782
    %v3142 = vunpack.c.h.b16 %v2782
    %v3143 = vunpack.c.l.b16 %v2783
    %v3144 = vunpack.c.h.b16 %v2783
    %v3145 = vunpack.c.l.b16 %v2784
    %v3146 = vunpack.c.h.b16 %v2784
    %v3147 = vunpack.c.l.b16 %v2785
    %v3148 = vunpack.c.h.b16 %v2785
    %v3149 = vunpack.c.l.b16 %v2786
    %v3150 = vunpack.c.h.b16 %v2786
    %v3151 = vunpack.c.l.b16 %v2787
    %v3152 = vunpack.c.h.b16 %v2787
    %v3153 = vunpack.c.l.b16 %v2788
    %v3154 = vunpack.c.h.b16 %v2788
    %v3155 = vunpack.c.l.b16 %v2789
    %v3156 = vunpack.c.h.b16 %v2789
    %v3157 = vunpack.c.l.b16 %v2790
    %v3158 = vunpack.c.h.b16 %v2790
    %v3159 = vunpack.c.l.b16 %v2791
    %v3160 = vunpack.c.h.b16 %v2791
    %v3161 = vunpack.c.l.b16 %v2792
    %v3162 = vunpack.c.h.b16 %v2792
    %v3163 = vunpack.c.l.b16 %v2793
    %v3164 = vunpack.c.h.b16 %v2793
    %v3165 = vunpack.c.l.b16 %v2794
    %v3166 = vunpack.c.h.b16 %v2794
    %v3167 = vunpack.c.l.b16 %v2795
    %v3168 = vunpack.c.h.b16 %v2795
    %v3169 = vunpack.c.l.b16 %v2796
    %v3170 = vunpack.c.h.b16 %v2796
    %v3171 = vunpack.c.l.b16 %v2797
    %v3172 = vunpack.c.h.b16 %v2797
    %v3173 = vunpack.c.l.b16 %v2798
    %v3174 = vunpack.c.h.b16 %v2798
    %v3175 = vunpack.c.l.b16 %v2799
    %v3176 = vunpack.c.h.b16 %v2799
    %v3177 = vunpack.c.l.b16 %v2800
    %v3178 = vunpack.c.h.b16 %v2800
    %v3179 = vunpack.c.l.b16 %v2801
    %v3180 = vunpack.c.h.b16 %v2801
    %v3181 = vunpack.c.l.b16 %v2802
    %v3182 = vunpack.c.h.b16 %v2802
    %v3183 = vunpack.c.l.b16 %v2803
    %v3184 = vunpack.c.h.b16 %v2803
    %v3185 = vunpack.c.l.b16 %v2804
    %v3186 = vunpack.c.h.b16 %v2804
    %v3187 = vunpack.c.l.b16 %v2805
    %v3188 = vunpack.c.h.b16 %v2805
    %v3189 = vunpack.c.l.b16 %v2806
    %v3190 = vunpack.c.h.b16 %v2806
    %v3191 = vunpack.c.l.b16 %v2807
    %v3192 = vunpack.c.h.b16 %v2807
    %v3193 = vunpack.c.l.b16 %v2808
    %v3194 = vunpack.c.h.b16 %v2808
    %v3195 = vunpack.c.l.b16 %v2809
    %v3196 = vunpack.c.h.b16 %v2809
    %v3197 = vunpack.c.l.b16 %v2810
    %v3198 = vunpack.c.h.b16 %v2810
    %v3199 = vunpack.c.l.b16 %v2811
    %v3200 = vunpack.c.h.b16 %v2811
    %v3201 = vunpack.c.l.b16 %v2812
    %v3202 = vunpack.c.h.b16 %v2812
    %v3203 = vunpack.c.l.b16 %v2813
    %v3204 = vunpack.c.h.b16 %v2813
    %v3205 = vunpack.c.l.b16 %v2814
    %v3206 = vunpack.c.h.b16 %v2814
    %v3207 = vunpack.c.l.b16 %v2815
    %v3208 = vunpack.c.h.b16 %v2815
    %v3209 = vunpack.c.l.b16 %v2816
    %v3210 = vunpack.c.h.b16 %v2816
    %v3211 = vunpack.c.l.b16 %v2817
    %v3212 = vunpack.c.h.b16 %v2817
    %v3213 = vunpack.c.l.b16 %v2818
    %v3214 = vunpack.c.h.b16 %v2818
    %v3215 = vpack.c.b16 %v2961, %v2959
    %v3216 = vpack.c.b16 %v2962, %v2960
    %v3217 = vpack.c.b16 %v2965, %v2963
    %v3218 = vpack.c.b16 %v2966, %v2964
    %v3219 = vpack.c.b16 %v2969, %v2967
    %v3220 = vpack.c.b16 %v2970, %v2968
    %v3221 = vpack.c.b16 %v2973, %v2971
    %v3222 = vpack.c.b16 %v2974, %v2972
    %v3223 = vpack.c.b16 %v2977, %v2975
    %v3224 = vpack.c.b16 %v2978, %v2976
    %v3225 = vpack.c.b16 %v2981, %v2979
    %v3226 = vpack.c.b16 %v2982, %v2980
    %v3227 = vpack.c.b16 %v2985, %v2983
    %v3228 = vpack.c.b16 %v2986, %v2984
    %v3229 = vpack.c.b16 %v2989, %v2987
    %v3230 = vpack.c.b16 %v2990, %v2988
    %v3231 = vpack.c.b16 %v2993, %v2991
    %v3232 = vpack.c.b16 %v2994, %v2992
    %v3233 = vpack.c.b16 %v2997, %v2995
    %v3234 = vpack.c.b16 %v2998, %v2996
    %v3235 = vpack.c.b16 %v3001, %v2999
    %v3236 = vpack.c.b16 %v3002, %v3000
    %v3237 = vpack.c.b16 %v3005, %v3003
    %v3238 = vpack.c.b16 %v3006, %v3004
    %v3239 = vpack.c.b16 %v3009, %v3007
    %v3240 = vpack.c.b16 %v3010, %v3008
    %v3241 = vpack.c.b16 %v3013, %v3011
    %v3242 = vpack.c.b16 %v3014, %v3012
    %v3243 = vpack.c.b16 %v3017, %v3015
    %v3244 = vpack.c.b16 %v3018, %v3016
    %v3245 = vpack.c.b16 %v3021, %v3019
    %v3246 = vpack.c.b16 %v3022, %v3020
    %v3247 = vpack.c.b16 %v3025, %v3023
    %v3248 = vpack.c.b16 %v3026, %v3024
    %v3249 = vpack.c.b16 %v3029, %v3027
    %v3250 = vpack.c.b16 %v3030, %v3028
    %v3251 = vpack.c.b16 %v3033, %v3031
    %v3252 = vpack.c.b16 %v3034, %v3032
    %v3253 = vpack.c.b16 %v3037, %v3035
    %v3254 = vpack.c.b16 %v3038, %v3036
    %v3255 = vpack.c.b16 %v3041, %v3039
    %v3256 = vpack.c.b16 %v3042, %v3040
    %v3257 = vpack.c.b16 %v3045, %v3043
    %v3258 = vpack.c.b16 %v3046, %v3044
    %v3259 = vpack.c.b16 %v3049, %v3047
    %v3260 = vpack.c.b16 %v3050, %v3048
    %v3261 = vpack.c.b16 %v3053, %v3051
    %v3262 = vpack.c.b16 %v3054, %v3052
    %v3263 = vpack.c.b16 %v3057, %v3055
    %v3264 = vpack.c.b16 %v3058, %v3056
    %v3265 = vpack.c.b16 %v3061, %v3059
    %v3266 = vpack.c.b16 %v3062, %v3060
    %v3267 = vpack.c.b16 %v3065, %v3063
    %v3268 = vpack.c.b16 %v3066, %v3064
    %v3269 = vpack.c.b16 %v3069, %v3067
    %v3270 = vpack.c.b16 %v3070, %v3068
    %v3271 = vpack.c.b16 %v3073, %v3071
    %v3272 = vpack.c.b16 %v3074, %v3072
    %v3273 = vpack.c.b16 %v3077, %v3075
    %v3274 = vpack.c.b16 %v3078, %v3076
    %v3275 = vpack.c.b16 %v3081, %v3079
    %v3276 = vpack.c.b16 %v3082, %v3080
    %v3277 = vpack.c.b16 %v3085, %v3083
    %v3278 = vpack.c.b16 %v3086, %v3084
    %v3279 = vpack.c.b16 %v3089, %v3087
    %v3280 = vpack.c.b16 %v3090, %v3088
    %v3281 = vpack.c.b16 %v3093, %v3091
    %v3282 = vpack.c.b16 %v3094, %v3092
    %v3283 = vpack.c.b16 %v3097, %v3095
    %v3284 = vpack.c.b16 %v3098, %v3096
    %v3285 = vpack.c.b16 %v3101, %v3099
    %v3286 = vpack.c.b16 %v3102, %v3100
    %v3287 = vpack.c.b16 %v3105, %v3103
    %v3288 = vpack.c.b16 %v3106, %v3104
    %v3289 = vpack.c.b16 %v3109, %v3107
    %v3290 = vpack.c.b16 %v3110, %v3108
    %v3291 = vpack.c.b16 %v3113, %v3111
    %v3292 = vpack.c.b16 %v3114, %v3112
    %v3293 = vpack.c.b16 %v3117, %v3115
    %v3294 = vpack.c.b16 %v3118, %v3116
    %v3295 = vpack.c.b16 %v3121, %v3119
    %v3296 = vpack.c.b16 %v3122, %v3120
    %v3297 = vpack.c.b16 %v3125, %v3123
    %v3298 = vpack.c.b16 %v3126, %v3124
    %v3299 = vpack.c.b16 %v3129, %v3127
    %v3300 = vpack.c.b16 %v3130, %v3128
    %v3301 = vpack.c.b16 %v3133, %v3131
    %v3302 = vpack.c.b16 %v3134, %v3132
    %v3303 = vpack.c.b16 %v3137, %v3135
    %v3304 = vpack.c.b16 %v3138, %v3136
    %v3305 = vpack.c.b16 %v3141, %v3139
    %v3306 = vpack.c.b16 %v3142, %v3140
    %v3307 = vpack.c.b16 %v3145, %v3143
    %v3308 = vpack.c.b16 %v3146, %v3144
    %v3309 = vpack.c.b16 %v3149, %v3147
    %v3310 = vpack.c.b16 %v3150, %v3148
    %v3311 = vpack.c.b16 %v3153, %v3151
    %v3312 = vpack.c.b16 %v3154, %v3152
    %v3313 = vpack.c.b16 %v3157, %v3155
    %v3314 = vpack.c.b16 %v3158, %v3156
    %v3315 = vpack.c.b16 %v3161, %v3159
    %v3316 = vpack.c.b16 %v3162, %v3160
    %v3317 = vpack.c.b16 %v3165, %v3163
    %v3318 = vpack.c.b16 %v3166, %v3164
    %v3319 = vpack.c.b16 %v3169, %v3167
    %v3320 = vpack.c.b16 %v3170, %v3168
    %v3321 = vpack.c.b16 %v3173, %v3171
    %v3322 = vpack.c.b16 %v3174, %v3172
    %v3323 = vpack.c.b16 %v3177, %v3175
    %v3324 = vpack.c.b16 %v3178, %v3176
    %v3325 = vpack.c.b16 %v3181, %v3179
    %v3326 = vpack.c.b16 %v3182, %v3180
    %v3327 = vpack.c.b16 %v3185, %v3183
    %v3328 = vpack.c.b16 %v3186, %v3184
    %v3329 = vpack.c.b16 %v3189, %v3187
    %v3330 = vpack.c.b16 %v3190, %v3188
    %v3331 = vpack.c.b16 %v3193, %v3191
    %v3332 = vpack.c.b16 %v3194, %v3192
    %v3333 = vpack.c.b16 %v3197, %v3195
    %v3334 = vpack.c.b16 %v3198, %v3196
    %v3335 = vpack.c.b16 %v3201, %v3199
    %v3336 = vpack.c.b16 %v3202, %v3200
    %v3337 = vpack.c.b16 %v3205, %v3203
    %v3338 = vpack.c.b16 %v3206, %v3204
    %v3339 = vpack.c.b16 %v3209, %v3207
    %v3340 = vpack.c.b16 %v3210, %v3208
    %v3341 = vpack.c.b16 %v3213, %v3211
    %v3342 = vpack.c.b16 %v3214, %v3212
    %3471 = vmatprep.subr.bf16.mxu0 %v3216
    %3472 = vmatpush1.bf16.msra.mxu0 %v3215
    %3473 = vmatprep.subr.bf16.mxu0 %v3218
    %3474 = vmatpush1.bf16.msra.mxu0 %v3217
    %3475 = vmatprep.subr.bf16.mxu0 %v3220
    %3476 = vmatpush1.bf16.msra.mxu0 %v3219
    %3477 = vmatprep.subr.bf16.mxu0 %v3222
    %3478 = vmatpush1.bf16.msra.mxu0 %v3221
    %3479 = vmatprep.subr.bf16.mxu0 %v3224
    %3480 = vmatpush1.bf16.msra.mxu0 %v3223
    %3481 = vmatprep.subr.bf16.mxu0 %v3226
    %3482 = vmatpush1.bf16.msra.mxu0 %v3225
    %3483 = vmatprep.subr.bf16.mxu0 %v3228
    %3484 = vmatpush1.bf16.msra.mxu0 %v3227
    %3485 = vmatprep.subr.bf16.mxu0 %v3230
    %3486 = vmatpush1.bf16.msra.mxu0 %v3229
    %3487 = vmatprep.subr.bf16.mxu0 %v3232
    %3488 = vmatpush1.bf16.msra.mxu0 %v3231
    %3489 = vmatprep.subr.bf16.mxu0 %v3234
    %3490 = vmatpush1.bf16.msra.mxu0 %v3233
    %3491 = vmatprep.subr.bf16.mxu0 %v3236
    %3492 = vmatpush1.bf16.msra.mxu0 %v3235
    %3493 = vmatprep.subr.bf16.mxu0 %v3238
    %3494 = vmatpush1.bf16.msra.mxu0 %v3237
    %3495 = vmatprep.subr.bf16.mxu0 %v3240
    %3496 = vmatpush1.bf16.msra.mxu0 %v3239
    %3497 = vmatprep.subr.bf16.mxu0 %v3242
    %3498 = vmatpush1.bf16.msra.mxu0 %v3241
    %3499 = vmatprep.subr.bf16.mxu0 %v3244
    %3500 = vmatpush1.bf16.msra.mxu0 %v3243
    %3501 = vmatprep.subr.bf16.mxu0 %v3246
    %3502 = vmatpush1.bf16.msra.mxu0 %v3245
    %3503 = vmatprep.mubr.bf16.mxu0 %v2684
    %3504 = vmatmul.mubr.bf16.gmra.mrb[0].mxu0 %v2683
    %v3505 = vpop.f32.mrb[0].mxu0
    %v3506 = vadd.f32 %v2824, %v3505
    %v3507 = vpop.f32.mrb[0].mxu0
    %v3508 = vadd.f32 %v2828, %v3507
    %v3509 = vpop.f32.mrb[0].mxu0
    %v3510 = vpop.f32.mrb[0].mxu0
    %3511 = vdwg.mxu0
    %3512 = vmatprep.subr.bf16.mxu0 %v3248
    %3513 = vmatpush1.bf16.msra.mxu0 %v3247
    %3514 = vmatprep.subr.bf16.mxu0 %v3250
    %3515 = vmatpush1.bf16.msra.mxu0 %v3249
    %3516 = vmatprep.subr.bf16.mxu0 %v3252
    %3517 = vmatpush1.bf16.msra.mxu0 %v3251
    %3518 = vmatprep.subr.bf16.mxu0 %v3254
    %3519 = vmatpush1.bf16.msra.mxu0 %v3253
    %3520 = vmatprep.subr.bf16.mxu0 %v3256
    %3521 = vmatpush1.bf16.msra.mxu0 %v3255
    %3522 = vmatprep.subr.bf16.mxu0 %v3258
    %3523 = vmatpush1.bf16.msra.mxu0 %v3257
    %3524 = vmatprep.subr.bf16.mxu0 %v3260
    %3525 = vmatpush1.bf16.msra.mxu0 %v3259
    %3526 = vmatprep.subr.bf16.mxu0 %v3262
    %3527 = vmatpush1.bf16.msra.mxu0 %v3261
    %3528 = vmatprep.subr.bf16.mxu0 %v3264
    %3529 = vmatpush1.bf16.msra.mxu0 %v3263
    %3530 = vmatprep.subr.bf16.mxu0 %v3266
    %3531 = vmatpush1.bf16.msra.mxu0 %v3265
    %3532 = vmatprep.subr.bf16.mxu0 %v3268
    %3533 = vmatpush1.bf16.msra.mxu0 %v3267
    %3534 = vmatprep.subr.bf16.mxu0 %v3270
    %3535 = vmatpush1.bf16.msra.mxu0 %v3269
    %3536 = vmatprep.subr.bf16.mxu0 %v3272
    %3537 = vmatpush1.bf16.msra.mxu0 %v3271
    %3538 = vmatprep.subr.bf16.mxu0 %v3274
    %3539 = vmatpush1.bf16.msra.mxu0 %v3273
    %3540 = vmatprep.subr.bf16.mxu0 %v3276
    %3541 = vmatpush1.bf16.msra.mxu0 %v3275
    %3542 = vmatprep.subr.bf16.mxu0 %v3278
    %3543 = vmatpush1.bf16.msra.mxu0 %v3277
    %3544 = vmatprep.mubr.bf16.mxu0 %v2686
    %3545 = vmatmul.mubr.bf16.gmra.mrb[0].mxu0 %v2685
    %v3546 = vpop.f32.mrb[0].mxu0
    %v3547 = vadd.f32 %v3506, %v3546
    %v3548 = vpop.f32.mrb[0].mxu0
    %v3549 = vadd.f32 %v3508, %v3548
    %v3550 = vpop.f32.mrb[0].mxu0
    %v3551 = vpop.f32.mrb[0].mxu0
    %3552 = vdwg.mxu0
    %3553 = vmatprep.subr.bf16.mxu0 %v3280
    %3554 = vmatpush1.bf16.msra.mxu0 %v3279
    %3555 = vmatprep.subr.bf16.mxu0 %v3282
    %3556 = vmatpush1.bf16.msra.mxu0 %v3281
    %3557 = vmatprep.subr.bf16.mxu0 %v3284
    %3558 = vmatpush1.bf16.msra.mxu0 %v3283
    %3559 = vmatprep.subr.bf16.mxu0 %v3286
    %3560 = vmatpush1.bf16.msra.mxu0 %v3285
    %3561 = vmatprep.subr.bf16.mxu0 %v3288
    %3562 = vmatpush1.bf16.msra.mxu0 %v3287
    %3563 = vmatprep.subr.bf16.mxu0 %v3290
    %3564 = vmatpush1.bf16.msra.mxu0 %v3289
    %3565 = vmatprep.subr.bf16.mxu0 %v3292
    %3566 = vmatpush1.bf16.msra.mxu0 %v3291
    %3567 = vmatprep.subr.bf16.mxu0 %v3294
    %3568 = vmatpush1.bf16.msra.mxu0 %v3293
    %3569 = vmatprep.subr.bf16.mxu0 %v3296
    %3570 = vmatpush1.bf16.msra.mxu0 %v3295
    %3571 = vmatprep.subr.bf16.mxu0 %v3298
    %3572 = vmatpush1.bf16.msra.mxu0 %v3297
    %3573 = vmatprep.subr.bf16.mxu0 %v3300
    %3574 = vmatpush1.bf16.msra.mxu0 %v3299
    %3575 = vmatprep.subr.bf16.mxu0 %v3302
    %3576 = vmatpush1.bf16.msra.mxu0 %v3301
    %3577 = vmatprep.subr.bf16.mxu0 %v3304
    %3578 = vmatpush1.bf16.msra.mxu0 %v3303
    %3579 = vmatprep.subr.bf16.mxu0 %v3306
    %3580 = vmatpush1.bf16.msra.mxu0 %v3305
    %3581 = vmatprep.subr.bf16.mxu0 %v3308
    %3582 = vmatpush1.bf16.msra.mxu0 %v3307
    %3583 = vmatprep.subr.bf16.mxu0 %v3310
    %3584 = vmatpush1.bf16.msra.mxu0 %v3309
    %3585 = vmatprep.mubr.bf16.mxu0 %v2688
    %3586 = vmatmul.mubr.bf16.gmra.mrb[0].mxu0 %v2687
    %v3587 = vpop.f32.mrb[0].mxu0
    %v3588 = vadd.f32 %v3547, %v3587
    %v3589 = vpop.f32.mrb[0].mxu0
    %v3590 = vadd.f32 %v3549, %v3589
    %v3591 = vpop.f32.mrb[0].mxu0
    %v3592 = vpop.f32.mrb[0].mxu0
    %3593 = vdwg.mxu0
    %3594 = vmatprep.subr.bf16.mxu0 %v3312
    %3595 = vmatpush1.bf16.msra.mxu0 %v3311
    %3596 = vmatprep.subr.bf16.mxu0 %v3314
    %3597 = vmatpush1.bf16.msra.mxu0 %v3313
    %3598 = vmatprep.subr.bf16.mxu0 %v3316
    %3599 = vmatpush1.bf16.msra.mxu0 %v3315
    %3600 = vmatprep.subr.bf16.mxu0 %v3318
    %3601 = vmatpush1.bf16.msra.mxu0 %v3317
    %3602 = vmatprep.subr.bf16.mxu0 %v3320
    %3603 = vmatpush1.bf16.msra.mxu0 %v3319
    %3604 = vmatprep.subr.bf16.mxu0 %v3322
    %3605 = vmatpush1.bf16.msra.mxu0 %v3321
    %3606 = vmatprep.subr.bf16.mxu0 %v3324
    %3607 = vmatpush1.bf16.msra.mxu0 %v3323
    %3608 = vmatprep.subr.bf16.mxu0 %v3326
    %3609 = vmatpush1.bf16.msra.mxu0 %v3325
    %3610 = vmatprep.subr.bf16.mxu0 %v3328
    %3611 = vmatpush1.bf16.msra.mxu0 %v3327
    %3612 = vmatprep.subr.bf16.mxu0 %v3330
    %3613 = vmatpush1.bf16.msra.mxu0 %v3329
    %3614 = vmatprep.subr.bf16.mxu0 %v3332
    %3615 = vmatpush1.bf16.msra.mxu0 %v3331
    %3616 = vmatprep.subr.bf16.mxu0 %v3334
    %3617 = vmatpush1.bf16.msra.mxu0 %v3333
    %3618 = vmatprep.subr.bf16.mxu0 %v3336
    %3619 = vmatpush1.bf16.msra.mxu0 %v3335
    %3620 = vmatprep.subr.bf16.mxu0 %v3338
    %3621 = vmatpush1.bf16.msra.mxu0 %v3337
    %3622 = vmatprep.subr.bf16.mxu0 %v3340
    %3623 = vmatpush1.bf16.msra.mxu0 %v3339
    %3624 = vmatprep.subr.bf16.mxu0 %v3342
    %3625 = vmatpush1.bf16.msra.mxu0 %v3341
    %3626 = vmatprep.mubr.bf16.mxu0 %v2690
    %3627 = vmatmul.mubr.bf16.gmra.mrb[0].mxu0 %v2689
    %v3628 = vpop.f32.mrb[0].mxu0
    %v3629 = vadd.f32 %v3588, %v3628
    %v3630 = vpop.f32.mrb[0].mxu0
    %v3631 = vadd.f32 %v3590, %v3630
    %v3632 = vpop.f32.mrb[0].mxu0
    %v3633 = vpop.f32.mrb[0].mxu0
    %3634 = vdwg.mxu0
    %v3635 = vmax.f32 %v3629, 0.0
    %v3636 = vmax.f32 %v3631, 0.0
    %v3637 = vand.u32 2147483647, %v3629
    %v3638 = vand.u32 2147483647, %v3631
    %v3639 = vsub.f32 0.0, %v3637
    %v3640 = vsub.f32 0.0, %v3638
    %v3641 = vmul.f32 %v3639, 1.442695
    %v3642 = vpow.pop %v3641
    %v3643 = vmul.f32 %v3640, 1.442695
    %v3644 = vpow.pop %v3643
    %v3645 = vadd.f32 %v3642, 1.0
    %v3646 = vlog2.pop %v3645
    %v3647 = vmul.f32 %v3646, 0.6931472
    %v3648 = vmul.f32 -0.5, %v3642
    %v3649 = vadd.f32 %v3648, 1.0
    %v3650 = vmul.f32 %v3649, %v3642
    %v3651 = vand.u32 2147483647, %v3642
    %vm3652 = vcmp.lt.f32.partialorder %v3651, 0.0004427343
    %v3653 = vsel %vm3652, %v3650, %v3647
    %v3654 = vadd.f32 %v3644, 1.0
    %v3655 = vlog2.pop %v3654
    %v3656 = vmul.f32 %v3655, 0.6931472
    %v3657 = vmul.f32 -0.5, %v3644
    %v3658 = vadd.f32 %v3657, 1.0
    %v3659 = vmul.f32 %v3658, %v3644
    %v3660 = vand.u32 2147483647, %v3644
    %vm3661 = vcmp.lt.f32.partialorder %v3660, 0.0004427343
    %v3662 = vsel %vm3661, %v3659, %v3656
    %v3663 = vadd.f32 %v3635, %v3653
    %v3664 = vadd.f32 %v3636, %v3662
    %3665 = vst [vmem:[#allocation16] sm:$0xff] %v3663
    %3666 = vst [vmem:[#allocation16 + $0x8] sm:$0xff] %v3664
    // Predicated region
    $region86: #{tpu_custom_call.1} parent=1 // pred_check
      _
    $region87: #{tpu_custom_call.1} parent=1 // pred_check_branch
      %3668 = sbr.rel (0) target = $region89
    $region88: #{tpu_custom_call.1} parent=1 // pred_region
      %s3670 = ssub.s32 256, 256
      %3671 = vsyncadd [#allocation4], %s3670
      %s3673 = sshll.u32 [#allocation16], 4
      %s3674 = int_to_ptr.vmem [resolvable:$true] %s3673
      %3676 = dma.vmem_to_hbm [thread:$0]  %s3674, 256, %s13, [#allocation4]
    $region89: #{tpu_custom_call.1} parent=1 // pred_fallthru
      _
    // Predicated region
    $region90: #{tpu_custom_call.1} parent=1 // pred_check
      _
    $region91: #{tpu_custom_call.1} parent=1 // pred_check_branch
      %3678 = sbr.rel (0) target = $region93
    $region92: #{tpu_custom_call.1} parent=1 // pred_region
      %3679 = dma.done [#allocation4], 256
    $region93: #{tpu_custom_call.1} parent=1 // pred_fallthru
      _
    %3680 = vsyncpa [#allocation3], 1
    %3681 = vsyncpa [#allocation6], 1
    %3682 = vsyncpa [#allocation9], 1
    %3683 = vsyncpa [#allocation12], 1
    %3684 = vsyncpa [#allocation15], 1
    %3685 = vsyncpa [#allocation4], 1

// kernel: tpu_custom_call.1
$region0: #{tpu_custom_call.1}
  #allocation0 [shape = 'u32[]', space=smem, size = 0x4, offset = 0x4, fixed_abs, tag = 'smem constant byte address 0x4 - core index']
  #allocation1 [shape = 'u32[144,128]{1,0:T(1,128)}', space=vmem, size = 0x12000, scoped, tag = 'internal scratch']
  %s0 = inlined_call_operand.hbm [shape: bf16[8,256], index: 0, kind: input, shape index: {}]
  %s1 = inlined_call_operand.hbm [shape: bf16[256,1024], index: 1, kind: input, shape index: {}]
  %s2 = inlined_call_operand.hbm [shape: f32[1,1024], index: 2, kind: input, shape index: {}]
  %s3 = inlined_call_operand.hbm [shape: bf16[1024,128], index: 3, kind: input, shape index: {}]
  %s4 = inlined_call_operand.vmem [shape: f32[1,128], index: 4, kind: input, shape index: {}]
  %s5 = inlined_call_operand.hbm [shape: bf16[128,128], index: 5, kind: input, shape index: {}]
  %s6 = inlined_call_operand.vmem [shape: f32[1,128], index: 6, kind: input, shape index: {}]
  %s7 = inlined_call_operand.hbm [shape: bf16[128,128], index: 7, kind: input, shape index: {}]
  %s8 = inlined_call_operand.vmem [shape: f32[1,128], index: 8, kind: input, shape index: {}]
  %s9 = inlined_call_operand.hbm [shape: bf16[128,1024], index: 9, kind: input, shape index: {}]
  %s10 = inlined_call_operand.vmem [shape: f32[1,1024], index: 10, kind: input, shape index: {}]
  %s11 = inlined_call_operand.hbm [shape: bf16[1024,256], index: 11, kind: input, shape index: {}]
  %s12 = inlined_call_operand.vmem [shape: f32[1,256], index: 12, kind: input, shape index: {}]
  %s13 = inlined_call_operand.hbm [shape: f32[8,256], index: 13, kind: output, shape index: {}]
  %s14 = sld [smem:[#allocation0]]
  $region94: #{tpu_custom_call.1} parent=0
    _
  %s16 = ssub.s32 1, %s14
  %s17 = scalar_select 0, %s16, %s14
  $region1: #{tpu_custom_call.1} parent=0
    #allocation2 [shape = 'u8[4096]{0}', space=vmem, size = 0x1000, scoped, tag = 'input window, operand 0, single buffered']
    #allocation3 [shape = 's32[1]{0}', space=sflag, size = 0x4, scoped, tag = 'scoped memory for tpu_custom_call.1']
    #allocation4 [shape = 's32[1]{0}', space=sflag, size = 0x4, scoped, tag = 'scoped memory for tpu_custom_call.1']
    #allocation5 [shape = 'u8[524288]{0}', space=vmem, size = 0x80000, scoped, tag = 'input window, operand 1, single buffered']
    #allocation6 [shape = 's32[1]{0}', space=sflag, size = 0x4, scoped, tag = 'scoped memory for tpu_custom_call.1']
    #allocation7 [shape = 'u8[4096]{0}', space=vmem, size = 0x1000, scoped, tag = 'input window, operand 2, single buffered']
    #allocation8 [shape = 'u8[262144]{0}', space=vmem, size = 0x40000, scoped, tag = 'input window, operand 3, single buffered']
    #allocation9 [shape = 's32[1]{0}', space=sflag, size = 0x4, scoped, tag = 'scoped memory for tpu_custom_call.1']
    #allocation10 [shape = 'u8[32768]{0}', space=vmem, size = 0x8000, scoped, tag = 'input window, operand 5, single buffered']
    #allocation11 [shape = 'u8[32768]{0}', space=vmem, size = 0x8000, scoped, tag = 'input window, operand 7, single buffered']
    #allocation12 [shape = 's32[1]{0}', space=sflag, size = 0x4, scoped, tag = 'scoped memory for tpu_custom_call.1']
    #allocation13 [shape = 'u8[262144]{0}', space=vmem, size = 0x40000, scoped, tag = 'input window, operand 9, single buffered']
    #allocation14 [shape = 'u8[524288]{0}', space=vmem, size = 0x80000, scoped, tag = 'input window, operand 11, single buffered']
    #allocation15 [shape = 's32[1]{0}', space=sflag, size = 0x4, scoped, tag = 'scoped memory for tpu_custom_call.1']
    #allocation16 [shape = 'u8[8192]{0}', space=vmem, size = 0x2000, scoped, tag = 'output window, operand 0, single buffered']
    %18 = vsyncpa [#allocation3], 0
    %19 = vsyncpa [#allocation6], 0
    %20 = vsyncpa [#allocation9], 0
    %21 = vsyncpa [#allocation12], 0
    %22 = vsyncpa [#allocation15], 0
    %23 = vsyncpa [#allocation4], 0
    // Predicated region
    $region2: #{tpu_custom_call.1} parent=1 // pred_check
      _
    $region3: #{tpu_custom_call.1} parent=1 // pred_check_branch
      %25 = sbr.rel (0) target = $region5
    $region4: #{tpu_custom_call.1} parent=1 // pred_region
      %s27 = ssub.s32 128, 128
      %28 = vsyncadd [#allocation3], %s27
      %s30 = sshll.u32 [#allocation2], 4
      %s31 = int_to_ptr.vmem [resolvable:$true] %s30
      %33 = dma.hbm_to_vmem [thread:$0]  %s0, 128, %s31, [#allocation3]
    $region5: #{tpu_custom_call.1} parent=1 // pred_fallthru
      _
    // Predicated region
    $region6: #{tpu_custom_call.1} parent=1 // pred_check
      _
    $region7: #{tpu_custom_call.1} parent=1 // pred_check_branch
      %35 = sbr.rel (0) target = $region9
    $region8: #{tpu_custom_call.1} parent=1 // pred_region
      %s37 = ssub.s32 16384, 16384
      %38 = vsyncadd [#allocation6], %s37
      %s39 = sshll.u32 [#allocation5], 4
      %s40 = int_to_ptr.vmem [resolvable:$true] %s39
      %45 = dma.hbm_to_vmem [thread:$0]  %s1, 16384, %s40, [#allocation6], 512, 512, 32
    $region9: #{tpu_custom_call.1} parent=1 // pred_fallthru
      _
    // Predicated region
    $region10: #{tpu_custom_call.1} parent=1 // pred_check
      _
    $region11: #{tpu_custom_call.1} parent=1 // pred_check_branch
      %47 = sbr.rel (0) target = $region13
    $region12: #{tpu_custom_call.1} parent=1 // pred_region
      %s49 = ssub.s32 128, 128
      %50 = vsyncadd [#allocation6], %s49
      %s52 = sshll.u32 [#allocation7], 4
      %s53 = int_to_ptr.vmem [resolvable:$true] %s52
      %55 = dma.hbm_to_vmem [thread:$0]  %s2, 128, %s53, [#allocation6]
    $region13: #{tpu_custom_call.1} parent=1 // pred_fallthru
      _
    // Predicated region
    $region14: #{tpu_custom_call.1} parent=1 // pred_check
      _
    $region15: #{tpu_custom_call.1} parent=1 // pred_check_branch
      %57 = sbr.rel (0) target = $region17
    $region16: #{tpu_custom_call.1} parent=1 // pred_region
      %s59 = ssub.s32 8192, 8192
      %60 = vsyncadd [#allocation9], %s59
      %s61 = sshll.u32 [#allocation8], 4
      %s62 = int_to_ptr.vmem [resolvable:$true] %s61
      %67 = dma.hbm_to_vmem [thread:$0]  %s3, 8192, %s62, [#allocation9], 64, 64, 4
    $region17: #{tpu_custom_call.1} parent=1 // pred_fallthru
      _
    // Predicated region
    $region18: #{tpu_custom_call.1} parent=1 // pred_check
      _
    $region19: #{tpu_custom_call.1} parent=1 // pred_check_branch
      %69 = sbr.rel (0) target = $region21
    $region20: #{tpu_custom_call.1} parent=1 // pred_region
      _
    $region21: #{tpu_custom_call.1} parent=1 // pred_fallthru
      _
    // Predicated region
    $region22: #{tpu_custom_call.1} parent=1 // pred_check
      _
    $region23: #{tpu_custom_call.1} parent=1 // pred_check_branch
      %71 = sbr.rel (0) target = $region25
    $region24: #{tpu_custom_call.1} parent=1 // pred_region
      %s73 = ssub.s32 1024, 1024
      %74 = vsyncadd [#allocation9], %s73
      %s75 = sshll.u32 [#allocation10], 4
      %s76 = int_to_ptr.vmem [resolvable:$true] %s75
      %81 = dma.hbm_to_vmem [thread:$0]  %s5, 1024, %s76, [#allocation9], 64, 64, 4
    $region25: #{tpu_custom_call.1} parent=1 // pred_fallthru
      _
    // Predicated region
    $region26: #{tpu_custom_call.1} parent=1 // pred_check
      _
    $region27: #{tpu_custom_call.1} parent=1 // pred_check_branch
      %83 = sbr.rel (0) target = $region29
    $region28: #{tpu_custom_call.1} parent=1 // pred_region
      _
    $region29: #{tpu_custom_call.1} parent=1 // pred_fallthru
      _
    // Predicated region
    $region30: #{tpu_custom_call.1} parent=1 // pred_check
      _
    $region31: #{tpu_custom_call.1} parent=1 // pred_check_branch
      %85 = sbr.rel (0) target = $region33
    $region32: #{tpu_custom_call.1} parent=1 // pred_region
      %s87 = ssub.s32 1024, 1024
      %88 = vsyncadd [#allocation12], %s87
      %s89 = sshll.u32 [#allocation11], 4
      %s90 = int_to_ptr.vmem [resolvable:$true] %s89
      %95 = dma.hbm_to_vmem [thread:$0]  %s7, 1024, %s90, [#allocation12], 64, 64, 4
    $region33: #{tpu_custom_call.1} parent=1 // pred_fallthru
      _
    // Predicated region
    $region34: #{tpu_custom_call.1} parent=1 // pred_check
      _
    $region35: #{tpu_custom_call.1} parent=1 // pred_check_branch
      %97 = sbr.rel (0) target = $region37
    $region36: #{tpu_custom_call.1} parent=1 // pred_region
      _
    $region37: #{tpu_custom_call.1} parent=1 // pred_fallthru
      _
    // Predicated region
    $region38: #{tpu_custom_call.1} parent=1 // pred_check
      _
    $region39: #{tpu_custom_call.1} parent=1 // pred_check_branch
      %99 = sbr.rel (0) target = $region41
    $region40: #{tpu_custom_call.1} parent=1 // pred_region
      %s101 = ssub.s32 8192, 8192
      %102 = vsyncadd [#allocation12], %s101
      %s103 = sshll.u32 [#allocation13], 4
      %s104 = int_to_ptr.vmem [resolvable:$true] %s103
      %109 = dma.hbm_to_vmem [thread:$0]  %s9, 8192, %s104, [#allocation12], 512, 512, 32
    $region41: #{tpu_custom_call.1} parent=1 // pred_fallthru
      _
    // Predicated region
    $region42: #{tpu_custom_call.1} parent=1 // pred_check
      _
    $region43: #{tpu_custom_call.1} parent=1 // pred_check_branch
      %111 = sbr.rel (0) target = $region45
    $region44: #{tpu_custom_call.1} parent=1 // pred_region
      _
    $region45: #{tpu_custom_call.1} parent=1 // pred_fallthru
      _
    // Predicated region
    $region46: #{tpu_custom_call.1} parent=1 // pred_check
      _
    $region47: #{tpu_custom_call.1} parent=1 // pred_check_branch
      %113 = sbr.rel (0) target = $region49
    $region48: #{tpu_custom_call.1} parent=1 // pred_region
      %s115 = ssub.s32 16384, 16384
      %116 = vsyncadd [#allocation15], %s115
      %s117 = sshll.u32 [#allocation14], 4
      %s118 = int_to_ptr.vmem [resolvable:$true] %s117
      %123 = dma.hbm_to_vmem [thread:$0]  %s11, 16384, %s118, [#allocation15], 128, 128, 8
    $region49: #{tpu_custom_call.1} parent=1 // pred_fallthru
      _
    // Predicated region
    $region50: #{tpu_custom_call.1} parent=1 // pred_check
      _
    $region51: #{tpu_custom_call.1} parent=1 // pred_check_branch
      %125 = sbr.rel (0) target = $region53
    $region52: #{tpu_custom_call.1} parent=1 // pred_region
      _
    $region53: #{tpu_custom_call.1} parent=1 // pred_fallthru
      _
    // Predicated region
    $region54: #{tpu_custom_call.1} parent=1 // pred_check
      _
    $region55: #{tpu_custom_call.1} parent=1 // pred_check_branch
      %127 = sbr.rel (0) target = $region57
    $region56: #{tpu_custom_call.1} parent=1 // pred_region
      %128 = dma.done [#allocation3], 128
    $region57: #{tpu_custom_call.1} parent=1 // pred_fallthru
      _
    // Predicated region
    $region58: #{tpu_custom_call.1} parent=1 // pred_check
      _
    $region59: #{tpu_custom_call.1} parent=1 // pred_check_branch
      %130 = sbr.rel (0) target = $region61
    $region60: #{tpu_custom_call.1} parent=1 // pred_region
      %131 = dma.done [#allocation6], 16384
    $region61: #{tpu_custom_call.1} parent=1 // pred_fallthru
      _
    // Predicated region
    $region62: #{tpu_custom_call.1} parent=1 // pred_check
      _
    $region63: #{tpu_custom_call.1} parent=1 // pred_check_branch
      %133 = sbr.rel (0) target = $region65
    $region64: #{tpu_custom_call.1} parent=1 // pred_region
      %134 = dma.done [#allocation6], 128
    $region65: #{tpu_custom_call.1} parent=1 // pred_fallthru
      _
    // Predicated region
    $region66: #{tpu_custom_call.1} parent=1 // pred_check
      _
    $region67: #{tpu_custom_call.1} parent=1 // pred_check_branch
      %136 = sbr.rel (0) target = $region69
    $region68: #{tpu_custom_call.1} parent=1 // pred_region
      %137 = dma.done [#allocation9], 8192
    $region69: #{tpu_custom_call.1} parent=1 // pred_fallthru
      _
    // Predicated region
    $region70: #{tpu_custom_call.1} parent=1 // pred_check
      _
    $region71: #{tpu_custom_call.1} parent=1 // pred_check_branch
      %139 = sbr.rel (0) target = $region73
    $region72: #{tpu_custom_call.1} parent=1 // pred_region
      %140 = dma.done [#allocation9], 1024
    $region73: #{tpu_custom_call.1} parent=1 // pred_fallthru
      _
    // Predicated region
    $region74: #{tpu_custom_call.1} parent=1 // pred_check
      _
    $region75: #{tpu_custom_call.1} parent=1 // pred_check_branch
      %142 = sbr.rel (0) target = $region77
    $region76: #{tpu_custom_call.1} parent=1 // pred_region
      %143 = dma.done [#allocation12], 1024
    $region77: #{tpu_custom_call.1} parent=1 // pred_fallthru
      _
    // Predicated region
    $region78: #{tpu_custom_call.1} parent=1 // pred_check
      _
    $region79: #{tpu_custom_call.1} parent=1 // pred_check_branch
      %145 = sbr.rel (0) target = $region81
    $region80: #{tpu_custom_call.1} parent=1 // pred_region
      %146 = dma.done [#allocation12], 8192
    $region81: #{tpu_custom_call.1} parent=1 // pred_fallthru
      _
    // Predicated region
    $region82: #{tpu_custom_call.1} parent=1 // pred_check
      _
    $region83: #{tpu_custom_call.1} parent=1 // pred_check_branch
      %148 = sbr.rel (0) target = $region85
    $region84: #{tpu_custom_call.1} parent=1 // pred_region
      %149 = dma.done [#allocation15], 16384
    $region85: #{tpu_custom_call.1} parent=1 // pred_fallthru
      _
    %v151 = vld [vmem:[#allocation2] sm:$0xff]
    %v152 = vld [vmem:[#allocation5] sm:$0xff]
    %v153 = vld [vmem:[#allocation5 + $0x8] sm:$0xff]
    %v154 = vld [vmem:[#allocation5 + $0x10] sm:$0xff]
    %v155 = vld [vmem:[#allocation5 + $0x18] sm:$0xff]
    %v156 = vld [vmem:[#allocation5 + $0x20] sm:$0xff]
    %v157 = vld [vmem:[#allocation5 + $0x28] sm:$0xff]
    %v158 = vld [vmem:[#allocation5 + $0x30] sm:$0xff]
    %v159 = vld [vmem:[#allocation5 + $0x38] sm:$0xff]
    %v160 = vld [vmem:[#allocation5 + $0x40] sm:$0xff]
    %v161 = vld [vmem:[#allocation5 + $0x48] sm:$0xff]
    %v162 = vld [vmem:[#allocation5 + $0x50] sm:$0xff]
    %v163 = vld [vmem:[#allocation5 + $0x58] sm:$0xff]
    %v164 = vld [vmem:[#allocation5 + $0x60] sm:$0xff]
    %v165 = vld [vmem:[#allocation5 + $0x68] sm:$0xff]
    %v166 = vld [vmem:[#allocation5 + $0x70] sm:$0xff]
    %v167 = vld [vmem:[#allocation5 + $0x78] sm:$0xff]
    %v168 = vld [vmem:[#allocation5 + $0x80] sm:$0xff]
    %v169 = vld [vmem:[#allocation5 + $0x88] sm:$0xff]
    %v170 = vld [vmem:[#allocation5 + $0x90] sm:$0xff]
    %v171 = vld [vmem:[#allocation5 + $0x98] sm:$0xff]
    %v172 = vld [vmem:[#allocation5 + $0xa0] sm:$0xff]
    %v173 = vld [vmem:[#allocation5 + $0xa8] sm:$0xff]
    %v174 = vld [vmem:[#allocation5 + $0xb0] sm:$0xff]
    %v175 = vld [vmem:[#allocation5 + $0xb8] sm:$0xff]
    %v176 = vld [vmem:[#allocation5 + $0xc0] sm:$0xff]
    %v177 = vld [vmem:[#allocation5 + $0xc8] sm:$0xff]
    %v178 = vld [vmem:[#allocation5 + $0xd0] sm:$0xff]
    %v179 = vld [vmem:[#allocation5 + $0xd8] sm:$0xff]
    %v180 = vld [vmem:[#allocation5 + $0xe0] sm:$0xff]
    %v181 = vld [vmem:[#allocation5 + $0xe8] sm:$0xff]
    %v182 = vld [vmem:[#allocation5 + $0xf0] sm:$0xff]
    %v183 = vld [vmem:[#allocation5 + $0xf8] sm:$0xff]
    %v184 = vld [vmem:[#allocation5 + $0x100] sm:$0xff]
    %v185 = vld [vmem:[#allocation5 + $0x108] sm:$0xff]
    %v186 = vld [vmem:[#allocation5 + $0x110] sm:$0xff]
    %v187 = vld [vmem:[#allocation5 + $0x118] sm:$0xff]
    %v188 = vld [vmem:[#allocation5 + $0x120] sm:$0xff]
    %v189 = vld [vmem:[#allocation5 + $0x128] sm:$0xff]
    %v190 = vld [vmem:[#allocation5 + $0x130] sm:$0xff]
    %v191 = vld [vmem:[#allocation5 + $0x138] sm:$0xff]
    %v192 = vld [vmem:[#allocation5 + $0x140] sm:$0xff]
    %v193 = vld [vmem:[#allocation5 + $0x148] sm:$0xff]
    %v194 = vld [vmem:[#allocation5 + $0x150] sm:$0xff]
    %v195 = vld [vmem:[#allocation5 + $0x158] sm:$0xff]
    %v196 = vld [vmem:[#allocation5 + $0x160] sm:$0xff]
    %v197 = vld [vmem:[#allocation5 + $0x168] sm:$0xff]
    %v198 = vld [vmem:[#allocation5 + $0x170] sm:$0xff]
    %v199 = vld [vmem:[#allocation5 + $0x178] sm:$0xff]
    %v200 = vld [vmem:[#allocation5 + $0x180] sm:$0xff]
    %v201 = vld [vmem:[#allocation5 + $0x188] sm:$0xff]
    %v202 = vld [vmem:[#allocation5 + $0x190] sm:$0xff]
    %v203 = vld [vmem:[#allocation5 + $0x198] sm:$0xff]
    %v204 = vld [vmem:[#allocation5 + $0x1a0] sm:$0xff]
    %v205 = vld [vmem:[#allocation5 + $0x1a8] sm:$0xff]
    %v206 = vld [vmem:[#allocation5 + $0x1b0] sm:$0xff]
    %v207 = vld [vmem:[#allocation5 + $0x1b8] sm:$0xff]
    %v208 = vld [vmem:[#allocation5 + $0x1c0] sm:$0xff]
    %v209 = vld [vmem:[#allocation5 + $0x1c8] sm:$0xff]
    %v210 = vld [vmem:[#allocation5 + $0x1d0] sm:$0xff]
    %v211 = vld [vmem:[#allocation5 + $0x1d8] sm:$0xff]
    %v212 = vld [vmem:[#allocation5 + $0x1e0] sm:$0xff]
    %v213 = vld [vmem:[#allocation5 + $0x1e8] sm:$0xff]
    %v214 = vld [vmem:[#allocation5 + $0x1f0] sm:$0xff]
    %v215 = vld [vmem:[#allocation5 + $0x1f8] sm:$0xff]
    %v216 = vld [vmem:[#allocation5 + $0x200] sm:$0xff]
    %v217 = vld [vmem:[#allocation5 + $0x208] sm:$0xff]
    %v218 = vld [vmem:[#allocation5 + $0x210] sm:$0xff]
    %v219 = vld [vmem:[#allocation5 + $0x218] sm:$0xff]
    %v220 = vld [vmem:[#allocation5 + $0x220] sm:$0xff]
    %v221 = vld [vmem:[#allocation5 + $0x228] sm:$0xff]
    %v222 = vld [vmem:[#allocation5 + $0x230] sm:$0xff]
    %v223 = vld [vmem:[#allocation5 + $0x238] sm:$0xff]
    %v224 = vld [vmem:[#allocation5 + $0x240] sm:$0xff]
    %v225 = vld [vmem:[#allocation5 + $0x248] sm:$0xff]
    %v226 = vld [vmem:[#allocation5 + $0x250] sm:$0xff]
    %v227 = vld [vmem:[#allocation5 + $0x258] sm:$0xff]
    %v228 = vld [vmem:[#allocation5 + $0x260] sm:$0xff]
    %v229 = vld [vmem:[#allocation5 + $0x268] sm:$0xff]
    %v230 = vld [vmem:[#allocation5 + $0x270] sm:$0xff]
    %v231 = vld [vmem:[#allocation5 + $0x278] sm:$0xff]
    %v232 = vld [vmem:[#allocation5 + $0x280] sm:$0xff]
    %v233 = vld [vmem:[#allocation5 + $0x288] sm:$0xff]
    %v234 = vld [vmem:[#allocation5 + $0x290] sm:$0xff]
    %v235 = vld [vmem:[#allocation5 + $0x298] sm:$0xff]
    %v236 = vld [vmem:[#allocation5 + $0x2a0] sm:$0xff]
    %v237 = vld [vmem:[#allocation5 + $0x2a8] sm:$0xff]
    %v238 = vld [vmem:[#allocation5 + $0x2b0] sm:$0xff]
    %v239 = vld [vmem:[#allocation5 + $0x2b8] sm:$0xff]
    %v240 = vld [vmem:[#allocation5 + $0x2c0] sm:$0xff]
    %v241 = vld [vmem:[#allocation5 + $0x2c8] sm:$0xff]
    %v242 = vld [vmem:[#allocation5 + $0x2d0] sm:$0xff]
    %v243 = vld [vmem:[#allocation5 + $0x2d8] sm:$0xff]
    %v244 = vld [vmem:[#allocation5 + $0x2e0] sm:$0xff]
    %v245 = vld [vmem:[#allocation5 + $0x2e8] sm:$0xff]
    %v246 = vld [vmem:[#allocation5 + $0x2f0] sm:$0xff]
    %v247 = vld [vmem:[#allocation5 + $0x2f8] sm:$0xff]
    %v248 = vld [vmem:[#allocation5 + $0x300] sm:$0xff]
    %v249 = vld [vmem:[#allocation5 + $0x308] sm:$0xff]
    %v250 = vld [vmem:[#allocation5 + $0x310] sm:$0xff]
    %v251 = vld [vmem:[#allocation5 + $0x318] sm:$0xff]
    %v252 = vld [vmem:[#allocation5 + $0x320] sm:$0xff]
    %v253 = vld [vmem:[#allocation5 + $0x328] sm:$0xff]
    %v254 = vld [vmem:[#allocation5 + $0x330] sm:$0xff]
    %v255 = vld [vmem:[#allocation5 + $0x338] sm:$0xff]
    %v256 = vld [vmem:[#allocation5 + $0x340] sm:$0xff]
    %v257 = vld [vmem:[#allocation5 + $0x348] sm:$0xff]
    %v258 = vld [vmem:[#allocation5 + $0x350] sm:$0xff]
    %v259 = vld [vmem:[#allocation5 + $0x358] sm:$0xff]
    %v260 = vld [vmem:[#allocation5 + $0x360] sm:$0xff]
    %v261 = vld [vmem:[#allocation5 + $0x368] sm:$0xff]
    %v262 = vld [vmem:[#allocation5 + $0x370] sm:$0xff]
    %v263 = vld [vmem:[#allocation5 + $0x378] sm:$0xff]
    %v264 = vld [vmem:[#allocation5 + $0x380] sm:$0xff]
    %v265 = vld [vmem:[#allocation5 + $0x388] sm:$0xff]
    %v266 = vld [vmem:[#allocation5 + $0x390] sm:$0xff]
    %v267 = vld [vmem:[#allocation5 + $0x398] sm:$0xff]
    %v268 = vld [vmem:[#allocation5 + $0x3a0] sm:$0xff]
    %v269 = vld [vmem:[#allocation5 + $0x3a8] sm:$0xff]
    %v270 = vld [vmem:[#allocation5 + $0x3b0] sm:$0xff]
    %v271 = vld [vmem:[#allocation5 + $0x3b8] sm:$0xff]
    %v272 = vld [vmem:[#allocation5 + $0x3c0] sm:$0xff]
    %v273 = vld [vmem:[#allocation5 + $0x3c8] sm:$0xff]
    %v274 = vld [vmem:[#allocation5 + $0x3d0] sm:$0xff]
    %v275 = vld [vmem:[#allocation5 + $0x3d8] sm:$0xff]
    %v276 = vld [vmem:[#allocation5 + $0x3e0] sm:$0xff]
    %v277 = vld [vmem:[#allocation5 + $0x3e8] sm:$0xff]
    %v278 = vld [vmem:[#allocation5 + $0x3f0] sm:$0xff]
    %v279 = vld [vmem:[#allocation5 + $0x3f8] sm:$0xff]
    %v280 = vld [vmem:[#allocation7] sm:$0xff]
    %v282 = vlaneseq
    %v283 = vshrl.u32 %v282, 7
    %v284 = vsub.s32 0, %v283
    %v285 = vrot.slane %v280, %v284
    %v286 = vlaneseq
    %v287 = vshrl.u32 %v286, 7
    %v288 = vsub.s32 1, %v287
    %v289 = vrot.slane %v280, %v288
    %v290 = vlaneseq
    %v291 = vshrl.u32 %v290, 7
    %v292 = vsub.s32 2, %v291
    %v293 = vrot.slane %v280, %v292
    %v294 = vlaneseq
    %v295 = vshrl.u32 %v294, 7
    %v296 = vsub.s32 3, %v295
    %v297 = vrot.slane %v280, %v296
    %v298 = vlaneseq
    %v299 = vshrl.u32 %v298, 7
    %v300 = vsub.s32 4, %v299
    %v301 = vrot.slane %v280, %v300
    %v302 = vlaneseq
    %v303 = vshrl.u32 %v302, 7
    %v304 = vsub.s32 5, %v303
    %v305 = vrot.slane %v280, %v304
    %v306 = vlaneseq
    %v307 = vshrl.u32 %v306, 7
    %v308 = vsub.s32 6, %v307
    %v309 = vrot.slane %v280, %v308
    %v310 = vlaneseq
    %v311 = vshrl.u32 %v310, 7
    %v312 = vsub.s32 7, %v311
    %v313 = vrot.slane %v280, %v312
    %v323 = vunpack.c.l.b16 %v151
    %v324 = vunpack.c.h.b16 %v151
    %v325 = vpack.c.b16 %v323, %v323
    %v326 = vpack.c.b16 %v324, %v324
    %v457 = vunpack.c.l.b16 %v152
    %v458 = vunpack.c.h.b16 %v152
    %v459 = vunpack.c.l.b16 %v153
    %v460 = vunpack.c.h.b16 %v153
    %v461 = vunpack.c.l.b16 %v154
    %v462 = vunpack.c.h.b16 %v154
    %v463 = vunpack.c.l.b16 %v155
    %v464 = vunpack.c.h.b16 %v155
    %v465 = vunpack.c.l.b16 %v156
    %v466 = vunpack.c.h.b16 %v156
    %v467 = vunpack.c.l.b16 %v157
    %v468 = vunpack.c.h.b16 %v157
    %v469 = vunpack.c.l.b16 %v158
    %v470 = vunpack.c.h.b16 %v158
    %v471 = vunpack.c.l.b16 %v159
    %v472 = vunpack.c.h.b16 %v159
    %v473 = vunpack.c.l.b16 %v160
    %v474 = vunpack.c.h.b16 %v160
    %v475 = vunpack.c.l.b16 %v161
    %v476 = vunpack.c.h.b16 %v161
    %v477 = vunpack.c.l.b16 %v162
    %v478 = vunpack.c.h.b16 %v162
    %v479 = vunpack.c.l.b16 %v163
    %v480 = vunpack.c.h.b16 %v163
    %v481 = vunpack.c.l.b16 %v164
    %v482 = vunpack.c.h.b16 %v164
    %v483 = vunpack.c.l.b16 %v165
    %v484 = vunpack.c.h.b16 %v165
    %v485 = vunpack.c.l.b16 %v166
    %v486 = vunpack.c.h.b16 %v166
    %v487 = vunpack.c.l.b16 %v167
    %v488 = vunpack.c.h.b16 %v167
    %v489 = vunpack.c.l.b16 %v168
    %v490 = vunpack.c.h.b16 %v168
    %v491 = vunpack.c.l.b16 %v169
    %v492 = vunpack.c.h.b16 %v169
    %v493 = vunpack.c.l.b16 %v170
    %v494 = vunpack.c.h.b16 %v170
    %v495 = vunpack.c.l.b16 %v171
    %v496 = vunpack.c.h.b16 %v171
    %v497 = vunpack.c.l.b16 %v172
    %v498 = vunpack.c.h.b16 %v172
    %v499 = vunpack.c.l.b16 %v173
    %v500 = vunpack.c.h.b16 %v173
    %v501 = vunpack.c.l.b16 %v174
    %v502 = vunpack.c.h.b16 %v174
    %v503 = vunpack.c.l.b16 %v175
    %v504 = vunpack.c.h.b16 %v175
    %v505 = vunpack.c.l.b16 %v176
    %v506 = vunpack.c.h.b16 %v176
    %v507 = vunpack.c.l.b16 %v177
    %v508 = vunpack.c.h.b16 %v177
    %v509 = vunpack.c.l.b16 %v178
    %v510 = vunpack.c.h.b16 %v178
    %v511 = vunpack.c.l.b16 %v179
    %v512 = vunpack.c.h.b16 %v179
    %v513 = vunpack.c.l.b16 %v180
    %v514 = vunpack.c.h.b16 %v180
    %v515 = vunpack.c.l.b16 %v181
    %v516 = vunpack.c.h.b16 %v181
    %v517 = vunpack.c.l.b16 %v182
    %v518 = vunpack.c.h.b16 %v182
    %v519 = vunpack.c.l.b16 %v183
    %v520 = vunpack.c.h.b16 %v183
    %v521 = vunpack.c.l.b16 %v184
    %v522 = vunpack.c.h.b16 %v184
    %v523 = vunpack.c.l.b16 %v185
    %v524 = vunpack.c.h.b16 %v185
    %v525 = vunpack.c.l.b16 %v186
    %v526 = vunpack.c.h.b16 %v186
    %v527 = vunpack.c.l.b16 %v187
    %v528 = vunpack.c.h.b16 %v187
    %v529 = vunpack.c.l.b16 %v188
    %v530 = vunpack.c.h.b16 %v188
    %v531 = vunpack.c.l.b16 %v189
    %v532 = vunpack.c.h.b16 %v189
    %v533 = vunpack.c.l.b16 %v190
    %v534 = vunpack.c.h.b16 %v190
    %v535 = vunpack.c.l.b16 %v191
    %v536 = vunpack.c.h.b16 %v191
    %v537 = vunpack.c.l.b16 %v192
    %v538 = vunpack.c.h.b16 %v192
    %v539 = vunpack.c.l.b16 %v193
    %v540 = vunpack.c.h.b16 %v193
    %v541 = vunpack.c.l.b16 %v194
    %v542 = vunpack.c.h.b16 %v194
    %v543 = vunpack.c.l.b16 %v195
    %v544 = vunpack.c.h.b16 %v195
    %v545 = vunpack.c.l.b16 %v196
    %v546 = vunpack.c.h.b16 %v196
    %v547 = vunpack.c.l.b16 %v197
    %v548 = vunpack.c.h.b16 %v197
    %v549 = vunpack.c.l.b16 %v198
    %v550 = vunpack.c.h.b16 %v198
    %v551 = vunpack.c.l.b16 %v199
    %v552 = vunpack.c.h.b16 %v199
    %v553 = vunpack.c.l.b16 %v200
    %v554 = vunpack.c.h.b16 %v200
    %v555 = vunpack.c.l.b16 %v201
    %v556 = vunpack.c.h.b16 %v201
    %v557 = vunpack.c.l.b16 %v202
    %v558 = vunpack.c.h.b16 %v202
    %v559 = vunpack.c.l.b16 %v203
    %v560 = vunpack.c.h.b16 %v203
    %v561 = vunpack.c.l.b16 %v204
    %v562 = vunpack.c.h.b16 %v204
    %v563 = vunpack.c.l.b16 %v205
    %v564 = vunpack.c.h.b16 %v205
    %v565 = vunpack.c.l.b16 %v206
    %v566 = vunpack.c.h.b16 %v206
    %v567 = vunpack.c.l.b16 %v207
    %v568 = vunpack.c.h.b16 %v207
    %v569 = vunpack.c.l.b16 %v208
    %v570 = vunpack.c.h.b16 %v208
    %v571 = vunpack.c.l.b16 %v209
    %v572 = vunpack.c.h.b16 %v209
    %v573 = vunpack.c.l.b16 %v210
    %v574 = vunpack.c.h.b16 %v210
    %v575 = vunpack.c.l.b16 %v211
    %v576 = vunpack.c.h.b16 %v211
    %v577 = vunpack.c.l.b16 %v212
    %v578 = vunpack.c.h.b16 %v212
    %v579 = vunpack.c.l.b16 %v213
    %v580 = vunpack.c.h.b16 %v213
    %v581 = vunpack.c.l.b16 %v214
    %v582 = vunpack.c.h.b16 %v214
    %v583 = vunpack.c.l.b16 %v215
    %v584 = vunpack.c.h.b16 %v215
    %v585 = vunpack.c.l.b16 %v216
    %v586 = vunpack.c.h.b16 %v216
    %v587 = vunpack.c.l.b16 %v217
    %v588 = vunpack.c.h.b16 %v217
    %v589 = vunpack.c.l.b16 %v218
    %v590 = vunpack.c.h.b16 %v218
    %v591 = vunpack.c.l.b16 %v219
    %v592 = vunpack.c.h.b16 %v219
    %v593 = vunpack.c.l.b16 %v220
    %v594 = vunpack.c.h.b16 %v220
    %v595 = vunpack.c.l.b16 %v221
    %v596 = vunpack.c.h.b16 %v221
    %v597 = vunpack.c.l.b16 %v222
    %v598 = vunpack.c.h.b16 %v222
    %v599 = vunpack.c.l.b16 %v223
    %v600 = vunpack.c.h.b16 %v223
    %v601 = vunpack.c.l.b16 %v224
    %v602 = vunpack.c.h.b16 %v224
    %v603 = vunpack.c.l.b16 %v225
    %v604 = vunpack.c.h.b16 %v225
    %v605 = vunpack.c.l.b16 %v226
    %v606 = vunpack.c.h.b16 %v226
    %v607 = vunpack.c.l.b16 %v227
    %v608 = vunpack.c.h.b16 %v227
    %v609 = vunpack.c.l.b16 %v228
    %v610 = vunpack.c.h.b16 %v228
    %v611 = vunpack.c.l.b16 %v229
    %v612 = vunpack.c.h.b16 %v229
    %v613 = vunpack.c.l.b16 %v230
    %v614 = vunpack.c.h.b16 %v230
    %v615 = vunpack.c.l.b16 %v231
    %v616 = vunpack.c.h.b16 %v231
    %v617 = vunpack.c.l.b16 %v232
    %v618 = vunpack.c.h.b16 %v232
    %v619 = vunpack.c.l.b16 %v233
    %v620 = vunpack.c.h.b16 %v233
    %v621 = vunpack.c.l.b16 %v234
    %v622 = vunpack.c.h.b16 %v234
    %v623 = vunpack.c.l.b16 %v235
    %v624 = vunpack.c.h.b16 %v235
    %v625 = vunpack.c.l.b16 %v236
    %v626 = vunpack.c.h.b16 %v236
    %v627 = vunpack.c.l.b16 %v237
    %v628 = vunpack.c.h.b16 %v237
    %v629 = vunpack.c.l.b16 %v238
    %v630 = vunpack.c.h.b16 %v238
    %v631 = vunpack.c.l.b16 %v239
    %v632 = vunpack.c.h.b16 %v239
    %v633 = vunpack.c.l.b16 %v240
    %v634 = vunpack.c.h.b16 %v240
    %v635 = vunpack.c.l.b16 %v241
    %v636 = vunpack.c.h.b16 %v241
    %v637 = vunpack.c.l.b16 %v242
    %v638 = vunpack.c.h.b16 %v242
    %v639 = vunpack.c.l.b16 %v243
    %v640 = vunpack.c.h.b16 %v243
    %v641 = vunpack.c.l.b16 %v244
    %v642 = vunpack.c.h.b16 %v244
    %v643 = vunpack.c.l.b16 %v245
    %v644 = vunpack.c.h.b16 %v245
    %v645 = vunpack.c.l.b16 %v246
    %v646 = vunpack.c.h.b16 %v246
    %v647 = vunpack.c.l.b16 %v247
    %v648 = vunpack.c.h.b16 %v247
    %v649 = vunpack.c.l.b16 %v248
    %v650 = vunpack.c.h.b16 %v248
    %v651 = vunpack.c.l.b16 %v249
    %v652 = vunpack.c.h.b16 %v249
    %v653 = vunpack.c.l.b16 %v250
    %v654 = vunpack.c.h.b16 %v250
    %v655 = vunpack.c.l.b16 %v251
    %v656 = vunpack.c.h.b16 %v251
    %v657 = vunpack.c.l.b16 %v252
    %v658 = vunpack.c.h.b16 %v252
    %v659 = vunpack.c.l.b16 %v253
    %v660 = vunpack.c.h.b16 %v253
    %v661 = vunpack.c.l.b16 %v254
    %v662 = vunpack.c.h.b16 %v254
    %v663 = vunpack.c.l.b16 %v255
    %v664 = vunpack.c.h.b16 %v255
    %v665 = vunpack.c.l.b16 %v256
    %v666 = vunpack.c.h.b16 %v256
    %v667 = vunpack.c.l.b16 %v257
    %v668 = vunpack.c.h.b16 %v257
    %v669 = vunpack.c.l.b16 %v258
    %v670 = vunpack.c.h.b16 %v258
    %v671 = vunpack.c.l.b16 %v259
    %v672 = vunpack.c.h.b16 %v259
    %v673 = vunpack.c.l.b16 %v260
    %v674 = vunpack.c.h.b16 %v260
    %v675 = vunpack.c.l.b16 %v261
    %v676 = vunpack.c.h.b16 %v261
    %v677 = vunpack.c.l.b16 %v262
    %v678 = vunpack.c.h.b16 %v262
    %v679 = vunpack.c.l.b16 %v263
    %v680 = vunpack.c.h.b16 %v263
    %v681 = vunpack.c.l.b16 %v264
    %v682 = vunpack.c.h.b16 %v264
    %v683 = vunpack.c.l.b16 %v265
    %v684 = vunpack.c.h.b16 %v265
    %v685 = vunpack.c.l.b16 %v266
    %v686 = vunpack.c.h.b16 %v266
    %v687 = vunpack.c.l.b16 %v267
    %v688 = vunpack.c.h.b16 %v267
    %v689 = vunpack.c.l.b16 %v268
    %v690 = vunpack.c.h.b16 %v268
    %v691 = vunpack.c.l.b16 %v269
    %v692 = vunpack.c.h.b16 %v269
    %v693 = vunpack.c.l.b16 %v270
    %v694 = vunpack.c.h.b16 %v270
    %v695 = vunpack.c.l.b16 %v271
    %v696 = vunpack.c.h.b16 %v271
    %v697 = vunpack.c.l.b16 %v272
    %v698 = vunpack.c.h.b16 %v272
    %v699 = vunpack.c.l.b16 %v273
    %v700 = vunpack.c.h.b16 %v273
    %v701 = vunpack.c.l.b16 %v274
    %v702 = vunpack.c.h.b16 %v274
    %v703 = vunpack.c.l.b16 %v275
    %v704 = vunpack.c.h.b16 %v275
    %v705 = vunpack.c.l.b16 %v276
    %v706 = vunpack.c.h.b16 %v276
    %v707 = vunpack.c.l.b16 %v277
    %v708 = vunpack.c.h.b16 %v277
    %v709 = vunpack.c.l.b16 %v278
    %v710 = vunpack.c.h.b16 %v278
    %v711 = vunpack.c.l.b16 %v279
    %v712 = vunpack.c.h.b16 %v279
    %v713 = vpack.c.b16 %v465, %v457
    %v714 = vpack.c.b16 %v466, %v458
    %v715 = vpack.c.b16 %v467, %v459
    %v716 = vpack.c.b16 %v468, %v460
    %v717 = vpack.c.b16 %v469, %v461
    %v718 = vpack.c.b16 %v470, %v462
    %v719 = vpack.c.b16 %v471, %v463
    %v720 = vpack.c.b16 %v472, %v464
    %v721 = vpack.c.b16 %v481, %v473
    %v722 = vpack.c.b16 %v482, %v474
    %v723 = vpack.c.b16 %v483, %v475
    %v724 = vpack.c.b16 %v484, %v476
    %v725 = vpack.c.b16 %v485, %v477
    %v726 = vpack.c.b16 %v486, %v478
    %v727 = vpack.c.b16 %v487, %v479
    %v728 = vpack.c.b16 %v488, %v480
    %v729 = vpack.c.b16 %v497, %v489
    %v730 = vpack.c.b16 %v498, %v490
    %v731 = vpack.c.b16 %v499, %v491
    %v732 = vpack.c.b16 %v500, %v492
    %v733 = vpack.c.b16 %v501, %v493
    %v734 = vpack.c.b16 %v502, %v494
    %v735 = vpack.c.b16 %v503, %v495
    %v736 = vpack.c.b16 %v504, %v496
    %v737 = vpack.c.b16 %v513, %v505
    %v738 = vpack.c.b16 %v514, %v506
    %v739 = vpack.c.b16 %v515, %v507
    %v740 = vpack.c.b16 %v516, %v508
    %v741 = vpack.c.b16 %v517, %v509
    %v742 = vpack.c.b16 %v518, %v510
    %v743 = vpack.c.b16 %v519, %v511
    %v744 = vpack.c.b16 %v520, %v512
    %v745 = vpack.c.b16 %v529, %v521
    %v746 = vpack.c.b16 %v530, %v522
    %v747 = vpack.c.b16 %v531, %v523
    %v748 = vpack.c.b16 %v532, %v524
    %v749 = vpack.c.b16 %v533, %v525
    %v750 = vpack.c.b16 %v534, %v526
    %v751 = vpack.c.b16 %v535, %v527
    %v752 = vpack.c.b16 %v536, %v528
    %v753 = vpack.c.b16 %v545, %v537
    %v754 = vpack.c.b16 %v546, %v538
    %v755 = vpack.c.b16 %v547, %v539
    %v756 = vpack.c.b16 %v548, %v540
    %v757 = vpack.c.b16 %v549, %v541
    %v758 = vpack.c.b16 %v550, %v542
    %v759 = vpack.c.b16 %v551, %v543
    %v760 = vpack.c.b16 %v552, %v544
    %v761 = vpack.c.b16 %v561, %v553
    %v762 = vpack.c.b16 %v562, %v554
    %v763 = vpack.c.b16 %v563, %v555
    %v764 = vpack.c.b16 %v564, %v556
    %v765 = vpack.c.b16 %v565, %v557
    %v766 = vpack.c.b16 %v566, %v558
    %v767 = vpack.c.b16 %v567, %v559
    %v768 = vpack.c.b16 %v568, %v560
    %v769 = vpack.c.b16 %v577, %v569
    %v770 = vpack.c.b16 %v578, %v570
    %v771 = vpack.c.b16 %v579, %v571
    %v772 = vpack.c.b16 %v580, %v572
    %v773 = vpack.c.b16 %v581, %v573
    %v774 = vpack.c.b16 %v582, %v574
    %v775 = vpack.c.b16 %v583, %v575
    %v776 = vpack.c.b16 %v584, %v576
    %v777 = vpack.c.b16 %v593, %v585
    %v778 = vpack.c.b16 %v594, %v586
    %v779 = vpack.c.b16 %v595, %v587
    %v780 = vpack.c.b16 %v596, %v588
    %v781 = vpack.c.b16 %v597, %v589
    %v782 = vpack.c.b16 %v598, %v590
    %v783 = vpack.c.b16 %v599, %v591
    %v784 = vpack.c.b16 %v600, %v592
    %v785 = vpack.c.b16 %v609, %v601
    %v786 = vpack.c.b16 %v610, %v602
    %v787 = vpack.c.b16 %v611, %v603
    %v788 = vpack.c.b16 %v612, %v604
    %v789 = vpack.c.b16 %v613, %v605
    %v790 = vpack.c.b16 %v614, %v606
    %v791 = vpack.c.b16 %v615, %v607
    %v792 = vpack.c.b16 %v616, %v608
    %v793 = vpack.c.b16 %v625, %v617
    %v794 = vpack.c.b16 %v626, %v618
    %v795 = vpack.c.b16 %v627, %v619
    %v796 = vpack.c.b16 %v628, %v620
    %v797 = vpack.c.b16 %v629, %v621
    %v798 = vpack.c.b16 %v630, %v622
    %v799 = vpack.c.b16 %v631, %v623
    %v800 = vpack.c.b16 %v632, %v624
    %v801 = vpack.c.b16 %v641, %v633
    %v802 = vpack.c.b16 %v642, %v634
    %v803 = vpack.c.b16 %v643, %v635
    %v804 = vpack.c.b16 %v644, %v636
    %v805 = vpack.c.b16 %v645, %v637
    %v806 = vpack.c.b16 %v646, %v638
    %v807 = vpack.c.b16 %v647, %v639
    %v808 = vpack.c.b16 %v648, %v640
    %v809 = vpack.c.b16 %v657, %v649
    %v810 = vpack.c.b16 %v658, %v650
    %v811 = vpack.c.b16 %v659, %v651
    %v812 = vpack.c.b16 %v660, %v652
    %v813 = vpack.c.b16 %v661, %v653
    %v814 = vpack.c.b16 %v662, %v654
    %v815 = vpack.c.b16 %v663, %v655
    %v816 = vpack.c.b16 %v664, %v656
    %v817 = vpack.c.b16 %v673, %v665
    %v818 = vpack.c.b16 %v674, %v666
    %v819 = vpack.c.b16 %v675, %v667
    %v820 = vpack.c.b16 %v676, %v668
    %v821 = vpack.c.b16 %v677, %v669
    %v822 = vpack.c.b16 %v678, %v670
    %v823 = vpack.c.b16 %v679, %v671
    %v824 = vpack.c.b16 %v680, %v672
    %v825 = vpack.c.b16 %v689, %v681
    %v826 = vpack.c.b16 %v690, %v682
    %v827 = vpack.c.b16 %v691, %v683
    %v828 = vpack.c.b16 %v692, %v684
    %v829 = vpack.c.b16 %v693, %v685
    %v830 = vpack.c.b16 %v694, %v686
    %v831 = vpack.c.b16 %v695, %v687
    %v832 = vpack.c.b16 %v696, %v688
    %v833 = vpack.c.b16 %v705, %v697
    %v834 = vpack.c.b16 %v706, %v698
    %v835 = vpack.c.b16 %v707, %v699
    %v836 = vpack.c.b16 %v708, %v700
    %v837 = vpack.c.b16 %v709, %v701
    %v838 = vpack.c.b16 %v710, %v702
    %v839 = vpack.c.b16 %v711, %v703
    %v840 = vpack.c.b16 %v712, %v704
    %969 = vmatprep.subr.bf16.mxu0 %v714
    %970 = vmatpush1.bf16.msra.mxu0 %v713
    %971 = vmatprep.subr.bf16.mxu0 %v722
    %972 = vmatpush1.bf16.msra.mxu0 %v721
    %973 = vmatprep.subr.bf16.mxu0 %v730
    %974 = vmatpush1.bf16.msra.mxu0 %v729
    %975 = vmatprep.subr.bf16.mxu0 %v738
    %976 = vmatpush1.bf16.msra.mxu0 %v737
    %977 = vmatprep.subr.bf16.mxu0 %v746
    %978 = vmatpush1.bf16.msra.mxu0 %v745
    %979 = vmatprep.subr.bf16.mxu0 %v754
    %980 = vmatpush1.bf16.msra.mxu0 %v753
    %981 = vmatprep.subr.bf16.mxu0 %v762
    %982 = vmatpush1.bf16.msra.mxu0 %v761
    %983 = vmatprep.subr.bf16.mxu0 %v770
    %984 = vmatpush1.bf16.msra.mxu0 %v769
    %985 = vmatprep.subr.bf16.mxu0 %v778
    %986 = vmatpush1.bf16.msra.mxu0 %v777
    %987 = vmatprep.subr.bf16.mxu0 %v786
    %988 = vmatpush1.bf16.msra.mxu0 %v785
    %989 = vmatprep.subr.bf16.mxu0 %v794
    %990 = vmatpush1.bf16.msra.mxu0 %v793
    %991 = vmatprep.subr.bf16.mxu0 %v802
    %992 = vmatpush1.bf16.msra.mxu0 %v801
    %993 = vmatprep.subr.bf16.mxu0 %v810
    %994 = vmatpush1.bf16.msra.mxu0 %v809
    %995 = vmatprep.subr.bf16.mxu0 %v818
    %996 = vmatpush1.bf16.msra.mxu0 %v817
    %997 = vmatprep.subr.bf16.mxu0 %v826
    %998 = vmatpush1.bf16.msra.mxu0 %v825
    %999 = vmatprep.subr.bf16.mxu0 %v834
    %1000 = vmatpush1.bf16.msra.mxu0 %v833
    %1001 = vmatprep.mubr.bf16.mxu0 %v326
    %1002 = vmatmul.mubr.bf16.gmra.mrb[0].mxu0 %v325
    %v1003 = vpop.f32.mrb[0].mxu0
    %v1004 = vadd.f32 %v285, %v1003
    %v1005 = vpop.f32.mrb[0].mxu0
    %v1006 = vadd.f32 %v289, %v1005
    %v1007 = vpop.f32.mrb[0].mxu0
    %v1008 = vpop.f32.mrb[0].mxu0
    %1009 = vdwg.mxu0
    %1010 = vmatprep.subr.bf16.mxu0 %v716
    %1011 = vmatpush1.bf16.msra.mxu0 %v715
    %1012 = vmatprep.subr.bf16.mxu0 %v724
    %1013 = vmatpush1.bf16.msra.mxu0 %v723
    %1014 = vmatprep.subr.bf16.mxu0 %v732
    %1015 = vmatpush1.bf16.msra.mxu0 %v731
    %1016 = vmatprep.subr.bf16.mxu0 %v740
    %1017 = vmatpush1.bf16.msra.mxu0 %v739
    %1018 = vmatprep.subr.bf16.mxu0 %v748
    %1019 = vmatpush1.bf16.msra.mxu0 %v747
    %1020 = vmatprep.subr.bf16.mxu0 %v756
    %1021 = vmatpush1.bf16.msra.mxu0 %v755
    %1022 = vmatprep.subr.bf16.mxu0 %v764
    %1023 = vmatpush1.bf16.msra.mxu0 %v763
    %1024 = vmatprep.subr.bf16.mxu0 %v772
    %1025 = vmatpush1.bf16.msra.mxu0 %v771
    %1026 = vmatprep.subr.bf16.mxu0 %v780
    %1027 = vmatpush1.bf16.msra.mxu0 %v779
    %1028 = vmatprep.subr.bf16.mxu0 %v788
    %1029 = vmatpush1.bf16.msra.mxu0 %v787
    %1030 = vmatprep.subr.bf16.mxu0 %v796
    %1031 = vmatpush1.bf16.msra.mxu0 %v795
    %1032 = vmatprep.subr.bf16.mxu0 %v804
    %1033 = vmatpush1.bf16.msra.mxu0 %v803
    %1034 = vmatprep.subr.bf16.mxu0 %v812
    %1035 = vmatpush1.bf16.msra.mxu0 %v811
    %1036 = vmatprep.subr.bf16.mxu0 %v820
    %1037 = vmatpush1.bf16.msra.mxu0 %v819
    %1038 = vmatprep.subr.bf16.mxu0 %v828
    %1039 = vmatpush1.bf16.msra.mxu0 %v827
    %1040 = vmatprep.subr.bf16.mxu0 %v836
    %1041 = vmatpush1.bf16.msra.mxu0 %v835
    %1042 = vmatprep.mubr.bf16.mxu0 %v326
    %1043 = vmatmul.mubr.bf16.gmra.mrb[0].mxu0 %v325
    %v1044 = vpop.f32.mrb[0].mxu0
    %v1045 = vadd.f32 %v293, %v1044
    %v1046 = vpop.f32.mrb[0].mxu0
    %v1047 = vadd.f32 %v297, %v1046
    %v1048 = vpop.f32.mrb[0].mxu0
    %v1049 = vpop.f32.mrb[0].mxu0
    %1050 = vdwg.mxu0
    %1051 = vmatprep.subr.bf16.mxu0 %v718
    %1052 = vmatpush1.bf16.msra.mxu0 %v717
    %1053 = vmatprep.subr.bf16.mxu0 %v726
    %1054 = vmatpush1.bf16.msra.mxu0 %v725
    %1055 = vmatprep.subr.bf16.mxu0 %v734
    %1056 = vmatpush1.bf16.msra.mxu0 %v733
    %1057 = vmatprep.subr.bf16.mxu0 %v742
    %1058 = vmatpush1.bf16.msra.mxu0 %v741
    %1059 = vmatprep.subr.bf16.mxu0 %v750
    %1060 = vmatpush1.bf16.msra.mxu0 %v749
    %1061 = vmatprep.subr.bf16.mxu0 %v758
    %1062 = vmatpush1.bf16.msra.mxu0 %v757
    %1063 = vmatprep.subr.bf16.mxu0 %v766
    %1064 = vmatpush1.bf16.msra.mxu0 %v765
    %1065 = vmatprep.subr.bf16.mxu0 %v774
    %1066 = vmatpush1.bf16.msra.mxu0 %v773
    %1067 = vmatprep.subr.bf16.mxu0 %v782
    %1068 = vmatpush1.bf16.msra.mxu0 %v781
    %1069 = vmatprep.subr.bf16.mxu0 %v790
    %1070 = vmatpush1.bf16.msra.mxu0 %v789
    %1071 = vmatprep.subr.bf16.mxu0 %v798
    %1072 = vmatpush1.bf16.msra.mxu0 %v797
    %1073 = vmatprep.subr.bf16.mxu0 %v806
    %1074 = vmatpush1.bf16.msra.mxu0 %v805
    %1075 = vmatprep.subr.bf16.mxu0 %v814
    %1076 = vmatpush1.bf16.msra.mxu0 %v813
    %1077 = vmatprep.subr.bf16.mxu0 %v822
    %1078 = vmatpush1.bf16.msra.mxu0 %v821
    %1079 = vmatprep.subr.bf16.mxu0 %v830
    %1080 = vmatpush1.bf16.msra.mxu0 %v829
    %1081 = vmatprep.subr.bf16.mxu0 %v838
    %1082 = vmatpush1.bf16.msra.mxu0 %v837
    %1083 = vmatprep.mubr.bf16.mxu0 %v326
    %1084 = vmatmul.mubr.bf16.gmra.mrb[0].mxu0 %v325
    %v1085 = vpop.f32.mrb[0].mxu0
    %v1086 = vadd.f32 %v301, %v1085
    %v1087 = vpop.f32.mrb[0].mxu0
    %v1088 = vadd.f32 %v305, %v1087
    %v1089 = vpop.f32.mrb[0].mxu0
    %v1090 = vpop.f32.mrb[0].mxu0
    %1091 = vdwg.mxu0
    %1092 = vmatprep.subr.bf16.mxu0 %v720
    %1093 = vmatpush1.bf16.msra.mxu0 %v719
    %1094 = vmatprep.subr.bf16.mxu0 %v728
    %1095 = vmatpush1.bf16.msra.mxu0 %v727
    %1096 = vmatprep.subr.bf16.mxu0 %v736
    %1097 = vmatpush1.bf16.msra.mxu0 %v735
    %1098 = vmatprep.subr.bf16.mxu0 %v744
    %1099 = vmatpush1.bf16.msra.mxu0 %v743
    %1100 = vmatprep.subr.bf16.mxu0 %v752
    %1101 = vmatpush1.bf16.msra.mxu0 %v751
    %1102 = vmatprep.subr.bf16.mxu0 %v760
    %1103 = vmatpush1.bf16.msra.mxu0 %v759
    %1104 = vmatprep.subr.bf16.mxu0 %v768
    %1105 = vmatpush1.bf16.msra.mxu0 %v767
    %1106 = vmatprep.subr.bf16.mxu0 %v776
    %1107 = vmatpush1.bf16.msra.mxu0 %v775
    %1108 = vmatprep.subr.bf16.mxu0 %v784
    %1109 = vmatpush1.bf16.msra.mxu0 %v783
    %1110 = vmatprep.subr.bf16.mxu0 %v792
    %1111 = vmatpush1.bf16.msra.mxu0 %v791
    %1112 = vmatprep.subr.bf16.mxu0 %v800
    %1113 = vmatpush1.bf16.msra.mxu0 %v799
    %1114 = vmatprep.subr.bf16.mxu0 %v808
    %1115 = vmatpush1.bf16.msra.mxu0 %v807
    %1116 = vmatprep.subr.bf16.mxu0 %v816
    %1117 = vmatpush1.bf16.msra.mxu0 %v815
    %1118 = vmatprep.subr.bf16.mxu0 %v824
    %1119 = vmatpush1.bf16.msra.mxu0 %v823
    %1120 = vmatprep.subr.bf16.mxu0 %v832
    %1121 = vmatpush1.bf16.msra.mxu0 %v831
    %1122 = vmatprep.subr.bf16.mxu0 %v840
    %1123 = vmatpush1.bf16.msra.mxu0 %v839
    %1124 = vmatprep.mubr.bf16.mxu0 %v326
    %1125 = vmatmul.mubr.bf16.gmra.mrb[0].mxu0 %v325
    %v1126 = vpop.f32.mrb[0].mxu0
    %v1127 = vadd.f32 %v309, %v1126
    %v1128 = vpop.f32.mrb[0].mxu0
    %v1129 = vadd.f32 %v313, %v1128
    %v1130 = vpop.f32.mrb[0].mxu0
    %v1131 = vpop.f32.mrb[0].mxu0
    %1132 = vdwg.mxu0
    %vm1133 = vcmp.ge.f32.partialorder %v1004, 0.0
    %vm1134 = vcmp.ge.f32.partialorder %v1006, 0.0
    %vm1135 = vcmp.ge.f32.partialorder %v1045, 0.0
    %vm1136 = vcmp.ge.f32.partialorder %v1047, 0.0
    %vm1137 = vcmp.ge.f32.partialorder %v1086, 0.0
    %vm1138 = vcmp.ge.f32.partialorder %v1088, 0.0
    %vm1139 = vcmp.ge.f32.partialorder %v1127, 0.0
    %vm1140 = vcmp.ge.f32.partialorder %v1129, 0.0
    %v1141 = vmul.f32 %v1004, 0.01
    %v1142 = vmul.f32 %v1006, 0.01
    %v1143 = vmul.f32 %v1045, 0.01
    %v1144 = vmul.f32 %v1047, 0.01
    %v1145 = vmul.f32 %v1086, 0.01
    %v1146 = vmul.f32 %v1088, 0.01
    %v1147 = vmul.f32 %v1127, 0.01
    %v1148 = vmul.f32 %v1129, 0.01
    %v1149 = vsel %vm1133, %v1004, %v1141
    %v1150 = vsel %vm1134, %v1006, %v1142
    %v1151 = vsel %vm1135, %v1045, %v1143
    %v1152 = vsel %vm1136, %v1047, %v1144
    %v1153 = vsel %vm1137, %v1086, %v1145
    %v1154 = vsel %vm1138, %v1088, %v1146
    %v1155 = vsel %vm1139, %v1127, %v1147
    %v1156 = vsel %vm1140, %v1129, %v1148
    %v1157 = vpack.c.bf16 %v1149, %v1149
    %v1158 = vpack.c.bf16 %v1150, %v1150
    %v1159 = vpack.c.bf16 %v1151, %v1151
    %v1160 = vpack.c.bf16 %v1152, %v1152
    %v1161 = vpack.c.bf16 %v1153, %v1153
    %v1162 = vpack.c.bf16 %v1154, %v1154
    %v1163 = vpack.c.bf16 %v1155, %v1155
    %v1164 = vpack.c.bf16 %v1156, %v1156
    %v1165 = vld [vmem:[#allocation8] sm:$0xf]
    %v1166 = vld [vmem:[#allocation8 + $0x4] sm:$0xf]
    %v1167 = vld [vmem:[#allocation8 + $0x8] sm:$0xf]
    %v1168 = vld [vmem:[#allocation8 + $0xc] sm:$0xf]
    %v1169 = vld [vmem:[#allocation8 + $0x10] sm:$0xf]
    %v1170 = vld [vmem:[#allocation8 + $0x14] sm:$0xf]
    %v1171 = vld [vmem:[#allocation8 + $0x18] sm:$0xf]
    %v1172 = vld [vmem:[#allocation8 + $0x1c] sm:$0xf]
    %v1173 = vld [vmem:[#allocation8 + $0x20] sm:$0xf]
    %v1174 = vld [vmem:[#allocation8 + $0x24] sm:$0xf]
    %v1175 = vld [vmem:[#allocation8 + $0x28] sm:$0xf]
    %v1176 = vld [vmem:[#allocation8 + $0x2c] sm:$0xf]
    %v1177 = vld [vmem:[#allocation8 + $0x30] sm:$0xf]
    %v1178 = vld [vmem:[#allocation8 + $0x34] sm:$0xf]
    %v1179 = vld [vmem:[#allocation8 + $0x38] sm:$0xf]
    %v1180 = vld [vmem:[#allocation8 + $0x3c] sm:$0xf]
    %v1181 = vld [vmem:[#allocation8 + $0x40] sm:$0xf]
    %v1182 = vld [vmem:[#allocation8 + $0x44] sm:$0xf]
    %v1183 = vld [vmem:[#allocation8 + $0x48] sm:$0xf]
    %v1184 = vld [vmem:[#allocation8 + $0x4c] sm:$0xf]
    %v1185 = vld [vmem:[#allocation8 + $0x50] sm:$0xf]
    %v1186 = vld [vmem:[#allocation8 + $0x54] sm:$0xf]
    %v1187 = vld [vmem:[#allocation8 + $0x58] sm:$0xf]
    %v1188 = vld [vmem:[#allocation8 + $0x5c] sm:$0xf]
    %v1189 = vld [vmem:[#allocation8 + $0x60] sm:$0xf]
    %v1190 = vld [vmem:[#allocation8 + $0x64] sm:$0xf]
    %v1191 = vld [vmem:[#allocation8 + $0x68] sm:$0xf]
    %v1192 = vld [vmem:[#allocation8 + $0x6c] sm:$0xf]
    %v1193 = vld [vmem:[#allocation8 + $0x70] sm:$0xf]
    %v1194 = vld [vmem:[#allocation8 + $0x74] sm:$0xf]
    %v1195 = vld [vmem:[#allocation8 + $0x78] sm:$0xf]
    %v1196 = vld [vmem:[#allocation8 + $0x7c] sm:$0xf]
    %v1197 = vld [vmem:[#allocation8 + $0x80] sm:$0xf]
    %v1198 = vld [vmem:[#allocation8 + $0x84] sm:$0xf]
    %v1199 = vld [vmem:[#allocation8 + $0x88] sm:$0xf]
    %v1200 = vld [vmem:[#allocation8 + $0x8c] sm:$0xf]
    %v1201 = vld [vmem:[#allocation8 + $0x90] sm:$0xf]
    %v1202 = vld [vmem:[#allocation8 + $0x94] sm:$0xf]
    %v1203 = vld [vmem:[#allocation8 + $0x98] sm:$0xf]
    %v1204 = vld [vmem:[#allocation8 + $0x9c] sm:$0xf]
    %v1205 = vld [vmem:[#allocation8 + $0xa0] sm:$0xf]
    %v1206 = vld [vmem:[#allocation8 + $0xa4] sm:$0xf]
    %v1207 = vld [vmem:[#allocation8 + $0xa8] sm:$0xf]
    %v1208 = vld [vmem:[#allocation8 + $0xac] sm:$0xf]
    %v1209 = vld [vmem:[#allocation8 + $0xb0] sm:$0xf]
    %v1210 = vld [vmem:[#allocation8 + $0xb4] sm:$0xf]
    %v1211 = vld [vmem:[#allocation8 + $0xb8] sm:$0xf]
    %v1212 = vld [vmem:[#allocation8 + $0xbc] sm:$0xf]
    %v1213 = vld [vmem:[#allocation8 + $0xc0] sm:$0xf]
    %v1214 = vld [vmem:[#allocation8 + $0xc4] sm:$0xf]
    %v1215 = vld [vmem:[#allocation8 + $0xc8] sm:$0xf]
    %v1216 = vld [vmem:[#allocation8 + $0xcc] sm:$0xf]
    %v1217 = vld [vmem:[#allocation8 + $0xd0] sm:$0xf]
    %v1218 = vld [vmem:[#allocation8 + $0xd4] sm:$0xf]
    %v1219 = vld [vmem:[#allocation8 + $0xd8] sm:$0xf]
    %v1220 = vld [vmem:[#allocation8 + $0xdc] sm:$0xf]
    %v1221 = vld [vmem:[#allocation8 + $0xe0] sm:$0xf]
    %v1222 = vld [vmem:[#allocation8 + $0xe4] sm:$0xf]
    %v1223 = vld [vmem:[#allocation8 + $0xe8] sm:$0xf]
    %v1224 = vld [vmem:[#allocation8 + $0xec] sm:$0xf]
    %v1225 = vld [vmem:[#allocation8 + $0xf0] sm:$0xf]
    %v1226 = vld [vmem:[#allocation8 + $0xf4] sm:$0xf]
    %v1227 = vld [vmem:[#allocation8 + $0xf8] sm:$0xf]
    %v1228 = vld [vmem:[#allocation8 + $0xfc] sm:$0xf]
    %v1229 = vld [vmem:[#allocation8 + $0x100] sm:$0xf]
    %v1230 = vld [vmem:[#allocation8 + $0x104] sm:$0xf]
    %v1231 = vld [vmem:[#allocation8 + $0x108] sm:$0xf]
    %v1232 = vld [vmem:[#allocation8 + $0x10c] sm:$0xf]
    %v1233 = vld [vmem:[#allocation8 + $0x110] sm:$0xf]
    %v1234 = vld [vmem:[#allocation8 + $0x114] sm:$0xf]
    %v1235 = vld [vmem:[#allocation8 + $0x118] sm:$0xf]
    %v1236 = vld [vmem:[#allocation8 + $0x11c] sm:$0xf]
    %v1237 = vld [vmem:[#allocation8 + $0x120] sm:$0xf]
    %v1238 = vld [vmem:[#allocation8 + $0x124] sm:$0xf]
    %v1239 = vld [vmem:[#allocation8 + $0x128] sm:$0xf]
    %v1240 = vld [vmem:[#allocation8 + $0x12c] sm:$0xf]
    %v1241 = vld [vmem:[#allocation8 + $0x130] sm:$0xf]
    %v1242 = vld [vmem:[#allocation8 + $0x134] sm:$0xf]
    %v1243 = vld [vmem:[#allocation8 + $0x138] sm:$0xf]
    %v1244 = vld [vmem:[#allocation8 + $0x13c] sm:$0xf]
    %v1245 = vld [vmem:[#allocation8 + $0x140] sm:$0xf]
    %v1246 = vld [vmem:[#allocation8 + $0x144] sm:$0xf]
    %v1247 = vld [vmem:[#allocation8 + $0x148] sm:$0xf]
    %v1248 = vld [vmem:[#allocation8 + $0x14c] sm:$0xf]
    %v1249 = vld [vmem:[#allocation8 + $0x150] sm:$0xf]
    %v1250 = vld [vmem:[#allocation8 + $0x154] sm:$0xf]
    %v1251 = vld [vmem:[#allocation8 + $0x158] sm:$0xf]
    %v1252 = vld [vmem:[#allocation8 + $0x15c] sm:$0xf]
    %v1253 = vld [vmem:[#allocation8 + $0x160] sm:$0xf]
    %v1254 = vld [vmem:[#allocation8 + $0x164] sm:$0xf]
    %v1255 = vld [vmem:[#allocation8 + $0x168] sm:$0xf]
    %v1256 = vld [vmem:[#allocation8 + $0x16c] sm:$0xf]
    %v1257 = vld [vmem:[#allocation8 + $0x170] sm:$0xf]
    %v1258 = vld [vmem:[#allocation8 + $0x174] sm:$0xf]
    %v1259 = vld [vmem:[#allocation8 + $0x178] sm:$0xf]
    %v1260 = vld [vmem:[#allocation8 + $0x17c] sm:$0xf]
    %v1261 = vld [vmem:[#allocation8 + $0x180] sm:$0xf]
    %v1262 = vld [vmem:[#allocation8 + $0x184] sm:$0xf]
    %v1263 = vld [vmem:[#allocation8 + $0x188] sm:$0xf]
    %v1264 = vld [vmem:[#allocation8 + $0x18c] sm:$0xf]
    %v1265 = vld [vmem:[#allocation8 + $0x190] sm:$0xf]
    %v1266 = vld [vmem:[#allocation8 + $0x194] sm:$0xf]
    %v1267 = vld [vmem:[#allocation8 + $0x198] sm:$0xf]
    %v1268 = vld [vmem:[#allocation8 + $0x19c] sm:$0xf]
    %v1269 = vld [vmem:[#allocation8 + $0x1a0] sm:$0xf]
    %v1270 = vld [vmem:[#allocation8 + $0x1a4] sm:$0xf]
    %v1271 = vld [vmem:[#allocation8 + $0x1a8] sm:$0xf]
    %v1272 = vld [vmem:[#allocation8 + $0x1ac] sm:$0xf]
    %v1273 = vld [vmem:[#allocation8 + $0x1b0] sm:$0xf]
    %v1274 = vld [vmem:[#allocation8 + $0x1b4] sm:$0xf]
    %v1275 = vld [vmem:[#allocation8 + $0x1b8] sm:$0xf]
    %v1276 = vld [vmem:[#allocation8 + $0x1bc] sm:$0xf]
    %v1277 = vld [vmem:[#allocation8 + $0x1c0] sm:$0xf]
    %v1278 = vld [vmem:[#allocation8 + $0x1c4] sm:$0xf]
    %v1279 = vld [vmem:[#allocation8 + $0x1c8] sm:$0xf]
    %v1280 = vld [vmem:[#allocation8 + $0x1cc] sm:$0xf]
    %v1281 = vld [vmem:[#allocation8 + $0x1d0] sm:$0xf]
    %v1282 = vld [vmem:[#allocation8 + $0x1d4] sm:$0xf]
    %v1283 = vld [vmem:[#allocation8 + $0x1d8] sm:$0xf]
    %v1284 = vld [vmem:[#allocation8 + $0x1dc] sm:$0xf]
    %v1285 = vld [vmem:[#allocation8 + $0x1e0] sm:$0xf]
    %v1286 = vld [vmem:[#allocation8 + $0x1e4] sm:$0xf]
    %v1287 = vld [vmem:[#allocation8 + $0x1e8] sm:$0xf]
    %v1288 = vld [vmem:[#allocation8 + $0x1ec] sm:$0xf]
    %v1289 = vld [vmem:[#allocation8 + $0x1f0] sm:$0xf]
    %v1290 = vld [vmem:[#allocation8 + $0x1f4] sm:$0xf]
    %v1291 = vld [vmem:[#allocation8 + $0x1f8] sm:$0xf]
    %v1292 = vld [vmem:[#allocation8 + $0x1fc] sm:$0xf]
    %v1293 = vld [vmem:[%s4] sm:$0x1]
    %v1295 = vlaneseq
    %v1296 = vshrl.u32 %v1295, 7
    %v1297 = vsub.s32 0, %v1296
    %v1298 = vrot.slane %v1293, %v1297
    %v1428 = vunpack.c.l.b16 %v1165
    %v1429 = vunpack.c.l.b16 %v1166
    %v1430 = vunpack.c.l.b16 %v1167
    %v1431 = vunpack.c.l.b16 %v1168
    %v1432 = vunpack.c.l.b16 %v1169
    %v1433 = vunpack.c.l.b16 %v1170
    %v1434 = vunpack.c.l.b16 %v1171
    %v1435 = vunpack.c.l.b16 %v1172
    %v1436 = vunpack.c.l.b16 %v1173
    %v1437 = vunpack.c.l.b16 %v1174
    %v1438 = vunpack.c.l.b16 %v1175
    %v1439 = vunpack.c.l.b16 %v1176
    %v1440 = vunpack.c.l.b16 %v1177
    %v1441 = vunpack.c.l.b16 %v1178
    %v1442 = vunpack.c.l.b16 %v1179
    %v1443 = vunpack.c.l.b16 %v1180
    %v1444 = vunpack.c.l.b16 %v1181
    %v1445 = vunpack.c.l.b16 %v1182
    %v1446 = vunpack.c.l.b16 %v1183
    %v1447 = vunpack.c.l.b16 %v1184
    %v1448 = vunpack.c.l.b16 %v1185
    %v1449 = vunpack.c.l.b16 %v1186
    %v1450 = vunpack.c.l.b16 %v1187
    %v1451 = vunpack.c.l.b16 %v1188
    %v1452 = vunpack.c.l.b16 %v1189
    %v1453 = vunpack.c.l.b16 %v1190
    %v1454 = vunpack.c.l.b16 %v1191
    %v1455 = vunpack.c.l.b16 %v1192
    %v1456 = vunpack.c.l.b16 %v1193
    %v1457 = vunpack.c.l.b16 %v1194
    %v1458 = vunpack.c.l.b16 %v1195
    %v1459 = vunpack.c.l.b16 %v1196
    %v1460 = vunpack.c.l.b16 %v1197
    %v1461 = vunpack.c.l.b16 %v1198
    %v1462 = vunpack.c.l.b16 %v1199
    %v1463 = vunpack.c.l.b16 %v1200
    %v1464 = vunpack.c.l.b16 %v1201
    %v1465 = vunpack.c.l.b16 %v1202
    %v1466 = vunpack.c.l.b16 %v1203
    %v1467 = vunpack.c.l.b16 %v1204
    %v1468 = vunpack.c.l.b16 %v1205
    %v1469 = vunpack.c.l.b16 %v1206
    %v1470 = vunpack.c.l.b16 %v1207
    %v1471 = vunpack.c.l.b16 %v1208
    %v1472 = vunpack.c.l.b16 %v1209
    %v1473 = vunpack.c.l.b16 %v1210
    %v1474 = vunpack.c.l.b16 %v1211
    %v1475 = vunpack.c.l.b16 %v1212
    %v1476 = vunpack.c.l.b16 %v1213
    %v1477 = vunpack.c.l.b16 %v1214
    %v1478 = vunpack.c.l.b16 %v1215
    %v1479 = vunpack.c.l.b16 %v1216
    %v1480 = vunpack.c.l.b16 %v1217
    %v1481 = vunpack.c.l.b16 %v1218
    %v1482 = vunpack.c.l.b16 %v1219
    %v1483 = vunpack.c.l.b16 %v1220
    %v1484 = vunpack.c.l.b16 %v1221
    %v1485 = vunpack.c.l.b16 %v1222
    %v1486 = vunpack.c.l.b16 %v1223
    %v1487 = vunpack.c.l.b16 %v1224
    %v1488 = vunpack.c.l.b16 %v1225
    %v1489 = vunpack.c.l.b16 %v1226
    %v1490 = vunpack.c.l.b16 %v1227
    %v1491 = vunpack.c.l.b16 %v1228
    %v1492 = vunpack.c.l.b16 %v1229
    %v1493 = vunpack.c.l.b16 %v1230
    %v1494 = vunpack.c.l.b16 %v1231
    %v1495 = vunpack.c.l.b16 %v1232
    %v1496 = vunpack.c.l.b16 %v1233
    %v1497 = vunpack.c.l.b16 %v1234
    %v1498 = vunpack.c.l.b16 %v1235
    %v1499 = vunpack.c.l.b16 %v1236
    %v1500 = vunpack.c.l.b16 %v1237
    %v1501 = vunpack.c.l.b16 %v1238
    %v1502 = vunpack.c.l.b16 %v1239
    %v1503 = vunpack.c.l.b16 %v1240
    %v1504 = vunpack.c.l.b16 %v1241
    %v1505 = vunpack.c.l.b16 %v1242
    %v1506 = vunpack.c.l.b16 %v1243
    %v1507 = vunpack.c.l.b16 %v1244
    %v1508 = vunpack.c.l.b16 %v1245
    %v1509 = vunpack.c.l.b16 %v1246
    %v1510 = vunpack.c.l.b16 %v1247
    %v1511 = vunpack.c.l.b16 %v1248
    %v1512 = vunpack.c.l.b16 %v1249
    %v1513 = vunpack.c.l.b16 %v1250
    %v1514 = vunpack.c.l.b16 %v1251
    %v1515 = vunpack.c.l.b16 %v1252
    %v1516 = vunpack.c.l.b16 %v1253
    %v1517 = vunpack.c.l.b16 %v1254
    %v1518 = vunpack.c.l.b16 %v1255
    %v1519 = vunpack.c.l.b16 %v1256
    %v1520 = vunpack.c.l.b16 %v1257
    %v1521 = vunpack.c.l.b16 %v1258
    %v1522 = vunpack.c.l.b16 %v1259
    %v1523 = vunpack.c.l.b16 %v1260
    %v1524 = vunpack.c.l.b16 %v1261
    %v1525 = vunpack.c.l.b16 %v1262
    %v1526 = vunpack.c.l.b16 %v1263
    %v1527 = vunpack.c.l.b16 %v1264
    %v1528 = vunpack.c.l.b16 %v1265
    %v1529 = vunpack.c.l.b16 %v1266
    %v1530 = vunpack.c.l.b16 %v1267
    %v1531 = vunpack.c.l.b16 %v1268
    %v1532 = vunpack.c.l.b16 %v1269
    %v1533 = vunpack.c.l.b16 %v1270
    %v1534 = vunpack.c.l.b16 %v1271
    %v1535 = vunpack.c.l.b16 %v1272
    %v1536 = vunpack.c.l.b16 %v1273
    %v1537 = vunpack.c.l.b16 %v1274
    %v1538 = vunpack.c.l.b16 %v1275
    %v1539 = vunpack.c.l.b16 %v1276
    %v1540 = vunpack.c.l.b16 %v1277
    %v1541 = vunpack.c.l.b16 %v1278
    %v1542 = vunpack.c.l.b16 %v1279
    %v1543 = vunpack.c.l.b16 %v1280
    %v1544 = vunpack.c.l.b16 %v1281
    %v1545 = vunpack.c.l.b16 %v1282
    %v1546 = vunpack.c.l.b16 %v1283
    %v1547 = vunpack.c.l.b16 %v1284
    %v1548 = vunpack.c.l.b16 %v1285
    %v1549 = vunpack.c.l.b16 %v1286
    %v1550 = vunpack.c.l.b16 %v1287
    %v1551 = vunpack.c.l.b16 %v1288
    %v1552 = vunpack.c.l.b16 %v1289
    %v1553 = vunpack.c.l.b16 %v1290
    %v1554 = vunpack.c.l.b16 %v1291
    %v1555 = vunpack.c.l.b16 %v1292
    %v1556 = vpack.c.b16 %v1429, %v1428
    %v1557 = vpack.c.b16 %v1431, %v1430
    %v1558 = vpack.c.b16 %v1433, %v1432
    %v1559 = vpack.c.b16 %v1435, %v1434
    %v1560 = vpack.c.b16 %v1437, %v1436
    %v1561 = vpack.c.b16 %v1439, %v1438
    %v1562 = vpack.c.b16 %v1441, %v1440
    %v1563 = vpack.c.b16 %v1443, %v1442
    %v1564 = vpack.c.b16 %v1445, %v1444
    %v1565 = vpack.c.b16 %v1447, %v1446
    %v1566 = vpack.c.b16 %v1449, %v1448
    %v1567 = vpack.c.b16 %v1451, %v1450
    %v1568 = vpack.c.b16 %v1453, %v1452
    %v1569 = vpack.c.b16 %v1455, %v1454
    %v1570 = vpack.c.b16 %v1457, %v1456
    %v1571 = vpack.c.b16 %v1459, %v1458
    %v1572 = vpack.c.b16 %v1461, %v1460
    %v1573 = vpack.c.b16 %v1463, %v1462
    %v1574 = vpack.c.b16 %v1465, %v1464
    %v1575 = vpack.c.b16 %v1467, %v1466
    %v1576 = vpack.c.b16 %v1469, %v1468
    %v1577 = vpack.c.b16 %v1471, %v1470
    %v1578 = vpack.c.b16 %v1473, %v1472
    %v1579 = vpack.c.b16 %v1475, %v1474
    %v1580 = vpack.c.b16 %v1477, %v1476
    %v1581 = vpack.c.b16 %v1479, %v1478
    %v1582 = vpack.c.b16 %v1481, %v1480
    %v1583 = vpack.c.b16 %v1483, %v1482
    %v1584 = vpack.c.b16 %v1485, %v1484
    %v1585 = vpack.c.b16 %v1487, %v1486
    %v1586 = vpack.c.b16 %v1489, %v1488
    %v1587 = vpack.c.b16 %v1491, %v1490
    %v1588 = vpack.c.b16 %v1493, %v1492
    %v1589 = vpack.c.b16 %v1495, %v1494
    %v1590 = vpack.c.b16 %v1497, %v1496
    %v1591 = vpack.c.b16 %v1499, %v1498
    %v1592 = vpack.c.b16 %v1501, %v1500
    %v1593 = vpack.c.b16 %v1503, %v1502
    %v1594 = vpack.c.b16 %v1505, %v1504
    %v1595 = vpack.c.b16 %v1507, %v1506
    %v1596 = vpack.c.b16 %v1509, %v1508
    %v1597 = vpack.c.b16 %v1511, %v1510
    %v1598 = vpack.c.b16 %v1513, %v1512
    %v1599 = vpack.c.b16 %v1515, %v1514
    %v1600 = vpack.c.b16 %v1517, %v1516
    %v1601 = vpack.c.b16 %v1519, %v1518
    %v1602 = vpack.c.b16 %v1521, %v1520
    %v1603 = vpack.c.b16 %v1523, %v1522
    %v1604 = vpack.c.b16 %v1525, %v1524
    %v1605 = vpack.c.b16 %v1527, %v1526
    %v1606 = vpack.c.b16 %v1529, %v1528
    %v1607 = vpack.c.b16 %v1531, %v1530
    %v1608 = vpack.c.b16 %v1533, %v1532
    %v1609 = vpack.c.b16 %v1535, %v1534
    %v1610 = vpack.c.b16 %v1537, %v1536
    %v1611 = vpack.c.b16 %v1539, %v1538
    %v1612 = vpack.c.b16 %v1541, %v1540
    %v1613 = vpack.c.b16 %v1543, %v1542
    %v1614 = vpack.c.b16 %v1545, %v1544
    %v1615 = vpack.c.b16 %v1547, %v1546
    %v1616 = vpack.c.b16 %v1549, %v1548
    %v1617 = vpack.c.b16 %v1551, %v1550
    %v1618 = vpack.c.b16 %v1553, %v1552
    %v1619 = vpack.c.b16 %v1555, %v1554
    %1684 = vmatprep.subr.bf16.mxu0 0
    %1685 = vmatpush1.bf16.msra.mxu0 %v1556
    %1686 = vmatprep.subr.bf16.mxu0 0
    %1687 = vmatpush1.bf16.msra.mxu0 %v1557
    %1688 = vmatprep.subr.bf16.mxu0 0
    %1689 = vmatpush1.bf16.msra.mxu0 %v1558
    %1690 = vmatprep.subr.bf16.mxu0 0
    %1691 = vmatpush1.bf16.msra.mxu0 %v1559
    %1692 = vmatprep.subr.bf16.mxu0 0
    %1693 = vmatpush1.bf16.msra.mxu0 %v1560
    %1694 = vmatprep.subr.bf16.mxu0 0
    %1695 = vmatpush1.bf16.msra.mxu0 %v1561
    %1696 = vmatprep.subr.bf16.mxu0 0
    %1697 = vmatpush1.bf16.msra.mxu0 %v1562
    %1698 = vmatprep.subr.bf16.mxu0 0
    %1699 = vmatpush1.bf16.msra.mxu0 %v1563
    %1700 = vmatprep.subr.bf16.mxu0 0
    %1701 = vmatpush1.bf16.msra.mxu0 %v1564
    %1702 = vmatprep.subr.bf16.mxu0 0
    %1703 = vmatpush1.bf16.msra.mxu0 %v1565
    %1704 = vmatprep.subr.bf16.mxu0 0
    %1705 = vmatpush1.bf16.msra.mxu0 %v1566
    %1706 = vmatprep.subr.bf16.mxu0 0
    %1707 = vmatpush1.bf16.msra.mxu0 %v1567
    %1708 = vmatprep.subr.bf16.mxu0 0
    %1709 = vmatpush1.bf16.msra.mxu0 %v1568
    %1710 = vmatprep.subr.bf16.mxu0 0
    %1711 = vmatpush1.bf16.msra.mxu0 %v1569
    %1712 = vmatprep.subr.bf16.mxu0 0
    %1713 = vmatpush1.bf16.msra.mxu0 %v1570
    %1714 = vmatprep.subr.bf16.mxu0 0
    %1715 = vmatpush1.bf16.msra.mxu0 %v1571
    %1716 = vmatprep.mubr.bf16.mxu0 %v1158
    %1717 = vmatmul.mubr.bf16.gmra.mrb[0].mxu0 %v1157
    %v1718 = vpop.f32.mrb[0].mxu0
    %v1719 = vadd.f32 %v1298, %v1718
    %v1720 = vpop.f32.mrb[0].mxu0
    %v1721 = vpop.f32.mrb[0].mxu0
    %v1722 = vpop.f32.mrb[0].mxu0
    %1723 = vdwg.mxu0
    %1724 = vmatprep.subr.bf16.mxu0 0
    %1725 = vmatpush1.bf16.msra.mxu0 %v1572
    %1726 = vmatprep.subr.bf16.mxu0 0
    %1727 = vmatpush1.bf16.msra.mxu0 %v1573
    %1728 = vmatprep.subr.bf16.mxu0 0
    %1729 = vmatpush1.bf16.msra.mxu0 %v1574
    %1730 = vmatprep.subr.bf16.mxu0 0
    %1731 = vmatpush1.bf16.msra.mxu0 %v1575
    %1732 = vmatprep.subr.bf16.mxu0 0
    %1733 = vmatpush1.bf16.msra.mxu0 %v1576
    %1734 = vmatprep.subr.bf16.mxu0 0
    %1735 = vmatpush1.bf16.msra.mxu0 %v1577
    %1736 = vmatprep.subr.bf16.mxu0 0
    %1737 = vmatpush1.bf16.msra.mxu0 %v1578
    %1738 = vmatprep.subr.bf16.mxu0 0
    %1739 = vmatpush1.bf16.msra.mxu0 %v1579
    %1740 = vmatprep.subr.bf16.mxu0 0
    %1741 = vmatpush1.bf16.msra.mxu0 %v1580
    %1742 = vmatprep.subr.bf16.mxu0 0
    %1743 = vmatpush1.bf16.msra.mxu0 %v1581
    %1744 = vmatprep.subr.bf16.mxu0 0
    %1745 = vmatpush1.bf16.msra.mxu0 %v1582
    %1746 = vmatprep.subr.bf16.mxu0 0
    %1747 = vmatpush1.bf16.msra.mxu0 %v1583
    %1748 = vmatprep.subr.bf16.mxu0 0
    %1749 = vmatpush1.bf16.msra.mxu0 %v1584
    %1750 = vmatprep.subr.bf16.mxu0 0
    %1751 = vmatpush1.bf16.msra.mxu0 %v1585
    %1752 = vmatprep.subr.bf16.mxu0 0
    %1753 = vmatpush1.bf16.msra.mxu0 %v1586
    %1754 = vmatprep.subr.bf16.mxu0 0
    %1755 = vmatpush1.bf16.msra.mxu0 %v1587
    %1756 = vmatprep.mubr.bf16.mxu0 %v1160
    %1757 = vmatmul.mubr.bf16.gmra.mrb[0].mxu0 %v1159
    %v1758 = vpop.f32.mrb[0].mxu0
    %v1759 = vadd.f32 %v1719, %v1758
    %v1760 = vpop.f32.mrb[0].mxu0
    %v1761 = vpop.f32.mrb[0].mxu0
    %v1762 = vpop.f32.mrb[0].mxu0
    %1763 = vdwg.mxu0
    %1764 = vmatprep.subr.bf16.mxu0 0
    %1765 = vmatpush1.bf16.msra.mxu0 %v1588
    %1766 = vmatprep.subr.bf16.mxu0 0
    %1767 = vmatpush1.bf16.msra.mxu0 %v1589
    %1768 = vmatprep.subr.bf16.mxu0 0
    %1769 = vmatpush1.bf16.msra.mxu0 %v1590
    %1770 = vmatprep.subr.bf16.mxu0 0
    %1771 = vmatpush1.bf16.msra.mxu0 %v1591
    %1772 = vmatprep.subr.bf16.mxu0 0
    %1773 = vmatpush1.bf16.msra.mxu0 %v1592
    %1774 = vmatprep.subr.bf16.mxu0 0
    %1775 = vmatpush1.bf16.msra.mxu0 %v1593
    %1776 = vmatprep.subr.bf16.mxu0 0
    %1777 = vmatpush1.bf16.msra.mxu0 %v1594
    %1778 = vmatprep.subr.bf16.mxu0 0
    %1779 = vmatpush1.bf16.msra.mxu0 %v1595
    %1780 = vmatprep.subr.bf16.mxu0 0
    %1781 = vmatpush1.bf16.msra.mxu0 %v1596
    %1782 = vmatprep.subr.bf16.mxu0 0
    %1783 = vmatpush1.bf16.msra.mxu0 %v1597
    %1784 = vmatprep.subr.bf16.mxu0 0
    %1785 = vmatpush1.bf16.msra.mxu0 %v1598
    %1786 = vmatprep.subr.bf16.mxu0 0
    %1787 = vmatpush1.bf16.msra.mxu0 %v1599
    %1788 = vmatprep.subr.bf16.mxu0 0
    %1789 = vmatpush1.bf16.msra.mxu0 %v1600
    %1790 = vmatprep.subr.bf16.mxu0 0
    %1791 = vmatpush1.bf16.msra.mxu0 %v1601
    %1792 = vmatprep.subr.bf16.mxu0 0
    %1793 = vmatpush1.bf16.msra.mxu0 %v1602
    %1794 = vmatprep.subr.bf16.mxu0 0
    %1795 = vmatpush1.bf16.msra.mxu0 %v1603
    %1796 = vmatprep.mubr.bf16.mxu0 %v1162
    %1797 = vmatmul.mubr.bf16.gmra.mrb[0].mxu0 %v1161
    %v1798 = vpop.f32.mrb[0].mxu0
    %v1799 = vadd.f32 %v1759, %v1798
    %v1800 = vpop.f32.mrb[0].mxu0
    %v1801 = vpop.f32.mrb[0].mxu0
    %v1802 = vpop.f32.mrb[0].mxu0
    %1803 = vdwg.mxu0
    %1804 = vmatprep.subr.bf16.mxu0 0
    %1805 = vmatpush1.bf16.msra.mxu0 %v1604
    %1806 = vmatprep.subr.bf16.mxu0 0
    %1807 = vmatpush1.bf16.msra.mxu0 %v1605
    %1808 = vmatprep.subr.bf16.mxu0 0
    %1809 = vmatpush1.bf16.msra.mxu0 %v1606
    %1810 = vmatprep.subr.bf16.mxu0 0
    %1811 = vmatpush1.bf16.msra.mxu0 %v1607
    %1812 = vmatprep.subr.bf16.mxu0 0
    %1813 = vmatpush1.bf16.msra.mxu0 %v1608
    %1814 = vmatprep.subr.bf16.mxu0 0
    %1815 = vmatpush1.bf16.msra.mxu0 %v1609
    %1816 = vmatprep.subr.bf16.mxu0 0
    %1817 = vmatpush1.bf16.msra.mxu0 %v1610
    %1818 = vmatprep.subr.bf16.mxu0 0
    %1819 = vmatpush1.bf16.msra.mxu0 %v1611
    %1820 = vmatprep.subr.bf16.mxu0 0
    %1821 = vmatpush1.bf16.msra.mxu0 %v1612
    %1822 = vmatprep.subr.bf16.mxu0 0
    %1823 = vmatpush1.bf16.msra.mxu0 %v1613
    %1824 = vmatprep.subr.bf16.mxu0 0
    %1825 = vmatpush1.bf16.msra.mxu0 %v1614
    %1826 = vmatprep.subr.bf16.mxu0 0
    %1827 = vmatpush1.bf16.msra.mxu0 %v1615
    %1828 = vmatprep.subr.bf16.mxu0 0
    %1829 = vmatpush1.bf16.msra.mxu0 %v1616
    %1830 = vmatprep.subr.bf16.mxu0 0
    %1831 = vmatpush1.bf16.msra.mxu0 %v1617
    %1832 = vmatprep.subr.bf16.mxu0 0
    %1833 = vmatpush1.bf16.msra.mxu0 %v1618
    %1834 = vmatprep.subr.bf16.mxu0 0
    %1835 = vmatpush1.bf16.msra.mxu0 %v1619
    %1836 = vmatprep.mubr.bf16.mxu0 %v1164
    %1837 = vmatmul.mubr.bf16.gmra.mrb[0].mxu0 %v1163
    %v1838 = vpop.f32.mrb[0].mxu0
    %v1839 = vadd.f32 %v1799, %v1838
    %v1840 = vpop.f32.mrb[0].mxu0
    %v1841 = vpop.f32.mrb[0].mxu0
    %v1842 = vpop.f32.mrb[0].mxu0
    %1843 = vdwg.mxu0
    %vm1844 = vcmp.ge.f32.partialorder %v1839, 0.0
    %v1845 = vmul.f32 %v1839, 0.01
    %v1846 = vsel %vm1844, %v1839, %v1845
    %v1847 = vld [vmem:[#allocation10] sm:$0xf]
    %v1848 = vld [vmem:[#allocation10 + $0x4] sm:$0xf]
    %v1849 = vld [vmem:[#allocation10 + $0x8] sm:$0xf]
    %v1850 = vld [vmem:[#allocation10 + $0xc] sm:$0xf]
    %v1851 = vld [vmem:[#allocation10 + $0x10] sm:$0xf]
    %v1852 = vld [vmem:[#allocation10 + $0x14] sm:$0xf]
    %v1853 = vld [vmem:[#allocation10 + $0x18] sm:$0xf]
    %v1854 = vld [vmem:[#allocation10 + $0x1c] sm:$0xf]
    %v1855 = vld [vmem:[#allocation10 + $0x20] sm:$0xf]
    %v1856 = vld [vmem:[#allocation10 + $0x24] sm:$0xf]
    %v1857 = vld [vmem:[#allocation10 + $0x28] sm:$0xf]
    %v1858 = vld [vmem:[#allocation10 + $0x2c] sm:$0xf]
    %v1859 = vld [vmem:[#allocation10 + $0x30] sm:$0xf]
    %v1860 = vld [vmem:[#allocation10 + $0x34] sm:$0xf]
    %v1861 = vld [vmem:[#allocation10 + $0x38] sm:$0xf]
    %v1862 = vld [vmem:[#allocation10 + $0x3c] sm:$0xf]
    %v1863 = vunpack.c.l.bf16 %v1847
    %v1864 = vunpack.c.l.bf16 %v1848
    %v1865 = vunpack.c.l.bf16 %v1849
    %v1866 = vunpack.c.l.bf16 %v1850
    %v1867 = vunpack.c.l.bf16 %v1851
    %v1868 = vunpack.c.l.bf16 %v1852
    %v1869 = vunpack.c.l.bf16 %v1853
    %v1870 = vunpack.c.l.bf16 %v1854
    %v1871 = vunpack.c.l.bf16 %v1855
    %v1872 = vunpack.c.l.bf16 %v1856
    %v1873 = vunpack.c.l.bf16 %v1857
    %v1874 = vunpack.c.l.bf16 %v1858
    %v1875 = vunpack.c.l.bf16 %v1859
    %v1876 = vunpack.c.l.bf16 %v1860
    %v1877 = vunpack.c.l.bf16 %v1861
    %v1878 = vunpack.c.l.bf16 %v1862
    %v1879 = vld [vmem:[%s6] sm:$0x1]
    %v1881 = vlaneseq
    %v1882 = vshrl.u32 %v1881, 7
    %v1883 = vsub.s32 0, %v1882
    %v1884 = vrot.slane %v1879, %v1883
    %1886 = vmatprep.subr.mxu0 0.0
    %1887 = vmatpush1.msra.mxu0 %v1863
    %1888 = vmatprep.subr.mxu0 0.0
    %1889 = vmatpush1.msra.mxu0 %v1864
    %1890 = vmatprep.subr.mxu0 0.0
    %1891 = vmatpush1.msra.mxu0 %v1865
    %1892 = vmatprep.subr.mxu0 0.0
    %1893 = vmatpush1.msra.mxu0 %v1866
    %1894 = vmatprep.subr.mxu0 0.0
    %1895 = vmatpush1.msra.mxu0 %v1867
    %1896 = vmatprep.subr.mxu0 0.0
    %1897 = vmatpush1.msra.mxu0 %v1868
    %1898 = vmatprep.subr.mxu0 0.0
    %1899 = vmatpush1.msra.mxu0 %v1869
    %1900 = vmatprep.subr.mxu0 0.0
    %1901 = vmatpush1.msra.mxu0 %v1870
    %1902 = vmatprep.subr.mxu0 0.0
    %1903 = vmatpush1.msra.mxu0 %v1871
    %1904 = vmatprep.subr.mxu0 0.0
    %1905 = vmatpush1.msra.mxu0 %v1872
    %1906 = vmatprep.subr.mxu0 0.0
    %1907 = vmatpush1.msra.mxu0 %v1873
    %1908 = vmatprep.subr.mxu0 0.0
    %1909 = vmatpush1.msra.mxu0 %v1874
    %1910 = vmatprep.subr.mxu0 0.0
    %1911 = vmatpush1.msra.mxu0 %v1875
    %1912 = vmatprep.subr.mxu0 0.0
    %1913 = vmatpush1.msra.mxu0 %v1876
    %1914 = vmatprep.subr.mxu0 0.0
    %1915 = vmatpush1.msra.mxu0 %v1877
    %1916 = vmatprep.subr.mxu0 0.0
    %1917 = vmatpush1.msra.mxu0 %v1878
    %1918 = vmatprep.subr.mxu0 0.0
    %1919 = vmatpush1.msra.mxu0 0.0
    %1920 = vmatprep.subr.mxu0 0.0
    %1921 = vmatpush1.msra.mxu0 0.0
    %1922 = vmatprep.subr.mxu0 0.0
    %1923 = vmatpush1.msra.mxu0 0.0
    %1924 = vmatprep.subr.mxu0 0.0
    %1925 = vmatpush1.msra.mxu0 0.0
    %1926 = vmatprep.subr.mxu0 0.0
    %1927 = vmatpush1.msra.mxu0 0.0
    %1928 = vmatprep.subr.mxu0 0.0
    %1929 = vmatpush1.msra.mxu0 0.0
    %1930 = vmatprep.subr.mxu0 0.0
    %1931 = vmatpush1.msra.mxu0 0.0
    %1932 = vmatprep.subr.mxu0 0.0
    %1933 = vmatpush1.msra.mxu0 0.0
    %1934 = vmatprep.subr.mxu0 0.0
    %1935 = vmatpush1.msra.mxu0 0.0
    %1936 = vmatprep.subr.mxu0 0.0
    %1937 = vmatpush1.msra.mxu0 0.0
    %1938 = vmatprep.subr.mxu0 0.0
    %1939 = vmatpush1.msra.mxu0 0.0
    %1940 = vmatprep.subr.mxu0 0.0
    %1941 = vmatpush1.msra.mxu0 0.0
    %1942 = vmatprep.subr.mxu0 0.0
    %1943 = vmatpush1.msra.mxu0 0.0
    %1944 = vmatprep.subr.mxu0 0.0
    %1945 = vmatpush1.msra.mxu0 0.0
    %1946 = vmatprep.subr.mxu0 0.0
    %1947 = vmatpush1.msra.mxu0 0.0
    %1948 = vmatprep.subr.mxu0 0.0
    %1949 = vmatpush1.msra.mxu0 0.0
    %1950 = vmatprep.mubr.f32.mxu0 0.0
    %1951 = vmatmul.mubr.f32.gmra.mrb[0].mxu0 %v1846
    %v1952 = vpop.f32.mrb[0].mxu0
    %v1953 = vadd.f32 %v1884, %v1952
    %v1954 = vpop.f32.mrb[0].mxu0
    %1955 = vdwg.mxu0
    %v1956 = vld [vmem:[#allocation11] sm:$0xf]
    %v1957 = vld [vmem:[#allocation11 + $0x4] sm:$0xf]
    %v1958 = vld [vmem:[#allocation11 + $0x8] sm:$0xf]
    %v1959 = vld [vmem:[#allocation11 + $0xc] sm:$0xf]
    %v1960 = vld [vmem:[#allocation11 + $0x10] sm:$0xf]
    %v1961 = vld [vmem:[#allocation11 + $0x14] sm:$0xf]
    %v1962 = vld [vmem:[#allocation11 + $0x18] sm:$0xf]
    %v1963 = vld [vmem:[#allocation11 + $0x1c] sm:$0xf]
    %v1964 = vld [vmem:[#allocation11 + $0x20] sm:$0xf]
    %v1965 = vld [vmem:[#allocation11 + $0x24] sm:$0xf]
    %v1966 = vld [vmem:[#allocation11 + $0x28] sm:$0xf]
    %v1967 = vld [vmem:[#allocation11 + $0x2c] sm:$0xf]
    %v1968 = vld [vmem:[#allocation11 + $0x30] sm:$0xf]
    %v1969 = vld [vmem:[#allocation11 + $0x34] sm:$0xf]
    %v1970 = vld [vmem:[#allocation11 + $0x38] sm:$0xf]
    %v1971 = vld [vmem:[#allocation11 + $0x3c] sm:$0xf]
    %v1972 = vunpack.c.l.bf16 %v1956
    %v1973 = vunpack.c.l.bf16 %v1957
    %v1974 = vunpack.c.l.bf16 %v1958
    %v1975 = vunpack.c.l.bf16 %v1959
    %v1976 = vunpack.c.l.bf16 %v1960
    %v1977 = vunpack.c.l.bf16 %v1961
    %v1978 = vunpack.c.l.bf16 %v1962
    %v1979 = vunpack.c.l.bf16 %v1963
    %v1980 = vunpack.c.l.bf16 %v1964
    %v1981 = vunpack.c.l.bf16 %v1965
    %v1982 = vunpack.c.l.bf16 %v1966
    %v1983 = vunpack.c.l.bf16 %v1967
    %v1984 = vunpack.c.l.bf16 %v1968
    %v1985 = vunpack.c.l.bf16 %v1969
    %v1986 = vunpack.c.l.bf16 %v1970
    %v1987 = vunpack.c.l.bf16 %v1971
    %v1988 = vld [vmem:[%s8] sm:$0x1]
    %v1990 = vlaneseq
    %v1991 = vshrl.u32 %v1990, 7
    %v1992 = vsub.s32 0, %v1991
    %v1993 = vrot.slane %v1988, %v1992
    %1995 = vmatprep.subr.mxu0 0.0
    %1996 = vmatpush1.msra.mxu0 %v1972
    %1997 = vmatprep.subr.mxu0 0.0
    %1998 = vmatpush1.msra.mxu0 %v1973
    %1999 = vmatprep.subr.mxu0 0.0
    %2000 = vmatpush1.msra.mxu0 %v1974
    %2001 = vmatprep.subr.mxu0 0.0
    %2002 = vmatpush1.msra.mxu0 %v1975
    %2003 = vmatprep.subr.mxu0 0.0
    %2004 = vmatpush1.msra.mxu0 %v1976
    %2005 = vmatprep.subr.mxu0 0.0
    %2006 = vmatpush1.msra.mxu0 %v1977
    %2007 = vmatprep.subr.mxu0 0.0
    %2008 = vmatpush1.msra.mxu0 %v1978
    %2009 = vmatprep.subr.mxu0 0.0
    %2010 = vmatpush1.msra.mxu0 %v1979
    %2011 = vmatprep.subr.mxu0 0.0
    %2012 = vmatpush1.msra.mxu0 %v1980
    %2013 = vmatprep.subr.mxu0 0.0
    %2014 = vmatpush1.msra.mxu0 %v1981
    %2015 = vmatprep.subr.mxu0 0.0
    %2016 = vmatpush1.msra.mxu0 %v1982
    %2017 = vmatprep.subr.mxu0 0.0
    %2018 = vmatpush1.msra.mxu0 %v1983
    %2019 = vmatprep.subr.mxu0 0.0
    %2020 = vmatpush1.msra.mxu0 %v1984
    %2021 = vmatprep.subr.mxu0 0.0
    %2022 = vmatpush1.msra.mxu0 %v1985
    %2023 = vmatprep.subr.mxu0 0.0
    %2024 = vmatpush1.msra.mxu0 %v1986
    %2025 = vmatprep.subr.mxu0 0.0
    %2026 = vmatpush1.msra.mxu0 %v1987
    %2027 = vmatprep.subr.mxu0 0.0
    %2028 = vmatpush1.msra.mxu0 0.0
    %2029 = vmatprep.subr.mxu0 0.0
    %2030 = vmatpush1.msra.mxu0 0.0
    %2031 = vmatprep.subr.mxu0 0.0
    %2032 = vmatpush1.msra.mxu0 0.0
    %2033 = vmatprep.subr.mxu0 0.0
    %2034 = vmatpush1.msra.mxu0 0.0
    %2035 = vmatprep.subr.mxu0 0.0
    %2036 = vmatpush1.msra.mxu0 0.0
    %2037 = vmatprep.subr.mxu0 0.0
    %2038 = vmatpush1.msra.mxu0 0.0
    %2039 = vmatprep.subr.mxu0 0.0
    %2040 = vmatpush1.msra.mxu0 0.0
    %2041 = vmatprep.subr.mxu0 0.0
    %2042 = vmatpush1.msra.mxu0 0.0
    %2043 = vmatprep.subr.mxu0 0.0
    %2044 = vmatpush1.msra.mxu0 0.0
    %2045 = vmatprep.subr.mxu0 0.0
    %2046 = vmatpush1.msra.mxu0 0.0
    %2047 = vmatprep.subr.mxu0 0.0
    %2048 = vmatpush1.msra.mxu0 0.0
    %2049 = vmatprep.subr.mxu0 0.0
    %2050 = vmatpush1.msra.mxu0 0.0
    %2051 = vmatprep.subr.mxu0 0.0
    %2052 = vmatpush1.msra.mxu0 0.0
    %2053 = vmatprep.subr.mxu0 0.0
    %2054 = vmatpush1.msra.mxu0 0.0
    %2055 = vmatprep.subr.mxu0 0.0
    %2056 = vmatpush1.msra.mxu0 0.0
    %2057 = vmatprep.subr.mxu0 0.0
    %2058 = vmatpush1.msra.mxu0 0.0
    %2059 = vmatprep.mubr.f32.mxu0 0.0
    %2060 = vmatmul.mubr.f32.gmra.mrb[0].mxu0 %v1953
    %v2061 = vpop.f32.mrb[0].mxu0
    %v2062 = vadd.f32 %v1993, %v2061
    %v2063 = vpop.f32.mrb[0].mxu0
    %2064 = vdwg.mxu0
    %vm2065 = vcmp.ge.f32.partialorder %v2062, 0.0
    %v2066 = vmul.f32 %v2062, 0.01
    %v2067 = vsel %vm2065, %v2062, %v2066
    %v2068 = vpack.c.bf16 %v2067, %v2067
    %v2069 = vld [vmem:[#allocation13] sm:$0xff]
    %v2070 = vld [vmem:[#allocation13 + $0x8] sm:$0xff]
    %v2071 = vld [vmem:[#allocation13 + $0x10] sm:$0xff]
    %v2072 = vld [vmem:[#allocation13 + $0x18] sm:$0xff]
    %v2073 = vld [vmem:[#allocation13 + $0x20] sm:$0xff]
    %v2074 = vld [vmem:[#allocation13 + $0x28] sm:$0xff]
    %v2075 = vld [vmem:[#allocation13 + $0x30] sm:$0xff]
    %v2076 = vld [vmem:[#allocation13 + $0x38] sm:$0xff]
    %v2077 = vld [vmem:[#allocation13 + $0x40] sm:$0xff]
    %v2078 = vld [vmem:[#allocation13 + $0x48] sm:$0xff]
    %v2079 = vld [vmem:[#allocation13 + $0x50] sm:$0xff]
    %v2080 = vld [vmem:[#allocation13 + $0x58] sm:$0xff]
    %v2081 = vld [vmem:[#allocation13 + $0x60] sm:$0xff]
    %v2082 = vld [vmem:[#allocation13 + $0x68] sm:$0xff]
    %v2083 = vld [vmem:[#allocation13 + $0x70] sm:$0xff]
    %v2084 = vld [vmem:[#allocation13 + $0x78] sm:$0xff]
    %v2085 = vld [vmem:[#allocation13 + $0x80] sm:$0xff]
    %v2086 = vld [vmem:[#allocation13 + $0x88] sm:$0xff]
    %v2087 = vld [vmem:[#allocation13 + $0x90] sm:$0xff]
    %v2088 = vld [vmem:[#allocation13 + $0x98] sm:$0xff]
    %v2089 = vld [vmem:[#allocation13 + $0xa0] sm:$0xff]
    %v2090 = vld [vmem:[#allocation13 + $0xa8] sm:$0xff]
    %v2091 = vld [vmem:[#allocation13 + $0xb0] sm:$0xff]
    %v2092 = vld [vmem:[#allocation13 + $0xb8] sm:$0xff]
    %v2093 = vld [vmem:[#allocation13 + $0xc0] sm:$0xff]
    %v2094 = vld [vmem:[#allocation13 + $0xc8] sm:$0xff]
    %v2095 = vld [vmem:[#allocation13 + $0xd0] sm:$0xff]
    %v2096 = vld [vmem:[#allocation13 + $0xd8] sm:$0xff]
    %v2097 = vld [vmem:[#allocation13 + $0xe0] sm:$0xff]
    %v2098 = vld [vmem:[#allocation13 + $0xe8] sm:$0xff]
    %v2099 = vld [vmem:[#allocation13 + $0xf0] sm:$0xff]
    %v2100 = vld [vmem:[#allocation13 + $0xf8] sm:$0xff]
    %v2101 = vld [vmem:[#allocation13 + $0x100] sm:$0xff]
    %v2102 = vld [vmem:[#allocation13 + $0x108] sm:$0xff]
    %v2103 = vld [vmem:[#allocation13 + $0x110] sm:$0xff]
    %v2104 = vld [vmem:[#allocation13 + $0x118] sm:$0xff]
    %v2105 = vld [vmem:[#allocation13 + $0x120] sm:$0xff]
    %v2106 = vld [vmem:[#allocation13 + $0x128] sm:$0xff]
    %v2107 = vld [vmem:[#allocation13 + $0x130] sm:$0xff]
    %v2108 = vld [vmem:[#allocation13 + $0x138] sm:$0xff]
    %v2109 = vld [vmem:[#allocation13 + $0x140] sm:$0xff]
    %v2110 = vld [vmem:[#allocation13 + $0x148] sm:$0xff]
    %v2111 = vld [vmem:[#allocation13 + $0x150] sm:$0xff]
    %v2112 = vld [vmem:[#allocation13 + $0x158] sm:$0xff]
    %v2113 = vld [vmem:[#allocation13 + $0x160] sm:$0xff]
    %v2114 = vld [vmem:[#allocation13 + $0x168] sm:$0xff]
    %v2115 = vld [vmem:[#allocation13 + $0x170] sm:$0xff]
    %v2116 = vld [vmem:[#allocation13 + $0x178] sm:$0xff]
    %v2117 = vld [vmem:[#allocation13 + $0x180] sm:$0xff]
    %v2118 = vld [vmem:[#allocation13 + $0x188] sm:$0xff]
    %v2119 = vld [vmem:[#allocation13 + $0x190] sm:$0xff]
    %v2120 = vld [vmem:[#allocation13 + $0x198] sm:$0xff]
    %v2121 = vld [vmem:[#allocation13 + $0x1a0] sm:$0xff]
    %v2122 = vld [vmem:[#allocation13 + $0x1a8] sm:$0xff]
    %v2123 = vld [vmem:[#allocation13 + $0x1b0] sm:$0xff]
    %v2124 = vld [vmem:[#allocation13 + $0x1b8] sm:$0xff]
    %v2125 = vld [vmem:[#allocation13 + $0x1c0] sm:$0xff]
    %v2126 = vld [vmem:[#allocation13 + $0x1c8] sm:$0xff]
    %v2127 = vld [vmem:[#allocation13 + $0x1d0] sm:$0xff]
    %v2128 = vld [vmem:[#allocation13 + $0x1d8] sm:$0xff]
    %v2129 = vld [vmem:[#allocation13 + $0x1e0] sm:$0xff]
    %v2130 = vld [vmem:[#allocation13 + $0x1e8] sm:$0xff]
    %v2131 = vld [vmem:[#allocation13 + $0x1f0] sm:$0xff]
    %v2132 = vld [vmem:[#allocation13 + $0x1f8] sm:$0xff]
    %v2133 = vld [vmem:[%s10] sm:$0xff]
    %v2135 = vlaneseq
    %v2136 = vshrl.u32 %v2135, 7
    %v2137 = vsub.s32 0, %v2136
    %v2138 = vrot.slane %v2133, %v2137
    %v2139 = vlaneseq
    %v2140 = vshrl.u32 %v2139, 7
    %v2141 = vsub.s32 1, %v2140
    %v2142 = vrot.slane %v2133, %v2141
    %v2143 = vlaneseq
    %v2144 = vshrl.u32 %v2143, 7
    %v2145 = vsub.s32 2, %v2144
    %v2146 = vrot.slane %v2133, %v2145
    %v2147 = vlaneseq
    %v2148 = vshrl.u32 %v2147, 7
    %v2149 = vsub.s32 3, %v2148
    %v2150 = vrot.slane %v2133, %v2149
    %v2151 = vlaneseq
    %v2152 = vshrl.u32 %v2151, 7
    %v2153 = vsub.s32 4, %v2152
    %v2154 = vrot.slane %v2133, %v2153
    %v2155 = vlaneseq
    %v2156 = vshrl.u32 %v2155, 7
    %v2157 = vsub.s32 5, %v2156
    %v2158 = vrot.slane %v2133, %v2157
    %v2159 = vlaneseq
    %v2160 = vshrl.u32 %v2159, 7
    %v2161 = vsub.s32 6, %v2160
    %v2162 = vrot.slane %v2133, %v2161
    %v2163 = vlaneseq
    %v2164 = vshrl.u32 %v2163, 7
    %v2165 = vsub.s32 7, %v2164
    %v2166 = vrot.slane %v2133, %v2165
    %v2239 = vunpack.c.l.b16 %v2069
    %v2240 = vunpack.c.h.b16 %v2069
    %v2241 = vunpack.c.l.b16 %v2070
    %v2242 = vunpack.c.h.b16 %v2070
    %v2243 = vunpack.c.l.b16 %v2071
    %v2244 = vunpack.c.h.b16 %v2071
    %v2245 = vunpack.c.l.b16 %v2072
    %v2246 = vunpack.c.h.b16 %v2072
    %v2247 = vunpack.c.l.b16 %v2073
    %v2248 = vunpack.c.h.b16 %v2073
    %v2249 = vunpack.c.l.b16 %v2074
    %v2250 = vunpack.c.h.b16 %v2074
    %v2251 = vunpack.c.l.b16 %v2075
    %v2252 = vunpack.c.h.b16 %v2075
    %v2253 = vunpack.c.l.b16 %v2076
    %v2254 = vunpack.c.h.b16 %v2076
    %v2255 = vunpack.c.l.b16 %v2077
    %v2256 = vunpack.c.h.b16 %v2077
    %v2257 = vunpack.c.l.b16 %v2078
    %v2258 = vunpack.c.h.b16 %v2078
    %v2259 = vunpack.c.l.b16 %v2079
    %v2260 = vunpack.c.h.b16 %v2079
    %v2261 = vunpack.c.l.b16 %v2080
    %v2262 = vunpack.c.h.b16 %v2080
    %v2263 = vunpack.c.l.b16 %v2081
    %v2264 = vunpack.c.h.b16 %v2081
    %v2265 = vunpack.c.l.b16 %v2082
    %v2266 = vunpack.c.h.b16 %v2082
    %v2267 = vunpack.c.l.b16 %v2083
    %v2268 = vunpack.c.h.b16 %v2083
    %v2269 = vunpack.c.l.b16 %v2084
    %v2270 = vunpack.c.h.b16 %v2084
    %v2271 = vunpack.c.l.b16 %v2085
    %v2272 = vunpack.c.h.b16 %v2085
    %v2273 = vunpack.c.l.b16 %v2086
    %v2274 = vunpack.c.h.b16 %v2086
    %v2275 = vunpack.c.l.b16 %v2087
    %v2276 = vunpack.c.h.b16 %v2087
    %v2277 = vunpack.c.l.b16 %v2088
    %v2278 = vunpack.c.h.b16 %v2088
    %v2279 = vunpack.c.l.b16 %v2089
    %v2280 = vunpack.c.h.b16 %v2089
    %v2281 = vunpack.c.l.b16 %v2090
    %v2282 = vunpack.c.h.b16 %v2090
    %v2283 = vunpack.c.l.b16 %v2091
    %v2284 = vunpack.c.h.b16 %v2091
    %v2285 = vunpack.c.l.b16 %v2092
    %v2286 = vunpack.c.h.b16 %v2092
    %v2287 = vunpack.c.l.b16 %v2093
    %v2288 = vunpack.c.h.b16 %v2093
    %v2289 = vunpack.c.l.b16 %v2094
    %v2290 = vunpack.c.h.b16 %v2094
    %v2291 = vunpack.c.l.b16 %v2095
    %v2292 = vunpack.c.h.b16 %v2095
    %v2293 = vunpack.c.l.b16 %v2096
    %v2294 = vunpack.c.h.b16 %v2096
    %v2295 = vunpack.c.l.b16 %v2097
    %v2296 = vunpack.c.h.b16 %v2097
    %v2297 = vunpack.c.l.b16 %v2098
    %v2298 = vunpack.c.h.b16 %v2098
    %v2299 = vunpack.c.l.b16 %v2099
    %v2300 = vunpack.c.h.b16 %v2099
    %v2301 = vunpack.c.l.b16 %v2100
    %v2302 = vunpack.c.h.b16 %v2100
    %v2303 = vunpack.c.l.b16 %v2101
    %v2304 = vunpack.c.h.b16 %v2101
    %v2305 = vunpack.c.l.b16 %v2102
    %v2306 = vunpack.c.h.b16 %v2102
    %v2307 = vunpack.c.l.b16 %v2103
    %v2308 = vunpack.c.h.b16 %v2103
    %v2309 = vunpack.c.l.b16 %v2104
    %v2310 = vunpack.c.h.b16 %v2104
    %v2311 = vunpack.c.l.b16 %v2105
    %v2312 = vunpack.c.h.b16 %v2105
    %v2313 = vunpack.c.l.b16 %v2106
    %v2314 = vunpack.c.h.b16 %v2106
    %v2315 = vunpack.c.l.b16 %v2107
    %v2316 = vunpack.c.h.b16 %v2107
    %v2317 = vunpack.c.l.b16 %v2108
    %v2318 = vunpack.c.h.b16 %v2108
    %v2319 = vunpack.c.l.b16 %v2109
    %v2320 = vunpack.c.h.b16 %v2109
    %v2321 = vunpack.c.l.b16 %v2110
    %v2322 = vunpack.c.h.b16 %v2110
    %v2323 = vunpack.c.l.b16 %v2111
    %v2324 = vunpack.c.h.b16 %v2111
    %v2325 = vunpack.c.l.b16 %v2112
    %v2326 = vunpack.c.h.b16 %v2112
    %v2327 = vunpack.c.l.b16 %v2113
    %v2328 = vunpack.c.h.b16 %v2113
    %v2329 = vunpack.c.l.b16 %v2114
    %v2330 = vunpack.c.h.b16 %v2114
    %v2331 = vunpack.c.l.b16 %v2115
    %v2332 = vunpack.c.h.b16 %v2115
    %v2333 = vunpack.c.l.b16 %v2116
    %v2334 = vunpack.c.h.b16 %v2116
    %v2335 = vunpack.c.l.b16 %v2117
    %v2336 = vunpack.c.h.b16 %v2117
    %v2337 = vunpack.c.l.b16 %v2118
    %v2338 = vunpack.c.h.b16 %v2118
    %v2339 = vunpack.c.l.b16 %v2119
    %v2340 = vunpack.c.h.b16 %v2119
    %v2341 = vunpack.c.l.b16 %v2120
    %v2342 = vunpack.c.h.b16 %v2120
    %v2343 = vunpack.c.l.b16 %v2121
    %v2344 = vunpack.c.h.b16 %v2121
    %v2345 = vunpack.c.l.b16 %v2122
    %v2346 = vunpack.c.h.b16 %v2122
    %v2347 = vunpack.c.l.b16 %v2123
    %v2348 = vunpack.c.h.b16 %v2123
    %v2349 = vunpack.c.l.b16 %v2124
    %v2350 = vunpack.c.h.b16 %v2124
    %v2351 = vunpack.c.l.b16 %v2125
    %v2352 = vunpack.c.h.b16 %v2125
    %v2353 = vunpack.c.l.b16 %v2126
    %v2354 = vunpack.c.h.b16 %v2126
    %v2355 = vunpack.c.l.b16 %v2127
    %v2356 = vunpack.c.h.b16 %v2127
    %v2357 = vunpack.c.l.b16 %v2128
    %v2358 = vunpack.c.h.b16 %v2128
    %v2359 = vunpack.c.l.b16 %v2129
    %v2360 = vunpack.c.h.b16 %v2129
    %v2361 = vunpack.c.l.b16 %v2130
    %v2362 = vunpack.c.h.b16 %v2130
    %v2363 = vunpack.c.l.b16 %v2131
    %v2364 = vunpack.c.h.b16 %v2131
    %v2365 = vunpack.c.l.b16 %v2132
    %v2366 = vunpack.c.h.b16 %v2132
    %v2367 = vpack.c.b16 %v2247, %v2239
    %v2368 = vpack.c.b16 %v2248, %v2240
    %v2369 = vpack.c.b16 %v2249, %v2241
    %v2370 = vpack.c.b16 %v2250, %v2242
    %v2371 = vpack.c.b16 %v2251, %v2243
    %v2372 = vpack.c.b16 %v2252, %v2244
    %v2373 = vpack.c.b16 %v2253, %v2245
    %v2374 = vpack.c.b16 %v2254, %v2246
    %v2375 = vpack.c.b16 %v2263, %v2255
    %v2376 = vpack.c.b16 %v2264, %v2256
    %v2377 = vpack.c.b16 %v2265, %v2257
    %v2378 = vpack.c.b16 %v2266, %v2258
    %v2379 = vpack.c.b16 %v2267, %v2259
    %v2380 = vpack.c.b16 %v2268, %v2260
    %v2381 = vpack.c.b16 %v2269, %v2261
    %v2382 = vpack.c.b16 %v2270, %v2262
    %v2383 = vpack.c.b16 %v2279, %v2271
    %v2384 = vpack.c.b16 %v2280, %v2272
    %v2385 = vpack.c.b16 %v2281, %v2273
    %v2386 = vpack.c.b16 %v2282, %v2274
    %v2387 = vpack.c.b16 %v2283, %v2275
    %v2388 = vpack.c.b16 %v2284, %v2276
    %v2389 = vpack.c.b16 %v2285, %v2277
    %v2390 = vpack.c.b16 %v2286, %v2278
    %v2391 = vpack.c.b16 %v2295, %v2287
    %v2392 = vpack.c.b16 %v2296, %v2288
    %v2393 = vpack.c.b16 %v2297, %v2289
    %v2394 = vpack.c.b16 %v2298, %v2290
    %v2395 = vpack.c.b16 %v2299, %v2291
    %v2396 = vpack.c.b16 %v2300, %v2292
    %v2397 = vpack.c.b16 %v2301, %v2293
    %v2398 = vpack.c.b16 %v2302, %v2294
    %v2399 = vpack.c.b16 %v2311, %v2303
    %v2400 = vpack.c.b16 %v2312, %v2304
    %v2401 = vpack.c.b16 %v2313, %v2305
    %v2402 = vpack.c.b16 %v2314, %v2306
    %v2403 = vpack.c.b16 %v2315, %v2307
    %v2404 = vpack.c.b16 %v2316, %v2308
    %v2405 = vpack.c.b16 %v2317, %v2309
    %v2406 = vpack.c.b16 %v2318, %v2310
    %v2407 = vpack.c.b16 %v2327, %v2319
    %v2408 = vpack.c.b16 %v2328, %v2320
    %v2409 = vpack.c.b16 %v2329, %v2321
    %v2410 = vpack.c.b16 %v2330, %v2322
    %v2411 = vpack.c.b16 %v2331, %v2323
    %v2412 = vpack.c.b16 %v2332, %v2324
    %v2413 = vpack.c.b16 %v2333, %v2325
    %v2414 = vpack.c.b16 %v2334, %v2326
    %v2415 = vpack.c.b16 %v2343, %v2335
    %v2416 = vpack.c.b16 %v2344, %v2336
    %v2417 = vpack.c.b16 %v2345, %v2337
    %v2418 = vpack.c.b16 %v2346, %v2338
    %v2419 = vpack.c.b16 %v2347, %v2339
    %v2420 = vpack.c.b16 %v2348, %v2340
    %v2421 = vpack.c.b16 %v2349, %v2341
    %v2422 = vpack.c.b16 %v2350, %v2342
    %v2423 = vpack.c.b16 %v2359, %v2351
    %v2424 = vpack.c.b16 %v2360, %v2352
    %v2425 = vpack.c.b16 %v2361, %v2353
    %v2426 = vpack.c.b16 %v2362, %v2354
    %v2427 = vpack.c.b16 %v2363, %v2355
    %v2428 = vpack.c.b16 %v2364, %v2356
    %v2429 = vpack.c.b16 %v2365, %v2357
    %v2430 = vpack.c.b16 %v2366, %v2358
    %2495 = vmatprep.subr.bf16.mxu0 %v2368
    %2496 = vmatpush1.bf16.msra.mxu0 %v2367
    %2497 = vmatprep.subr.bf16.mxu0 %v2376
    %2498 = vmatpush1.bf16.msra.mxu0 %v2375
    %2499 = vmatprep.subr.bf16.mxu0 %v2384
    %2500 = vmatpush1.bf16.msra.mxu0 %v2383
    %2501 = vmatprep.subr.bf16.mxu0 %v2392
    %2502 = vmatpush1.bf16.msra.mxu0 %v2391
    %2503 = vmatprep.subr.bf16.mxu0 %v2400
    %2504 = vmatpush1.bf16.msra.mxu0 %v2399
    %2505 = vmatprep.subr.bf16.mxu0 %v2408
    %2506 = vmatpush1.bf16.msra.mxu0 %v2407
    %2507 = vmatprep.subr.bf16.mxu0 %v2416
    %2508 = vmatpush1.bf16.msra.mxu0 %v2415
    %2509 = vmatprep.subr.bf16.mxu0 %v2424
    %2510 = vmatpush1.bf16.msra.mxu0 %v2423
    %2511 = vmatprep.subr.bf16.mxu0 0
    %2512 = vmatpush1.bf16.msra.mxu0 0
    %2513 = vmatprep.subr.bf16.mxu0 0
    %2514 = vmatpush1.bf16.msra.mxu0 0
    %2515 = vmatprep.subr.bf16.mxu0 0
    %2516 = vmatpush1.bf16.msra.mxu0 0
    %2517 = vmatprep.subr.bf16.mxu0 0
    %2518 = vmatpush1.bf16.msra.mxu0 0
    %2519 = vmatprep.subr.bf16.mxu0 0
    %2520 = vmatpush1.bf16.msra.mxu0 0
    %2521 = vmatprep.subr.bf16.mxu0 0
    %2522 = vmatpush1.bf16.msra.mxu0 0
    %2523 = vmatprep.subr.bf16.mxu0 0
    %2524 = vmatpush1.bf16.msra.mxu0 0
    %2525 = vmatprep.subr.bf16.mxu0 0
    %2526 = vmatpush1.bf16.msra.mxu0 0
    %2527 = vmatprep.mubr.bf16.mxu0 0
    %2528 = vmatmul.mubr.bf16.gmra.mrb[0].mxu0 %v2068
    %v2529 = vpop.f32.mrb[0].mxu0
    %v2530 = vadd.f32 %v2138, %v2529
    %v2531 = vpop.f32.mrb[0].mxu0
    %v2532 = vadd.f32 %v2142, %v2531
    %v2533 = vpop.f32.mrb[0].mxu0
    %v2534 = vpop.f32.mrb[0].mxu0
    %2535 = vdwg.mxu0
    %2536 = vmatprep.subr.bf16.mxu0 %v2370
    %2537 = vmatpush1.bf16.msra.mxu0 %v2369
    %2538 = vmatprep.subr.bf16.mxu0 %v2378
    %2539 = vmatpush1.bf16.msra.mxu0 %v2377
    %2540 = vmatprep.subr.bf16.mxu0 %v2386
    %2541 = vmatpush1.bf16.msra.mxu0 %v2385
    %2542 = vmatprep.subr.bf16.mxu0 %v2394
    %2543 = vmatpush1.bf16.msra.mxu0 %v2393
    %2544 = vmatprep.subr.bf16.mxu0 %v2402
    %2545 = vmatpush1.bf16.msra.mxu0 %v2401
    %2546 = vmatprep.subr.bf16.mxu0 %v2410
    %2547 = vmatpush1.bf16.msra.mxu0 %v2409
    %2548 = vmatprep.subr.bf16.mxu0 %v2418
    %2549 = vmatpush1.bf16.msra.mxu0 %v2417
    %2550 = vmatprep.subr.bf16.mxu0 %v2426
    %2551 = vmatpush1.bf16.msra.mxu0 %v2425
    %2552 = vmatprep.subr.bf16.mxu0 0
    %2553 = vmatpush1.bf16.msra.mxu0 0
    %2554 = vmatprep.subr.bf16.mxu0 0
    %2555 = vmatpush1.bf16.msra.mxu0 0
    %2556 = vmatprep.subr.bf16.mxu0 0
    %2557 = vmatpush1.bf16.msra.mxu0 0
    %2558 = vmatprep.subr.bf16.mxu0 0
    %2559 = vmatpush1.bf16.msra.mxu0 0
    %2560 = vmatprep.subr.bf16.mxu0 0
    %2561 = vmatpush1.bf16.msra.mxu0 0
    %2562 = vmatprep.subr.bf16.mxu0 0
    %2563 = vmatpush1.bf16.msra.mxu0 0
    %2564 = vmatprep.subr.bf16.mxu0 0
    %2565 = vmatpush1.bf16.msra.mxu0 0
    %2566 = vmatprep.subr.bf16.mxu0 0
    %2567 = vmatpush1.bf16.msra.mxu0 0
    %2568 = vmatprep.mubr.bf16.mxu0 0
    %2569 = vmatmul.mubr.bf16.gmra.mrb[0].mxu0 %v2068
    %v2570 = vpop.f32.mrb[0].mxu0
    %v2571 = vadd.f32 %v2146, %v2570
    %v2572 = vpop.f32.mrb[0].mxu0
    %v2573 = vadd.f32 %v2150, %v2572
    %v2574 = vpop.f32.mrb[0].mxu0
    %v2575 = vpop.f32.mrb[0].mxu0
    %2576 = vdwg.mxu0
    %2577 = vmatprep.subr.bf16.mxu0 %v2372
    %2578 = vmatpush1.bf16.msra.mxu0 %v2371
    %2579 = vmatprep.subr.bf16.mxu0 %v2380
    %2580 = vmatpush1.bf16.msra.mxu0 %v2379
    %2581 = vmatprep.subr.bf16.mxu0 %v2388
    %2582 = vmatpush1.bf16.msra.mxu0 %v2387
    %2583 = vmatprep.subr.bf16.mxu0 %v2396
    %2584 = vmatpush1.bf16.msra.mxu0 %v2395
    %2585 = vmatprep.subr.bf16.mxu0 %v2404
    %2586 = vmatpush1.bf16.msra.mxu0 %v2403
    %2587 = vmatprep.subr.bf16.mxu0 %v2412
    %2588 = vmatpush1.bf16.msra.mxu0 %v2411
    %2589 = vmatprep.subr.bf16.mxu0 %v2420
    %2590 = vmatpush1.bf16.msra.mxu0 %v2419
    %2591 = vmatprep.subr.bf16.mxu0 %v2428
    %2592 = vmatpush1.bf16.msra.mxu0 %v2427
    %2593 = vmatprep.subr.bf16.mxu0 0
    %2594 = vmatpush1.bf16.msra.mxu0 0
    %2595 = vmatprep.subr.bf16.mxu0 0
    %2596 = vmatpush1.bf16.msra.mxu0 0
    %2597 = vmatprep.subr.bf16.mxu0 0
    %2598 = vmatpush1.bf16.msra.mxu0 0
    %2599 = vmatprep.subr.bf16.mxu0 0
    %2600 = vmatpush1.bf16.msra.mxu0 0
    %2601 = vmatprep.subr.bf16.mxu0 0
    %2602 = vmatpush1.bf16.msra.mxu0 0
    %2603 = vmatprep.subr.bf16.mxu0 0
    %2604 = vmatpush1.bf16.msra.mxu0 0
    %2605 = vmatprep.subr.bf16.mxu0 0
    %2606 = vmatpush1.bf16.msra.mxu0 0
    %2607 = vmatprep.subr.bf16.mxu0 0
    %2608 = vmatpush1.bf16.msra.mxu0 0
    %2609 = vmatprep.mubr.bf16.mxu0 0
    %2610 = vmatmul.mubr.bf16.gmra.mrb[0].mxu0 %v2068
    %v2611 = vpop.f32.mrb[0].mxu0
    %v2612 = vadd.f32 %v2154, %v2611
    %v2613 = vpop.f32.mrb[0].mxu0
    %v2614 = vadd.f32 %v2158, %v2613
    %v2615 = vpop.f32.mrb[0].mxu0
    %v2616 = vpop.f32.mrb[0].mxu0
    %2617 = vdwg.mxu0
    %2618 = vmatprep.subr.bf16.mxu0 %v2374
    %2619 = vmatpush1.bf16.msra.mxu0 %v2373
    %2620 = vmatprep.subr.bf16.mxu0 %v2382
    %2621 = vmatpush1.bf16.msra.mxu0 %v2381
    %2622 = vmatprep.subr.bf16.mxu0 %v2390
    %2623 = vmatpush1.bf16.msra.mxu0 %v2389
    %2624 = vmatprep.subr.bf16.mxu0 %v2398
    %2625 = vmatpush1.bf16.msra.mxu0 %v2397
    %2626 = vmatprep.subr.bf16.mxu0 %v2406
    %2627 = vmatpush1.bf16.msra.mxu0 %v2405
    %2628 = vmatprep.subr.bf16.mxu0 %v2414
    %2629 = vmatpush1.bf16.msra.mxu0 %v2413
    %2630 = vmatprep.subr.bf16.mxu0 %v2422
    %2631 = vmatpush1.bf16.msra.mxu0 %v2421
    %2632 = vmatprep.subr.bf16.mxu0 %v2430
    %2633 = vmatpush1.bf16.msra.mxu0 %v2429
    %2634 = vmatprep.subr.bf16.mxu0 0
    %2635 = vmatpush1.bf16.msra.mxu0 0
    %2636 = vmatprep.subr.bf16.mxu0 0
    %2637 = vmatpush1.bf16.msra.mxu0 0
    %2638 = vmatprep.subr.bf16.mxu0 0
    %2639 = vmatpush1.bf16.msra.mxu0 0
    %2640 = vmatprep.subr.bf16.mxu0 0
    %2641 = vmatpush1.bf16.msra.mxu0 0
    %2642 = vmatprep.subr.bf16.mxu0 0
    %2643 = vmatpush1.bf16.msra.mxu0 0
    %2644 = vmatprep.subr.bf16.mxu0 0
    %2645 = vmatpush1.bf16.msra.mxu0 0
    %2646 = vmatprep.subr.bf16.mxu0 0
    %2647 = vmatpush1.bf16.msra.mxu0 0
    %2648 = vmatprep.subr.bf16.mxu0 0
    %2649 = vmatpush1.bf16.msra.mxu0 0
    %2650 = vmatprep.mubr.bf16.mxu0 0
    %2651 = vmatmul.mubr.bf16.gmra.mrb[0].mxu0 %v2068
    %v2652 = vpop.f32.mrb[0].mxu0
    %v2653 = vadd.f32 %v2162, %v2652
    %v2654 = vpop.f32.mrb[0].mxu0
    %v2655 = vadd.f32 %v2166, %v2654
    %v2656 = vpop.f32.mrb[0].mxu0
    %v2657 = vpop.f32.mrb[0].mxu0
    %2658 = vdwg.mxu0
    %vm2659 = vcmp.ge.f32.partialorder %v2530, 0.0
    %vm2660 = vcmp.ge.f32.partialorder %v2532, 0.0
    %vm2661 = vcmp.ge.f32.partialorder %v2571, 0.0
    %vm2662 = vcmp.ge.f32.partialorder %v2573, 0.0
    %vm2663 = vcmp.ge.f32.partialorder %v2612, 0.0
    %vm2664 = vcmp.ge.f32.partialorder %v2614, 0.0
    %vm2665 = vcmp.ge.f32.partialorder %v2653, 0.0
    %vm2666 = vcmp.ge.f32.partialorder %v2655, 0.0
    %v2667 = vmul.f32 %v2530, 0.01
    %v2668 = vmul.f32 %v2532, 0.01
    %v2669 = vmul.f32 %v2571, 0.01
    %v2670 = vmul.f32 %v2573, 0.01
    %v2671 = vmul.f32 %v2612, 0.01
    %v2672 = vmul.f32 %v2614, 0.01
    %v2673 = vmul.f32 %v2653, 0.01
    %v2674 = vmul.f32 %v2655, 0.01
    %v2675 = vsel %vm2659, %v2530, %v2667
    %v2676 = vsel %vm2660, %v2532, %v2668
    %v2677 = vsel %vm2661, %v2571, %v2669
    %v2678 = vsel %vm2662, %v2573, %v2670
    %v2679 = vsel %vm2663, %v2612, %v2671
    %v2680 = vsel %vm2664, %v2614, %v2672
    %v2681 = vsel %vm2665, %v2653, %v2673
    %v2682 = vsel %vm2666, %v2655, %v2674
    %v2683 = vpack.c.bf16 %v2675, %v2675
    %v2684 = vpack.c.bf16 %v2676, %v2676
    %v2685 = vpack.c.bf16 %v2677, %v2677
    %v2686 = vpack.c.bf16 %v2678, %v2678
    %v2687 = vpack.c.bf16 %v2679, %v2679
    %v2688 = vpack.c.bf16 %v2680, %v2680
    %v2689 = vpack.c.bf16 %v2681, %v2681
    %v2690 = vpack.c.bf16 %v2682, %v2682
    %v2691 = vld [vmem:[#allocation14] sm:$0xff]
    %v2692 = vld [vmem:[#allocation14 + $0x8] sm:$0xff]
    %v2693 = vld [vmem:[#allocation14 + $0x10] sm:$0xff]
    %v2694 = vld [vmem:[#allocation14 + $0x18] sm:$0xff]
    %v2695 = vld [vmem:[#allocation14 + $0x20] sm:$0xff]
    %v2696 = vld [vmem:[#allocation14 + $0x28] sm:$0xff]
    %v2697 = vld [vmem:[#allocation14 + $0x30] sm:$0xff]
    %v2698 = vld [vmem:[#allocation14 + $0x38] sm:$0xff]
    %v2699 = vld [vmem:[#allocation14 + $0x40] sm:$0xff]
    %v2700 = vld [vmem:[#allocation14 + $0x48] sm:$0xff]
    %v2701 = vld [vmem:[#allocation14 + $0x50] sm:$0xff]
    %v2702 = vld [vmem:[#allocation14 + $0x58] sm:$0xff]
    %v2703 = vld [vmem:[#allocation14 + $0x60] sm:$0xff]
    %v2704 = vld [vmem:[#allocation14 + $0x68] sm:$0xff]
    %v2705 = vld [vmem:[#allocation14 + $0x70] sm:$0xff]
    %v2706 = vld [vmem:[#allocation14 + $0x78] sm:$0xff]
    %v2707 = vld [vmem:[#allocation14 + $0x80] sm:$0xff]
    %v2708 = vld [vmem:[#allocation14 + $0x88] sm:$0xff]
    %v2709 = vld [vmem:[#allocation14 + $0x90] sm:$0xff]
    %v2710 = vld [vmem:[#allocation14 + $0x98] sm:$0xff]
    %v2711 = vld [vmem:[#allocation14 + $0xa0] sm:$0xff]
    %v2712 = vld [vmem:[#allocation14 + $0xa8] sm:$0xff]
    %v2713 = vld [vmem:[#allocation14 + $0xb0] sm:$0xff]
    %v2714 = vld [vmem:[#allocation14 + $0xb8] sm:$0xff]
    %v2715 = vld [vmem:[#allocation14 + $0xc0] sm:$0xff]
    %v2716 = vld [vmem:[#allocation14 + $0xc8] sm:$0xff]
    %v2717 = vld [vmem:[#allocation14 + $0xd0] sm:$0xff]
    %v2718 = vld [vmem:[#allocation14 + $0xd8] sm:$0xff]
    %v2719 = vld [vmem:[#allocation14 + $0xe0] sm:$0xff]
    %v2720 = vld [vmem:[#allocation14 + $0xe8] sm:$0xff]
    %v2721 = vld [vmem:[#allocation14 + $0xf0] sm:$0xff]
    %v2722 = vld [vmem:[#allocation14 + $0xf8] sm:$0xff]
    %v2723 = vld [vmem:[#allocation14 + $0x100] sm:$0xff]
    %v2724 = vld [vmem:[#allocation14 + $0x108] sm:$0xff]
    %v2725 = vld [vmem:[#allocation14 + $0x110] sm:$0xff]
    %v2726 = vld [vmem:[#allocation14 + $0x118] sm:$0xff]
    %v2727 = vld [vmem:[#allocation14 + $0x120] sm:$0xff]
    %v2728 = vld [vmem:[#allocation14 + $0x128] sm:$0xff]
    %v2729 = vld [vmem:[#allocation14 + $0x130] sm:$0xff]
    %v2730 = vld [vmem:[#allocation14 + $0x138] sm:$0xff]
    %v2731 = vld [vmem:[#allocation14 + $0x140] sm:$0xff]
    %v2732 = vld [vmem:[#allocation14 + $0x148] sm:$0xff]
    %v2733 = vld [vmem:[#allocation14 + $0x150] sm:$0xff]
    %v2734 = vld [vmem:[#allocation14 + $0x158] sm:$0xff]
    %v2735 = vld [vmem:[#allocation14 + $0x160] sm:$0xff]
    %v2736 = vld [vmem:[#allocation14 + $0x168] sm:$0xff]
    %v2737 = vld [vmem:[#allocation14 + $0x170] sm:$0xff]
    %v2738 = vld [vmem:[#allocation14 + $0x178] sm:$0xff]
    %v2739 = vld [vmem:[#allocation14 + $0x180] sm:$0xff]
    %v2740 = vld [vmem:[#allocation14 + $0x188] sm:$0xff]
    %v2741 = vld [vmem:[#allocation14 + $0x190] sm:$0xff]
    %v2742 = vld [vmem:[#allocation14 + $0x198] sm:$0xff]
    %v2743 = vld [vmem:[#allocation14 + $0x1a0] sm:$0xff]
    %v2744 = vld [vmem:[#allocation14 + $0x1a8] sm:$0xff]
    %v2745 = vld [vmem:[#allocation14 + $0x1b0] sm:$0xff]
    %v2746 = vld [vmem:[#allocation14 + $0x1b8] sm:$0xff]
    %v2747 = vld [vmem:[#allocation14 + $0x1c0] sm:$0xff]
    %v2748 = vld [vmem:[#allocation14 + $0x1c8] sm:$0xff]
    %v2749 = vld [vmem:[#allocation14 + $0x1d0] sm:$0xff]
    %v2750 = vld [vmem:[#allocation14 + $0x1d8] sm:$0xff]
    %v2751 = vld [vmem:[#allocation14 + $0x1e0] sm:$0xff]
    %v2752 = vld [vmem:[#allocation14 + $0x1e8] sm:$0xff]
    %v2753 = vld [vmem:[#allocation14 + $0x1f0] sm:$0xff]
    %v2754 = vld [vmem:[#allocation14 + $0x1f8] sm:$0xff]
    %v2755 = vld [vmem:[#allocation14 + $0x200] sm:$0xff]
    %v2756 = vld [vmem:[#allocation14 + $0x208] sm:$0xff]
    %v2757 = vld [vmem:[#allocation14 + $0x210] sm:$0xff]
    %v2758 = vld [vmem:[#allocation14 + $0x218] sm:$0xff]
    %v2759 = vld [vmem:[#allocation14 + $0x220] sm:$0xff]
    %v2760 = vld [vmem:[#allocation14 + $0x228] sm:$0xff]
    %v2761 = vld [vmem:[#allocation14 + $0x230] sm:$0xff]
    %v2762 = vld [vmem:[#allocation14 + $0x238] sm:$0xff]
    %v2763 = vld [vmem:[#allocation14 + $0x240] sm:$0xff]
    %v2764 = vld [vmem:[#allocation14 + $0x248] sm:$0xff]
    %v2765 = vld [vmem:[#allocation14 + $0x250] sm:$0xff]
    %v2766 = vld [vmem:[#allocation14 + $0x258] sm:$0xff]
    %v2767 = vld [vmem:[#allocation14 + $0x260] sm:$0xff]
    %v2768 = vld [vmem:[#allocation14 + $0x268] sm:$0xff]
    %v2769 = vld [vmem:[#allocation14 + $0x270] sm:$0xff]
    %v2770 = vld [vmem:[#allocation14 + $0x278] sm:$0xff]
    %v2771 = vld [vmem:[#allocation14 + $0x280] sm:$0xff]
    %v2772 = vld [vmem:[#allocation14 + $0x288] sm:$0xff]
    %v2773 = vld [vmem:[#allocation14 + $0x290] sm:$0xff]
    %v2774 = vld [vmem:[#allocation14 + $0x298] sm:$0xff]
    %v2775 = vld [vmem:[#allocation14 + $0x2a0] sm:$0xff]
    %v2776 = vld [vmem:[#allocation14 + $0x2a8] sm:$0xff]
    %v2777 = vld [vmem:[#allocation14 + $0x2b0] sm:$0xff]
    %v2778 = vld [vmem:[#allocation14 + $0x2b8] sm:$0xff]
    %v2779 = vld [vmem:[#allocation14 + $0x2c0] sm:$0xff]
    %v2780 = vld [vmem:[#allocation14 + $0x2c8] sm:$0xff]
    %v2781 = vld [vmem:[#allocation14 + $0x2d0] sm:$0xff]
    %v2782 = vld [vmem:[#allocation14 + $0x2d8] sm:$0xff]
    %v2783 = vld [vmem:[#allocation14 + $0x2e0] sm:$0xff]
    %v2784 = vld [vmem:[#allocation14 + $0x2e8] sm:$0xff]
    %v2785 = vld [vmem:[#allocation14 + $0x2f0] sm:$0xff]
    %v2786 = vld [vmem:[#allocation14 + $0x2f8] sm:$0xff]
    %v2787 = vld [vmem:[#allocation14 + $0x300] sm:$0xff]
    %v2788 = vld [vmem:[#allocation14 + $0x308] sm:$0xff]
    %v2789 = vld [vmem:[#allocation14 + $0x310] sm:$0xff]
    %v2790 = vld [vmem:[#allocation14 + $0x318] sm:$0xff]
    %v2791 = vld [vmem:[#allocation14 + $0x320] sm:$0xff]
    %v2792 = vld [vmem:[#allocation14 + $0x328] sm:$0xff]
    %v2793 = vld [vmem:[#allocation14 + $0x330] sm:$0xff]
    %v2794 = vld [vmem:[#allocation14 + $0x338] sm:$0xff]
    %v2795 = vld [vmem:[#allocation14 + $0x340] sm:$0xff]
    %v2796 = vld [vmem:[#allocation14 + $0x348] sm:$0xff]
    %v2797 = vld [vmem:[#allocation14 + $0x350] sm:$0xff]
    %v2798 = vld [vmem:[#allocation14 + $0x358] sm:$0xff]
    %v2799 = vld [vmem:[#allocation14 + $0x360] sm:$0xff]
    %v2800 = vld [vmem:[#allocation14 + $0x368] sm:$0xff]
    %v2801 = vld [vmem:[#allocation14 + $0x370] sm:$0xff]
    %v2802 = vld [vmem:[#allocation14 + $0x378] sm:$0xff]
    %v2803 = vld [vmem:[#allocation14 + $0x380] sm:$0xff]
    %v2804 = vld [vmem:[#allocation14 + $0x388] sm:$0xff]
    %v2805 = vld [vmem:[#allocation14 + $0x390] sm:$0xff]
    %v2806 = vld [vmem:[#allocation14 + $0x398] sm:$0xff]
    %v2807 = vld [vmem:[#allocation14 + $0x3a0] sm:$0xff]
    %v2808 = vld [vmem:[#allocation14 + $0x3a8] sm:$0xff]
    %v2809 = vld [vmem:[#allocation14 + $0x3b0] sm:$0xff]
    %v2810 = vld [vmem:[#allocation14 + $0x3b8] sm:$0xff]
    %v2811 = vld [vmem:[#allocation14 + $0x3c0] sm:$0xff]
    %v2812 = vld [vmem:[#allocation14 + $0x3c8] sm:$0xff]
    %v2813 = vld [vmem:[#allocation14 + $0x3d0] sm:$0xff]
    %v2814 = vld [vmem:[#allocation14 + $0x3d8] sm:$0xff]
    %v2815 = vld [vmem:[#allocation14 + $0x3e0] sm:$0xff]
    %v2816 = vld [vmem:[#allocation14 + $0x3e8] sm:$0xff]
    %v2817 = vld [vmem:[#allocation14 + $0x3f0] sm:$0xff]
    %v2818 = vld [vmem:[#allocation14 + $0x3f8] sm:$0xff]
    %v2819 = vld [vmem:[%s12] sm:$0x3]
    %v2821 = vlaneseq
    %v2822 = vshrl.u32 %v2821, 7
    %v2823 = vsub.s32 0, %v2822
    %v2824 = vrot.slane %v2819, %v2823
    %v2825 = vlaneseq
    %v2826 = vshrl.u32 %v2825, 7
    %v2827 = vsub.s32 1, %v2826
    %v2828 = vrot.slane %v2819, %v2827
    %v2959 = vunpack.c.l.b16 %v2691
    %v2960 = vunpack.c.h.b16 %v2691
    %v2961 = vunpack.c.l.b16 %v2692
    %v2962 = vunpack.c.h.b16 %v2692
    %v2963 = vunpack.c.l.b16 %v2693
    %v2964 = vunpack.c.h.b16 %v2693
    %v2965 = vunpack.c.l.b16 %v2694
    %v2966 = vunpack.c.h.b16 %v2694
    %v2967 = vunpack.c.l.b16 %v2695
    %v2968 = vunpack.c.h.b16 %v2695
    %v2969 = vunpack.c.l.b16 %v2696
    %v2970 = vunpack.c.h.b16 %v2696
    %v2971 = vunpack.c.l.b16 %v2697
    %v2972 = vunpack.c.h.b16 %v2697
    %v2973 = vunpack.c.l.b16 %v2698
    %v2974 = vunpack.c.h.b16 %v2698
    %v2975 = vunpack.c.l.b16 %v2699
    %v2976 = vunpack.c.h.b16 %v2699
    %v2977 = vunpack.c.l.b16 %v2700
    %v2978 = vunpack.c.h.b16 %v2700
    %v2979 = vunpack.c.l.b16 %v2701
    %v2980 = vunpack.c.h.b16 %v2701
    %v2981 = vunpack.c.l.b16 %v2702
    %v2982 = vunpack.c.h.b16 %v2702
    %v2983 = vunpack.c.l.b16 %v2703
    %v2984 = vunpack.c.h.b16 %v2703
    %v2985 = vunpack.c.l.b16 %v2704
    %v2986 = vunpack.c.h.b16 %v2704
    %v2987 = vunpack.c.l.b16 %v2705
    %v2988 = vunpack.c.h.b16 %v2705
    %v2989 = vunpack.c.l.b16 %v2706
    %v2990 = vunpack.c.h.b16 %v2706
    %v2991 = vunpack.c.l.b16 %v2707
    %v2992 = vunpack.c.h.b16 %v2707
    %v2993 = vunpack.c.l.b16 %v2708
    %v2994 = vunpack.c.h.b16 %v2708
    %v2995 = vunpack.c.l.b16 %v2709
    %v2996 = vunpack.c.h.b16 %v2709
    %v2997 = vunpack.c.l.b16 %v2710
    %v2998 = vunpack.c.h.b16 %v2710
    %v2999 = vunpack.c.l.b16 %v2711
    %v3000 = vunpack.c.h.b16 %v2711
    %v3001 = vunpack.c.l.b16 %v2712
    %v3002 = vunpack.c.h.b16 %v2712
    %v3003 = vunpack.c.l.b16 %v2713
    %v3004 = vunpack.c.h.b16 %v2713
    %v3005 = vunpack.c.l.b16 %v2714
    %v3006 = vunpack.c.h.b16 %v2714
    %v3007 = vunpack.c.l.b16 %v2715
    %v3008 = vunpack.c.h.b16 %v2715
    %v3009 = vunpack.c.l.b16 %v2716
    %v3010 = vunpack.c.h.b16 %v2716
    %v3011 = vunpack.c.l.b16 %v2717
    %v3012 = vunpack.c.h.b16 %v2717
    %v3013 = vunpack.c.l.b16 %v2718
    %v3014 = vunpack.c.h.b16 %v2718
    %v3015 = vunpack.c.l.b16 %v2719
    %v3016 = vunpack.c.h.b16 %v2719
    %v3017 = vunpack.c.l.b16 %v2720
    %v3018 = vunpack.c.h.b16 %v2720
    %v3019 = vunpack.c.l.b16 %v2721
    %v3020 = vunpack.c.h.b16 %v2721
    %v3021 = vunpack.c.l.b16 %v2722
    %v3022 = vunpack.c.h.b16 %v2722
    %v3023 = vunpack.c.l.b16 %v2723
    %v3024 = vunpack.c.h.b16 %v2723
    %v3025 = vunpack.c.l.b16 %v2724
    %v3026 = vunpack.c.h.b16 %v2724
    %v3027 = vunpack.c.l.b16 %v2725
    %v3028 = vunpack.c.h.b16 %v2725
    %v3029 = vunpack.c.l.b16 %v2726
    %v3030 = vunpack.c.h.b16 %v2726
    %v3031 = vunpack.c.l.b16 %v2727
    %v3032 = vunpack.c.h.b16 %v2727
    %v3033 = vunpack.c.l.b16 %v2728
    %v3034 = vunpack.c.h.b16 %v2728
    %v3035 = vunpack.c.l.b16 %v2729
    %v3036 = vunpack.c.h.b16 %v2729
    %v3037 = vunpack.c.l.b16 %v2730
    %v3038 = vunpack.c.h.b16 %v2730
    %v3039 = vunpack.c.l.b16 %v2731
    %v3040 = vunpack.c.h.b16 %v2731
    %v3041 = vunpack.c.l.b16 %v2732
    %v3042 = vunpack.c.h.b16 %v2732
    %v3043 = vunpack.c.l.b16 %v2733
    %v3044 = vunpack.c.h.b16 %v2733
    %v3045 = vunpack.c.l.b16 %v2734
    %v3046 = vunpack.c.h.b16 %v2734
    %v3047 = vunpack.c.l.b16 %v2735
    %v3048 = vunpack.c.h.b16 %v2735
    %v3049 = vunpack.c.l.b16 %v2736
    %v3050 = vunpack.c.h.b16 %v2736
    %v3051 = vunpack.c.l.b16 %v2737
    %v3052 = vunpack.c.h.b16 %v2737
    %v3053 = vunpack.c.l.b16 %v2738
    %v3054 = vunpack.c.h.b16 %v2738
    %v3055 = vunpack.c.l.b16 %v2739
    %v3056 = vunpack.c.h.b16 %v2739
    %v3057 = vunpack.c.l.b16 %v2740
    %v3058 = vunpack.c.h.b16 %v2740
    %v3059 = vunpack.c.l.b16 %v2741
    %v3060 = vunpack.c.h.b16 %v2741
    %v3061 = vunpack.c.l.b16 %v2742
    %v3062 = vunpack.c.h.b16 %v2742
    %v3063 = vunpack.c.l.b16 %v2743
    %v3064 = vunpack.c.h.b16 %v2743
    %v3065 = vunpack.c.l.b16 %v2744
    %v3066 = vunpack.c.h.b16 %v2744
    %v3067 = vunpack.c.l.b16 %v2745
    %v3068 = vunpack.c.h.b16 %v2745
    %v3069 = vunpack.c.l.b16 %v2746
    %v3070 = vunpack.c.h.b16 %v2746
    %v3071 = vunpack.c.l.b16 %v2747
    %v3072 = vunpack.c.h.b16 %v2747
    %v3073 = vunpack.c.l.b16 %v2748
    %v3074 = vunpack.c.h.b16 %v2748
    %v3075 = vunpack.c.l.b16 %v2749
    %v3076 = vunpack.c.h.b16 %v2749
    %v3077 = vunpack.c.l.b16 %v2750
    %v3078 = vunpack.c.h.b16 %v2750
    %v3079 = vunpack.c.l.b16 %v2751
    %v3080 = vunpack.c.h.b16 %v2751
    %v3081 = vunpack.c.l.b16 %v2752
    %v3082 = vunpack.c.h.b16 %v2752
    %v3083 = vunpack.c.l.b16 %v2753
    %v3084 = vunpack.c.h.b16 %v2753
    %v3085 = vunpack.c.l.b16 %v2754
    %v3086 = vunpack.c.h.b16 %v2754
    %v3087 = vunpack.c.l.b16 %v2755
    %v3088 = vunpack.c.h.b16 %v2755
    %v3089 = vunpack.c.l.b16 %v2756
    %v3090 = vunpack.c.h.b16 %v2756
    %v3091 = vunpack.c.l.b16 %v2757
    %v3092 = vunpack.c.h.b16 %v2757
    %v3093 = vunpack.c.l.b16 %v2758
    %v3094 = vunpack.c.h.b16 %v2758
    %v3095 = vunpack.c.l.b16 %v2759
    %v3096 = vunpack.c.h.b16 %v2759
    %v3097 = vunpack.c.l.b16 %v2760
    %v3098 = vunpack.c.h.b16 %v2760
    %v3099 = vunpack.c.l.b16 %v2761
    %v3100 = vunpack.c.h.b16 %v2761
    %v3101 = vunpack.c.l.b16 %v2762
    %v3102 = vunpack.c.h.b16 %v2762
    %v3103 = vunpack.c.l.b16 %v2763
    %v3104 = vunpack.c.h.b16 %v2763
    %v3105 = vunpack.c.l.b16 %v2764
    %v3106 = vunpack.c.h.b16 %v2764
    %v3107 = vunpack.c.l.b16 %v2765
    %v3108 = vunpack.c.h.b16 %v2765
    %v3109 = vunpack.c.l.b16 %v2766
    %v3110 = vunpack.c.h.b16 %v2766
    %v3111 = vunpack.c.l.b16 %v2767
    %v3112 = vunpack.c.h.b16 %v2767
    %v3113 = vunpack.c.l.b16 %v2768
    %v3114 = vunpack.c.h.b16 %v2768
    %v3115 = vunpack.c.l.b16 %v2769
    %v3116 = vunpack.c.h.b16 %v2769
    %v3117 = vunpack.c.l.b16 %v2770
    %v3118 = vunpack.c.h.b16 %v2770
    %v3119 = vunpack.c.l.b16 %v2771
    %v3120 = vunpack.c.h.b16 %v2771
    %v3121 = vunpack.c.l.b16 %v2772
    %v3122 = vunpack.c.h.b16 %v2772
    %v3123 = vunpack.c.l.b16 %v2773
    %v3124 = vunpack.c.h.b16 %v2773
    %v3125 = vunpack.c.l.b16 %v2774
    %v3126 = vunpack.c.h.b16 %v2774
    %v3127 = vunpack.c.l.b16 %v2775
    %v3128 = vunpack.c.h.b16 %v2775
    %v3129 = vunpack.c.l.b16 %v2776
    %v3130 = vunpack.c.h.b16 %v2776
    %v3131 = vunpack.c.l.b16 %v2777
    %v3132 = vunpack.c.h.b16 %v2777
    %v3133 = vunpack.c.l.b16 %v2778
    %v3134 = vunpack.c.h.b16 %v2778
    %v3135 = vunpack.c.l.b16 %v2779
    %v3136 = vunpack.c.h.b16 %v2779
    %v3137 = vunpack.c.l.b16 %v2780
    %v3138 = vunpack.c.h.b16 %v2780
    %v3139 = vunpack.c.l.b16 %v2781
    %v3140 = vunpack.c.h.b16 %v2781
    %v3141 = vunpack.c.l.b16 %v2782
    %v3142 = vunpack.c.h.b16 %v2782
    %v3143 = vunpack.c.l.b16 %v2783
    %v3144 = vunpack.c.h.b16 %v2783
    %v3145 = vunpack.c.l.b16 %v2784
    %v3146 = vunpack.c.h.b16 %v2784
    %v3147 = vunpack.c.l.b16 %v2785
    %v3148 = vunpack.c.h.b16 %v2785
    %v3149 = vunpack.c.l.b16 %v2786
    %v3150 = vunpack.c.h.b16 %v2786
    %v3151 = vunpack.c.l.b16 %v2787
    %v3152 = vunpack.c.h.b16 %v2787
    %v3153 = vunpack.c.l.b16 %v2788
    %v3154 = vunpack.c.h.b16 %v2788
    %v3155 = vunpack.c.l.b16 %v2789
    %v3156 = vunpack.c.h.b16 %v2789
    %v3157 = vunpack.c.l.b16 %v2790
    %v3158 = vunpack.c.h.b16 %v2790
    %v3159 = vunpack.c.l.b16 %v2791
    %v3160 = vunpack.c.h.b16 %v2791
    %v3161 = vunpack.c.l.b16 %v2792
    %v3162 = vunpack.c.h.b16 %v2792
    %v3163 = vunpack.c.l.b16 %v2793
    %v3164 = vunpack.c.h.b16 %v2793
    %v3165 = vunpack.c.l.b16 %v2794
    %v3166 = vunpack.c.h.b16 %v2794
    %v3167 = vunpack.c.l.b16 %v2795
    %v3168 = vunpack.c.h.b16 %v2795
    %v3169 = vunpack.c.l.b16 %v2796
    %v3170 = vunpack.c.h.b16 %v2796
    %v3171 = vunpack.c.l.b16 %v2797
    %v3172 = vunpack.c.h.b16 %v2797
    %v3173 = vunpack.c.l.b16 %v2798
    %v3174 = vunpack.c.h.b16 %v2798
    %v3175 = vunpack.c.l.b16 %v2799
    %v3176 = vunpack.c.h.b16 %v2799
    %v3177 = vunpack.c.l.b16 %v2800
    %v3178 = vunpack.c.h.b16 %v2800
    %v3179 = vunpack.c.l.b16 %v2801
    %v3180 = vunpack.c.h.b16 %v2801
    %v3181 = vunpack.c.l.b16 %v2802
    %v3182 = vunpack.c.h.b16 %v2802
    %v3183 = vunpack.c.l.b16 %v2803
    %v3184 = vunpack.c.h.b16 %v2803
    %v3185 = vunpack.c.l.b16 %v2804
    %v3186 = vunpack.c.h.b16 %v2804
    %v3187 = vunpack.c.l.b16 %v2805
    %v3188 = vunpack.c.h.b16 %v2805
    %v3189 = vunpack.c.l.b16 %v2806
    %v3190 = vunpack.c.h.b16 %v2806
    %v3191 = vunpack.c.l.b16 %v2807
    %v3192 = vunpack.c.h.b16 %v2807
    %v3193 = vunpack.c.l.b16 %v2808
    %v3194 = vunpack.c.h.b16 %v2808
    %v3195 = vunpack.c.l.b16 %v2809
    %v3196 = vunpack.c.h.b16 %v2809
    %v3197 = vunpack.c.l.b16 %v2810
    %v3198 = vunpack.c.h.b16 %v2810
    %v3199 = vunpack.c.l.b16 %v2811
    %v3200 = vunpack.c.h.b16 %v2811
    %v3201 = vunpack.c.l.b16 %v2812
    %v3202 = vunpack.c.h.b16 %v2812
    %v3203 = vunpack.c.l.b16 %v2813
    %v3204 = vunpack.c.h.b16 %v2813
    %v3205 = vunpack.c.l.b16 %v2814
    %v3206 = vunpack.c.h.b16 %v2814
    %v3207 = vunpack.c.l.b16 %v2815
    %v3208 = vunpack.c.h.b16 %v2815
    %v3209 = vunpack.c.l.b16 %v2816
    %v3210 = vunpack.c.h.b16 %v2816
    %v3211 = vunpack.c.l.b16 %v2817
    %v3212 = vunpack.c.h.b16 %v2817
    %v3213 = vunpack.c.l.b16 %v2818
    %v3214 = vunpack.c.h.b16 %v2818
    %v3215 = vpack.c.b16 %v2961, %v2959
    %v3216 = vpack.c.b16 %v2962, %v2960
    %v3217 = vpack.c.b16 %v2965, %v2963
    %v3218 = vpack.c.b16 %v2966, %v2964
    %v3219 = vpack.c.b16 %v2969, %v2967
    %v3220 = vpack.c.b16 %v2970, %v2968
    %v3221 = vpack.c.b16 %v2973, %v2971
    %v3222 = vpack.c.b16 %v2974, %v2972
    %v3223 = vpack.c.b16 %v2977, %v2975
    %v3224 = vpack.c.b16 %v2978, %v2976
    %v3225 = vpack.c.b16 %v2981, %v2979
    %v3226 = vpack.c.b16 %v2982, %v2980
    %v3227 = vpack.c.b16 %v2985, %v2983
    %v3228 = vpack.c.b16 %v2986, %v2984
    %v3229 = vpack.c.b16 %v2989, %v2987
    %v3230 = vpack.c.b16 %v2990, %v2988
    %v3231 = vpack.c.b16 %v2993, %v2991
    %v3232 = vpack.c.b16 %v2994, %v2992
    %v3233 = vpack.c.b16 %v2997, %v2995
    %v3234 = vpack.c.b16 %v2998, %v2996
    %v3235 = vpack.c.b16 %v3001, %v2999
    %v3236 = vpack.c.b16 %v3002, %v3000
    %v3237 = vpack.c.b16 %v3005, %v3003
    %v3238 = vpack.c.b16 %v3006, %v3004
    %v3239 = vpack.c.b16 %v3009, %v3007
    %v3240 = vpack.c.b16 %v3010, %v3008
    %v3241 = vpack.c.b16 %v3013, %v3011
    %v3242 = vpack.c.b16 %v3014, %v3012
    %v3243 = vpack.c.b16 %v3017, %v3015
    %v3244 = vpack.c.b16 %v3018, %v3016
    %v3245 = vpack.c.b16 %v3021, %v3019
    %v3246 = vpack.c.b16 %v3022, %v3020
    %v3247 = vpack.c.b16 %v3025, %v3023
    %v3248 = vpack.c.b16 %v3026, %v3024
    %v3249 = vpack.c.b16 %v3029, %v3027
    %v3250 = vpack.c.b16 %v3030, %v3028
    %v3251 = vpack.c.b16 %v3033, %v3031
    %v3252 = vpack.c.b16 %v3034, %v3032
    %v3253 = vpack.c.b16 %v3037, %v3035
    %v3254 = vpack.c.b16 %v3038, %v3036
    %v3255 = vpack.c.b16 %v3041, %v3039
    %v3256 = vpack.c.b16 %v3042, %v3040
    %v3257 = vpack.c.b16 %v3045, %v3043
    %v3258 = vpack.c.b16 %v3046, %v3044
    %v3259 = vpack.c.b16 %v3049, %v3047
    %v3260 = vpack.c.b16 %v3050, %v3048
    %v3261 = vpack.c.b16 %v3053, %v3051
    %v3262 = vpack.c.b16 %v3054, %v3052
    %v3263 = vpack.c.b16 %v3057, %v3055
    %v3264 = vpack.c.b16 %v3058, %v3056
    %v3265 = vpack.c.b16 %v3061, %v3059
    %v3266 = vpack.c.b16 %v3062, %v3060
    %v3267 = vpack.c.b16 %v3065, %v3063
    %v3268 = vpack.c.b16 %v3066, %v3064
    %v3269 = vpack.c.b16 %v3069, %v3067
    %v3270 = vpack.c.b16 %v3070, %v3068
    %v3271 = vpack.c.b16 %v3073, %v3071
    %v3272 = vpack.c.b16 %v3074, %v3072
    %v3273 = vpack.c.b16 %v3077, %v3075
    %v3274 = vpack.c.b16 %v3078, %v3076
    %v3275 = vpack.c.b16 %v3081, %v3079
    %v3276 = vpack.c.b16 %v3082, %v3080
    %v3277 = vpack.c.b16 %v3085, %v3083
    %v3278 = vpack.c.b16 %v3086, %v3084
    %v3279 = vpack.c.b16 %v3089, %v3087
    %v3280 = vpack.c.b16 %v3090, %v3088
    %v3281 = vpack.c.b16 %v3093, %v3091
    %v3282 = vpack.c.b16 %v3094, %v3092
    %v3283 = vpack.c.b16 %v3097, %v3095
    %v3284 = vpack.c.b16 %v3098, %v3096
    %v3285 = vpack.c.b16 %v3101, %v3099
    %v3286 = vpack.c.b16 %v3102, %v3100
    %v3287 = vpack.c.b16 %v3105, %v3103
    %v3288 = vpack.c.b16 %v3106, %v3104
    %v3289 = vpack.c.b16 %v3109, %v3107
    %v3290 = vpack.c.b16 %v3110, %v3108
    %v3291 = vpack.c.b16 %v3113, %v3111
    %v3292 = vpack.c.b16 %v3114, %v3112
    %v3293 = vpack.c.b16 %v3117, %v3115
    %v3294 = vpack.c.b16 %v3118, %v3116
    %v3295 = vpack.c.b16 %v3121, %v3119
    %v3296 = vpack.c.b16 %v3122, %v3120
    %v3297 = vpack.c.b16 %v3125, %v3123
    %v3298 = vpack.c.b16 %v3126, %v3124
    %v3299 = vpack.c.b16 %v3129, %v3127
    %v3300 = vpack.c.b16 %v3130, %v3128
    %v3301 = vpack.c.b16 %v3133, %v3131
    %v3302 = vpack.c.b16 %v3134, %v3132
    %v3303 = vpack.c.b16 %v3137, %v3135
    %v3304 = vpack.c.b16 %v3138, %v3136
    %v3305 = vpack.c.b16 %v3141, %v3139
    %v3306 = vpack.c.b16 %v3142, %v3140
    %v3307 = vpack.c.b16 %v3145, %v3143
    %v3308 = vpack.c.b16 %v3146, %v3144
    %v3309 = vpack.c.b16 %v3149, %v3147
    %v3310 = vpack.c.b16 %v3150, %v3148
    %v3311 = vpack.c.b16 %v3153, %v3151
    %v3312 = vpack.c.b16 %v3154, %v3152
    %v3313 = vpack.c.b16 %v3157, %v3155
    %v3314 = vpack.c.b16 %v3158, %v3156
    %v3315 = vpack.c.b16 %v3161, %v3159
    %v3316 = vpack.c.b16 %v3162, %v3160
    %v3317 = vpack.c.b16 %v3165, %v3163
    %v3318 = vpack.c.b16 %v3166, %v3164
    %v3319 = vpack.c.b16 %v3169, %v3167
    %v3320 = vpack.c.b16 %v3170, %v3168
    %v3321 = vpack.c.b16 %v3173, %v3171
    %v3322 = vpack.c.b16 %v3174, %v3172
    %v3323 = vpack.c.b16 %v3177, %v3175
    %v3324 = vpack.c.b16 %v3178, %v3176
    %v3325 = vpack.c.b16 %v3181, %v3179
    %v3326 = vpack.c.b16 %v3182, %v3180
    %v3327 = vpack.c.b16 %v3185, %v3183
    %v3328 = vpack.c.b16 %v3186, %v3184
    %v3329 = vpack.c.b16 %v3189, %v3187
    %v3330 = vpack.c.b16 %v3190, %v3188
    %v3331 = vpack.c.b16 %v3193, %v3191
    %v3332 = vpack.c.b16 %v3194, %v3192
    %v3333 = vpack.c.b16 %v3197, %v3195
    %v3334 = vpack.c.b16 %v3198, %v3196
    %v3335 = vpack.c.b16 %v3201, %v3199
    %v3336 = vpack.c.b16 %v3202, %v3200
    %v3337 = vpack.c.b16 %v3205, %v3203
    %v3338 = vpack.c.b16 %v3206, %v3204
    %v3339 = vpack.c.b16 %v3209, %v3207
    %v3340 = vpack.c.b16 %v3210, %v3208
    %v3341 = vpack.c.b16 %v3213, %v3211
    %v3342 = vpack.c.b16 %v3214, %v3212
    %3471 = vmatprep.subr.bf16.mxu0 %v3216
    %3472 = vmatpush1.bf16.msra.mxu0 %v3215
    %3473 = vmatprep.subr.bf16.mxu0 %v3218
    %3474 = vmatpush1.bf16.msra.mxu0 %v3217
    %3475 = vmatprep.subr.bf16.mxu0 %v3220
    %3476 = vmatpush1.bf16.msra.mxu0 %v3219
    %3477 = vmatprep.subr.bf16.mxu0 %v3222
    %3478 = vmatpush1.bf16.msra.mxu0 %v3221
    %3479 = vmatprep.subr.bf16.mxu0 %v3224
    %3480 = vmatpush1.bf16.msra.mxu0 %v3223
    %3481 = vmatprep.subr.bf16.mxu0 %v3226
    %3482 = vmatpush1.bf16.msra.mxu0 %v3225
    %3483 = vmatprep.subr.bf16.mxu0 %v3228
    %3484 = vmatpush1.bf16.msra.mxu0 %v3227
    %3485 = vmatprep.subr.bf16.mxu0 %v3230
    %3486 = vmatpush1.bf16.msra.mxu0 %v3229
    %3487 = vmatprep.subr.bf16.mxu0 %v3232
    %3488 = vmatpush1.bf16.msra.mxu0 %v3231
    %3489 = vmatprep.subr.bf16.mxu0 %v3234
    %3490 = vmatpush1.bf16.msra.mxu0 %v3233
    %3491 = vmatprep.subr.bf16.mxu0 %v3236
    %3492 = vmatpush1.bf16.msra.mxu0 %v3235
    %3493 = vmatprep.subr.bf16.mxu0 %v3238
    %3494 = vmatpush1.bf16.msra.mxu0 %v3237
    %3495 = vmatprep.subr.bf16.mxu0 %v3240
    %3496 = vmatpush1.bf16.msra.mxu0 %v3239
    %3497 = vmatprep.subr.bf16.mxu0 %v3242
    %3498 = vmatpush1.bf16.msra.mxu0 %v3241
    %3499 = vmatprep.subr.bf16.mxu0 %v3244
    %3500 = vmatpush1.bf16.msra.mxu0 %v3243
    %3501 = vmatprep.subr.bf16.mxu0 %v3246
    %3502 = vmatpush1.bf16.msra.mxu0 %v3245
    %3503 = vmatprep.mubr.bf16.mxu0 %v2684
    %3504 = vmatmul.mubr.bf16.gmra.mrb[0].mxu0 %v2683
    %v3505 = vpop.f32.mrb[0].mxu0
    %v3506 = vadd.f32 %v2824, %v3505
    %v3507 = vpop.f32.mrb[0].mxu0
    %v3508 = vadd.f32 %v2828, %v3507
    %v3509 = vpop.f32.mrb[0].mxu0
    %v3510 = vpop.f32.mrb[0].mxu0
    %3511 = vdwg.mxu0
    %3512 = vmatprep.subr.bf16.mxu0 %v3248
    %3513 = vmatpush1.bf16.msra.mxu0 %v3247
    %3514 = vmatprep.subr.bf16.mxu0 %v3250
    %3515 = vmatpush1.bf16.msra.mxu0 %v3249
    %3516 = vmatprep.subr.bf16.mxu0 %v3252
    %3517 = vmatpush1.bf16.msra.mxu0 %v3251
    %3518 = vmatprep.subr.bf16.mxu0 %v3254
    %3519 = vmatpush1.bf16.msra.mxu0 %v3253
    %3520 = vmatprep.subr.bf16.mxu0 %v3256
    %3521 = vmatpush1.bf16.msra.mxu0 %v3255
    %3522 = vmatprep.subr.bf16.mxu0 %v3258
    %3523 = vmatpush1.bf16.msra.mxu0 %v3257
    %3524 = vmatprep.subr.bf16.mxu0 %v3260
    %3525 = vmatpush1.bf16.msra.mxu0 %v3259
    %3526 = vmatprep.subr.bf16.mxu0 %v3262
    %3527 = vmatpush1.bf16.msra.mxu0 %v3261
    %3528 = vmatprep.subr.bf16.mxu0 %v3264
    %3529 = vmatpush1.bf16.msra.mxu0 %v3263
    %3530 = vmatprep.subr.bf16.mxu0 %v3266
    %3531 = vmatpush1.bf16.msra.mxu0 %v3265
    %3532 = vmatprep.subr.bf16.mxu0 %v3268
    %3533 = vmatpush1.bf16.msra.mxu0 %v3267
    %3534 = vmatprep.subr.bf16.mxu0 %v3270
    %3535 = vmatpush1.bf16.msra.mxu0 %v3269
    %3536 = vmatprep.subr.bf16.mxu0 %v3272
    %3537 = vmatpush1.bf16.msra.mxu0 %v3271
    %3538 = vmatprep.subr.bf16.mxu0 %v3274
    %3539 = vmatpush1.bf16.msra.mxu0 %v3273
    %3540 = vmatprep.subr.bf16.mxu0 %v3276
    %3541 = vmatpush1.bf16.msra.mxu0 %v3275
    %3542 = vmatprep.subr.bf16.mxu0 %v3278
    %3543 = vmatpush1.bf16.msra.mxu0 %v3277
    %3544 = vmatprep.mubr.bf16.mxu0 %v2686
    %3545 = vmatmul.mubr.bf16.gmra.mrb[0].mxu0 %v2685
    %v3546 = vpop.f32.mrb[0].mxu0
    %v3547 = vadd.f32 %v3506, %v3546
    %v3548 = vpop.f32.mrb[0].mxu0
    %v3549 = vadd.f32 %v3508, %v3548
    %v3550 = vpop.f32.mrb[0].mxu0
    %v3551 = vpop.f32.mrb[0].mxu0
    %3552 = vdwg.mxu0
    %3553 = vmatprep.subr.bf16.mxu0 %v3280
    %3554 = vmatpush1.bf16.msra.mxu0 %v3279
    %3555 = vmatprep.subr.bf16.mxu0 %v3282
    %3556 = vmatpush1.bf16.msra.mxu0 %v3281
    %3557 = vmatprep.subr.bf16.mxu0 %v3284
    %3558 = vmatpush1.bf16.msra.mxu0 %v3283
    %3559 = vmatprep.subr.bf16.mxu0 %v3286
    %3560 = vmatpush1.bf16.msra.mxu0 %v3285
    %3561 = vmatprep.subr.bf16.mxu0 %v3288
    %3562 = vmatpush1.bf16.msra.mxu0 %v3287
    %3563 = vmatprep.subr.bf16.mxu0 %v3290
    %3564 = vmatpush1.bf16.msra.mxu0 %v3289
    %3565 = vmatprep.subr.bf16.mxu0 %v3292
    %3566 = vmatpush1.bf16.msra.mxu0 %v3291
    %3567 = vmatprep.subr.bf16.mxu0 %v3294
    %3568 = vmatpush1.bf16.msra.mxu0 %v3293
    %3569 = vmatprep.subr.bf16.mxu0 %v3296
    %3570 = vmatpush1.bf16.msra.mxu0 %v3295
    %3571 = vmatprep.subr.bf16.mxu0 %v3298
    %3572 = vmatpush1.bf16.msra.mxu0 %v3297
    %3573 = vmatprep.subr.bf16.mxu0 %v3300
    %3574 = vmatpush1.bf16.msra.mxu0 %v3299
    %3575 = vmatprep.subr.bf16.mxu0 %v3302
    %3576 = vmatpush1.bf16.msra.mxu0 %v3301
    %3577 = vmatprep.subr.bf16.mxu0 %v3304
    %3578 = vmatpush1.bf16.msra.mxu0 %v3303
    %3579 = vmatprep.subr.bf16.mxu0 %v3306
    %3580 = vmatpush1.bf16.msra.mxu0 %v3305
    %3581 = vmatprep.subr.bf16.mxu0 %v3308
    %3582 = vmatpush1.bf16.msra.mxu0 %v3307
    %3583 = vmatprep.subr.bf16.mxu0 %v3310
    %3584 = vmatpush1.bf16.msra.mxu0 %v3309
    %3585 = vmatprep.mubr.bf16.mxu0 %v2688
    %3586 = vmatmul.mubr.bf16.gmra.mrb[0].mxu0 %v2687
    %v3587 = vpop.f32.mrb[0].mxu0
    %v3588 = vadd.f32 %v3547, %v3587
    %v3589 = vpop.f32.mrb[0].mxu0
    %v3590 = vadd.f32 %v3549, %v3589
    %v3591 = vpop.f32.mrb[0].mxu0
    %v3592 = vpop.f32.mrb[0].mxu0
    %3593 = vdwg.mxu0
    %3594 = vmatprep.subr.bf16.mxu0 %v3312
    %3595 = vmatpush1.bf16.msra.mxu0 %v3311
    %3596 = vmatprep.subr.bf16.mxu0 %v3314
    %3597 = vmatpush1.bf16.msra.mxu0 %v3313
    %3598 = vmatprep.subr.bf16.mxu0 %v3316
    %3599 = vmatpush1.bf16.msra.mxu0 %v3315
    %3600 = vmatprep.subr.bf16.mxu0 %v3318
    %3601 = vmatpush1.bf16.msra.mxu0 %v3317
    %3602 = vmatprep.subr.bf16.mxu0 %v3320
    %3603 = vmatpush1.bf16.msra.mxu0 %v3319
    %3604 = vmatprep.subr.bf16.mxu0 %v3322
    %3605 = vmatpush1.bf16.msra.mxu0 %v3321
    %3606 = vmatprep.subr.bf16.mxu0 %v3324
    %3607 = vmatpush1.bf16.msra.mxu0 %v3323
    %3608 = vmatprep.subr.bf16.mxu0 %v3326
    %3609 = vmatpush1.bf16.msra.mxu0 %v3325
    %3610 = vmatprep.subr.bf16.mxu0 %v3328
    %3611 = vmatpush1.bf16.msra.mxu0 %v3327
    %3612 = vmatprep.subr.bf16.mxu0 %v3330
    %3613 = vmatpush1.bf16.msra.mxu0 %v3329
    %3614 = vmatprep.subr.bf16.mxu0 %v3332
    %3615 = vmatpush1.bf16.msra.mxu0 %v3331
    %3616 = vmatprep.subr.bf16.mxu0 %v3334
    %3617 = vmatpush1.bf16.msra.mxu0 %v3333
    %3618 = vmatprep.subr.bf16.mxu0 %v3336
    %3619 = vmatpush1.bf16.msra.mxu0 %v3335
    %3620 = vmatprep.subr.bf16.mxu0 %v3338
    %3621 = vmatpush1.bf16.msra.mxu0 %v3337
    %3622 = vmatprep.subr.bf16.mxu0 %v3340
    %3623 = vmatpush1.bf16.msra.mxu0 %v3339
    %3624 = vmatprep.subr.bf16.mxu0 %v3342
    %3625 = vmatpush1.bf16.msra.mxu0 %v3341
    %3626 = vmatprep.mubr.bf16.mxu0 %v2690
    %3627 = vmatmul.mubr.bf16.gmra.mrb[0].mxu0 %v2689
    %v3628 = vpop.f32.mrb[0].mxu0
    %v3629 = vadd.f32 %v3588, %v3628
    %v3630 = vpop.f32.mrb[0].mxu0
    %v3631 = vadd.f32 %v3590, %v3630
    %v3632 = vpop.f32.mrb[0].mxu0
    %v3633 = vpop.f32.mrb[0].mxu0
    %3634 = vdwg.mxu0
    %v3635 = vmax.f32 %v3629, 0.0
    %v3636 = vmax.f32 %v3631, 0.0
    %v3637 = vand.u32 2147483647, %v3629
    %v3638 = vand.u32 2147483647, %v3631
    %v3639 = vsub.f32 0.0, %v3637
    %v3640 = vsub.f32 0.0, %v3638
    %v3641 = vmul.f32 %v3639, 1.442695
    %v3642 = vpow.pop %v3641
    %v3643 = vmul.f32 %v3640, 1.442695
    %v3644 = vpow.pop %v3643
    %v3645 = vadd.f32 %v3642, 1.0
    %v3646 = vlog2.pop %v3645
    %v3647 = vmul.f32 %v3646, 0.6931472
    %v3648 = vmul.f32 -0.5, %v3642
    %v3649 = vadd.f32 %v3648, 1.0
    %v3650 = vmul.f32 %v3649, %v3642
    %v3651 = vand.u32 2147483647, %v3642
    %vm3652 = vcmp.lt.f32.partialorder %v3651, 0.0004427343
    %v3653 = vsel %vm3652, %v3650, %v3647
    %v3654 = vadd.f32 %v3644, 1.0
    %v3655 = vlog2.pop %v3654
    %v3656 = vmul.f32 %v3655, 0.6931472
    %v3657 = vmul.f32 -0.5, %v3644
    %v3658 = vadd.f32 %v3657, 1.0
    %v3659 = vmul.f32 %v3658, %v3644
    %v3660 = vand.u32 2147483647, %v3644
    %vm3661 = vcmp.lt.f32.partialorder %v3660, 0.0004427343
    %v3662 = vsel %vm3661, %v3659, %v3656
    %v3663 = vadd.f32 %v3635, %v3653
    %v3664 = vadd.f32 %v3636, %v3662
    %3665 = vst [vmem:[#allocation16] sm:$0xff] %v3663
    %3666 = vst [vmem:[#allocation16 + $0x8] sm:$0xff] %v3664
    // Predicated region
    $region86: #{tpu_custom_call.1} parent=1 // pred_check
      _
    $region87: #{tpu_custom_call.1} parent=1 // pred_check_branch
      %3668 = sbr.rel (0) target = $region89
    $region88: #{tpu_custom_call.1} parent=1 // pred_region
      %s3670 = ssub.s32 256, 256
      %3671 = vsyncadd [#allocation4], %s3670
      %s3673 = sshll.u32 [#allocation16], 4
      %s3674 = int_to_ptr.vmem [resolvable:$true] %s3673
      %3676 = dma.vmem_to_hbm [thread:$0]  %s3674, 256, %s13, [#allocation4]
    $region89: #{tpu_custom_call.1} parent=1 // pred_fallthru
      _
    // Predicated region
    $region90: #{tpu_custom_call.1} parent=1 // pred_check
      _
    $region91: #{tpu_custom_call.1} parent=1 // pred_check_branch
      %3678 = sbr.rel (0) target = $region93
    $region92: #{tpu_custom_call.1} parent=1 // pred_region
      %3679 = dma.done [#allocation4], 256
    $region93: #{tpu_custom_call.1} parent=1 // pred_fallthru
      _
    %3680 = vsyncpa [#allocation3], 1
    %3681 = vsyncpa [#allocation6], 1
    %3682 = vsyncpa [#allocation9], 1
    %3683 = vsyncpa [#allocation12], 1
    %3684 = vsyncpa [#allocation15], 1
    %3685 = vsyncpa [#allocation4], 1

</llo_original>
